<compile_context>
chip_gen: v7x
topology: tpu7x:2x2x1
jax: 0.10.0
libtpu: 0.0.40
codegen_flags: <defaults>
</compile_context>

<pallas_src>
import math

import jax
import jax.numpy as jnp
from jax import lax
from jax.experimental import pallas as pl
from jax.experimental.pallas import tpu as pltpu


def _make_encoder_kernel(num_heads, head_dim, block_kv, ffn_chunk, eps,
                         compute_dtype):
    def kernel(xq_ref, xf_ref,
               wq_ref, bq_ref, wkv_ref, bkv_ref, wo_ref, bo_ref,
               g1_ref, be1_ref,
               w1_ref, b1_ref, w2_ref, b2_ref,
               g2_ref, be2_ref,
               out_ref,
               k_scr, v_scr, q_scr, ctx_scr):
        f32 = jnp.float32
        cdt = compute_dtype
        nh, hd = num_heads, head_dim
        d_model = wq_ref.shape[0]
        tq = xq_ref.shape[1]
        seq = xf_ref.shape[1]
        tkv = block_kv

        # head-batched matmuls: batch dim 0, contract last dim of lhs.
        def bdot(a, b):            # (h,m,k) x (h,k,n) -> (h,m,n)
            return lax.dot_general(a, b, (((2,), (1,)), ((0,), (0,))),
                                   preferred_element_type=f32)

        def bdot_kt(a, b):         # (h,m,k) x (h,n,k) -> (h,m,n)  (k untransposed)
            return lax.dot_general(a, b, (((2,), (2,)), ((0,), (0,))),
                                   preferred_element_type=f32)

        # ---- K/V for the whole sequence: full-width (tkv, D) x (D, 2D)
        # matmuls, computed once per batch element (query-block 0), split per
        # head into VMEM scratch that stays resident for all later q-blocks.
        # NOTE: scratch reuse is only correct because the query-block grid
        # axis is the innermost, sequential ("arbitrary") axis.
        @pl.when(pl.program_id(1) == 0)
        def _():
            for s0 in range(0, seq, tkv):
                xc = xf_ref[0, s0:s0 + tkv, :]                     # bf16 (tkv, D)
                kv = jnp.dot(xc, wkv_ref[...],
                             preferred_element_type=f32) + bkv_ref[...]
                kv = kv.astype(cdt)                                # (tkv, 2D)
                for h in range(nh):
                    k_scr[h, s0:s0 + tkv, :] = kv[:, h * hd:(h + 1) * hd]
                    v_scr[h, s0:s0 + tkv, :] = kv[:, d_model + h * hd:
                                                  d_model + (h + 1) * hd]

        x_res = xq_ref[0]                                          # (TQ, D) fp32 residual

        # ---- Q projection: one full-width matmul (1/sqrt(hd) folded into
        # wq/bq on the host), then split per head into (NH, TQ, hd) scratch.
        q_full = jnp.dot(x_res.astype(cdt), wq_ref[...],
                         preferred_element_type=f32) + bq_ref[...]
        q_full = q_full.astype(cdt)
        for h in range(nh):
            q_scr[h] = q_full[:, h * hd:(h + 1) * hd]
        qh = q_scr[...]                                            # (NH, TQ, hd)

        # ---- attention with online softmax over KV chunks (bounds the live
        # (NH, TQ, tkv) fp32 score tile); mask=False => no masking.
        m_i = jnp.full((nh, tq, 1), -jnp.inf, f32)
        l_i = jnp.zeros((nh, tq, 1), f32)
        acc = jnp.zeros((nh, tq, hd), f32)
        for c0 in range(0, seq, tkv):
            k_c = k_scr[:, c0:c0 + tkv, :]
            v_c = v_scr[:, c0:c0 + tkv, :]
            s = bdot_kt(qh, k_c)                                   # (NH, TQ, tkv) fp32
            m_new = jnp.maximum(m_i, jnp.max(s, axis=-1, keepdims=True))
            alpha = jnp.exp(m_i - m_new)
            p = jnp.exp(s - m_new)
            l_i = alpha * l_i + jnp.sum(p, axis=-1, keepdims=True)
            acc = alpha * acc + bdot(p.astype(cdt), v_c)
            m_i = m_new
        ctx = (acc * pl.reciprocal(l_i, approx=True)).astype(cdt)  # (NH, TQ, hd)

        # ---- fused output projection: merge heads into a lane-dense (TQ, D)
        # tile, then a single K=D matmul (no per-head matmuls, no head sum).
        for h in range(nh):
            ctx_scr[:, h * hd:(h + 1) * hd] = ctx[h]
        attn = jnp.dot(ctx_scr[...], wo_ref[...],
                       preferred_element_type=f32) + bo_ref[...]   # (TQ, D) fp32

        # dropout1: identity (inference)
        h1 = attn + x_res

        # ---- LayerNorm 1 (biased variance, fp32 stats)
        mean1 = jnp.mean(h1, axis=-1, keepdims=True)
        var1 = jnp.mean((h1 - mean1) ** 2, axis=-1, keepdims=True)
        y1 = (h1 - mean1) * lax.rsqrt(var1 + eps)
        y1 = g1_ref[...] * y1 + be1_ref[...]

        # ---- position-wise FFN, chunked over the (zero-padded) hidden dim
        hidden = w1_ref.shape[1]
        fc = ffn_chunk
        y1c = y1.astype(cdt)
        ffn = jnp.zeros((tq, d_model), f32)
        for c0 in range(0, hidden, fc):                            # static, 128-aligned chunks
            f = jnp.dot(y1c, w1_ref[:, c0:c0 + fc],
                        preferred_element_type=f32) + b1_ref[:, c0:c0 + fc]
            f = jnp.maximum(f, 0.0).astype(cdt)                    # relu (dropout: identity)
            ffn = ffn + jnp.dot(f, w2_ref[c0:c0 + fc, :],
                                preferred_element_type=f32)
        ffn = ffn + b2_ref[...]

        # dropout2: identity (inference)
        h2 = ffn + y1

        # ---- LayerNorm 2
        mean2 = jnp.mean(h2, axis=-1, keepdims=True)
        var2 = jnp.mean((h2 - mean2) ** 2, axis=-1, keepdims=True)
        y2 = (h2 - mean2) * lax.rsqrt(var2 + eps)
        out_ref[0] = (g2_ref[...] * y2 + be2_ref[...]).astype(out_ref.dtype)

    return kernel


def encoder_layer_pallas(x, params, num_heads, *, block_q=256, block_kv=512,
                         ffn_chunk=512, compute_dtype=jnp.bfloat16, eps=1e-5):
    """x: (B, S, D) float32. params: dict in the PyTorch-equivalent layout."""
    B, S, D = x.shape
    assert D % num_heads == 0
    hd = D // num_heads
    f32 = jnp.float32

    def _fit(tile, extent):
        tile = min(tile, extent)
        if extent % tile != 0:
            tile = math.gcd(extent, tile)
            if tile < 8:
                tile = extent
        return tile

    # v6e/v5e: prefer block_q 256-512 (128 MiB VMEM); v7x: keep <=256.
    block_q = _fit(block_q, S)
    block_kv = _fit(block_kv, S)

    # --- repack weights for full-width, lane-dense matmuls (host side).
    # wqkv columns are head-major [q_h | k_h | v_h] (matches the module's
    # reshape->permute->chunk); wo rows are head-major concat of head outputs.
    # TODO(synk): torch.nn.MultiheadAttention uses a row-stacked [Wq;Wk;Wv]
    # in_proj layout instead; this repack matches the tutorial-style module.
    scale = 1.0 / math.sqrt(hd)
    w3 = params["wqkv"].reshape(D, num_heads, 3, hd)
    b3 = params["bqkv"].reshape(num_heads, 3, hd)
    wq = (w3[:, :, 0, :].reshape(D, D) * scale).astype(compute_dtype)   # (D, D)
    bq = (b3[:, 0, :].reshape(1, D) * scale).astype(f32)
    wkv = jnp.concatenate([w3[:, :, 1, :].reshape(D, D),
                           w3[:, :, 2, :].reshape(D, D)],
                          axis=1).astype(compute_dtype)                 # (D, 2D)
    bkv = jnp.concatenate([b3[:, 1, :].reshape(1, D),
                           b3[:, 2, :].reshape(1, D)], axis=1).astype(f32)
    wo = params["wo"].astype(compute_dtype)                             # (D, D)
    bo = params["bo"].reshape(1, D).astype(f32)

    # --- FFN: pad hidden to a 128-aligned multiple of the chunk size.
    # Zero-padded w1/b1 columns and w2 rows => padded lanes contribute exactly 0.
    H = params["w1"].shape[1]
    fc = max(128, min(ffn_chunk, ((H + 127) // 128) * 128))
    fc = (fc // 128) * 128
    Hp = ((H + fc - 1) // fc) * fc
    w1 = jnp.zeros((D, Hp), f32).at[:, :H].set(params["w1"]).astype(compute_dtype)
    b1 = jnp.zeros((1, Hp), f32).at[:, :H].set(params["b1"].reshape(1, H))
    w2 = jnp.zeros((Hp, D), f32).at[:H, :].set(params["w2"]).astype(compute_dtype)
    b2 = params["b2"].reshape(1, D).astype(f32)

    weight_args = [
        wq, bq, wkv, bkv, wo, bo,
        params["gamma1"].reshape(1, D).astype(f32),
        params["beta1"].reshape(1, D).astype(f32),
        w1, b1, w2, b2,
        params["gamma2"].reshape(1, D).astype(f32),
        params["beta2"].reshape(1, D).astype(f32),
    ]

    xq_in = x                                   # fp32: query block + residual
    xf_in = x.astype(compute_dtype)             # bf16 full-seq copy for K/V source

    kernel = _make_encoder_kernel(num_heads, hd, block_kv, fc, eps, compute_dtype)

    # --- VMEM budget estimate (weights + resident scratch + pipelined I/O + workspace).
    bpe = jnp.dtype(compute_dtype).itemsize
    w_bytes = sum(int(a.size) * a.dtype.itemsize for a in weight_args)
    scratch_bytes = 2 * S * D * bpe + 2 * block_q * D * bpe
    io_bytes = 2 * 2 * (block_q * D * 4) + 2 * (S * D * bpe)
    work_bytes = 3 * num_heads * block_q * block_kv * 4 + 4 * block_q * max(fc, D) * 4
    vmem_bytes = int(min(max(2 * w_bytes + scratch_bytes + io_bytes + work_bytes
                             + (8 << 20), 32 << 20), 110 << 20))

    def _call(single_buffer_weights):
        def full_spec(p):
            idx = lambda b, q, n=p.ndim: (0,) * n
            if single_buffer_weights:
                # grid-invariant weights: no double-buffering (saves ~w_bytes of VMEM)
                return pl.BlockSpec(p.shape, idx, pipeline_mode=pl.Buffered(1))
            return pl.BlockSpec(p.shape, idx)

        grid_spec = pltpu.PrefetchScalarGridSpec(
            num_scalar_prefetch=0,
            grid=(B, S // block_q),
            in_specs=(
                [pl.BlockSpec((1, block_q, D), lambda b, q: (b, q, 0)),   # query block (fp32)
                 pl.BlockSpec((1, S, D), lambda b, q: (b, 0, 0))]          # full seq (bf16)
                + [full_spec(p) for p in weight_args]),
            out_specs=pl.BlockSpec((1, block_q, D), lambda b, q: (b, q, 0)),
            scratch_shapes=[
                pltpu.VMEM((num_heads, S, hd), compute_dtype),        # K (resident per batch elem)
                pltpu.VMEM((num_heads, S, hd), compute_dtype),        # V
                pltpu.VMEM((num_heads, block_q, hd), compute_dtype),  # Q head-split
                pltpu.VMEM((block_q, D), compute_dtype),              # merged attention heads
            ],
        )
        return pl.pallas_call(
            kernel,
            out_shape=jax.ShapeDtypeStruct((B, S, D), jnp.float32),
            grid_spec=grid_spec,
            compiler_params=pltpu.CompilerParams(
                # batch axis shards across TensorCores; the query-block axis
                # MUST stay the innermost "arbitrary" axis: K/V scratch is
                # filled at q-block 0 and reused by later blocks of that
                # batch element.
                # TODO(synk): for B < num TensorCores on v7x, split the
                # q-block range per core instead (one core idles otherwise).
                dimension_semantics=("parallel", "arbitrary"),
                vmem_limit_bytes=vmem_bytes),
        )(xq_in, xf_in, *weight_args)

    try:
        return _call(True)
    except Exception:
        # TODO(synk): pipeline_mode=pl.Buffered(1) unsupported by this JAX
        # version -> fall back to default double-buffered weight specs.
        return _call(False)


def encoder_layer_ref(x, params, num_heads, eps=1e-5):
    """Pure-JAX fp32 reference mirroring the PyTorch forward."""
    B, S, D = x.shape
    hd = D // num_heads
    qkv = x @ params["wqkv"] + params["bqkv"][0]                 # (B, S, 3D)
    qkv = qkv.reshape(B, S, num_heads, 3 * hd).transpose(0, 2, 1, 3)
    q, k, v = jnp.split(qkv, 3, axis=-1)                         # (B, H, S, hd)
    scores = jnp.einsum("bhqd,bhkd->bhqk", q, k) / math.sqrt(hd)
    p = jax.nn.softmax(scores, axis=-1)
    vals = jnp.einsum("bhqk,bhkd->bhqd", p, v)
    vals = vals.transpose(0, 2, 1, 3).reshape(B, S, D)
    attn = vals @ params["wo"] + params["bo"][0]

    def ln(z, g, b):
        m = jnp.mean(z, axis=-1, keepdims=True)
        vv = jnp.mean((z - m) ** 2, axis=-1, keepdims=True)
        return g[0] * ((z - m) / jnp.sqrt(vv + eps)) + b[0]

    y1 = ln(attn + x, params["gamma1"], params["beta1"])
    f = jnp.maximum(y1 @ params["w1"] + params["b1"][0], 0.0)
    f = f @ params["w2"] + params["b2"][0]
    return ln(f + y1, params["gamma2"], params["beta2"])


def init_params(key, d_model, ffn_hidden):
    ks = jax.random.split(key, 6)
    s = 0.02
    return {
        "wqkv": s * jax.random.normal(ks[0], (d_model, 3 * d_model), jnp.float32),
        "bqkv": jnp.zeros((1, 3 * d_model), jnp.float32),
        "wo":   s * jax.random.normal(ks[1], (d_model, d_model), jnp.float32),
        "bo":   jnp.zeros((1, d_model), jnp.float32),
        "gamma1": jnp.ones((1, d_model), jnp.float32),
        "beta1":  jnp.zeros((1, d_model), jnp.float32),
        "w1":   s * jax.random.normal(ks[2], (d_model, ffn_hidden), jnp.float32),
        "b1":   0.01 * jnp.ones((1, ffn_hidden), jnp.float32),
        "w2":   s * jax.random.normal(ks[3], (ffn_hidden, d_model), jnp.float32),
        "b2":   0.01 * jnp.ones((1, d_model), jnp.float32),
        "gamma2": jnp.ones((1, d_model), jnp.float32),
        "beta2":  jnp.zeros((1, d_model), jnp.float32),
    }


if __name__ == "__main__":
    # Small, lane-aligned shapes consistent with the module:
    # (batch, seq, d_model) with d_model multiple of 128, seq multiple of 8.
    B, S, D, H, NUM_HEADS = 2, 64, 128, 256, 4

    key = jax.random.PRNGKey(0)
    kx, kp = jax.random.split(key)
    x = jax.random.normal(kx, (B, S, D), jnp.float32)
    params = init_params(kp, d_model=D, ffn_hidden=H)

    # block_q=32 exercises the multi-query-block / resident-K,V-scratch path.
    out = encoder_layer_pallas(x, params, NUM_HEADS, block_q=32)
    out = jax.block_until_ready(out)

    ref = encoder_layer_ref(x, params, NUM_HEADS)
    assert out.shape == (B, S, D)
    # bf16 matmuls (fp32 accumulation, fp32 softmax/LN stats) vs a pure-fp32
    # reference -> tolerance at the bf16 error floor.
    max_err = float(jnp.max(jnp.abs(out - ref)))
    assert jnp.allclose(out, ref, atol=2e-2, rtol=2e-2), \
        f"mismatch vs reference (max abs err {max_err})"

    print("KERNEL_OK")
</pallas_src>

<mosaic_0001>
module attributes {stable_mosaic.version = 11 : i64} {
  func.func @kernel(%arg0: i32, %arg1: i32, %arg2: memref<1x32x128xf32, #tpu.memory_space<vmem>>, %arg3: memref<1x64x128xbf16, #tpu.memory_space<vmem>>, %arg4: memref<128x128xbf16, #tpu.memory_space<vmem>>, %arg5: memref<1x128xf32, #tpu.memory_space<vmem>>, %arg6: memref<128x256xbf16, #tpu.memory_space<vmem>>, %arg7: memref<1x256xf32, #tpu.memory_space<vmem>>, %arg8: memref<128x128xbf16, #tpu.memory_space<vmem>>, %arg9: memref<1x128xf32, #tpu.memory_space<vmem>>, %arg10: memref<1x128xf32, #tpu.memory_space<vmem>>, %arg11: memref<1x128xf32, #tpu.memory_space<vmem>>, %arg12: memref<128x256xbf16, #tpu.memory_space<vmem>>, %arg13: memref<1x256xf32, #tpu.memory_space<vmem>>, %arg14: memref<256x128xbf16, #tpu.memory_space<vmem>>, %arg15: memref<1x128xf32, #tpu.memory_space<vmem>>, %arg16: memref<1x128xf32, #tpu.memory_space<vmem>>, %arg17: memref<1x128xf32, #tpu.memory_space<vmem>>, %arg18: memref<1x32x128xf32, #tpu.memory_space<vmem>>, %arg19: memref<4x64x32xbf16, #tpu.memory_space<vmem>>, %arg20: memref<4x64x32xbf16, #tpu.memory_space<vmem>>, %arg21: memref<4x32x32xbf16, #tpu.memory_space<vmem>>, %arg22: memref<32x128xbf16, #tpu.memory_space<vmem>>) attributes {dimension_semantics = [#tpu.dimension_semantics<parallel>, #tpu.dimension_semantics<arbitrary>], iteration_bounds = array<i64: 2, 2>, scalar_prefetch = 0 : i64, scratch_operands = 4 : i64, tpu.core_type = #tpu.core_type<tc>, window_params = [{transform_indices = @transform_0, window_bounds = array<i64: 1, 32, 128>}, {transform_indices = @transform_1, window_bounds = array<i64: 1, 64, 128>}, {pipeline_mode = #tpu.pipeline_mode<synchronous>, transform_indices = @transform_2, window_bounds = array<i64: 128, 128>}, {pipeline_mode = #tpu.pipeline_mode<synchronous>, transform_indices = @transform_3, window_bounds = array<i64: 1, 128>}, {pipeline_mode = #tpu.pipeline_mode<synchronous>, transform_indices = @transform_4, window_bounds = array<i64: 128, 256>}, {pipeline_mode = #tpu.pipeline_mode<synchronous>, transform_indices = @transform_5, window_bounds = array<i64: 1, 256>}, {pipeline_mode = #tpu.pipeline_mode<synchronous>, transform_indices = @transform_6, window_bounds = array<i64: 128, 128>}, {pipeline_mode = #tpu.pipeline_mode<synchronous>, transform_indices = @transform_7, window_bounds = array<i64: 1, 128>}, {pipeline_mode = #tpu.pipeline_mode<synchronous>, transform_indices = @transform_8, window_bounds = array<i64: 1, 128>}, {pipeline_mode = #tpu.pipeline_mode<synchronous>, transform_indices = @transform_9, window_bounds = array<i64: 1, 128>}, {pipeline_mode = #tpu.pipeline_mode<synchronous>, transform_indices = @transform_10, window_bounds = array<i64: 128, 256>}, {pipeline_mode = #tpu.pipeline_mode<synchronous>, transform_indices = @transform_11, window_bounds = array<i64: 1, 256>}, {pipeline_mode = #tpu.pipeline_mode<synchronous>, transform_indices = @transform_12, window_bounds = array<i64: 256, 128>}, {pipeline_mode = #tpu.pipeline_mode<synchronous>, transform_indices = @transform_13, window_bounds = array<i64: 1, 128>}, {pipeline_mode = #tpu.pipeline_mode<synchronous>, transform_indices = @transform_14, window_bounds = array<i64: 1, 128>}, {pipeline_mode = #tpu.pipeline_mode<synchronous>, transform_indices = @transform_15, window_bounds = array<i64: 1, 128>}, {transform_indices = @transform_16, window_bounds = array<i64: 1, 32, 128>}]} {
    %c0_i32 = arith.constant 0 : i32
    %0 = arith.cmpi eq, %arg1, %c0_i32 : i32
    %1 = arith.extui %0 : i1 to i32
    %c0_i32_0 = arith.constant 0 : i32
    %2 = arith.cmpi ne, %1, %c0_i32_0 : i32
    scf.if %2 {
      %c0_77 = arith.constant 0 : index
      %c0_78 = arith.constant 0 : index
      %c0_79 = arith.constant 0 : index
      %143 = vector.load %arg3[%c0_77, %c0_78, %c0_79] : memref<1x64x128xbf16, #tpu.memory_space<vmem>>, vector<1x64x128xbf16>
      %144 = vector.shape_cast %143 : vector<1x64x128xbf16> to vector<64x128xbf16>
      %c0_80 = arith.constant 0 : index
      %c0_81 = arith.constant 0 : index
      %145 = vector.load %arg6[%c0_80, %c0_81] : memref<128x256xbf16, #tpu.memory_space<vmem>>, vector<128x256xbf16>
      %cst_82 = arith.constant dense<0.000000e+00> : vector<64x256xf32>
      %146 = tpu.matmul %144, %145, %cst_82 {dimension_numbers = #tpu.dot_dimension_numbers<[1], [0], [0], [1], [0, 0, 1, 1], [], []>} : vector<64x128xbf16>, vector<128x256xbf16>, vector<64x256xf32> -> vector<64x256xf32>
      %c0_83 = arith.constant 0 : index
      %c0_84 = arith.constant 0 : index
      %147 = vector.load %arg7[%c0_83, %c0_84] : memref<1x256xf32, #tpu.memory_space<vmem>>, vector<1x256xf32>
      %148 = vector.broadcast %147 : vector<1x256xf32> to vector<64x256xf32>
      %149 = arith.addf %146, %148 : vector<64x256xf32>
      %150 = arith.truncf %149 : vector<64x256xf32> to vector<64x256xbf16>
      %151 = vector.extract_strided_slice %150 {offsets = [0, 0], sizes = [64, 32], strides = [1, 1]} : vector<64x256xbf16> to vector<64x32xbf16>
      %c0_85 = arith.constant 0 : index
      %c0_86 = arith.constant 0 : index
      %c0_87 = arith.constant 0 : index
      %152 = vector.load %arg19[%c0_85, %c0_86, %c0_87] : memref<4x64x32xbf16, #tpu.memory_space<vmem>>, vector<1x64x32xbf16>
      %153 = vector.shape_cast %152 : vector<1x64x32xbf16> to vector<64x32xbf16>
      %154 = vector.shape_cast %151 : vector<64x32xbf16> to vector<1x64x32xbf16>
      tpu.vector_store %arg19[%c0_85, %c0_86, %c0_87], %154 {strides = array<i32>} : memref<4x64x32xbf16, #tpu.memory_space<vmem>>, vector<1x64x32xbf16>,
      %155 = vector.extract_strided_slice %150 {offsets = [0, 128], sizes = [64, 32], strides = [1, 1]} : vector<64x256xbf16> to vector<64x32xbf16>
      %c0_88 = arith.constant 0 : index
      %c0_89 = arith.constant 0 : index
      %c0_90 = arith.constant 0 : index
      %156 = vector.load %arg20[%c0_88, %c0_89, %c0_90] : memref<4x64x32xbf16, #tpu.memory_space<vmem>>, vector<1x64x32xbf16>
      %157 = vector.shape_cast %156 : vector<1x64x32xbf16> to vector<64x32xbf16>
      %158 = vector.shape_cast %155 : vector<64x32xbf16> to vector<1x64x32xbf16>
      tpu.vector_store %arg20[%c0_88, %c0_89, %c0_90], %158 {strides = array<i32>} : memref<4x64x32xbf16, #tpu.memory_space<vmem>>, vector<1x64x32xbf16>,
      %159 = vector.extract_strided_slice %150 {offsets = [0, 32], sizes = [64, 32], strides = [1, 1]} : vector<64x256xbf16> to vector<64x32xbf16>
      %c1_91 = arith.constant 1 : index
      %c0_92 = arith.constant 0 : index
      %c0_93 = arith.constant 0 : index
      %160 = vector.load %arg19[%c1_91, %c0_92, %c0_93] : memref<4x64x32xbf16, #tpu.memory_space<vmem>>, vector<1x64x32xbf16>
      %161 = vector.shape_cast %160 : vector<1x64x32xbf16> to vector<64x32xbf16>
      %162 = vector.shape_cast %159 : vector<64x32xbf16> to vector<1x64x32xbf16>
      tpu.vector_store %arg19[%c1_91, %c0_92, %c0_93], %162 {strides = array<i32>} : memref<4x64x32xbf16, #tpu.memory_space<vmem>>, vector<1x64x32xbf16>,
      %163 = vector.extract_strided_slice %150 {offsets = [0, 160], sizes = [64, 32], strides = [1, 1]} : vector<64x256xbf16> to vector<64x32xbf16>
      %c1_94 = arith.constant 1 : index
      %c0_95 = arith.constant 0 : index
      %c0_96 = arith.constant 0 : index
      %164 = vector.load %arg20[%c1_94, %c0_95, %c0_96] : memref<4x64x32xbf16, #tpu.memory_space<vmem>>, vector<1x64x32xbf16>
      %165 = vector.shape_cast %164 : vector<1x64x32xbf16> to vector<64x32xbf16>
      %166 = vector.shape_cast %163 : vector<64x32xbf16> to vector<1x64x32xbf16>
      tpu.vector_store %arg20[%c1_94, %c0_95, %c0_96], %166 {strides = array<i32>} : memref<4x64x32xbf16, #tpu.memory_space<vmem>>, vector<1x64x32xbf16>,
      %167 = vector.extract_strided_slice %150 {offsets = [0, 64], sizes = [64, 32], strides = [1, 1]} : vector<64x256xbf16> to vector<64x32xbf16>
      %c2_97 = arith.constant 2 : index
      %c0_98 = arith.constant 0 : index
      %c0_99 = arith.constant 0 : index
      %168 = vector.load %arg19[%c2_97, %c0_98, %c0_99] : memref<4x64x32xbf16, #tpu.memory_space<vmem>>, vector<1x64x32xbf16>
      %169 = vector.shape_cast %168 : vector<1x64x32xbf16> to vector<64x32xbf16>
      %170 = vector.shape_cast %167 : vector<64x32xbf16> to vector<1x64x32xbf16>
      tpu.vector_store %arg19[%c2_97, %c0_98, %c0_99], %170 {strides = array<i32>} : memref<4x64x32xbf16, #tpu.memory_space<vmem>>, vector<1x64x32xbf16>,
      %171 = vector.extract_strided_slice %150 {offsets = [0, 192], sizes = [64, 32], strides = [1, 1]} : vector<64x256xbf16> to vector<64x32xbf16>
      %c2_100 = arith.constant 2 : index
      %c0_101 = arith.constant 0 : index
      %c0_102 = arith.constant 0 : index
      %172 = vector.load %arg20[%c2_100, %c0_101, %c0_102] : memref<4x64x32xbf16, #tpu.memory_space<vmem>>, vector<1x64x32xbf16>
      %173 = vector.shape_cast %172 : vector<1x64x32xbf16> to vector<64x32xbf16>
      %174 = vector.shape_cast %171 : vector<64x32xbf16> to vector<1x64x32xbf16>
      tpu.vector_store %arg20[%c2_100, %c0_101, %c0_102], %174 {strides = array<i32>} : memref<4x64x32xbf16, #tpu.memory_space<vmem>>, vector<1x64x32xbf16>,
      %175 = vector.extract_strided_slice %150 {offsets = [0, 96], sizes = [64, 32], strides = [1, 1]} : vector<64x256xbf16> to vector<64x32xbf16>
      %c3_103 = arith.constant 3 : index
      %c0_104 = arith.constant 0 : index
      %c0_105 = arith.constant 0 : index
      %176 = vector.load %arg19[%c3_103, %c0_104, %c0_105] : memref<4x64x32xbf16, #tpu.memory_space<vmem>>, vector<1x64x32xbf16>
      %177 = vector.shape_cast %176 : vector<1x64x32xbf16> to vector<64x32xbf16>
      %178 = vector.shape_cast %175 : vector<64x32xbf16> to vector<1x64x32xbf16>
      tpu.vector_store %arg19[%c3_103, %c0_104, %c0_105], %178 {strides = array<i32>} : memref<4x64x32xbf16, #tpu.memory_space<vmem>>, vector<1x64x32xbf16>,
      %179 = vector.extract_strided_slice %150 {offsets = [0, 224], sizes = [64, 32], strides = [1, 1]} : vector<64x256xbf16> to vector<64x32xbf16>
      %c3_106 = arith.constant 3 : index
      %c0_107 = arith.constant 0 : index
      %c0_108 = arith.constant 0 : index
      %180 = vector.load %arg20[%c3_106, %c0_107, %c0_108] : memref<4x64x32xbf16, #tpu.memory_space<vmem>>, vector<1x64x32xbf16>
      %181 = vector.shape_cast %180 : vector<1x64x32xbf16> to vector<64x32xbf16>
      %182 = vector.shape_cast %179 : vector<64x32xbf16> to vector<1x64x32xbf16>
      tpu.vector_store %arg20[%c3_106, %c0_107, %c0_108], %182 {strides = array<i32>} : memref<4x64x32xbf16, #tpu.memory_space<vmem>>, vector<1x64x32xbf16>,
    } else {
    }
    %c0 = arith.constant 0 : index
    %c0_1 = arith.constant 0 : index
    %c0_2 = arith.constant 0 : index
    %3 = vector.load %arg2[%c0, %c0_1, %c0_2] : memref<1x32x128xf32, #tpu.memory_space<vmem>>, vector<1x32x128xf32>
    %4 = vector.shape_cast %3 : vector<1x32x128xf32> to vector<32x128xf32>
    %5 = arith.truncf %4 : vector<32x128xf32> to vector<32x128xbf16>
    %c0_3 = arith.constant 0 : index
    %c0_4 = arith.constant 0 : index
    %6 = vector.load %arg4[%c0_3, %c0_4] : memref<128x128xbf16, #tpu.memory_space<vmem>>, vector<128x128xbf16>
    %cst = arith.constant dense<0.000000e+00> : vector<32x128xf32>
    %7 = tpu.matmul %5, %6, %cst {dimension_numbers = #tpu.dot_dimension_numbers<[1], [0], [0], [1], [0, 0, 1, 1], [], []>} : vector<32x128xbf16>, vector<128x128xbf16>, vector<32x128xf32> -> vector<32x128xf32>
    %c0_5 = arith.constant 0 : index
    %c0_6 = arith.constant 0 : index
    %8 = vector.load %arg5[%c0_5, %c0_6] : memref<1x128xf32, #tpu.memory_space<vmem>>, vector<1x128xf32>
    %9 = vector.broadcast %8 : vector<1x128xf32> to vector<32x128xf32>
    %10 = arith.addf %7, %9 : vector<32x128xf32>
    %11 = arith.truncf %10 : vector<32x128xf32> to vector<32x128xbf16>
    %12 = vector.extract_strided_slice %11 {offsets = [0, 0], sizes = [32, 32], strides = [1, 1]} : vector<32x128xbf16> to vector<32x32xbf16>
    %c0_7 = arith.constant 0 : index
    %c0_8 = arith.constant 0 : index
    %c0_9 = arith.constant 0 : index
    %13 = vector.load %arg21[%c0_7, %c0_8, %c0_9] : memref<4x32x32xbf16, #tpu.memory_space<vmem>>, vector<1x32x32xbf16>
    %14 = vector.shape_cast %13 : vector<1x32x32xbf16> to vector<32x32xbf16>
    %15 = vector.shape_cast %12 : vector<32x32xbf16> to vector<1x32x32xbf16>
    tpu.vector_store %arg21[%c0_7, %c0_8, %c0_9], %15 {strides = array<i32>} : memref<4x32x32xbf16, #tpu.memory_space<vmem>>, vector<1x32x32xbf16>,
    %16 = vector.extract_strided_slice %11 {offsets = [0, 32], sizes = [32, 32], strides = [1, 1]} : vector<32x128xbf16> to vector<32x32xbf16>
    %c1 = arith.constant 1 : index
    %c0_10 = arith.constant 0 : index
    %c0_11 = arith.constant 0 : index
    %17 = vector.load %arg21[%c1, %c0_10, %c0_11] : memref<4x32x32xbf16, #tpu.memory_space<vmem>>, vector<1x32x32xbf16>
    %18 = vector.shape_cast %17 : vector<1x32x32xbf16> to vector<32x32xbf16>
    %19 = vector.shape_cast %16 : vector<32x32xbf16> to vector<1x32x32xbf16>
    tpu.vector_store %arg21[%c1, %c0_10, %c0_11], %19 {strides = array<i32>} : memref<4x32x32xbf16, #tpu.memory_space<vmem>>, vector<1x32x32xbf16>,
    %20 = vector.extract_strided_slice %11 {offsets = [0, 64], sizes = [32, 32], strides = [1, 1]} : vector<32x128xbf16> to vector<32x32xbf16>
    %c2 = arith.constant 2 : index
    %c0_12 = arith.constant 0 : index
    %c0_13 = arith.constant 0 : index
    %21 = vector.load %arg21[%c2, %c0_12, %c0_13] : memref<4x32x32xbf16, #tpu.memory_space<vmem>>, vector<1x32x32xbf16>
    %22 = vector.shape_cast %21 : vector<1x32x32xbf16> to vector<32x32xbf16>
    %23 = vector.shape_cast %20 : vector<32x32xbf16> to vector<1x32x32xbf16>
    tpu.vector_store %arg21[%c2, %c0_12, %c0_13], %23 {strides = array<i32>} : memref<4x32x32xbf16, #tpu.memory_space<vmem>>, vector<1x32x32xbf16>,
    %24 = vector.extract_strided_slice %11 {offsets = [0, 96], sizes = [32, 32], strides = [1, 1]} : vector<32x128xbf16> to vector<32x32xbf16>
    %c3 = arith.constant 3 : index
    %c0_14 = arith.constant 0 : index
    %c0_15 = arith.constant 0 : index
    %25 = vector.load %arg21[%c3, %c0_14, %c0_15] : memref<4x32x32xbf16, #tpu.memory_space<vmem>>, vector<1x32x32xbf16>
    %26 = vector.shape_cast %25 : vector<1x32x32xbf16> to vector<32x32xbf16>
    %27 = vector.shape_cast %24 : vector<32x32xbf16> to vector<1x32x32xbf16>
    tpu.vector_store %arg21[%c3, %c0_14, %c0_15], %27 {strides = array<i32>} : memref<4x32x32xbf16, #tpu.memory_space<vmem>>, vector<1x32x32xbf16>,
    %c0_16 = arith.constant 0 : index
    %c0_17 = arith.constant 0 : index
    %c0_18 = arith.constant 0 : index
    %28 = vector.load %arg21[%c0_16, %c0_17, %c0_18] : memref<4x32x32xbf16, #tpu.memory_space<vmem>>, vector<4x32x32xbf16>
    %cst_19 = arith.constant 0xFF800000 : f32
    %29 = vector.broadcast %cst_19 : f32 to vector<4x32x1xf32>
    %cst_20 = arith.constant 0.000000e+00 : f32
    %30 = vector.broadcast %cst_20 : f32 to vector<4x32x1xf32>
    %cst_21 = arith.constant 0.000000e+00 : f32
    %31 = vector.broadcast %cst_21 : f32 to vector<4x32x32xf32>
    %c0_22 = arith.constant 0 : index
    %c0_23 = arith.constant 0 : index
    %c0_24 = arith.constant 0 : index
    %32 = vector.load %arg19[%c0_22, %c0_23, %c0_24] : memref<4x64x32xbf16, #tpu.memory_space<vmem>>, vector<4x64x32xbf16>
    %c0_25 = arith.constant 0 : index
    %c0_26 = arith.constant 0 : index
    %c0_27 = arith.constant 0 : index
    %33 = vector.load %arg20[%c0_25, %c0_26, %c0_27] : memref<4x64x32xbf16, #tpu.memory_space<vmem>>, vector<4x64x32xbf16>
    %cst_28 = arith.constant dense<0.000000e+00> : vector<4x32x64xf32>
    %34 = tpu.matmul %28, %32, %cst_28 {dimension_numbers = #tpu.dot_dimension_numbers<[2], [2], [1], [1], [0, 0, 0, 1, 1, 1], [0], [0]>} : vector<4x32x32xbf16>, vector<4x64x32xbf16>, vector<4x32x64xf32> -> vector<4x32x64xf32>
    %cst_29 = arith.constant dense<0xFF800000> : vector<4x32xf32>
    %35 = vector.multi_reduction <maximumf>, %34, %cst_29 [2] : vector<4x32x64xf32> to vector<4x32xf32>
    %36 = vector.shape_cast %35 : vector<4x32xf32> to vector<4x32x1xf32>
    %37 = arith.maximumf %29, %36 : vector<4x32x1xf32>
    %38 = arith.subf %29, %37 : vector<4x32x1xf32>
    %39 = math.exp %38 : vector<4x32x1xf32>
    %40 = vector.broadcast %37 : vector<4x32x1xf32> to vector<4x32x64xf32>
    %41 = arith.subf %34, %40 : vector<4x32x64xf32>
    %42 = math.exp %41 : vector<4x32x64xf32>
    %43 = arith.mulf %39, %30 : vector<4x32x1xf32>
    %cst_30 = arith.constant dense<0.000000e+00> : vector<4x32xf32>
    %44 = vector.multi_reduction <add>, %42, %cst_30 [2] : vector<4x32x64xf32> to vector<4x32xf32>
    %45 = vector.shape_cast %44 : vector<4x32xf32> to vector<4x32x1xf32>
    %46 = arith.addf %43, %45 : vector<4x32x1xf32>
    %47 = vector.broadcast %39 : vector<4x32x1xf32> to vector<4x32x32xf32>
    %48 = arith.mulf %47, %31 : vector<4x32x32xf32>
    %49 = arith.truncf %42 : vector<4x32x64xf32> to vector<4x32x64xbf16>
    %cst_31 = arith.constant dense<0.000000e+00> : vector<4x32x32xf32>
    %50 = tpu.matmul %49, %33, %cst_31 {dimension_numbers = #tpu.dot_dimension_numbers<[2], [1], [1], [2], [0, 0, 0, 1, 1, 2], [0], [0]>} : vector<4x32x64xbf16>, vector<4x64x32xbf16>, vector<4x32x32xf32> -> vector<4x32x32xf32>
    %51 = arith.addf %48, %50 : vector<4x32x32xf32>
    %52 = tpu.reciprocal %46 {approx = true} : vector<4x32x1xf32> -> vector<4x32x1xf32>
    %53 = vector.broadcast %52 : vector<4x32x1xf32> to vector<4x32x32xf32>
    %54 = arith.mulf %51, %53 : vector<4x32x32xf32>
    %55 = arith.truncf %54 : vector<4x32x32xf32> to vector<4x32x32xbf16>
    %56 = vector.extract_strided_slice %55 {offsets = [0, 0, 0], sizes = [1, 32, 32], strides = [1, 1, 1]} : vector<4x32x32xbf16> to vector<1x32x32xbf16>
    %57 = vector.shape_cast %56 : vector<1x32x32xbf16> to vector<32x32xbf16>
    %c0_32 = arith.constant 0 : index
    %c0_33 = arith.constant 0 : index
    %58 = vector.load %arg22[%c0_32, %c0_33] : memref<32x128xbf16, #tpu.memory_space<vmem>>, vector<32x32xbf16>
    tpu.vector_store %arg22[%c0_32, %c0_33], %57 {strides = array<i32>} : memref<32x128xbf16, #tpu.memory_space<vmem>>, vector<32x32xbf16>,
    %59 = vector.extract_strided_slice %55 {offsets = [1, 0, 0], sizes = [1, 32, 32], strides = [1, 1, 1]} : vector<4x32x32xbf16> to vector<1x32x32xbf16>
    %60 = vector.shape_cast %59 : vector<1x32x32xbf16> to vector<32x32xbf16>
    %c0_34 = arith.constant 0 : index
    %c32 = arith.constant 32 : index
    %61 = vector.load %arg22[%c0_34, %c32] : memref<32x128xbf16, #tpu.memory_space<vmem>>, vector<32x32xbf16>
    tpu.vector_store %arg22[%c0_34, %c32], %60 {strides = array<i32>} : memref<32x128xbf16, #tpu.memory_space<vmem>>, vector<32x32xbf16>,
    %62 = vector.extract_strided_slice %55 {offsets = [2, 0, 0], sizes = [1, 32, 32], strides = [1, 1, 1]} : vector<4x32x32xbf16> to vector<1x32x32xbf16>
    %63 = vector.shape_cast %62 : vector<1x32x32xbf16> to vector<32x32xbf16>
    %c0_35 = arith.constant 0 : index
    %c64 = arith.constant 64 : index
    %64 = vector.load %arg22[%c0_35, %c64] : memref<32x128xbf16, #tpu.memory_space<vmem>>, vector<32x32xbf16>
    tpu.vector_store %arg22[%c0_35, %c64], %63 {strides = array<i32>} : memref<32x128xbf16, #tpu.memory_space<vmem>>, vector<32x32xbf16>,
    %65 = vector.extract_strided_slice %55 {offsets = [3, 0, 0], sizes = [1, 32, 32], strides = [1, 1, 1]} : vector<4x32x32xbf16> to vector<1x32x32xbf16>
    %66 = vector.shape_cast %65 : vector<1x32x32xbf16> to vector<32x32xbf16>
    %c0_36 = arith.constant 0 : index
    %c96 = arith.constant 96 : index
    %67 = vector.load %arg22[%c0_36, %c96] : memref<32x128xbf16, #tpu.memory_space<vmem>>, vector<32x32xbf16>
    tpu.vector_store %arg22[%c0_36, %c96], %66 {strides = array<i32>} : memref<32x128xbf16, #tpu.memory_space<vmem>>, vector<32x32xbf16>,
    %c0_37 = arith.constant 0 : index
    %c0_38 = arith.constant 0 : index
    %68 = vector.load %arg22[%c0_37, %c0_38] : memref<32x128xbf16, #tpu.memory_space<vmem>>, vector<32x128xbf16>
    %c0_39 = arith.constant 0 : index
    %c0_40 = arith.constant 0 : index
    %69 = vector.load %arg8[%c0_39, %c0_40] : memref<128x128xbf16, #tpu.memory_space<vmem>>, vector<128x128xbf16>
    %cst_41 = arith.constant dense<0.000000e+00> : vector<32x128xf32>
    %70 = tpu.matmul %68, %69, %cst_41 {dimension_numbers = #tpu.dot_dimension_numbers<[1], [0], [0], [1], [0, 0, 1, 1], [], []>} : vector<32x128xbf16>, vector<128x128xbf16>, vector<32x128xf32> -> vector<32x128xf32>
    %c0_42 = arith.constant 0 : index
    %c0_43 = arith.constant 0 : index
    %71 = vector.load %arg9[%c0_42, %c0_43] : memref<1x128xf32, #tpu.memory_space<vmem>>, vector<1x128xf32>
    %72 = vector.broadcast %71 : vector<1x128xf32> to vector<32x128xf32>
    %73 = arith.addf %70, %72 : vector<32x128xf32>
    %74 = arith.addf %73, %4 : vector<32x128xf32>
    %cst_44 = arith.constant dense<0.000000e+00> : vector<32xf32>
    %75 = vector.multi_reduction <add>, %74, %cst_44 [1] : vector<32x128xf32> to vector<32xf32>
    %76 = vector.shape_cast %75 : vector<32xf32> to vector<32x1xf32>
    %cst_45 = arith.constant 1.280000e+02 : f32
    %77 = vector.broadcast %cst_45 : f32 to vector<32x1xf32>
    %78 = arith.divf %76, %77 : vector<32x1xf32>
    %79 = vector.broadcast %78 : vector<32x1xf32> to vector<32x128xf32>
    %80 = arith.subf %74, %79 : vector<32x128xf32>
    %81 = arith.mulf %80, %80 : vector<32x128xf32>
    %cst_46 = arith.constant dense<0.000000e+00> : vector<32xf32>
    %82 = vector.multi_reduction <add>, %81, %cst_46 [1] : vector<32x128xf32> to vector<32xf32>
    %83 = vector.shape_cast %82 : vector<32xf32> to vector<32x1xf32>
    %cst_47 = arith.constant 1.280000e+02 : f32
    %84 = vector.broadcast %cst_47 : f32 to vector<32x1xf32>
    %85 = arith.divf %83, %84 : vector<32x1xf32>
    %86 = vector.broadcast %78 : vector<32x1xf32> to vector<32x128xf32>
    %87 = arith.subf %74, %86 : vector<32x128xf32>
    %cst_48 = arith.constant 9.99999974E-6 : f32
    %88 = vector.broadcast %cst_48 : f32 to vector<32x1xf32>
    %89 = arith.addf %85, %88 : vector<32x1xf32>
    %90 = math.rsqrt %89 : vector<32x1xf32>
    %91 = vector.broadcast %90 : vector<32x1xf32> to vector<32x128xf32>
    %92 = arith.mulf %87, %91 : vector<32x128xf32>
    %c0_49 = arith.constant 0 : index
    %c0_50 = arith.constant 0 : index
    %93 = vector.load %arg10[%c0_49, %c0_50] : memref<1x128xf32, #tpu.memory_space<vmem>>, vector<1x128xf32>
    %94 = vector.broadcast %93 : vector<1x128xf32> to vector<32x128xf32>
    %95 = arith.mulf %94, %92 : vector<32x128xf32>
    %c0_51 = arith.constant 0 : index
    %c0_52 = arith.constant 0 : index
    %96 = vector.load %arg11[%c0_51, %c0_52] : memref<1x128xf32, #tpu.memory_space<vmem>>, vector<1x128xf32>
    %97 = vector.broadcast %96 : vector<1x128xf32> to vector<32x128xf32>
    %98 = arith.addf %95, %97 : vector<32x128xf32>
    %99 = arith.truncf %98 : vector<32x128xf32> to vector<32x128xbf16>
    %cst_53 = arith.constant 0.000000e+00 : f32
    %100 = vector.broadcast %cst_53 : f32 to vector<32x128xf32>
    %c0_54 = arith.constant 0 : index
    %c0_55 = arith.constant 0 : index
    %101 = vector.load %arg12[%c0_54, %c0_55] : memref<128x256xbf16, #tpu.memory_space<vmem>>, vector<128x256xbf16>
    %cst_56 = arith.constant dense<0.000000e+00> : vector<32x256xf32>
    %102 = tpu.matmul %99, %101, %cst_56 {dimension_numbers = #tpu.dot_dimension_numbers<[1], [0], [0], [1], [0, 0, 1, 1], [], []>} : vector<32x128xbf16>, vector<128x256xbf16>, vector<32x256xf32> -> vector<32x256xf32>
    %c0_57 = arith.constant 0 : index
    %c0_58 = arith.constant 0 : index
    %103 = vector.load %arg13[%c0_57, %c0_58] : memref<1x256xf32, #tpu.memory_space<vmem>>, vector<1x256xf32>
    %104 = vector.broadcast %103 : vector<1x256xf32> to vector<32x256xf32>
    %105 = arith.addf %102, %104 : vector<32x256xf32>
    %cst_59 = arith.constant 0.000000e+00 : f32
    %106 = vector.broadcast %cst_59 : f32 to vector<32x256xf32>
    %107 = arith.maximumf %105, %106 : vector<32x256xf32>
    %108 = arith.truncf %107 : vector<32x256xf32> to vector<32x256xbf16>
    %c0_60 = arith.constant 0 : index
    %c0_61 = arith.constant 0 : index
    %109 = vector.load %arg14[%c0_60, %c0_61] : memref<256x128xbf16, #tpu.memory_space<vmem>>, vector<256x128xbf16>
    %cst_62 = arith.constant dense<0.000000e+00> : vector<32x128xf32>
    %110 = tpu.matmul %108, %109, %cst_62 {dimension_numbers = #tpu.dot_dimension_numbers<[1], [0], [0], [1], [0, 0, 1, 1], [], []>} : vector<32x256xbf16>, vector<256x128xbf16>, vector<32x128xf32> -> vector<32x128xf32>
    %111 = arith.addf %100, %110 : vector<32x128xf32>
    %c0_63 = arith.constant 0 : index
    %c0_64 = arith.constant 0 : index
    %112 = vector.load %arg15[%c0_63, %c0_64] : memref<1x128xf32, #tpu.memory_space<vmem>>, vector<1x128xf32>
    %113 = vector.broadcast %112 : vector<1x128xf32> to vector<32x128xf32>
    %114 = arith.addf %111, %113 : vector<32x128xf32>
    %115 = arith.addf %114, %98 : vector<32x128xf32>
    %cst_65 = arith.constant dense<0.000000e+00> : vector<32xf32>
    %116 = vector.multi_reduction <add>, %115, %cst_65 [1] : vector<32x128xf32> to vector<32xf32>
    %117 = vector.shape_cast %116 : vector<32xf32> to vector<32x1xf32>
    %cst_66 = arith.constant 1.280000e+02 : f32
    %118 = vector.broadcast %cst_66 : f32 to vector<32x1xf32>
    %119 = arith.divf %117, %118 : vector<32x1xf32>
    %120 = vector.broadcast %119 : vector<32x1xf32> to vector<32x128xf32>
    %121 = arith.subf %115, %120 : vector<32x128xf32>
    %122 = arith.mulf %121, %121 : vector<32x128xf32>
    %cst_67 = arith.constant dense<0.000000e+00> : vector<32xf32>
    %123 = vector.multi_reduction <add>, %122, %cst_67 [1] : vector<32x128xf32> to vector<32xf32>
    %124 = vector.shape_cast %123 : vector<32xf32> to vector<32x1xf32>
    %cst_68 = arith.constant 1.280000e+02 : f32
    %125 = vector.broadcast %cst_68 : f32 to vector<32x1xf32>
    %126 = arith.divf %124, %125 : vector<32x1xf32>
    %127 = vector.broadcast %119 : vector<32x1xf32> to vector<32x128xf32>
    %128 = arith.subf %115, %127 : vector<32x128xf32>
    %cst_69 = arith.constant 9.99999974E-6 : f32
    %129 = vector.broadcast %cst_69 : f32 to vector<32x1xf32>
    %130 = arith.addf %126, %129 : vector<32x1xf32>
    %131 = math.rsqrt %130 : vector<32x1xf32>
    %132 = vector.broadcast %131 : vector<32x1xf32> to vector<32x128xf32>
    %133 = arith.mulf %128, %132 : vector<32x128xf32>
    %c0_70 = arith.constant 0 : index
    %c0_71 = arith.constant 0 : index
    %134 = vector.load %arg16[%c0_70, %c0_71] : memref<1x128xf32, #tpu.memory_space<vmem>>, vector<1x128xf32>
    %135 = vector.broadcast %134 : vector<1x128xf32> to vector<32x128xf32>
    %136 = arith.mulf %135, %133 : vector<32x128xf32>
    %c0_72 = arith.constant 0 : index
    %c0_73 = arith.constant 0 : index
    %137 = vector.load %arg17[%c0_72, %c0_73] : memref<1x128xf32, #tpu.memory_space<vmem>>, vector<1x128xf32>
    %138 = vector.broadcast %137 : vector<1x128xf32> to vector<32x128xf32>
    %139 = arith.addf %136, %138 : vector<32x128xf32>
    %c0_74 = arith.constant 0 : index
    %c0_75 = arith.constant 0 : index
    %c0_76 = arith.constant 0 : index
    %140 = vector.load %arg18[%c0_74, %c0_75, %c0_76] : memref<1x32x128xf32, #tpu.memory_space<vmem>>, vector<1x32x128xf32>
    %141 = vector.shape_cast %140 : vector<1x32x128xf32> to vector<32x128xf32>
    %142 = vector.shape_cast %139 : vector<32x128xf32> to vector<1x32x128xf32>
    tpu.vector_store %arg18[%c0_74, %c0_75, %c0_76], %142 {strides = array<i32>} : memref<1x32x128xf32, #tpu.memory_space<vmem>>, vector<1x32x128xf32>,
    return
  }
  func.func @transform_0(%arg0: i32, %arg1: i32) -> (i32, i32, i32) {
    %c0_i32 = arith.constant 0 : i32
    %c0_i32_0 = arith.constant 0 : i32
    return %arg0, %arg1, %c0_i32 : i32, i32, i32
  }
  func.func @transform_1(%arg0: i32, %arg1: i32) -> (i32, i32, i32) {
    %c0_i32 = arith.constant 0 : i32
    %c0_i32_0 = arith.constant 0 : i32
    %c0_i32_1 = arith.constant 0 : i32
    return %arg0, %c0_i32, %c0_i32_0 : i32, i32, i32
  }
  func.func @transform_2(%arg0: i32, %arg1: i32) -> (i32, i32) {
    %c0_i32 = arith.constant 0 : i32
    %c0_i32_0 = arith.constant 0 : i32
    %c0_i32_1 = arith.constant 0 : i32
    return %c0_i32, %c0_i32_0 : i32, i32
  }
  func.func @transform_3(%arg0: i32, %arg1: i32) -> (i32, i32) {
    %c0_i32 = arith.constant 0 : i32
    %c0_i32_0 = arith.constant 0 : i32
    %c0_i32_1 = arith.constant 0 : i32
    return %c0_i32, %c0_i32_0 : i32, i32
  }
  func.func @transform_4(%arg0: i32, %arg1: i32) -> (i32, i32) {
    %c0_i32 = arith.constant 0 : i32
    %c0_i32_0 = arith.constant 0 : i32
    %c0_i32_1 = arith.constant 0 : i32
    return %c0_i32, %c0_i32_0 : i32, i32
  }
  func.func @transform_5(%arg0: i32, %arg1: i32) -> (i32, i32) {
    %c0_i32 = arith.constant 0 : i32
    %c0_i32_0 = arith.constant 0 : i32
    %c0_i32_1 = arith.constant 0 : i32
    return %c0_i32, %c0_i32_0 : i32, i32
  }
  func.func @transform_6(%arg0: i32, %arg1: i32) -> (i32, i32) {
    %c0_i32 = arith.constant 0 : i32
    %c0_i32_0 = arith.constant 0 : i32
    %c0_i32_1 = arith.constant 0 : i32
    return %c0_i32, %c0_i32_0 : i32, i32
  }
  func.func @transform_7(%arg0: i32, %arg1: i32) -> (i32, i32) {
    %c0_i32 = arith.constant 0 : i32
    %c0_i32_0 = arith.constant 0 : i32
    %c0_i32_1 = arith.constant 0 : i32
    return %c0_i32, %c0_i32_0 : i32, i32
  }
  func.func @transform_8(%arg0: i32, %arg1: i32) -> (i32, i32) {
    %c0_i32 = arith.constant 0 : i32
    %c0_i32_0 = arith.constant 0 : i32
    %c0_i32_1 = arith.constant 0 : i32
    return %c0_i32, %c0_i32_0 : i32, i32
  }
  func.func @transform_9(%arg0: i32, %arg1: i32) -> (i32, i32) {
    %c0_i32 = arith.constant 0 : i32
    %c0_i32_0 = arith.constant 0 : i32
    %c0_i32_1 = arith.constant 0 : i32
    return %c0_i32, %c0_i32_0 : i32, i32
  }
  func.func @transform_10(%arg0: i32, %arg1: i32) -> (i32, i32) {
    %c0_i32 = arith.constant 0 : i32
    %c0_i32_0 = arith.constant 0 : i32
    %c0_i32_1 = arith.constant 0 : i32
    return %c0_i32, %c0_i32_0 : i32, i32
  }
  func.func @transform_11(%arg0: i32, %arg1: i32) -> (i32, i32) {
    %c0_i32 = arith.constant 0 : i32
    %c0_i32_0 = arith.constant 0 : i32
    %c0_i32_1 = arith.constant 0 : i32
    return %c0_i32, %c0_i32_0 : i32, i32
  }
  func.func @transform_12(%arg0: i32, %arg1: i32) -> (i32, i32) {
    %c0_i32 = arith.constant 0 : i32
    %c0_i32_0 = arith.constant 0 : i32
    %c0_i32_1 = arith.constant 0 : i32
    return %c0_i32, %c0_i32_0 : i32, i32
  }
  func.func @transform_13(%arg0: i32, %arg1: i32) -> (i32, i32) {
    %c0_i32 = arith.constant 0 : i32
    %c0_i32_0 = arith.constant 0 : i32
    %c0_i32_1 = arith.constant 0 : i32
    return %c0_i32, %c0_i32_0 : i32, i32
  }
  func.func @transform_14(%arg0: i32, %arg1: i32) -> (i32, i32) {
    %c0_i32 = arith.constant 0 : i32
    %c0_i32_0 = arith.constant 0 : i32
    %c0_i32_1 = arith.constant 0 : i32
    return %c0_i32, %c0_i32_0 : i32, i32
  }
  func.func @transform_15(%arg0: i32, %arg1: i32) -> (i32, i32) {
    %c0_i32 = arith.constant 0 : i32
    %c0_i32_0 = arith.constant 0 : i32
    %c0_i32_1 = arith.constant 0 : i32
    return %c0_i32, %c0_i32_0 : i32, i32
  }
  func.func @transform_16(%arg0: i32, %arg1: i32) -> (i32, i32, i32) {
    %c0_i32 = arith.constant 0 : i32
    %c0_i32_0 = arith.constant 0 : i32
    return %arg0, %arg1, %c0_i32 : i32, i32, i32
  }
}

module attributes {stable_mosaic.version = 11 : i64} {
  func.func @kernel(%arg0: i32, %arg1: i32, %arg2: memref<1x32x128xf32, #tpu.memory_space<vmem>>, %arg3: memref<1x64x128xbf16, #tpu.memory_space<vmem>>, %arg4: memref<128x128xbf16, #tpu.memory_space<vmem>>, %arg5: memref<1x128xf32, #tpu.memory_space<vmem>>, %arg6: memref<128x256xbf16, #tpu.memory_space<vmem>>, %arg7: memref<1x256xf32, #tpu.memory_space<vmem>>, %arg8: memref<128x128xbf16, #tpu.memory_space<vmem>>, %arg9: memref<1x128xf32, #tpu.memory_space<vmem>>, %arg10: memref<1x128xf32, #tpu.memory_space<vmem>>, %arg11: memref<1x128xf32, #tpu.memory_space<vmem>>, %arg12: memref<128x256xbf16, #tpu.memory_space<vmem>>, %arg13: memref<1x256xf32, #tpu.memory_space<vmem>>, %arg14: memref<256x128xbf16, #tpu.memory_space<vmem>>, %arg15: memref<1x128xf32, #tpu.memory_space<vmem>>, %arg16: memref<1x128xf32, #tpu.memory_space<vmem>>, %arg17: memref<1x128xf32, #tpu.memory_space<vmem>>, %arg18: memref<1x32x128xf32, #tpu.memory_space<vmem>>, %arg19: memref<4x64x32xbf16, #tpu.memory_space<vmem>>, %arg20: memref<4x64x32xbf16, #tpu.memory_space<vmem>>, %arg21: memref<4x32x32xbf16, #tpu.memory_space<vmem>>, %arg22: memref<32x128xbf16, #tpu.memory_space<vmem>>) attributes {dimension_semantics = [#tpu.dimension_semantics<parallel>, #tpu.dimension_semantics<arbitrary>], iteration_bounds = array<i64: 2, 2>, scalar_prefetch = 0 : i64, scratch_operands = 4 : i64, tpu.core_type = #tpu.core_type<tc>, window_params = [{transform_indices = @transform_0, window_bounds = array<i64: 1, 32, 128>}, {transform_indices = @transform_1, window_bounds = array<i64: 1, 64, 128>}, {pipeline_mode = #tpu.pipeline_mode<synchronous>, transform_indices = @transform_2, window_bounds = array<i64: 128, 128>}, {pipeline_mode = #tpu.pipeline_mode<synchronous>, transform_indices = @transform_3, window_bounds = array<i64: 1, 128>}, {pipeline_mode = #tpu.pipeline_mode<synchronous>, transform_indices = @transform_4, window_bounds = array<i64: 128, 256>}, {pipeline_mode = #tpu.pipeline_mode<synchronous>, transform_indices = @transform_5, window_bounds = array<i64: 1, 256>}, {pipeline_mode = #tpu.pipeline_mode<synchronous>, transform_indices = @transform_6, window_bounds = array<i64: 128, 128>}, {pipeline_mode = #tpu.pipeline_mode<synchronous>, transform_indices = @transform_7, window_bounds = array<i64: 1, 128>}, {pipeline_mode = #tpu.pipeline_mode<synchronous>, transform_indices = @transform_8, window_bounds = array<i64: 1, 128>}, {pipeline_mode = #tpu.pipeline_mode<synchronous>, transform_indices = @transform_9, window_bounds = array<i64: 1, 128>}, {pipeline_mode = #tpu.pipeline_mode<synchronous>, transform_indices = @transform_10, window_bounds = array<i64: 128, 256>}, {pipeline_mode = #tpu.pipeline_mode<synchronous>, transform_indices = @transform_11, window_bounds = array<i64: 1, 256>}, {pipeline_mode = #tpu.pipeline_mode<synchronous>, transform_indices = @transform_12, window_bounds = array<i64: 256, 128>}, {pipeline_mode = #tpu.pipeline_mode<synchronous>, transform_indices = @transform_13, window_bounds = array<i64: 1, 128>}, {pipeline_mode = #tpu.pipeline_mode<synchronous>, transform_indices = @transform_14, window_bounds = array<i64: 1, 128>}, {pipeline_mode = #tpu.pipeline_mode<synchronous>, transform_indices = @transform_15, window_bounds = array<i64: 1, 128>}, {transform_indices = @transform_16, window_bounds = array<i64: 1, 32, 128>}]} {
    %c0_i32 = arith.constant 0 : i32
    %0 = arith.cmpi eq, %arg1, %c0_i32 : i32
    %1 = arith.extui %0 : i1 to i32
    %c0_i32_0 = arith.constant 0 : i32
    %2 = arith.cmpi ne, %1, %c0_i32_0 : i32
    scf.if %2 {
      %c0_77 = arith.constant 0 : index
      %c0_78 = arith.constant 0 : index
      %c0_79 = arith.constant 0 : index
      %143 = vector.load %arg3[%c0_77, %c0_78, %c0_79] : memref<1x64x128xbf16, #tpu.memory_space<vmem>>, vector<1x64x128xbf16>
      %144 = vector.shape_cast %143 : vector<1x64x128xbf16> to vector<64x128xbf16>
      %c0_80 = arith.constant 0 : index
      %c0_81 = arith.constant 0 : index
      %145 = vector.load %arg6[%c0_80, %c0_81] : memref<128x256xbf16, #tpu.memory_space<vmem>>, vector<128x256xbf16>
      %cst_82 = arith.constant dense<0.000000e+00> : vector<64x256xf32>
      %146 = tpu.matmul %144, %145, %cst_82 {dimension_numbers = #tpu.dot_dimension_numbers<[1], [0], [0], [1], [0, 0, 1, 1], [], []>} : vector<64x128xbf16>, vector<128x256xbf16>, vector<64x256xf32> -> vector<64x256xf32>
      %c0_83 = arith.constant 0 : index
      %c0_84 = arith.constant 0 : index
      %147 = vector.load %arg7[%c0_83, %c0_84] : memref<1x256xf32, #tpu.memory_space<vmem>>, vector<1x256xf32>
      %148 = vector.broadcast %147 : vector<1x256xf32> to vector<64x256xf32>
      %149 = arith.addf %146, %148 : vector<64x256xf32>
      %150 = arith.truncf %149 : vector<64x256xf32> to vector<64x256xbf16>
      %151 = vector.extract_strided_slice %150 {offsets = [0, 0], sizes = [64, 32], strides = [1, 1]} : vector<64x256xbf16> to vector<64x32xbf16>
      %c0_85 = arith.constant 0 : index
      %c0_86 = arith.constant 0 : index
      %c0_87 = arith.constant 0 : index
      %152 = vector.load %arg19[%c0_85, %c0_86, %c0_87] : memref<4x64x32xbf16, #tpu.memory_space<vmem>>, vector<1x64x32xbf16>
      %153 = vector.shape_cast %152 : vector<1x64x32xbf16> to vector<64x32xbf16>
      %154 = vector.shape_cast %151 : vector<64x32xbf16> to vector<1x64x32xbf16>
      tpu.vector_store %arg19[%c0_85, %c0_86, %c0_87], %154 {strides = array<i32>} : memref<4x64x32xbf16, #tpu.memory_space<vmem>>, vector<1x64x32xbf16>,
      %155 = vector.extract_strided_slice %150 {offsets = [0, 128], sizes = [64, 32], strides = [1, 1]} : vector<64x256xbf16> to vector<64x32xbf16>
      %c0_88 = arith.constant 0 : index
      %c0_89 = arith.constant 0 : index
      %c0_90 = arith.constant 0 : index
      %156 = vector.load %arg20[%c0_88, %c0_89, %c0_90] : memref<4x64x32xbf16, #tpu.memory_space<vmem>>, vector<1x64x32xbf16>
      %157 = vector.shape_cast %156 : vector<1x64x32xbf16> to vector<64x32xbf16>
      %158 = vector.shape_cast %155 : vector<64x32xbf16> to vector<1x64x32xbf16>
      tpu.vector_store %arg20[%c0_88, %c0_89, %c0_90], %158 {strides = array<i32>} : memref<4x64x32xbf16, #tpu.memory_space<vmem>>, vector<1x64x32xbf16>,
      %159 = vector.extract_strided_slice %150 {offsets = [0, 32], sizes = [64, 32], strides = [1, 1]} : vector<64x256xbf16> to vector<64x32xbf16>
      %c1_91 = arith.constant 1 : index
      %c0_92 = arith.constant 0 : index
      %c0_93 = arith.constant 0 : index
      %160 = vector.load %arg19[%c1_91, %c0_92, %c0_93] : memref<4x64x32xbf16, #tpu.memory_space<vmem>>, vector<1x64x32xbf16>
      %161 = vector.shape_cast %160 : vector<1x64x32xbf16> to vector<64x32xbf16>
      %162 = vector.shape_cast %159 : vector<64x32xbf16> to vector<1x64x32xbf16>
      tpu.vector_store %arg19[%c1_91, %c0_92, %c0_93], %162 {strides = array<i32>} : memref<4x64x32xbf16, #tpu.memory_space<vmem>>, vector<1x64x32xbf16>,
      %163 = vector.extract_strided_slice %150 {offsets = [0, 160], sizes = [64, 32], strides = [1, 1]} : vector<64x256xbf16> to vector<64x32xbf16>
      %c1_94 = arith.constant 1 : index
      %c0_95 = arith.constant 0 : index
      %c0_96 = arith.constant 0 : index
      %164 = vector.load %arg20[%c1_94, %c0_95, %c0_96] : memref<4x64x32xbf16, #tpu.memory_space<vmem>>, vector<1x64x32xbf16>
      %165 = vector.shape_cast %164 : vector<1x64x32xbf16> to vector<64x32xbf16>
      %166 = vector.shape_cast %163 : vector<64x32xbf16> to vector<1x64x32xbf16>
      tpu.vector_store %arg20[%c1_94, %c0_95, %c0_96], %166 {strides = array<i32>} : memref<4x64x32xbf16, #tpu.memory_space<vmem>>, vector<1x64x32xbf16>,
      %167 = vector.extract_strided_slice %150 {offsets = [0, 64], sizes = [64, 32], strides = [1, 1]} : vector<64x256xbf16> to vector<64x32xbf16>
      %c2_97 = arith.constant 2 : index
      %c0_98 = arith.constant 0 : index
      %c0_99 = arith.constant 0 : index
      %168 = vector.load %arg19[%c2_97, %c0_98, %c0_99] : memref<4x64x32xbf16, #tpu.memory_space<vmem>>, vector<1x64x32xbf16>
      %169 = vector.shape_cast %168 : vector<1x64x32xbf16> to vector<64x32xbf16>
      %170 = vector.shape_cast %167 : vector<64x32xbf16> to vector<1x64x32xbf16>
      tpu.vector_store %arg19[%c2_97, %c0_98, %c0_99], %170 {strides = array<i32>} : memref<4x64x32xbf16, #tpu.memory_space<vmem>>, vector<1x64x32xbf16>,
      %171 = vector.extract_strided_slice %150 {offsets = [0, 192], sizes = [64, 32], strides = [1, 1]} : vector<64x256xbf16> to vector<64x32xbf16>
      %c2_100 = arith.constant 2 : index
      %c0_101 = arith.constant 0 : index
      %c0_102 = arith.constant 0 : index
      %172 = vector.load %arg20[%c2_100, %c0_101, %c0_102] : memref<4x64x32xbf16, #tpu.memory_space<vmem>>, vector<1x64x32xbf16>
      %173 = vector.shape_cast %172 : vector<1x64x32xbf16> to vector<64x32xbf16>
      %174 = vector.shape_cast %171 : vector<64x32xbf16> to vector<1x64x32xbf16>
      tpu.vector_store %arg20[%c2_100, %c0_101, %c0_102], %174 {strides = array<i32>} : memref<4x64x32xbf16, #tpu.memory_space<vmem>>, vector<1x64x32xbf16>,
      %175 = vector.extract_strided_slice %150 {offsets = [0, 96], sizes = [64, 32], strides = [1, 1]} : vector<64x256xbf16> to vector<64x32xbf16>
      %c3_103 = arith.constant 3 : index
      %c0_104 = arith.constant 0 : index
      %c0_105 = arith.constant 0 : index
      %176 = vector.load %arg19[%c3_103, %c0_104, %c0_105] : memref<4x64x32xbf16, #tpu.memory_space<vmem>>, vector<1x64x32xbf16>
      %177 = vector.shape_cast %176 : vector<1x64x32xbf16> to vector<64x32xbf16>
      %178 = vector.shape_cast %175 : vector<64x32xbf16> to vector<1x64x32xbf16>
      tpu.vector_store %arg19[%c3_103, %c0_104, %c0_105], %178 {strides = array<i32>} : memref<4x64x32xbf16, #tpu.memory_space<vmem>>, vector<1x64x32xbf16>,
      %179 = vector.extract_strided_slice %150 {offsets = [0, 224], sizes = [64, 32], strides = [1, 1]} : vector<64x256xbf16> to vector<64x32xbf16>
      %c3_106 = arith.constant 3 : index
      %c0_107 = arith.constant 0 : index
      %c0_108 = arith.constant 0 : index
      %180 = vector.load %arg20[%c3_106, %c0_107, %c0_108] : memref<4x64x32xbf16, #tpu.memory_space<vmem>>, vector<1x64x32xbf16>
      %181 = vector.shape_cast %180 : vector<1x64x32xbf16> to vector<64x32xbf16>
      %182 = vector.shape_cast %179 : vector<64x32xbf16> to vector<1x64x32xbf16>
      tpu.vector_store %arg20[%c3_106, %c0_107, %c0_108], %182 {strides = array<i32>} : memref<4x64x32xbf16, #tpu.memory_space<vmem>>, vector<1x64x32xbf16>,
    } else {
    }
    %c0 = arith.constant 0 : index
    %c0_1 = arith.constant 0 : index
    %c0_2 = arith.constant 0 : index
    %3 = vector.load %arg2[%c0, %c0_1, %c0_2] : memref<1x32x128xf32, #tpu.memory_space<vmem>>, vector<1x32x128xf32>
    %4 = vector.shape_cast %3 : vector<1x32x128xf32> to vector<32x128xf32>
    %5 = arith.truncf %4 : vector<32x128xf32> to vector<32x128xbf16>
    %c0_3 = arith.constant 0 : index
    %c0_4 = arith.constant 0 : index
    %6 = vector.load %arg4[%c0_3, %c0_4] : memref<128x128xbf16, #tpu.memory_space<vmem>>, vector<128x128xbf16>
    %cst = arith.constant dense<0.000000e+00> : vector<32x128xf32>
    %7 = tpu.matmul %5, %6, %cst {dimension_numbers = #tpu.dot_dimension_numbers<[1], [0], [0], [1], [0, 0, 1, 1], [], []>} : vector<32x128xbf16>, vector<128x128xbf16>, vector<32x128xf32> -> vector<32x128xf32>
    %c0_5 = arith.constant 0 : index
    %c0_6 = arith.constant 0 : index
    %8 = vector.load %arg5[%c0_5, %c0_6] : memref<1x128xf32, #tpu.memory_space<vmem>>, vector<1x128xf32>
    %9 = vector.broadcast %8 : vector<1x128xf32> to vector<32x128xf32>
    %10 = arith.addf %7, %9 : vector<32x128xf32>
    %11 = arith.truncf %10 : vector<32x128xf32> to vector<32x128xbf16>
    %12 = vector.extract_strided_slice %11 {offsets = [0, 0], sizes = [32, 32], strides = [1, 1]} : vector<32x128xbf16> to vector<32x32xbf16>
    %c0_7 = arith.constant 0 : index
    %c0_8 = arith.constant 0 : index
    %c0_9 = arith.constant 0 : index
    %13 = vector.load %arg21[%c0_7, %c0_8, %c0_9] : memref<4x32x32xbf16, #tpu.memory_space<vmem>>, vector<1x32x32xbf16>
    %14 = vector.shape_cast %13 : vector<1x32x32xbf16> to vector<32x32xbf16>
    %15 = vector.shape_cast %12 : vector<32x32xbf16> to vector<1x32x32xbf16>
    tpu.vector_store %arg21[%c0_7, %c0_8, %c0_9], %15 {strides = array<i32>} : memref<4x32x32xbf16, #tpu.memory_space<vmem>>, vector<1x32x32xbf16>,
    %16 = vector.extract_strided_slice %11 {offsets = [0, 32], sizes = [32, 32], strides = [1, 1]} : vector<32x128xbf16> to vector<32x32xbf16>
    %c1 = arith.constant 1 : index
    %c0_10 = arith.constant 0 : index
    %c0_11 = arith.constant 0 : index
    %17 = vector.load %arg21[%c1, %c0_10, %c0_11] : memref<4x32x32xbf16, #tpu.memory_space<vmem>>, vector<1x32x32xbf16>
    %18 = vector.shape_cast %17 : vector<1x32x32xbf16> to vector<32x32xbf16>
    %19 = vector.shape_cast %16 : vector<32x32xbf16> to vector<1x32x32xbf16>
    tpu.vector_store %arg21[%c1, %c0_10, %c0_11], %19 {strides = array<i32>} : memref<4x32x32xbf16, #tpu.memory_space<vmem>>, vector<1x32x32xbf16>,
    %20 = vector.extract_strided_slice %11 {offsets = [0, 64], sizes = [32, 32], strides = [1, 1]} : vector<32x128xbf16> to vector<32x32xbf16>
    %c2 = arith.constant 2 : index
    %c0_12 = arith.constant 0 : index
    %c0_13 = arith.constant 0 : index
    %21 = vector.load %arg21[%c2, %c0_12, %c0_13] : memref<4x32x32xbf16, #tpu.memory_space<vmem>>, vector<1x32x32xbf16>
    %22 = vector.shape_cast %21 : vector<1x32x32xbf16> to vector<32x32xbf16>
    %23 = vector.shape_cast %20 : vector<32x32xbf16> to vector<1x32x32xbf16>
    tpu.vector_store %arg21[%c2, %c0_12, %c0_13], %23 {strides = array<i32>} : memref<4x32x32xbf16, #tpu.memory_space<vmem>>, vector<1x32x32xbf16>,
    %24 = vector.extract_strided_slice %11 {offsets = [0, 96], sizes = [32, 32], strides = [1, 1]} : vector<32x128xbf16> to vector<32x32xbf16>
    %c3 = arith.constant 3 : index
    %c0_14 = arith.constant 0 : index
    %c0_15 = arith.constant 0 : index
    %25 = vector.load %arg21[%c3, %c0_14, %c0_15] : memref<4x32x32xbf16, #tpu.memory_space<vmem>>, vector<1x32x32xbf16>
    %26 = vector.shape_cast %25 : vector<1x32x32xbf16> to vector<32x32xbf16>
    %27 = vector.shape_cast %24 : vector<32x32xbf16> to vector<1x32x32xbf16>
    tpu.vector_store %arg21[%c3, %c0_14, %c0_15], %27 {strides = array<i32>} : memref<4x32x32xbf16, #tpu.memory_space<vmem>>, vector<1x32x32xbf16>,
    %c0_16 = arith.constant 0 : index
    %c0_17 = arith.constant 0 : index
    %c0_18 = arith.constant 0 : index
    %28 = vector.load %arg21[%c0_16, %c0_17, %c0_18] : memref<4x32x32xbf16, #tpu.memory_space<vmem>>, vector<4x32x32xbf16>
    %cst_19 = arith.constant 0xFF800000 : f32
    %29 = vector.broadcast %cst_19 : f32 to vector<4x32x1xf32>
    %cst_20 = arith.constant 0.000000e+00 : f32
    %30 = vector.broadcast %cst_20 : f32 to vector<4x32x1xf32>
    %cst_21 = arith.constant 0.000000e+00 : f32
    %31 = vector.broadcast %cst_21 : f32 to vector<4x32x32xf32>
    %c0_22 = arith.constant 0 : index
    %c0_23 = arith.constant 0 : index
    %c0_24 = arith.constant 0 : index
    %32 = vector.load %arg19[%c0_22, %c0_23, %c0_24] : memref<4x64x32xbf16, #tpu.memory_space<vmem>>, vector<4x64x32xbf16>
    %c0_25 = arith.constant 0 : index
    %c0_26 = arith.constant 0 : index
    %c0_27 = arith.constant 0 : index
    %33 = vector.load %arg20[%c0_25, %c0_26, %c0_27] : memref<4x64x32xbf16, #tpu.memory_space<vmem>>, vector<4x64x32xbf16>
    %cst_28 = arith.constant dense<0.000000e+00> : vector<4x32x64xf32>
    %34 = tpu.matmul %28, %32, %cst_28 {dimension_numbers = #tpu.dot_dimension_numbers<[2], [2], [1], [1], [0, 0, 0, 1, 1, 1], [0], [0]>} : vector<4x32x32xbf16>, vector<4x64x32xbf16>, vector<4x32x64xf32> -> vector<4x32x64xf32>
    %cst_29 = arith.constant dense<0xFF800000> : vector<4x32xf32>
    %35 = vector.multi_reduction <maximumf>, %34, %cst_29 [2] : vector<4x32x64xf32> to vector<4x32xf32>
    %36 = vector.shape_cast %35 : vector<4x32xf32> to vector<4x32x1xf32>
    %37 = arith.maximumf %29, %36 : vector<4x32x1xf32>
    %38 = arith.subf %29, %37 : vector<4x32x1xf32>
    %39 = math.exp %38 : vector<4x32x1xf32>
    %40 = vector.broadcast %37 : vector<4x32x1xf32> to vector<4x32x64xf32>
    %41 = arith.subf %34, %40 : vector<4x32x64xf32>
    %42 = math.exp %41 : vector<4x32x64xf32>
    %43 = arith.mulf %39, %30 : vector<4x32x1xf32>
    %cst_30 = arith.constant dense<0.000000e+00> : vector<4x32xf32>
    %44 = vector.multi_reduction <add>, %42, %cst_30 [2] : vector<4x32x64xf32> to vector<4x32xf32>
    %45 = vector.shape_cast %44 : vector<4x32xf32> to vector<4x32x1xf32>
    %46 = arith.addf %43, %45 : vector<4x32x1xf32>
    %47 = vector.broadcast %39 : vector<4x32x1xf32> to vector<4x32x32xf32>
    %48 = arith.mulf %47, %31 : vector<4x32x32xf32>
    %49 = arith.truncf %42 : vector<4x32x64xf32> to vector<4x32x64xbf16>
    %cst_31 = arith.constant dense<0.000000e+00> : vector<4x32x32xf32>
    %50 = tpu.matmul %49, %33, %cst_31 {dimension_numbers = #tpu.dot_dimension_numbers<[2], [1], [1], [2], [0, 0, 0, 1, 1, 2], [0], [0]>} : vector<4x32x64xbf16>, vector<4x64x32xbf16>, vector<4x32x32xf32> -> vector<4x32x32xf32>
    %51 = arith.addf %48, %50 : vector<4x32x32xf32>
    %52 = tpu.reciprocal %46 {approx = true} : vector<4x32x1xf32> -> vector<4x32x1xf32>
    %53 = vector.broadcast %52 : vector<4x32x1xf32> to vector<4x32x32xf32>
    %54 = arith.mulf %51, %53 : vector<4x32x32xf32>
    %55 = arith.truncf %54 : vector<4x32x32xf32> to vector<4x32x32xbf16>
    %56 = vector.extract_strided_slice %55 {offsets = [0, 0, 0], sizes = [1, 32, 32], strides = [1, 1, 1]} : vector<4x32x32xbf16> to vector<1x32x32xbf16>
    %57 = vector.shape_cast %56 : vector<1x32x32xbf16> to vector<32x32xbf16>
    %c0_32 = arith.constant 0 : index
    %c0_33 = arith.constant 0 : index
    %58 = vector.load %arg22[%c0_32, %c0_33] : memref<32x128xbf16, #tpu.memory_space<vmem>>, vector<32x32xbf16>
    tpu.vector_store %arg22[%c0_32, %c0_33], %57 {strides = array<i32>} : memref<32x128xbf16, #tpu.memory_space<vmem>>, vector<32x32xbf16>,
    %59 = vector.extract_strided_slice %55 {offsets = [1, 0, 0], sizes = [1, 32, 32], strides = [1, 1, 1]} : vector<4x32x32xbf16> to vector<1x32x32xbf16>
    %60 = vector.shape_cast %59 : vector<1x32x32xbf16> to vector<32x32xbf16>
    %c0_34 = arith.constant 0 : index
    %c32 = arith.constant 32 : index
    %61 = vector.load %arg22[%c0_34, %c32] : memref<32x128xbf16, #tpu.memory_space<vmem>>, vector<32x32xbf16>
    tpu.vector_store %arg22[%c0_34, %c32], %60 {strides = array<i32>} : memref<32x128xbf16, #tpu.memory_space<vmem>>, vector<32x32xbf16>,
    %62 = vector.extract_strided_slice %55 {offsets = [2, 0, 0], sizes = [1, 32, 32], strides = [1, 1, 1]} : vector<4x32x32xbf16> to vector<1x32x32xbf16>
    %63 = vector.shape_cast %62 : vector<1x32x32xbf16> to vector<32x32xbf16>
    %c0_35 = arith.constant 0 : index
    %c64 = arith.constant 64 : index
    %64 = vector.load %arg22[%c0_35, %c64] : memref<32x128xbf16, #tpu.memory_space<vmem>>, vector<32x32xbf16>
    tpu.vector_store %arg22[%c0_35, %c64], %63 {strides = array<i32>} : memref<32x128xbf16, #tpu.memory_space<vmem>>, vector<32x32xbf16>,
    %65 = vector.extract_strided_slice %55 {offsets = [3, 0, 0], sizes = [1, 32, 32], strides = [1, 1, 1]} : vector<4x32x32xbf16> to vector<1x32x32xbf16>
    %66 = vector.shape_cast %65 : vector<1x32x32xbf16> to vector<32x32xbf16>
    %c0_36 = arith.constant 0 : index
    %c96 = arith.constant 96 : index
    %67 = vector.load %arg22[%c0_36, %c96] : memref<32x128xbf16, #tpu.memory_space<vmem>>, vector<32x32xbf16>
    tpu.vector_store %arg22[%c0_36, %c96], %66 {strides = array<i32>} : memref<32x128xbf16, #tpu.memory_space<vmem>>, vector<32x32xbf16>,
    %c0_37 = arith.constant 0 : index
    %c0_38 = arith.constant 0 : index
    %68 = vector.load %arg22[%c0_37, %c0_38] : memref<32x128xbf16, #tpu.memory_space<vmem>>, vector<32x128xbf16>
    %c0_39 = arith.constant 0 : index
    %c0_40 = arith.constant 0 : index
    %69 = vector.load %arg8[%c0_39, %c0_40] : memref<128x128xbf16, #tpu.memory_space<vmem>>, vector<128x128xbf16>
    %cst_41 = arith.constant dense<0.000000e+00> : vector<32x128xf32>
    %70 = tpu.matmul %68, %69, %cst_41 {dimension_numbers = #tpu.dot_dimension_numbers<[1], [0], [0], [1], [0, 0, 1, 1], [], []>} : vector<32x128xbf16>, vector<128x128xbf16>, vector<32x128xf32> -> vector<32x128xf32>
    %c0_42 = arith.constant 0 : index
    %c0_43 = arith.constant 0 : index
    %71 = vector.load %arg9[%c0_42, %c0_43] : memref<1x128xf32, #tpu.memory_space<vmem>>, vector<1x128xf32>
    %72 = vector.broadcast %71 : vector<1x128xf32> to vector<32x128xf32>
    %73 = arith.addf %70, %72 : vector<32x128xf32>
    %74 = arith.addf %73, %4 : vector<32x128xf32>
    %cst_44 = arith.constant dense<0.000000e+00> : vector<32xf32>
    %75 = vector.multi_reduction <add>, %74, %cst_44 [1] : vector<32x128xf32> to vector<32xf32>
    %76 = vector.shape_cast %75 : vector<32xf32> to vector<32x1xf32>
    %cst_45 = arith.constant 1.280000e+02 : f32
    %77 = vector.broadcast %cst_45 : f32 to vector<32x1xf32>
    %78 = arith.divf %76, %77 : vector<32x1xf32>
    %79 = vector.broadcast %78 : vector<32x1xf32> to vector<32x128xf32>
    %80 = arith.subf %74, %79 : vector<32x128xf32>
    %81 = arith.mulf %80, %80 : vector<32x128xf32>
    %cst_46 = arith.constant dense<0.000000e+00> : vector<32xf32>
    %82 = vector.multi_reduction <add>, %81, %cst_46 [1] : vector<32x128xf32> to vector<32xf32>
    %83 = vector.shape_cast %82 : vector<32xf32> to vector<32x1xf32>
    %cst_47 = arith.constant 1.280000e+02 : f32
    %84 = vector.broadcast %cst_47 : f32 to vector<32x1xf32>
    %85 = arith.divf %83, %84 : vector<32x1xf32>
    %86 = vector.broadcast %78 : vector<32x1xf32> to vector<32x128xf32>
    %87 = arith.subf %74, %86 : vector<32x128xf32>
    %cst_48 = arith.constant 9.99999974E-6 : f32
    %88 = vector.broadcast %cst_48 : f32 to vector<32x1xf32>
    %89 = arith.addf %85, %88 : vector<32x1xf32>
    %90 = math.rsqrt %89 : vector<32x1xf32>
    %91 = vector.broadcast %90 : vector<32x1xf32> to vector<32x128xf32>
    %92 = arith.mulf %87, %91 : vector<32x128xf32>
    %c0_49 = arith.constant 0 : index
    %c0_50 = arith.constant 0 : index
    %93 = vector.load %arg10[%c0_49, %c0_50] : memref<1x128xf32, #tpu.memory_space<vmem>>, vector<1x128xf32>
    %94 = vector.broadcast %93 : vector<1x128xf32> to vector<32x128xf32>
    %95 = arith.mulf %94, %92 : vector<32x128xf32>
    %c0_51 = arith.constant 0 : index
    %c0_52 = arith.constant 0 : index
    %96 = vector.load %arg11[%c0_51, %c0_52] : memref<1x128xf32, #tpu.memory_space<vmem>>, vector<1x128xf32>
    %97 = vector.broadcast %96 : vector<1x128xf32> to vector<32x128xf32>
    %98 = arith.addf %95, %97 : vector<32x128xf32>
    %99 = arith.truncf %98 : vector<32x128xf32> to vector<32x128xbf16>
    %cst_53 = arith.constant 0.000000e+00 : f32
    %100 = vector.broadcast %cst_53 : f32 to vector<32x128xf32>
    %c0_54 = arith.constant 0 : index
    %c0_55 = arith.constant 0 : index
    %101 = vector.load %arg12[%c0_54, %c0_55] : memref<128x256xbf16, #tpu.memory_space<vmem>>, vector<128x256xbf16>
    %cst_56 = arith.constant dense<0.000000e+00> : vector<32x256xf32>
    %102 = tpu.matmul %99, %101, %cst_56 {dimension_numbers = #tpu.dot_dimension_numbers<[1], [0], [0], [1], [0, 0, 1, 1], [], []>} : vector<32x128xbf16>, vector<128x256xbf16>, vector<32x256xf32> -> vector<32x256xf32>
    %c0_57 = arith.constant 0 : index
    %c0_58 = arith.constant 0 : index
    %103 = vector.load %arg13[%c0_57, %c0_58] : memref<1x256xf32, #tpu.memory_space<vmem>>, vector<1x256xf32>
    %104 = vector.broadcast %103 : vector<1x256xf32> to vector<32x256xf32>
    %105 = arith.addf %102, %104 : vector<32x256xf32>
    %cst_59 = arith.constant 0.000000e+00 : f32
    %106 = vector.broadcast %cst_59 : f32 to vector<32x256xf32>
    %107 = arith.maximumf %105, %106 : vector<32x256xf32>
    %108 = arith.truncf %107 : vector<32x256xf32> to vector<32x256xbf16>
    %c0_60 = arith.constant 0 : index
    %c0_61 = arith.constant 0 : index
    %109 = vector.load %arg14[%c0_60, %c0_61] : memref<256x128xbf16, #tpu.memory_space<vmem>>, vector<256x128xbf16>
    %cst_62 = arith.constant dense<0.000000e+00> : vector<32x128xf32>
    %110 = tpu.matmul %108, %109, %cst_62 {dimension_numbers = #tpu.dot_dimension_numbers<[1], [0], [0], [1], [0, 0, 1, 1], [], []>} : vector<32x256xbf16>, vector<256x128xbf16>, vector<32x128xf32> -> vector<32x128xf32>
    %111 = arith.addf %100, %110 : vector<32x128xf32>
    %c0_63 = arith.constant 0 : index
    %c0_64 = arith.constant 0 : index
    %112 = vector.load %arg15[%c0_63, %c0_64] : memref<1x128xf32, #tpu.memory_space<vmem>>, vector<1x128xf32>
    %113 = vector.broadcast %112 : vector<1x128xf32> to vector<32x128xf32>
    %114 = arith.addf %111, %113 : vector<32x128xf32>
    %115 = arith.addf %114, %98 : vector<32x128xf32>
    %cst_65 = arith.constant dense<0.000000e+00> : vector<32xf32>
    %116 = vector.multi_reduction <add>, %115, %cst_65 [1] : vector<32x128xf32> to vector<32xf32>
    %117 = vector.shape_cast %116 : vector<32xf32> to vector<32x1xf32>
    %cst_66 = arith.constant 1.280000e+02 : f32
    %118 = vector.broadcast %cst_66 : f32 to vector<32x1xf32>
    %119 = arith.divf %117, %118 : vector<32x1xf32>
    %120 = vector.broadcast %119 : vector<32x1xf32> to vector<32x128xf32>
    %121 = arith.subf %115, %120 : vector<32x128xf32>
    %122 = arith.mulf %121, %121 : vector<32x128xf32>
    %cst_67 = arith.constant dense<0.000000e+00> : vector<32xf32>
    %123 = vector.multi_reduction <add>, %122, %cst_67 [1] : vector<32x128xf32> to vector<32xf32>
    %124 = vector.shape_cast %123 : vector<32xf32> to vector<32x1xf32>
    %cst_68 = arith.constant 1.280000e+02 : f32
    %125 = vector.broadcast %cst_68 : f32 to vector<32x1xf32>
    %126 = arith.divf %124, %125 : vector<32x1xf32>
    %127 = vector.broadcast %119 : vector<32x1xf32> to vector<32x128xf32>
    %128 = arith.subf %115, %127 : vector<32x128xf32>
    %cst_69 = arith.constant 9.99999974E-6 : f32
    %129 = vector.broadcast %cst_69 : f32 to vector<32x1xf32>
    %130 = arith.addf %126, %129 : vector<32x1xf32>
    %131 = math.rsqrt %130 : vector<32x1xf32>
    %132 = vector.broadcast %131 : vector<32x1xf32> to vector<32x128xf32>
    %133 = arith.mulf %128, %132 : vector<32x128xf32>
    %c0_70 = arith.constant 0 : index
    %c0_71 = arith.constant 0 : index
    %134 = vector.load %arg16[%c0_70, %c0_71] : memref<1x128xf32, #tpu.memory_space<vmem>>, vector<1x128xf32>
    %135 = vector.broadcast %134 : vector<1x128xf32> to vector<32x128xf32>
    %136 = arith.mulf %135, %133 : vector<32x128xf32>
    %c0_72 = arith.constant 0 : index
    %c0_73 = arith.constant 0 : index
    %137 = vector.load %arg17[%c0_72, %c0_73] : memref<1x128xf32, #tpu.memory_space<vmem>>, vector<1x128xf32>
    %138 = vector.broadcast %137 : vector<1x128xf32> to vector<32x128xf32>
    %139 = arith.addf %136, %138 : vector<32x128xf32>
    %c0_74 = arith.constant 0 : index
    %c0_75 = arith.constant 0 : index
    %c0_76 = arith.constant 0 : index
    %140 = vector.load %arg18[%c0_74, %c0_75, %c0_76] : memref<1x32x128xf32, #tpu.memory_space<vmem>>, vector<1x32x128xf32>
    %141 = vector.shape_cast %140 : vector<1x32x128xf32> to vector<32x128xf32>
    %142 = vector.shape_cast %139 : vector<32x128xf32> to vector<1x32x128xf32>
    tpu.vector_store %arg18[%c0_74, %c0_75, %c0_76], %142 {strides = array<i32>} : memref<1x32x128xf32, #tpu.memory_space<vmem>>, vector<1x32x128xf32>,
    return
  }
  func.func @transform_0(%arg0: i32, %arg1: i32) -> (i32, i32, i32) {
    %c0_i32 = arith.constant 0 : i32
    %c0_i32_0 = arith.constant 0 : i32
    return %arg0, %arg1, %c0_i32 : i32, i32, i32
  }
  func.func @transform_1(%arg0: i32, %arg1: i32) -> (i32, i32, i32) {
    %c0_i32 = arith.constant 0 : i32
    %c0_i32_0 = arith.constant 0 : i32
    %c0_i32_1 = arith.constant 0 : i32
    return %arg0, %c0_i32, %c0_i32_0 : i32, i32, i32
  }
  func.func @transform_2(%arg0: i32, %arg1: i32) -> (i32, i32) {
    %c0_i32 = arith.constant 0 : i32
    %c0_i32_0 = arith.constant 0 : i32
    %c0_i32_1 = arith.constant 0 : i32
    return %c0_i32, %c0_i32_0 : i32, i32
  }
  func.func @transform_3(%arg0: i32, %arg1: i32) -> (i32, i32) {
    %c0_i32 = arith.constant 0 : i32
    %c0_i32_0 = arith.constant 0 : i32
    %c0_i32_1 = arith.constant 0 : i32
    return %c0_i32, %c0_i32_0 : i32, i32
  }
  func.func @transform_4(%arg0: i32, %arg1: i32) -> (i32, i32) {
    %c0_i32 = arith.constant 0 : i32
    %c0_i32_0 = arith.constant 0 : i32
    %c0_i32_1 = arith.constant 0 : i32
    return %c0_i32, %c0_i32_0 : i32, i32
  }
  func.func @transform_5(%arg0: i32, %arg1: i32) -> (i32, i32) {
    %c0_i32 = arith.constant 0 : i32
    %c0_i32_0 = arith.constant 0 : i32
    %c0_i32_1 = arith.constant 0 : i32
    return %c0_i32, %c0_i32_0 : i32, i32
  }
  func.func @transform_6(%arg0: i32, %arg1: i32) -> (i32, i32) {
    %c0_i32 = arith.constant 0 : i32
    %c0_i32_0 = arith.constant 0 : i32
    %c0_i32_1 = arith.constant 0 : i32
    return %c0_i32, %c0_i32_0 : i32, i32
  }
  func.func @transform_7(%arg0: i32, %arg1: i32) -> (i32, i32) {
    %c0_i32 = arith.constant 0 : i32
    %c0_i32_0 = arith.constant 0 : i32
    %c0_i32_1 = arith.constant 0 : i32
    return %c0_i32, %c0_i32_0 : i32, i32
  }
  func.func @transform_8(%arg0: i32, %arg1: i32) -> (i32, i32) {
    %c0_i32 = arith.constant 0 : i32
    %c0_i32_0 = arith.constant 0 : i32
    %c0_i32_1 = arith.constant 0 : i32
    return %c0_i32, %c0_i32_0 : i32, i32
  }
  func.func @transform_9(%arg0: i32, %arg1: i32) -> (i32, i32) {
    %c0_i32 = arith.constant 0 : i32
    %c0_i32_0 = arith.constant 0 : i32
    %c0_i32_1 = arith.constant 0 : i32
    return %c0_i32, %c0_i32_0 : i32, i32
  }
  func.func @transform_10(%arg0: i32, %arg1: i32) -> (i32, i32) {
    %c0_i32 = arith.constant 0 : i32
    %c0_i32_0 = arith.constant 0 : i32
    %c0_i32_1 = arith.constant 0 : i32
    return %c0_i32, %c0_i32_0 : i32, i32
  }
  func.func @transform_11(%arg0: i32, %arg1: i32) -> (i32, i32) {
    %c0_i32 = arith.constant 0 : i32
    %c0_i32_0 = arith.constant 0 : i32
    %c0_i32_1 = arith.constant 0 : i32
    return %c0_i32, %c0_i32_0 : i32, i32
  }
  func.func @transform_12(%arg0: i32, %arg1: i32) -> (i32, i32) {
    %c0_i32 = arith.constant 0 : i32
    %c0_i32_0 = arith.constant 0 : i32
    %c0_i32_1 = arith.constant 0 : i32
    return %c0_i32, %c0_i32_0 : i32, i32
  }
  func.func @transform_13(%arg0: i32, %arg1: i32) -> (i32, i32) {
    %c0_i32 = arith.constant 0 : i32
    %c0_i32_0 = arith.constant 0 : i32
    %c0_i32_1 = arith.constant 0 : i32
    return %c0_i32, %c0_i32_0 : i32, i32
  }
  func.func @transform_14(%arg0: i32, %arg1: i32) -> (i32, i32) {
    %c0_i32 = arith.constant 0 : i32
    %c0_i32_0 = arith.constant 0 : i32
    %c0_i32_1 = arith.constant 0 : i32
    return %c0_i32, %c0_i32_0 : i32, i32
  }
  func.func @transform_15(%arg0: i32, %arg1: i32) -> (i32, i32) {
    %c0_i32 = arith.constant 0 : i32
    %c0_i32_0 = arith.constant 0 : i32
    %c0_i32_1 = arith.constant 0 : i32
    return %c0_i32, %c0_i32_0 : i32, i32
  }
  func.func @transform_16(%arg0: i32, %arg1: i32) -> (i32, i32, i32) {
    %c0_i32 = arith.constant 0 : i32
    %c0_i32_0 = arith.constant 0 : i32
    return %arg0, %arg1, %c0_i32 : i32, i32, i32
  }
}

</mosaic_0001>

<llo_original>
// kernel: tpu_custom_call.1
$region0: #{tpu_custom_call.1}
  #allocation0 [shape = 'u32[]', space=smem, size = 0x4, offset = 0x4, fixed_abs, tag = 'smem constant byte address 0x4 - core index']
  #allocation1 [shape = 'u32[144,128]{1,0:T(1,128)}', space=vmem, size = 0x12000, scoped, tag = 'internal scratch']
  #allocation2 [shape = 'bf16[4,64,32]{2,1,0:T(16,128)(2,1)}', space=vmem, size = 0x10000, scoped, tag = 'scratch operand']
  #allocation3 [shape = 'bf16[4,64,32]{2,1,0:T(16,128)(2,1)}', space=vmem, size = 0x10000, scoped, tag = 'scratch operand']
  #allocation4 [shape = 'bf16[4,32,32]{2,1,0:T(16,128)(2,1)}', space=vmem, size = 0x8000, scoped, tag = 'scratch operand']
  #allocation5 [shape = 'bf16[32,128]{1,0:T(16,128)(2,1)}', space=vmem, size = 0x2000, scoped, tag = 'scratch operand']
  %s0 = inlined_call_operand.hbm [shape: f32[2,64,128], index: 0, kind: input, shape index: {}]
  %s1 = inlined_call_operand.hbm [shape: bf16[2,64,128], index: 1, kind: input, shape index: {}]
  %s2 = inlined_call_operand.hbm [shape: bf16[128,128], index: 2, kind: input, shape index: {}]
  %s3 = inlined_call_operand.vmem [shape: f32[1,128], index: 3, kind: input, shape index: {}]
  %s4 = inlined_call_operand.hbm [shape: bf16[128,256], index: 4, kind: input, shape index: {}]
  %s5 = inlined_call_operand.vmem [shape: f32[1,256], index: 5, kind: input, shape index: {}]
  %s6 = inlined_call_operand.hbm [shape: bf16[128,128], index: 6, kind: input, shape index: {}]
  %s7 = inlined_call_operand.vmem [shape: f32[1,128], index: 7, kind: input, shape index: {}]
  %s8 = inlined_call_operand.vmem [shape: f32[1,128], index: 8, kind: input, shape index: {}]
  %s9 = inlined_call_operand.vmem [shape: f32[1,128], index: 9, kind: input, shape index: {}]
  %s10 = inlined_call_operand.hbm [shape: bf16[128,256], index: 10, kind: input, shape index: {}]
  %s11 = inlined_call_operand.vmem [shape: f32[1,256], index: 11, kind: input, shape index: {}]
  %s12 = inlined_call_operand.hbm [shape: bf16[256,128], index: 12, kind: input, shape index: {}]
  %s13 = inlined_call_operand.vmem [shape: f32[1,128], index: 13, kind: input, shape index: {}]
  %s14 = inlined_call_operand.vmem [shape: f32[1,128], index: 14, kind: input, shape index: {}]
  %s15 = inlined_call_operand.vmem [shape: f32[1,128], index: 15, kind: input, shape index: {}]
  %s16 = inlined_call_operand.hbm [shape: f32[2,64,128], index: 16, kind: output, shape index: {}]
  %s17 = sld [smem:[#allocation0]]
  $region129: #{tpu_custom_call.1} parent=0
    _
  %s19 = ssub.s32 1, %s17
  %s20 = scalar_select 0, %s19, %s17
  $region1: #{tpu_custom_call.1} parent=0
    #allocation6 [shape = 'u8[32768]{0}', space=vmem, size = 0x8000, scoped, tag = 'input window, operand 0']
    #allocation7 [shape = 's32[2]{0}', space=sflag, size = 0x8, scoped, tag = 'scoped memory for tpu_custom_call.1']
    #allocation8 [shape = 's32[2]{0}', space=sflag, size = 0x8, scoped, tag = 'scoped memory for tpu_custom_call.1']
    #allocation9 [shape = 'u8[32768]{0}', space=vmem, size = 0x8000, scoped, tag = 'input window, operand 1']
    #allocation10 [shape = 's32[2]{0}', space=sflag, size = 0x8, scoped, tag = 'scoped memory for tpu_custom_call.1']
    #allocation11 [shape = 'u8[32768]{0}', space=vmem, size = 0x8000, scoped, tag = 'input window, operand 2, single buffered']
    #allocation12 [shape = 'u8[65536]{0}', space=vmem, size = 0x10000, scoped, tag = 'input window, operand 4, single buffered']
    #allocation13 [shape = 's32[1]{0}', space=sflag, size = 0x4, scoped, tag = 'scoped memory for tpu_custom_call.1']
    #allocation14 [shape = 'u8[32768]{0}', space=vmem, size = 0x8000, scoped, tag = 'input window, operand 6, single buffered']
    #allocation15 [shape = 'u8[65536]{0}', space=vmem, size = 0x10000, scoped, tag = 'input window, operand 10, single buffered']
    #allocation16 [shape = 's32[1]{0}', space=sflag, size = 0x4, scoped, tag = 'scoped memory for tpu_custom_call.1']
    #allocation17 [shape = 'u8[65536]{0}', space=vmem, size = 0x10000, scoped, tag = 'input window, operand 12, single buffered']
    #allocation18 [shape = 'u8[32768]{0}', space=vmem, size = 0x8000, scoped, tag = 'output window, operand 0']
    %21 = vsyncpa [#allocation7], 0
    %s22 = scalar_lea.sflag [#allocation7], 1
    %23 = vsyncpa %s22, 0
    %24 = vsyncpa [#allocation10], 0
    %s25 = scalar_lea.sflag [#allocation10], 1
    %26 = vsyncpa %s25, 0
    %27 = vsyncpa [#allocation13], 0
    %28 = vsyncpa [#allocation16], 0
    %29 = vsyncpa [#allocation8], 0
    %s30 = scalar_lea.sflag [#allocation8], 1
    %31 = vsyncpa %s30, 0
    loop: start=0, step=1, limit=6
    $region2: #{tpu_custom_call.1} parent=1 // loop_pre_header
      _
    $region3: #{tpu_custom_call.1} parent=1 // loop_header
      %s33 = sphi 0, %s37
      %p34 = scmp.ge.s32.totalorder %s33, 6
      %s40 = sphi 0, %s52
      %s41 = sphi 0, %s48
      %s42 = sphi 0, %s40
      %s43 = sphi 0, %s41
      %s44 = sphi 0, %s42
      %s45 = sphi 0, %s43
      %s57 = sphi 0, %s59
      %s60 = sphi 0, %s57
      %s61 = sphi 0, %s60
      %s77 = sphi 0, %s61
      %s83 = sphi 0, %s85
      %s86 = sphi 0, %s83
      %s87 = sphi 0, %s86
      %s103 = sphi 0, %s87
      %s107 = sphi 0, %s107
      %s109 = sphi 0, %s107
      %s110 = sphi 0, %s109
      %s124 = sphi 0, %s110
      %s128 = sphi 0, %s128
      %s130 = sphi 0, %s128
      %s131 = sphi 0, %s130
      %s145 = sphi 0, %s131
      %s149 = sphi 0, %s149
      %s151 = sphi 0, %s149
      %s152 = sphi 0, %s151
      %s166 = sphi 0, %s152
      %s170 = sphi 0, %s170
      %s172 = sphi 0, %s170
      %s173 = sphi 0, %s172
      %s187 = sphi 0, %s173
      %s191 = sphi 0, %s191
      %s193 = sphi 0, %s191
      %s194 = sphi 0, %s193
      %s208 = sphi 0, %s194
      %s212 = sphi 0, %s212
      %s214 = sphi 0, %s212
      %s215 = sphi 0, %s214
      %s229 = sphi 0, %s215
      %s233 = sphi 0, %s233
      %s235 = sphi 0, %s233
      %s236 = sphi 0, %s235
      %s250 = sphi 0, %s236
      %s254 = sphi 0, %s254
      %s256 = sphi 0, %s254
      %s257 = sphi 0, %s256
      %s271 = sphi 0, %s257
      %s275 = sphi 0, %s275
      %s277 = sphi 0, %s275
      %s278 = sphi 0, %s277
      %s292 = sphi 0, %s278
      %s296 = sphi 0, %s296
      %s298 = sphi 0, %s296
      %s299 = sphi 0, %s298
      %s313 = sphi 0, %s299
      %s317 = sphi 0, %s317
      %s319 = sphi 0, %s317
      %s320 = sphi 0, %s319
      %s334 = sphi 0, %s320
      %s338 = sphi 0, %s338
      %s340 = sphi 0, %s338
      %s341 = sphi 0, %s340
      %s355 = sphi 0, %s341
      %s359 = sphi 0, %s359
      %s361 = sphi 0, %s359
      %s362 = sphi 0, %s361
      %s376 = sphi 0, %s362
      %s380 = sphi 0, %s380
      %s382 = sphi 0, %s380
      %s383 = sphi 0, %s382
      %s397 = sphi 0, %s383
      %s405 = sphi 0, %s407
      %s408 = sphi 0, %s405
      %s409 = sphi 0, %s408
      %s425 = sphi 0, %s409
    $region4: #{tpu_custom_call.1} parent=1 // loop_header_branch
      %36 = sbr.rel (%p34) target = $region8
    $region5: #{tpu_custom_call.1} parent=1 // loop_body
      %s38 = ssub.s32 %s33, 1
      %s39 = ssub.s32 %s33, 2
      %s46 = sadd.s32 1, %s41
      %p47 = scmp.ge.s32.totalorder %s46, 2
      %s48 = scalar_select %p47, 0, %s46
      %s49 = sadd.s32 1, %s40
      %s50 = scalar_select %p47, %s49, %s40
      %p51 = scmp.ge.s32.totalorder %s50, 2
      %s52 = scalar_select %p51, 0, %s50
      %s53 = ssub.s32 %s40, %s52
      %s54 = ssub.s32 %s41, %s48
      %s55 = sor.u32 %s53, %s54
      %p56 = scmp.eq.s32.totalorder %s55, 0
      %s58 = sadd.s32 %s57, 1
      %s59 = scalar_select %p56, %s57, %s58
      %p62 = pneg %p56
      %p63 = scmp.eq.s32.totalorder %s33, 3
      %p64 = por %p62, %p63
      %p65 = scmp.ne.s32.totalorder %s57, %s60
      %p66 = scmp.eq.s32.totalorder %s33, 0
      %p67 = por %p65, %p66
      %p68 = scmp.ne.s32.totalorder %s57, %s60
      %p69 = scmp.eq.s32.totalorder %s38, 3
      %p70 = por %p68, %p69
      %p71 = scmp.ne.s32.totalorder %s60, %s61
      %p72 = scmp.eq.s32.totalorder %s38, 0
      %p73 = por %p71, %p72
      %p74 = scmp.ne.s32.totalorder %s60, %s61
      %p75 = scmp.eq.s32.totalorder %s39, 3
      %p76 = por %p74, %p75
      %p78 = scmp.ne.s32.totalorder %s61, %s77
      %p79 = scmp.eq.s32.totalorder %s39, 0
      %p80 = por %p78, %p79
      %s81 = ssub.s32 %s40, %s52
      %p82 = scmp.eq.s32.totalorder %s81, 0
      %s84 = sadd.s32 %s83, 1
      %s85 = scalar_select %p82, %s83, %s84
      %p88 = pneg %p82
      %p89 = scmp.eq.s32.totalorder %s33, 3
      %p90 = por %p88, %p89
      %p91 = scmp.ne.s32.totalorder %s83, %s86
      %p92 = scmp.eq.s32.totalorder %s33, 0
      %p93 = por %p91, %p92
      %p94 = scmp.ne.s32.totalorder %s83, %s86
      %p95 = scmp.eq.s32.totalorder %s38, 3
      %p96 = por %p94, %p95
      %p97 = scmp.ne.s32.totalorder %s86, %s87
      %p98 = scmp.eq.s32.totalorder %s38, 0
      %p99 = por %p97, %p98
      %p100 = scmp.ne.s32.totalorder %s86, %s87
      %p101 = scmp.eq.s32.totalorder %s39, 3
      %p102 = por %p100, %p101
      %p104 = scmp.ne.s32.totalorder %s87, %s103
      %p105 = scmp.eq.s32.totalorder %s39, 0
      %p106 = por %p104, %p105
      %s108 = sadd.s32 %s107, 1
      %p111 = scmp.eq.s32.totalorder %s33, 3
      %p112 = scmp.ne.s32.totalorder %s107, %s109
      %p113 = scmp.eq.s32.totalorder %s33, 0
      %p114 = por %p112, %p113
      %p115 = scmp.ne.s32.totalorder %s107, %s109
      %p116 = scmp.eq.s32.totalorder %s38, 3
      %p117 = por %p115, %p116
      %p118 = scmp.ne.s32.totalorder %s109, %s110
      %p119 = scmp.eq.s32.totalorder %s38, 0
      %p120 = por %p118, %p119
      %p121 = scmp.ne.s32.totalorder %s109, %s110
      %p122 = scmp.eq.s32.totalorder %s39, 3
      %p123 = por %p121, %p122
      %p125 = scmp.ne.s32.totalorder %s110, %s124
      %p126 = scmp.eq.s32.totalorder %s39, 0
      %p127 = por %p125, %p126
      %s129 = sadd.s32 %s128, 1
      %p132 = scmp.eq.s32.totalorder %s33, 3
      %p133 = scmp.ne.s32.totalorder %s128, %s130
      %p134 = scmp.eq.s32.totalorder %s33, 0
      %p135 = por %p133, %p134
      %p136 = scmp.ne.s32.totalorder %s128, %s130
      %p137 = scmp.eq.s32.totalorder %s38, 3
      %p138 = por %p136, %p137
      %p139 = scmp.ne.s32.totalorder %s130, %s131
      %p140 = scmp.eq.s32.totalorder %s38, 0
      %p141 = por %p139, %p140
      %p142 = scmp.ne.s32.totalorder %s130, %s131
      %p143 = scmp.eq.s32.totalorder %s39, 3
      %p144 = por %p142, %p143
      %p146 = scmp.ne.s32.totalorder %s131, %s145
      %p147 = scmp.eq.s32.totalorder %s39, 0
      %p148 = por %p146, %p147
      %s150 = sadd.s32 %s149, 1
      %p153 = scmp.eq.s32.totalorder %s33, 3
      %p154 = scmp.ne.s32.totalorder %s149, %s151
      %p155 = scmp.eq.s32.totalorder %s33, 0
      %p156 = por %p154, %p155
      %p157 = scmp.ne.s32.totalorder %s149, %s151
      %p158 = scmp.eq.s32.totalorder %s38, 3
      %p159 = por %p157, %p158
      %p160 = scmp.ne.s32.totalorder %s151, %s152
      %p161 = scmp.eq.s32.totalorder %s38, 0
      %p162 = por %p160, %p161
      %p163 = scmp.ne.s32.totalorder %s151, %s152
      %p164 = scmp.eq.s32.totalorder %s39, 3
      %p165 = por %p163, %p164
      %p167 = scmp.ne.s32.totalorder %s152, %s166
      %p168 = scmp.eq.s32.totalorder %s39, 0
      %p169 = por %p167, %p168
      %s171 = sadd.s32 %s170, 1
      %p174 = scmp.eq.s32.totalorder %s33, 3
      %p175 = scmp.ne.s32.totalorder %s170, %s172
      %p176 = scmp.eq.s32.totalorder %s33, 0
      %p177 = por %p175, %p176
      %p178 = scmp.ne.s32.totalorder %s170, %s172
      %p179 = scmp.eq.s32.totalorder %s38, 3
      %p180 = por %p178, %p179
      %p181 = scmp.ne.s32.totalorder %s172, %s173
      %p182 = scmp.eq.s32.totalorder %s38, 0
      %p183 = por %p181, %p182
      %p184 = scmp.ne.s32.totalorder %s172, %s173
      %p185 = scmp.eq.s32.totalorder %s39, 3
      %p186 = por %p184, %p185
      %p188 = scmp.ne.s32.totalorder %s173, %s187
      %p189 = scmp.eq.s32.totalorder %s39, 0
      %p190 = por %p188, %p189
      %s192 = sadd.s32 %s191, 1
      %p195 = scmp.eq.s32.totalorder %s33, 3
      %p196 = scmp.ne.s32.totalorder %s191, %s193
      %p197 = scmp.eq.s32.totalorder %s33, 0
      %p198 = por %p196, %p197
      %p199 = scmp.ne.s32.totalorder %s191, %s193
      %p200 = scmp.eq.s32.totalorder %s38, 3
      %p201 = por %p199, %p200
      %p202 = scmp.ne.s32.totalorder %s193, %s194
      %p203 = scmp.eq.s32.totalorder %s38, 0
      %p204 = por %p202, %p203
      %p205 = scmp.ne.s32.totalorder %s193, %s194
      %p206 = scmp.eq.s32.totalorder %s39, 3
      %p207 = por %p205, %p206
      %p209 = scmp.ne.s32.totalorder %s194, %s208
      %p210 = scmp.eq.s32.totalorder %s39, 0
      %p211 = por %p209, %p210
      %s213 = sadd.s32 %s212, 1
      %p216 = scmp.eq.s32.totalorder %s33, 3
      %p217 = scmp.ne.s32.totalorder %s212, %s214
      %p218 = scmp.eq.s32.totalorder %s33, 0
      %p219 = por %p217, %p218
      %p220 = scmp.ne.s32.totalorder %s212, %s214
      %p221 = scmp.eq.s32.totalorder %s38, 3
      %p222 = por %p220, %p221
      %p223 = scmp.ne.s32.totalorder %s214, %s215
      %p224 = scmp.eq.s32.totalorder %s38, 0
      %p225 = por %p223, %p224
      %p226 = scmp.ne.s32.totalorder %s214, %s215
      %p227 = scmp.eq.s32.totalorder %s39, 3
      %p228 = por %p226, %p227
      %p230 = scmp.ne.s32.totalorder %s215, %s229
      %p231 = scmp.eq.s32.totalorder %s39, 0
      %p232 = por %p230, %p231
      %s234 = sadd.s32 %s233, 1
      %p237 = scmp.eq.s32.totalorder %s33, 3
      %p238 = scmp.ne.s32.totalorder %s233, %s235
      %p239 = scmp.eq.s32.totalorder %s33, 0
      %p240 = por %p238, %p239
      %p241 = scmp.ne.s32.totalorder %s233, %s235
      %p242 = scmp.eq.s32.totalorder %s38, 3
      %p243 = por %p241, %p242
      %p244 = scmp.ne.s32.totalorder %s235, %s236
      %p245 = scmp.eq.s32.totalorder %s38, 0
      %p246 = por %p244, %p245
      %p247 = scmp.ne.s32.totalorder %s235, %s236
      %p248 = scmp.eq.s32.totalorder %s39, 3
      %p249 = por %p247, %p248
      %p251 = scmp.ne.s32.totalorder %s236, %s250
      %p252 = scmp.eq.s32.totalorder %s39, 0
      %p253 = por %p251, %p252
      %s255 = sadd.s32 %s254, 1
      %p258 = scmp.eq.s32.totalorder %s33, 3
      %p259 = scmp.ne.s32.totalorder %s254, %s256
      %p260 = scmp.eq.s32.totalorder %s33, 0
      %p261 = por %p259, %p260
      %p262 = scmp.ne.s32.totalorder %s254, %s256
      %p263 = scmp.eq.s32.totalorder %s38, 3
      %p264 = por %p262, %p263
      %p265 = scmp.ne.s32.totalorder %s256, %s257
      %p266 = scmp.eq.s32.totalorder %s38, 0
      %p267 = por %p265, %p266
      %p268 = scmp.ne.s32.totalorder %s256, %s257
      %p269 = scmp.eq.s32.totalorder %s39, 3
      %p270 = por %p268, %p269
      %p272 = scmp.ne.s32.totalorder %s257, %s271
      %p273 = scmp.eq.s32.totalorder %s39, 0
      %p274 = por %p272, %p273
      %s276 = sadd.s32 %s275, 1
      %p279 = scmp.eq.s32.totalorder %s33, 3
      %p280 = scmp.ne.s32.totalorder %s275, %s277
      %p281 = scmp.eq.s32.totalorder %s33, 0
      %p282 = por %p280, %p281
      %p283 = scmp.ne.s32.totalorder %s275, %s277
      %p284 = scmp.eq.s32.totalorder %s38, 3
      %p285 = por %p283, %p284
      %p286 = scmp.ne.s32.totalorder %s277, %s278
      %p287 = scmp.eq.s32.totalorder %s38, 0
      %p288 = por %p286, %p287
      %p289 = scmp.ne.s32.totalorder %s277, %s278
      %p290 = scmp.eq.s32.totalorder %s39, 3
      %p291 = por %p289, %p290
      %p293 = scmp.ne.s32.totalorder %s278, %s292
      %p294 = scmp.eq.s32.totalorder %s39, 0
      %p295 = por %p293, %p294
      %s297 = sadd.s32 %s296, 1
      %p300 = scmp.eq.s32.totalorder %s33, 3
      %p301 = scmp.ne.s32.totalorder %s296, %s298
      %p302 = scmp.eq.s32.totalorder %s33, 0
      %p303 = por %p301, %p302
      %p304 = scmp.ne.s32.totalorder %s296, %s298
      %p305 = scmp.eq.s32.totalorder %s38, 3
      %p306 = por %p304, %p305
      %p307 = scmp.ne.s32.totalorder %s298, %s299
      %p308 = scmp.eq.s32.totalorder %s38, 0
      %p309 = por %p307, %p308
      %p310 = scmp.ne.s32.totalorder %s298, %s299
      %p311 = scmp.eq.s32.totalorder %s39, 3
      %p312 = por %p310, %p311
      %p314 = scmp.ne.s32.totalorder %s299, %s313
      %p315 = scmp.eq.s32.totalorder %s39, 0
      %p316 = por %p314, %p315
      %s318 = sadd.s32 %s317, 1
      %p321 = scmp.eq.s32.totalorder %s33, 3
      %p322 = scmp.ne.s32.totalorder %s317, %s319
      %p323 = scmp.eq.s32.totalorder %s33, 0
      %p324 = por %p322, %p323
      %p325 = scmp.ne.s32.totalorder %s317, %s319
      %p326 = scmp.eq.s32.totalorder %s38, 3
      %p327 = por %p325, %p326
      %p328 = scmp.ne.s32.totalorder %s319, %s320
      %p329 = scmp.eq.s32.totalorder %s38, 0
      %p330 = por %p328, %p329
      %p331 = scmp.ne.s32.totalorder %s319, %s320
      %p332 = scmp.eq.s32.totalorder %s39, 3
      %p333 = por %p331, %p332
      %p335 = scmp.ne.s32.totalorder %s320, %s334
      %p336 = scmp.eq.s32.totalorder %s39, 0
      %p337 = por %p335, %p336
      %s339 = sadd.s32 %s338, 1
      %p342 = scmp.eq.s32.totalorder %s33, 3
      %p343 = scmp.ne.s32.totalorder %s338, %s340
      %p344 = scmp.eq.s32.totalorder %s33, 0
      %p345 = por %p343, %p344
      %p346 = scmp.ne.s32.totalorder %s338, %s340
      %p347 = scmp.eq.s32.totalorder %s38, 3
      %p348 = por %p346, %p347
      %p349 = scmp.ne.s32.totalorder %s340, %s341
      %p350 = scmp.eq.s32.totalorder %s38, 0
      %p351 = por %p349, %p350
      %p352 = scmp.ne.s32.totalorder %s340, %s341
      %p353 = scmp.eq.s32.totalorder %s39, 3
      %p354 = por %p352, %p353
      %p356 = scmp.ne.s32.totalorder %s341, %s355
      %p357 = scmp.eq.s32.totalorder %s39, 0
      %p358 = por %p356, %p357
      %s360 = sadd.s32 %s359, 1
      %p363 = scmp.eq.s32.totalorder %s33, 3
      %p364 = scmp.ne.s32.totalorder %s359, %s361
      %p365 = scmp.eq.s32.totalorder %s33, 0
      %p366 = por %p364, %p365
      %p367 = scmp.ne.s32.totalorder %s359, %s361
      %p368 = scmp.eq.s32.totalorder %s38, 3
      %p369 = por %p367, %p368
      %p370 = scmp.ne.s32.totalorder %s361, %s362
      %p371 = scmp.eq.s32.totalorder %s38, 0
      %p372 = por %p370, %p371
      %p373 = scmp.ne.s32.totalorder %s361, %s362
      %p374 = scmp.eq.s32.totalorder %s39, 3
      %p375 = por %p373, %p374
      %p377 = scmp.ne.s32.totalorder %s362, %s376
      %p378 = scmp.eq.s32.totalorder %s39, 0
      %p379 = por %p377, %p378
      %s381 = sadd.s32 %s380, 1
      %p384 = scmp.eq.s32.totalorder %s33, 3
      %p385 = scmp.ne.s32.totalorder %s380, %s382
      %p386 = scmp.eq.s32.totalorder %s33, 0
      %p387 = por %p385, %p386
      %p388 = scmp.ne.s32.totalorder %s380, %s382
      %p389 = scmp.eq.s32.totalorder %s38, 3
      %p390 = por %p388, %p389
      %p391 = scmp.ne.s32.totalorder %s382, %s383
      %p392 = scmp.eq.s32.totalorder %s38, 0
      %p393 = por %p391, %p392
      %p394 = scmp.ne.s32.totalorder %s382, %s383
      %p395 = scmp.eq.s32.totalorder %s39, 3
      %p396 = por %p394, %p395
      %p398 = scmp.ne.s32.totalorder %s383, %s397
      %p399 = scmp.eq.s32.totalorder %s39, 0
      %p400 = por %p398, %p399
      %s401 = ssub.s32 %s40, %s52
      %s402 = ssub.s32 %s41, %s48
      %s403 = sor.u32 %s401, %s402
      %p404 = scmp.eq.s32.totalorder %s403, 0
      %s406 = sadd.s32 %s405, 1
      %s407 = scalar_select %p404, %s405, %s406
      %p410 = pneg %p404
      %p411 = scmp.eq.s32.totalorder %s33, 3
      %p412 = por %p410, %p411
      %p413 = scmp.ne.s32.totalorder %s405, %s408
      %p414 = scmp.eq.s32.totalorder %s33, 0
      %p415 = por %p413, %p414
      %p416 = scmp.ne.s32.totalorder %s405, %s408
      %p417 = scmp.eq.s32.totalorder %s38, 3
      %p418 = por %p416, %p417
      %p419 = scmp.ne.s32.totalorder %s408, %s409
      %p420 = scmp.eq.s32.totalorder %s38, 0
      %p421 = por %p419, %p420
      %p422 = scmp.ne.s32.totalorder %s408, %s409
      %p423 = scmp.eq.s32.totalorder %s39, 3
      %p424 = por %p422, %p423
      %p426 = scmp.ne.s32.totalorder %s409, %s425
      %p427 = scmp.eq.s32.totalorder %s39, 0
      %p428 = por %p426, %p427
      %p429 = scmp.le.s32.totalorder 1, %s33
      %p430 = scmp.lt.s32.totalorder %s33, 5
      %p431 = pnand %p429, %p430
      %p432 = pneg %p431
      // Predicated region
      $region9: #{tpu_custom_call.1} parent=5 // pred_check
        _
      $region10: #{tpu_custom_call.1} parent=5 // pred_check_branch
        %434 = sbr.rel (%p431) target = $region12
      $region11: #{tpu_custom_call.1} parent=5 // pred_region
        %s435 = ssub.s32 %s33, 1
        // Predicated region
        $region13: #{tpu_custom_call.1} parent=11 // pred_check
          %p436 = pneg %p120
        $region14: #{tpu_custom_call.1} parent=11 // pred_check_branch
          %438 = sbr.rel (%p436) target = $region16
        $region15: #{tpu_custom_call.1} parent=11 // pred_region
          %s440 = ssub.s32 1024, 1024
          %441 = vsyncadd [#allocation10], %s440
          %s442 = sshll.u32 [#allocation11], 4
          %s443 = int_to_ptr.vmem [resolvable:$true] %s442
          %448 = dma.hbm_to_vmem [thread:$0]  %s2, 1024, %s443, [#allocation10], 64, 64, 4
        $region16: #{tpu_custom_call.1} parent=11 // pred_fallthru
          _
        // Predicated region
        $region17: #{tpu_custom_call.1} parent=11 // pred_check
          %p449 = pneg %p141
        $region18: #{tpu_custom_call.1} parent=11 // pred_check_branch
          %451 = sbr.rel (%p449) target = $region20
        $region19: #{tpu_custom_call.1} parent=11 // pred_region
          _
        $region20: #{tpu_custom_call.1} parent=11 // pred_fallthru
          _
        // Predicated region
        $region21: #{tpu_custom_call.1} parent=11 // pred_check
          %p452 = pneg %p162
        $region22: #{tpu_custom_call.1} parent=11 // pred_check_branch
          %454 = sbr.rel (%p452) target = $region24
        $region23: #{tpu_custom_call.1} parent=11 // pred_region
          %s456 = ssub.s32 2048, 2048
          %457 = vsyncadd [#allocation13], %s456
          %s458 = sshll.u32 [#allocation12], 4
          %s459 = int_to_ptr.vmem [resolvable:$true] %s458
          %464 = dma.hbm_to_vmem [thread:$0]  %s4, 2048, %s459, [#allocation13], 128, 128, 8
        $region24: #{tpu_custom_call.1} parent=11 // pred_fallthru
          _
        // Predicated region
        $region25: #{tpu_custom_call.1} parent=11 // pred_check
          %p465 = pneg %p183
        $region26: #{tpu_custom_call.1} parent=11 // pred_check_branch
          %467 = sbr.rel (%p465) target = $region28
        $region27: #{tpu_custom_call.1} parent=11 // pred_region
          _
        $region28: #{tpu_custom_call.1} parent=11 // pred_fallthru
          _
        // Predicated region
        $region29: #{tpu_custom_call.1} parent=11 // pred_check
          %p468 = pneg %p204
        $region30: #{tpu_custom_call.1} parent=11 // pred_check_branch
          %470 = sbr.rel (%p468) target = $region32
        $region31: #{tpu_custom_call.1} parent=11 // pred_region
          %s472 = ssub.s32 1024, 1024
          %473 = vsyncadd [#allocation13], %s472
          %s474 = sshll.u32 [#allocation14], 4
          %s475 = int_to_ptr.vmem [resolvable:$true] %s474
          %480 = dma.hbm_to_vmem [thread:$0]  %s6, 1024, %s475, [#allocation13], 64, 64, 4
        $region32: #{tpu_custom_call.1} parent=11 // pred_fallthru
          _
        // Predicated region
        $region33: #{tpu_custom_call.1} parent=11 // pred_check
          %p481 = pneg %p225
        $region34: #{tpu_custom_call.1} parent=11 // pred_check_branch
          %483 = sbr.rel (%p481) target = $region36
        $region35: #{tpu_custom_call.1} parent=11 // pred_region
          _
        $region36: #{tpu_custom_call.1} parent=11 // pred_fallthru
          _
        // Predicated region
        $region37: #{tpu_custom_call.1} parent=11 // pred_check
          %p484 = pneg %p246
        $region38: #{tpu_custom_call.1} parent=11 // pred_check_branch
          %486 = sbr.rel (%p484) target = $region40
        $region39: #{tpu_custom_call.1} parent=11 // pred_region
          _
        $region40: #{tpu_custom_call.1} parent=11 // pred_fallthru
          _
        // Predicated region
        $region41: #{tpu_custom_call.1} parent=11 // pred_check
          %p487 = pneg %p267
        $region42: #{tpu_custom_call.1} parent=11 // pred_check_branch
          %489 = sbr.rel (%p487) target = $region44
        $region43: #{tpu_custom_call.1} parent=11 // pred_region
          _
        $region44: #{tpu_custom_call.1} parent=11 // pred_fallthru
          _
        // Predicated region
        $region45: #{tpu_custom_call.1} parent=11 // pred_check
          %p490 = pneg %p288
        $region46: #{tpu_custom_call.1} parent=11 // pred_check_branch
          %492 = sbr.rel (%p490) target = $region48
        $region47: #{tpu_custom_call.1} parent=11 // pred_region
          %s494 = ssub.s32 2048, 2048
          %495 = vsyncadd [#allocation16], %s494
          %s496 = sshll.u32 [#allocation15], 4
          %s497 = int_to_ptr.vmem [resolvable:$true] %s496
          %502 = dma.hbm_to_vmem [thread:$0]  %s10, 2048, %s497, [#allocation16], 128, 128, 8
        $region48: #{tpu_custom_call.1} parent=11 // pred_fallthru
          _
        // Predicated region
        $region49: #{tpu_custom_call.1} parent=11 // pred_check
          %p503 = pneg %p309
        $region50: #{tpu_custom_call.1} parent=11 // pred_check_branch
          %505 = sbr.rel (%p503) target = $region52
        $region51: #{tpu_custom_call.1} parent=11 // pred_region
          _
        $region52: #{tpu_custom_call.1} parent=11 // pred_fallthru
          _
        // Predicated region
        $region53: #{tpu_custom_call.1} parent=11 // pred_check
          %p506 = pneg %p330
        $region54: #{tpu_custom_call.1} parent=11 // pred_check_branch
          %508 = sbr.rel (%p506) target = $region56
        $region55: #{tpu_custom_call.1} parent=11 // pred_region
          %s510 = ssub.s32 2048, 2048
          %511 = vsyncadd [#allocation16], %s510
          %s512 = sshll.u32 [#allocation17], 4
          %s513 = int_to_ptr.vmem [resolvable:$true] %s512
          %518 = dma.hbm_to_vmem [thread:$0]  %s12, 2048, %s513, [#allocation16], 64, 64, 4
        $region56: #{tpu_custom_call.1} parent=11 // pred_fallthru
          _
        // Predicated region
        $region57: #{tpu_custom_call.1} parent=11 // pred_check
          %p519 = pneg %p351
        $region58: #{tpu_custom_call.1} parent=11 // pred_check_branch
          %521 = sbr.rel (%p519) target = $region60
        $region59: #{tpu_custom_call.1} parent=11 // pred_region
          _
        $region60: #{tpu_custom_call.1} parent=11 // pred_fallthru
          _
        // Predicated region
        $region61: #{tpu_custom_call.1} parent=11 // pred_check
          %p522 = pneg %p372
        $region62: #{tpu_custom_call.1} parent=11 // pred_check_branch
          %524 = sbr.rel (%p522) target = $region64
        $region63: #{tpu_custom_call.1} parent=11 // pred_region
          _
        $region64: #{tpu_custom_call.1} parent=11 // pred_fallthru
          _
        // Predicated region
        $region65: #{tpu_custom_call.1} parent=11 // pred_check
          %p525 = pneg %p393
        $region66: #{tpu_custom_call.1} parent=11 // pred_check_branch
          %527 = sbr.rel (%p525) target = $region68
        $region67: #{tpu_custom_call.1} parent=11 // pred_region
          _
        $region68: #{tpu_custom_call.1} parent=11 // pred_fallthru
          _
      $region12: #{tpu_custom_call.1} parent=5 // pred_fallthru
        _
      %p528 = scmp.lt.s32.totalorder %s33, 4
      // Predicated region
      $region69: #{tpu_custom_call.1} parent=5 // pred_check
        %p529 = pneg %p528
      $region70: #{tpu_custom_call.1} parent=5 // pred_check_branch
        %531 = sbr.rel (%p529) target = $region72
      $region71: #{tpu_custom_call.1} parent=5 // pred_region
        // Predicated region
        $region73: #{tpu_custom_call.1} parent=71 // pred_check
          %p532 = pneg %p67
        $region74: #{tpu_custom_call.1} parent=71 // pred_check_branch
          %534 = sbr.rel (%p532) target = $region76
        $region75: #{tpu_custom_call.1} parent=71 // pred_region
          %s535 = sand.u32 %s57, 1
          %s536 = scalar_lea.sflag [#allocation7], %s535
          %s537 = sand.u32 %s57, 1
          %s538 = smul.addr %s537, 32
          %s539 = scalar_lea.vmem [#allocation6], %s538
          %s540 = smul.u32 4, %s41
          %s542 = ssub.s32 512, 512
          %543 = vsyncadd %s536, %s542
          %s544 = smul.addr %s40, 8
          %s545 = sadd.s32 %s540, %s544
          %s546 = smul.addr %s545, 128
          %s547 = scalar_lea.hbm %s0, %s546
          %s548 = sshll.u32 %s539, 4
          %s549 = int_to_ptr.vmem [resolvable:$true] %s548
          %554 = dma.hbm_to_vmem [thread:$0]  %s547, 512, %s549, %s536, 128, 128, 8
        $region76: #{tpu_custom_call.1} parent=71 // pred_fallthru
          _
        // Predicated region
        $region77: #{tpu_custom_call.1} parent=71 // pred_check
          %p555 = pneg %p93
        $region78: #{tpu_custom_call.1} parent=71 // pred_check_branch
          %557 = sbr.rel (%p555) target = $region80
        $region79: #{tpu_custom_call.1} parent=71 // pred_region
          %s558 = sand.u32 %s33, 1
          %s559 = scalar_lea.sflag [#allocation10], %s558
          %s560 = sand.u32 %s83, 1
          %s561 = smul.addr %s560, 32
          %s562 = scalar_lea.vmem [#allocation9], %s561
          %s564 = ssub.s32 512, 512
          %565 = vsyncadd %s559, %s564
          %s566 = smul.addr %s40, 8
          %s567 = smul.addr %s566, 64
          %s568 = scalar_lea.hbm %s1, %s567
          %s569 = sshll.u32 %s562, 4
          %s570 = int_to_ptr.vmem [resolvable:$true] %s569
          %575 = dma.hbm_to_vmem [thread:$0]  %s568, 512, %s570, %s559, 64, 64, 4
        $region80: #{tpu_custom_call.1} parent=71 // pred_fallthru
          _
      $region72: #{tpu_custom_call.1} parent=5 // pred_fallthru
        _
      %p576 = scmp.le.s32.totalorder 1, %s33
      %p577 = scmp.lt.s32.totalorder %s33, 5
      %p578 = pnand %p576, %p577
      %p579 = pneg %p578
      // Predicated region
      $region81: #{tpu_custom_call.1} parent=5 // pred_check
        _
      $region82: #{tpu_custom_call.1} parent=5 // pred_check_branch
        %581 = sbr.rel (%p578) target = $region84
      $region83: #{tpu_custom_call.1} parent=5 // pred_region
        %s582 = ssub.s32 %s33, 1
        %s583 = sand.u32 %s60, 1
        %s584 = scalar_lea.sflag [#allocation7], %s583
        %s585 = sand.u32 %s60, 1
        %s586 = smul.addr %s585, 32
        %s587 = scalar_lea.vmem [#allocation6], %s586
        // Predicated region
        $region85: #{tpu_custom_call.1} parent=83 // pred_check
          %p588 = pneg %p73
        $region86: #{tpu_custom_call.1} parent=83 // pred_check_branch
          %590 = sbr.rel (%p588) target = $region88
        $region87: #{tpu_custom_call.1} parent=83 // pred_region
          %591 = dma.done %s584, 512
        $region88: #{tpu_custom_call.1} parent=83 // pred_fallthru
          _
        %s592 = sand.u32 %s38, 1
        %s593 = scalar_lea.sflag [#allocation10], %s592
        %s594 = sand.u32 %s86, 1
        %s595 = smul.addr %s594, 32
        %s596 = scalar_lea.vmem [#allocation9], %s595
        // Predicated region
        $region89: #{tpu_custom_call.1} parent=83 // pred_check
          %p597 = pneg %p99
        $region90: #{tpu_custom_call.1} parent=83 // pred_check_branch
          %599 = sbr.rel (%p597) target = $region92
        $region91: #{tpu_custom_call.1} parent=83 // pred_region
          %600 = dma.done %s593, 512
        $region92: #{tpu_custom_call.1} parent=83 // pred_fallthru
          _
        // Predicated region
        $region93: #{tpu_custom_call.1} parent=83 // pred_check
          %p601 = pneg %p120
        $region94: #{tpu_custom_call.1} parent=83 // pred_check_branch
          %603 = sbr.rel (%p601) target = $region96
        $region95: #{tpu_custom_call.1} parent=83 // pred_region
          %604 = dma.done [#allocation10], 1024
        $region96: #{tpu_custom_call.1} parent=83 // pred_fallthru
          _
        // Predicated region
        $region97: #{tpu_custom_call.1} parent=83 // pred_check
          %p605 = pneg %p162
        $region98: #{tpu_custom_call.1} parent=83 // pred_check_branch
          %607 = sbr.rel (%p605) target = $region100
        $region99: #{tpu_custom_call.1} parent=83 // pred_region
          %608 = dma.done [#allocation13], 2048
        $region100: #{tpu_custom_call.1} parent=83 // pred_fallthru
          _
        // Predicated region
        $region101: #{tpu_custom_call.1} parent=83 // pred_check
          %p609 = pneg %p204
        $region102: #{tpu_custom_call.1} parent=83 // pred_check_branch
          %611 = sbr.rel (%p609) target = $region104
        $region103: #{tpu_custom_call.1} parent=83 // pred_region
          %612 = dma.done [#allocation13], 1024
        $region104: #{tpu_custom_call.1} parent=83 // pred_fallthru
          _
        // Predicated region
        $region105: #{tpu_custom_call.1} parent=83 // pred_check
          %p613 = pneg %p288
        $region106: #{tpu_custom_call.1} parent=83 // pred_check_branch
          %615 = sbr.rel (%p613) target = $region108
        $region107: #{tpu_custom_call.1} parent=83 // pred_region
          %616 = dma.done [#allocation16], 2048
        $region108: #{tpu_custom_call.1} parent=83 // pred_fallthru
          _
        // Predicated region
        $region109: #{tpu_custom_call.1} parent=83 // pred_check
          %p617 = pneg %p330
        $region110: #{tpu_custom_call.1} parent=83 // pred_check_branch
          %619 = sbr.rel (%p617) target = $region112
        $region111: #{tpu_custom_call.1} parent=83 // pred_region
          %620 = dma.done [#allocation16], 2048
        $region112: #{tpu_custom_call.1} parent=83 // pred_fallthru
          _
        %s621 = sand.u32 %s60, 1
        %s622 = scalar_lea.sflag [#allocation7], %s621
        %s623 = sand.u32 %s60, 1
        %s624 = smul.addr %s623, 32
        %s625 = scalar_lea.vmem [#allocation6], %s624
        %p626 = pneg %p73
        %p627 = pneg %p70
        %s628 = sand.u32 %s38, 1
        %s629 = scalar_lea.sflag [#allocation10], %s628
        %s630 = sand.u32 %s86, 1
        %s631 = smul.addr %s630, 32
        %s632 = scalar_lea.vmem [#allocation9], %s631
        %p633 = pneg %p99
        %p634 = pneg %p96
        %p635 = pneg %p120
        %p636 = pneg %p117
        %p637 = pneg %p141
        %p638 = pneg %p138
        %p639 = pneg %p162
        %p640 = pneg %p159
        %p641 = pneg %p183
        %p642 = pneg %p180
        %p643 = pneg %p204
        %p644 = pneg %p201
        %p645 = pneg %p225
        %p646 = pneg %p222
        %p647 = pneg %p246
        %p648 = pneg %p243
        %p649 = pneg %p267
        %p650 = pneg %p264
        %p651 = pneg %p288
        %p652 = pneg %p285
        %p653 = pneg %p309
        %p654 = pneg %p306
        %p655 = pneg %p330
        %p656 = pneg %p327
        %p657 = pneg %p351
        %p658 = pneg %p348
        %p659 = pneg %p372
        %p660 = pneg %p369
        %p661 = pneg %p393
        %p662 = pneg %p390
        %p663 = pneg %p421
        %p664 = pneg %p418
        %s665 = sand.u32 %s408, 1
        %s666 = scalar_lea.sflag [#allocation8], %s665
        %s667 = sand.u32 %s408, 1
        %s668 = smul.addr %s667, 32
        %s669 = scalar_lea.vmem [#allocation18], %s668
        %s670 = smul.u32 4, %s43
        %s671 = smul.u32 4, %s43
        %p673 = scmp.eq.s32.totalorder %s43, 0
        // Predicated region
        $region113: #{tpu_custom_call.1} parent=83 // pred_check
          %p674 = pneg %p673
        $region114: #{tpu_custom_call.1} parent=83 // pred_check_branch
          %676 = sbr.rel (%p674) target = $region116
        $region115: #{tpu_custom_call.1} parent=83 // pred_region
          %v677 = vld [vmem:[%s596] sm:$0xf]
          %v678 = vld [vmem:[%s596 + $0x4] sm:$0xf]
          %v679 = vld [vmem:[%s596 + $0x8] sm:$0xf]
          %v680 = vld [vmem:[%s596 + $0xc] sm:$0xf]
          %v681 = vld [vmem:[%s596 + $0x10] sm:$0xf]
          %v682 = vld [vmem:[%s596 + $0x14] sm:$0xf]
          %v683 = vld [vmem:[%s596 + $0x18] sm:$0xf]
          %v684 = vld [vmem:[%s596 + $0x1c] sm:$0xf]
          %v685 = vld [vmem:[#allocation12] sm:$0xff]
          %v686 = vld [vmem:[#allocation12 + $0x8] sm:$0xff]
          %v687 = vld [vmem:[#allocation12 + $0x10] sm:$0xff]
          %v688 = vld [vmem:[#allocation12 + $0x18] sm:$0xff]
          %v689 = vld [vmem:[#allocation12 + $0x20] sm:$0xff]
          %v690 = vld [vmem:[#allocation12 + $0x28] sm:$0xff]
          %v691 = vld [vmem:[#allocation12 + $0x30] sm:$0xff]
          %v692 = vld [vmem:[#allocation12 + $0x38] sm:$0xff]
          %v693 = vld [vmem:[#allocation12 + $0x40] sm:$0xff]
          %v694 = vld [vmem:[#allocation12 + $0x48] sm:$0xff]
          %v695 = vld [vmem:[#allocation12 + $0x50] sm:$0xff]
          %v696 = vld [vmem:[#allocation12 + $0x58] sm:$0xff]
          %v697 = vld [vmem:[#allocation12 + $0x60] sm:$0xff]
          %v698 = vld [vmem:[#allocation12 + $0x68] sm:$0xff]
          %v699 = vld [vmem:[#allocation12 + $0x70] sm:$0xff]
          %v700 = vld [vmem:[#allocation12 + $0x78] sm:$0xff]
          %v701 = vld [vmem:[%s5] sm:$0x3]
          %v703 = vlaneseq
          %v704 = vshrl.u32 %v703, 7
          %v705 = vsub.s32 0, %v704
          %v706 = vrot.slane %v701, %v705
          %v707 = vlaneseq
          %v708 = vshrl.u32 %v707, 7
          %v709 = vsub.s32 1, %v708
          %v710 = vrot.slane %v701, %v709
          %v721 = vunpack.c.l.b16 %v677
          %v722 = vunpack.c.l.b16 %v678
          %v723 = vunpack.c.l.b16 %v679
          %v724 = vunpack.c.l.b16 %v680
          %v725 = vunpack.c.l.b16 %v681
          %v726 = vunpack.c.l.b16 %v682
          %v727 = vunpack.c.l.b16 %v683
          %v728 = vunpack.c.l.b16 %v684
          %v729 = vpack.c.b16 %v722, %v721
          %v730 = vpack.c.b16 %v724, %v723
          %v731 = vpack.c.b16 %v726, %v725
          %v732 = vpack.c.b16 %v728, %v727
          %v753 = vunpack.c.l.b16 %v685
          %v754 = vunpack.c.h.b16 %v685
          %v755 = vunpack.c.l.b16 %v686
          %v756 = vunpack.c.h.b16 %v686
          %v757 = vunpack.c.l.b16 %v687
          %v758 = vunpack.c.h.b16 %v687
          %v759 = vunpack.c.l.b16 %v688
          %v760 = vunpack.c.h.b16 %v688
          %v761 = vunpack.c.l.b16 %v689
          %v762 = vunpack.c.h.b16 %v689
          %v763 = vunpack.c.l.b16 %v690
          %v764 = vunpack.c.h.b16 %v690
          %v765 = vunpack.c.l.b16 %v691
          %v766 = vunpack.c.h.b16 %v691
          %v767 = vunpack.c.l.b16 %v692
          %v768 = vunpack.c.h.b16 %v692
          %v769 = vunpack.c.l.b16 %v693
          %v770 = vunpack.c.h.b16 %v693
          %v771 = vunpack.c.l.b16 %v694
          %v772 = vunpack.c.h.b16 %v694
          %v773 = vunpack.c.l.b16 %v695
          %v774 = vunpack.c.h.b16 %v695
          %v775 = vunpack.c.l.b16 %v696
          %v776 = vunpack.c.h.b16 %v696
          %v777 = vunpack.c.l.b16 %v697
          %v778 = vunpack.c.h.b16 %v697
          %v779 = vunpack.c.l.b16 %v698
          %v780 = vunpack.c.h.b16 %v698
          %v781 = vunpack.c.l.b16 %v699
          %v782 = vunpack.c.h.b16 %v699
          %v783 = vunpack.c.l.b16 %v700
          %v784 = vunpack.c.h.b16 %v700
          %v785 = vpack.c.b16 %v755, %v753
          %v786 = vpack.c.b16 %v756, %v754
          %v787 = vpack.c.b16 %v759, %v757
          %v788 = vpack.c.b16 %v760, %v758
          %v789 = vpack.c.b16 %v763, %v761
          %v790 = vpack.c.b16 %v764, %v762
          %v791 = vpack.c.b16 %v767, %v765
          %v792 = vpack.c.b16 %v768, %v766
          %v793 = vpack.c.b16 %v771, %v769
          %v794 = vpack.c.b16 %v772, %v770
          %v795 = vpack.c.b16 %v775, %v773
          %v796 = vpack.c.b16 %v776, %v774
          %v797 = vpack.c.b16 %v779, %v777
          %v798 = vpack.c.b16 %v780, %v778
          %v799 = vpack.c.b16 %v783, %v781
          %v800 = vpack.c.b16 %v784, %v782
          %817 = vmatprep.subr.bf16.mxu0 %v786
          %818 = vmatpush1.bf16.msra.mxu0 %v785
          %819 = vmatprep.subr.bf16.mxu0 %v788
          %820 = vmatpush1.bf16.msra.mxu0 %v787
          %821 = vmatprep.subr.bf16.mxu0 %v790
          %822 = vmatpush1.bf16.msra.mxu0 %v789
          %823 = vmatprep.subr.bf16.mxu0 %v792
          %824 = vmatpush1.bf16.msra.mxu0 %v791
          %825 = vmatprep.subr.bf16.mxu0 %v794
          %826 = vmatpush1.bf16.msra.mxu0 %v793
          %827 = vmatprep.subr.bf16.mxu0 %v796
          %828 = vmatpush1.bf16.msra.mxu0 %v795
          %829 = vmatprep.subr.bf16.mxu0 %v798
          %830 = vmatpush1.bf16.msra.mxu0 %v797
          %831 = vmatprep.subr.bf16.mxu0 %v800
          %832 = vmatpush1.bf16.msra.mxu0 %v799
          %833 = vmatprep.subr.bf16.mxu0 0
          %834 = vmatpush1.bf16.msra.mxu0 0
          %835 = vmatprep.subr.bf16.mxu0 0
          %836 = vmatpush1.bf16.msra.mxu0 0
          %837 = vmatprep.subr.bf16.mxu0 0
          %838 = vmatpush1.bf16.msra.mxu0 0
          %839 = vmatprep.subr.bf16.mxu0 0
          %840 = vmatpush1.bf16.msra.mxu0 0
          %841 = vmatprep.subr.bf16.mxu0 0
          %842 = vmatpush1.bf16.msra.mxu0 0
          %843 = vmatprep.subr.bf16.mxu0 0
          %844 = vmatpush1.bf16.msra.mxu0 0
          %845 = vmatprep.subr.bf16.mxu0 0
          %846 = vmatpush1.bf16.msra.mxu0 0
          %847 = vmatprep.subr.bf16.mxu0 0
          %848 = vmatpush1.bf16.msra.mxu0 0
          %849 = vmatprep.mubr.bf16.mxu0 0
          %850 = vmatmul.mubr.bf16.gmra.mrb[0].mxu0 %v729
          %v851 = vpop.f32.mrb[0].mxu0
          %v852 = vadd.f32 %v706, %v851
          %v853 = vpop.f32.mrb[0].mxu0
          %v854 = vadd.f32 %v710, %v853
          %v855 = vpop.f32.mrb[0].mxu0
          %v856 = vadd.f32 %v706, %v855
          %v857 = vpop.f32.mrb[0].mxu0
          %v858 = vadd.f32 %v710, %v857
          %859 = vmatprep.mubr.bf16.mxu0 0
          %860 = vmatmul.mubr.bf16.gmra.mrb[0].mxu0 %v730
          %v861 = vpop.f32.mrb[0].mxu0
          %v862 = vadd.f32 %v706, %v861
          %v863 = vpop.f32.mrb[0].mxu0
          %v864 = vadd.f32 %v710, %v863
          %v865 = vpop.f32.mrb[0].mxu0
          %v866 = vadd.f32 %v706, %v865
          %v867 = vpop.f32.mrb[0].mxu0
          %v868 = vadd.f32 %v710, %v867
          %869 = vmatprep.mubr.bf16.mxu0 0
          %870 = vmatmul.mubr.bf16.gmra.mrb[0].mxu0 %v731
          %v871 = vpop.f32.mrb[0].mxu0
          %v872 = vadd.f32 %v706, %v871
          %v873 = vpop.f32.mrb[0].mxu0
          %v874 = vadd.f32 %v710, %v873
          %v875 = vpop.f32.mrb[0].mxu0
          %v876 = vadd.f32 %v706, %v875
          %v877 = vpop.f32.mrb[0].mxu0
          %v878 = vadd.f32 %v710, %v877
          %879 = vmatprep.mubr.bf16.mxu0 0
          %880 = vmatmul.mubr.bf16.gmra.mrb[0].mxu0 %v732
          %v881 = vpop.f32.mrb[0].mxu0
          %v882 = vadd.f32 %v706, %v881
          %v883 = vpop.f32.mrb[0].mxu0
          %v884 = vadd.f32 %v710, %v883
          %v885 = vpop.f32.mrb[0].mxu0
          %v886 = vadd.f32 %v706, %v885
          %v887 = vpop.f32.mrb[0].mxu0
          %v888 = vadd.f32 %v710, %v887
          %889 = vdwg.mxu0
          %v890 = vpack.c.bf16 %v856, %v852
          %v891 = vpack.c.bf16 %v858, %v854
          %v892 = vpack.c.bf16 %v866, %v862
          %v893 = vpack.c.bf16 %v868, %v864
          %v894 = vpack.c.bf16 %v876, %v872
          %v895 = vpack.c.bf16 %v878, %v874
          %v896 = vpack.c.bf16 %v886, %v882
          %v897 = vpack.c.bf16 %v888, %v884
          %vm898 = vcmask 261120
          %899 = vst.msk [vmem:[#allocation2] sm:$0xff] %vm898, %v890
          %900 = vst.msk [vmem:[#allocation2 + $0x8] sm:$0xff] %vm898, %v892
          %901 = vst.msk [vmem:[#allocation2 + $0x10] sm:$0xff] %vm898, %v894
          %902 = vst.msk [vmem:[#allocation2 + $0x18] sm:$0xff] %vm898, %v896
          %903 = vst.msk [vmem:[#allocation3] sm:$0xff] %vm898, %v891
          %904 = vst.msk [vmem:[#allocation3 + $0x8] sm:$0xff] %vm898, %v893
          %905 = vst.msk [vmem:[#allocation3 + $0x10] sm:$0xff] %vm898, %v895
          %906 = vst.msk [vmem:[#allocation3 + $0x18] sm:$0xff] %vm898, %v897
          %911 = vrot.lane.b32.xlu0 %v890, 96
          %v912 = vpop.permute.xlu0 %911
          %913 = vrot.lane.b32.xlu0 %v892, 96
          %v914 = vpop.permute.xlu0 %913
          %915 = vrot.lane.b32.xlu0 %v894, 96
          %v916 = vpop.permute.xlu0 %915
          %917 = vrot.lane.b32.xlu0 %v896, 96
          %v918 = vpop.permute.xlu0 %917
          %s923 = scalar_lea.vmem [#allocation2], 32
          %924 = vst.msk [vmem:[%s923] sm:$0xff] %vm898, %v912
          %925 = vst.msk [vmem:[%s923 + $0x8] sm:$0xff] %vm898, %v914
          %926 = vst.msk [vmem:[%s923 + $0x10] sm:$0xff] %vm898, %v916
          %927 = vst.msk [vmem:[%s923 + $0x18] sm:$0xff] %vm898, %v918
          %932 = vrot.lane.b32.xlu0 %v891, 96
          %v933 = vpop.permute.xlu0 %932
          %934 = vrot.lane.b32.xlu0 %v893, 96
          %v935 = vpop.permute.xlu0 %934
          %936 = vrot.lane.b32.xlu0 %v895, 96
          %v937 = vpop.permute.xlu0 %936
          %938 = vrot.lane.b32.xlu0 %v897, 96
          %v939 = vpop.permute.xlu0 %938
          %s944 = scalar_lea.vmem [#allocation3], 32
          %945 = vst.msk [vmem:[%s944] sm:$0xff] %vm898, %v933
          %946 = vst.msk [vmem:[%s944 + $0x8] sm:$0xff] %vm898, %v935
          %947 = vst.msk [vmem:[%s944 + $0x10] sm:$0xff] %vm898, %v937
          %948 = vst.msk [vmem:[%s944 + $0x18] sm:$0xff] %vm898, %v939
          %949 = vrot.lane.b32.xlu0 %v890, 64
          %v950 = vpop.permute.xlu0 %949
          %951 = vrot.lane.b32.xlu0 %v892, 64
          %v952 = vpop.permute.xlu0 %951
          %953 = vrot.lane.b32.xlu0 %v894, 64
          %v954 = vpop.permute.xlu0 %953
          %955 = vrot.lane.b32.xlu0 %v896, 64
          %v956 = vpop.permute.xlu0 %955
          %s961 = scalar_lea.vmem [#allocation2], 64
          %962 = vst.msk [vmem:[%s961] sm:$0xff] %vm898, %v950
          %963 = vst.msk [vmem:[%s961 + $0x8] sm:$0xff] %vm898, %v952
          %964 = vst.msk [vmem:[%s961 + $0x10] sm:$0xff] %vm898, %v954
          %965 = vst.msk [vmem:[%s961 + $0x18] sm:$0xff] %vm898, %v956
          %966 = vrot.lane.b32.xlu0 %v891, 64
          %v967 = vpop.permute.xlu0 %966
          %968 = vrot.lane.b32.xlu0 %v893, 64
          %v969 = vpop.permute.xlu0 %968
          %970 = vrot.lane.b32.xlu0 %v895, 64
          %v971 = vpop.permute.xlu0 %970
          %972 = vrot.lane.b32.xlu0 %v897, 64
          %v973 = vpop.permute.xlu0 %972
          %s978 = scalar_lea.vmem [#allocation3], 64
          %979 = vst.msk [vmem:[%s978] sm:$0xff] %vm898, %v967
          %980 = vst.msk [vmem:[%s978 + $0x8] sm:$0xff] %vm898, %v969
          %981 = vst.msk [vmem:[%s978 + $0x10] sm:$0xff] %vm898, %v971
          %982 = vst.msk [vmem:[%s978 + $0x18] sm:$0xff] %vm898, %v973
          %983 = vrot.lane.b32.xlu0 %v890, 32
          %v984 = vpop.permute.xlu0 %983
          %985 = vrot.lane.b32.xlu0 %v892, 32
          %v986 = vpop.permute.xlu0 %985
          %987 = vrot.lane.b32.xlu0 %v894, 32
          %v988 = vpop.permute.xlu0 %987
          %989 = vrot.lane.b32.xlu0 %v896, 32
          %v990 = vpop.permute.xlu0 %989
          %s995 = scalar_lea.vmem [#allocation2], 96
          %996 = vst.msk [vmem:[%s995] sm:$0xff] %vm898, %v984
          %997 = vst.msk [vmem:[%s995 + $0x8] sm:$0xff] %vm898, %v986
          %998 = vst.msk [vmem:[%s995 + $0x10] sm:$0xff] %vm898, %v988
          %999 = vst.msk [vmem:[%s995 + $0x18] sm:$0xff] %vm898, %v990
          %1000 = vrot.lane.b32.xlu0 %v891, 32
          %v1001 = vpop.permute.xlu0 %1000
          %1002 = vrot.lane.b32.xlu0 %v893, 32
          %v1003 = vpop.permute.xlu0 %1002
          %1004 = vrot.lane.b32.xlu0 %v895, 32
          %v1005 = vpop.permute.xlu0 %1004
          %1006 = vrot.lane.b32.xlu0 %v897, 32
          %v1007 = vpop.permute.xlu0 %1006
          %s1012 = scalar_lea.vmem [#allocation3], 96
          %1013 = vst.msk [vmem:[%s1012] sm:$0xff] %vm898, %v1001
          %1014 = vst.msk [vmem:[%s1012 + $0x8] sm:$0xff] %vm898, %v1003
          %1015 = vst.msk [vmem:[%s1012 + $0x10] sm:$0xff] %vm898, %v1005
          %1016 = vst.msk [vmem:[%s1012 + $0x18] sm:$0xff] %vm898, %v1007
        $region116: #{tpu_custom_call.1} parent=83 // pred_fallthru
          _
        %v1017 = vld [vmem:[%s587] sm:$0xff]
        %v1018 = vld [vmem:[%s587 + $0x8] sm:$0xff]
        %v1019 = vld [vmem:[%s587 + $0x10] sm:$0xff]
        %v1020 = vld [vmem:[%s587 + $0x18] sm:$0xff]
        %v1021 = vpack.c.bf16 %v1018, %v1017
        %v1022 = vpack.c.bf16 %v1020, %v1019
        %v1023 = vld [vmem:[#allocation11] sm:$0xf]
        %v1024 = vld [vmem:[#allocation11 + $0x4] sm:$0xf]
        %v1025 = vld [vmem:[#allocation11 + $0x8] sm:$0xf]
        %v1026 = vld [vmem:[#allocation11 + $0xc] sm:$0xf]
        %v1027 = vld [vmem:[#allocation11 + $0x10] sm:$0xf]
        %v1028 = vld [vmem:[#allocation11 + $0x14] sm:$0xf]
        %v1029 = vld [vmem:[#allocation11 + $0x18] sm:$0xf]
        %v1030 = vld [vmem:[#allocation11 + $0x1c] sm:$0xf]
        %v1031 = vld [vmem:[#allocation11 + $0x20] sm:$0xf]
        %v1032 = vld [vmem:[#allocation11 + $0x24] sm:$0xf]
        %v1033 = vld [vmem:[#allocation11 + $0x28] sm:$0xf]
        %v1034 = vld [vmem:[#allocation11 + $0x2c] sm:$0xf]
        %v1035 = vld [vmem:[#allocation11 + $0x30] sm:$0xf]
        %v1036 = vld [vmem:[#allocation11 + $0x34] sm:$0xf]
        %v1037 = vld [vmem:[#allocation11 + $0x38] sm:$0xf]
        %v1038 = vld [vmem:[#allocation11 + $0x3c] sm:$0xf]
        %v1039 = vld [vmem:[%s3] sm:$0x1]
        %v1041 = vlaneseq
        %v1042 = vshrl.u32 %v1041, 7
        %v1043 = vsub.s32 0, %v1042
        %v1044 = vrot.slane %v1039, %v1043
        %v1062 = vunpack.c.l.b16 %v1023
        %v1063 = vunpack.c.l.b16 %v1024
        %v1064 = vunpack.c.l.b16 %v1025
        %v1065 = vunpack.c.l.b16 %v1026
        %v1066 = vunpack.c.l.b16 %v1027
        %v1067 = vunpack.c.l.b16 %v1028
        %v1068 = vunpack.c.l.b16 %v1029
        %v1069 = vunpack.c.l.b16 %v1030
        %v1070 = vunpack.c.l.b16 %v1031
        %v1071 = vunpack.c.l.b16 %v1032
        %v1072 = vunpack.c.l.b16 %v1033
        %v1073 = vunpack.c.l.b16 %v1034
        %v1074 = vunpack.c.l.b16 %v1035
        %v1075 = vunpack.c.l.b16 %v1036
        %v1076 = vunpack.c.l.b16 %v1037
        %v1077 = vunpack.c.l.b16 %v1038
        %v1078 = vpack.c.b16 %v1063, %v1062
        %v1079 = vpack.c.b16 %v1065, %v1064
        %v1080 = vpack.c.b16 %v1067, %v1066
        %v1081 = vpack.c.b16 %v1069, %v1068
        %v1082 = vpack.c.b16 %v1071, %v1070
        %v1083 = vpack.c.b16 %v1073, %v1072
        %v1084 = vpack.c.b16 %v1075, %v1074
        %v1085 = vpack.c.b16 %v1077, %v1076
        %1094 = vmatprep.subr.bf16.mxu0 0
        %1095 = vmatpush1.bf16.msra.mxu0 %v1078
        %1096 = vmatprep.subr.bf16.mxu0 0
        %1097 = vmatpush1.bf16.msra.mxu0 %v1079
        %1098 = vmatprep.subr.bf16.mxu0 0
        %1099 = vmatpush1.bf16.msra.mxu0 %v1080
        %1100 = vmatprep.subr.bf16.mxu0 0
        %1101 = vmatpush1.bf16.msra.mxu0 %v1081
        %1102 = vmatprep.subr.bf16.mxu0 0
        %1103 = vmatpush1.bf16.msra.mxu0 %v1082
        %1104 = vmatprep.subr.bf16.mxu0 0
        %1105 = vmatpush1.bf16.msra.mxu0 %v1083
        %1106 = vmatprep.subr.bf16.mxu0 0
        %1107 = vmatpush1.bf16.msra.mxu0 %v1084
        %1108 = vmatprep.subr.bf16.mxu0 0
        %1109 = vmatpush1.bf16.msra.mxu0 %v1085
        %1110 = vmatprep.subr.bf16.mxu0 0
        %1111 = vmatpush1.bf16.msra.mxu0 0
        %1112 = vmatprep.subr.bf16.mxu0 0
        %1113 = vmatpush1.bf16.msra.mxu0 0
        %1114 = vmatprep.subr.bf16.mxu0 0
        %1115 = vmatpush1.bf16.msra.mxu0 0
        %1116 = vmatprep.subr.bf16.mxu0 0
        %1117 = vmatpush1.bf16.msra.mxu0 0
        %1118 = vmatprep.subr.bf16.mxu0 0
        %1119 = vmatpush1.bf16.msra.mxu0 0
        %1120 = vmatprep.subr.bf16.mxu0 0
        %1121 = vmatpush1.bf16.msra.mxu0 0
        %1122 = vmatprep.subr.bf16.mxu0 0
        %1123 = vmatpush1.bf16.msra.mxu0 0
        %1124 = vmatprep.subr.bf16.mxu0 0
        %1125 = vmatpush1.bf16.msra.mxu0 0
        %1126 = vmatprep.mubr.bf16.mxu0 0
        %1127 = vmatmul.mubr.bf16.gmra.mrb[0].mxu0 %v1021
        %v1128 = vpop.f32.mrb[0].mxu0
        %v1129 = vadd.f32 %v1044, %v1128
        %v1130 = vpop.f32.mrb[0].mxu0
        %v1131 = vpop.f32.mrb[0].mxu0
        %v1132 = vadd.f32 %v1044, %v1131
        %v1133 = vpop.f32.mrb[0].mxu0
        %1134 = vmatprep.mubr.bf16.mxu0 0
        %1135 = vmatmul.mubr.bf16.gmra.mrb[0].mxu0 %v1022
        %v1136 = vpop.f32.mrb[0].mxu0
        %v1137 = vadd.f32 %v1044, %v1136
        %v1138 = vpop.f32.mrb[0].mxu0
        %v1139 = vpop.f32.mrb[0].mxu0
        %v1140 = vadd.f32 %v1044, %v1139
        %v1141 = vpop.f32.mrb[0].mxu0
        %1142 = vdwg.mxu0
        %v1143 = vpack.c.bf16 %v1132, %v1129
        %v1144 = vpack.c.bf16 %v1140, %v1137
        %vm1145 = vcmask 261120
        %1146 = vst.msk [vmem:[#allocation4] sm:$0xff] %vm1145, %v1143
        %1147 = vst.msk [vmem:[#allocation4 + $0x8] sm:$0xff] %vm1145, %v1144
        %1150 = vrot.lane.b32.xlu0 %v1143, 96
        %v1151 = vpop.permute.xlu0 %1150
        %1152 = vrot.lane.b32.xlu0 %v1144, 96
        %v1153 = vpop.permute.xlu0 %1152
        %s1156 = scalar_lea.vmem [#allocation4], 16
        %1157 = vst.msk [vmem:[%s1156] sm:$0xff] %vm1145, %v1151
        %1158 = vst.msk [vmem:[%s1156 + $0x8] sm:$0xff] %vm1145, %v1153
        %1159 = vrot.lane.b32.xlu0 %v1143, 64
        %v1160 = vpop.permute.xlu0 %1159
        %1161 = vrot.lane.b32.xlu0 %v1144, 64
        %v1162 = vpop.permute.xlu0 %1161
        %s1165 = scalar_lea.vmem [#allocation4], 32
        %1166 = vst.msk [vmem:[%s1165] sm:$0xff] %vm1145, %v1160
        %1167 = vst.msk [vmem:[%s1165 + $0x8] sm:$0xff] %vm1145, %v1162
        %1168 = vrot.lane.b32.xlu0 %v1143, 32
        %v1169 = vpop.permute.xlu0 %1168
        %1170 = vrot.lane.b32.xlu0 %v1144, 32
        %v1171 = vpop.permute.xlu0 %1170
        %s1174 = scalar_lea.vmem [#allocation4], 48
        %1175 = vst.msk [vmem:[%s1174] sm:$0xff] %vm1145, %v1169
        %1176 = vst.msk [vmem:[%s1174 + $0x8] sm:$0xff] %vm1145, %v1171
        %v1177 = vld [vmem:[#allocation4] sm:$0xff]
        %v1178 = vld [vmem:[#allocation4 + $0x8] sm:$0xff]
        %v1179 = vld [vmem:[#allocation4 + $0x10] sm:$0xff]
        %v1180 = vld [vmem:[#allocation4 + $0x18] sm:$0xff]
        %v1181 = vld [vmem:[#allocation4 + $0x20] sm:$0xff]
        %v1182 = vld [vmem:[#allocation4 + $0x28] sm:$0xff]
        %v1183 = vld [vmem:[#allocation4 + $0x30] sm:$0xff]
        %v1184 = vld [vmem:[#allocation4 + $0x38] sm:$0xff]
        %v1185 = vld [vmem:[#allocation2] sm:$0xff]
        %v1186 = vld [vmem:[#allocation2 + $0x8] sm:$0xff]
        %v1187 = vld [vmem:[#allocation2 + $0x10] sm:$0xff]
        %v1188 = vld [vmem:[#allocation2 + $0x18] sm:$0xff]
        %v1189 = vld [vmem:[#allocation2 + $0x20] sm:$0xff]
        %v1190 = vld [vmem:[#allocation2 + $0x28] sm:$0xff]
        %v1191 = vld [vmem:[#allocation2 + $0x30] sm:$0xff]
        %v1192 = vld [vmem:[#allocation2 + $0x38] sm:$0xff]
        %v1193 = vld [vmem:[#allocation2 + $0x40] sm:$0xff]
        %v1194 = vld [vmem:[#allocation2 + $0x48] sm:$0xff]
        %v1195 = vld [vmem:[#allocation2 + $0x50] sm:$0xff]
        %v1196 = vld [vmem:[#allocation2 + $0x58] sm:$0xff]
        %v1197 = vld [vmem:[#allocation2 + $0x60] sm:$0xff]
        %v1198 = vld [vmem:[#allocation2 + $0x68] sm:$0xff]
        %v1199 = vld [vmem:[#allocation2 + $0x70] sm:$0xff]
        %v1200 = vld [vmem:[#allocation2 + $0x78] sm:$0xff]
        %v1201 = vld [vmem:[#allocation3] sm:$0xff]
        %v1202 = vld [vmem:[#allocation3 + $0x8] sm:$0xff]
        %v1203 = vld [vmem:[#allocation3 + $0x10] sm:$0xff]
        %v1204 = vld [vmem:[#allocation3 + $0x18] sm:$0xff]
        %v1205 = vld [vmem:[#allocation3 + $0x20] sm:$0xff]
        %v1206 = vld [vmem:[#allocation3 + $0x28] sm:$0xff]
        %v1207 = vld [vmem:[#allocation3 + $0x30] sm:$0xff]
        %v1208 = vld [vmem:[#allocation3 + $0x38] sm:$0xff]
        %v1209 = vld [vmem:[#allocation3 + $0x40] sm:$0xff]
        %v1210 = vld [vmem:[#allocation3 + $0x48] sm:$0xff]
        %v1211 = vld [vmem:[#allocation3 + $0x50] sm:$0xff]
        %v1212 = vld [vmem:[#allocation3 + $0x58] sm:$0xff]
        %v1213 = vld [vmem:[#allocation3 + $0x60] sm:$0xff]
        %v1214 = vld [vmem:[#allocation3 + $0x68] sm:$0xff]
        %v1215 = vld [vmem:[#allocation3 + $0x70] sm:$0xff]
        %v1216 = vld [vmem:[#allocation3 + $0x78] sm:$0xff]
        %v1218 = vsel %vm1145, %v1177, 0
        %v1221 = vsel %vm1145, %v1178, 0
        %v1224 = vsel %vm1145, %v1185, 0
        %v1227 = vsel %vm1145, %v1186, 0
        %v1230 = vsel %vm1145, %v1187, 0
        %v1233 = vsel %vm1145, %v1188, 0
        %1235 = vmatprep.subr.bf16.mxu0 0
        %1236 = vmatpush1.bf16.xpose.msra.mxu0 %v1224
        %1237 = vmatprep.subr.bf16.mxu0 0
        %1238 = vmatpush1.bf16.xpose.msra.mxu0 %v1227
        %1239 = vmatprep.subr.bf16.mxu0 0
        %1240 = vmatpush1.bf16.xpose.msra.mxu0 %v1230
        %1241 = vmatprep.subr.bf16.mxu0 0
        %1242 = vmatpush1.bf16.xpose.msra.mxu0 %v1233
        %1243 = vmatprep.subr.bf16.mxu0 0
        %1244 = vmatpush1.bf16.xpose.msra.mxu0 0
        %1245 = vmatprep.subr.bf16.mxu0 0
        %1246 = vmatpush1.bf16.xpose.msra.mxu0 0
        %1247 = vmatprep.subr.bf16.mxu0 0
        %1248 = vmatpush1.bf16.xpose.msra.mxu0 0
        %1249 = vmatprep.subr.bf16.mxu0 0
        %1250 = vmatpush1.bf16.xpose.msra.mxu0 0
        %1251 = vmatprep.subr.bf16.mxu0 0
        %1252 = vmatpush1.bf16.xpose.msra.mxu0 0
        %1253 = vmatprep.subr.bf16.mxu0 0
        %1254 = vmatpush1.bf16.xpose.msra.mxu0 0
        %1255 = vmatprep.subr.bf16.mxu0 0
        %1256 = vmatpush1.bf16.xpose.msra.mxu0 0
        %1257 = vmatprep.subr.bf16.mxu0 0
        %1258 = vmatpush1.bf16.xpose.msra.mxu0 0
        %1259 = vmatprep.subr.bf16.mxu0 0
        %1260 = vmatpush1.bf16.xpose.msra.mxu0 0
        %1261 = vmatprep.subr.bf16.mxu0 0
        %1262 = vmatpush1.bf16.xpose.msra.mxu0 0
        %1263 = vmatprep.subr.bf16.mxu0 0
        %1264 = vmatpush1.bf16.xpose.msra.mxu0 0
        %1265 = vmatprep.subr.bf16.mxu0 0
        %1266 = vmatpush1.bf16.xpose.msra.mxu0 0
        %1267 = vmatprep.mubr.bf16.mxu0 0
        %1268 = vmatmul.mubr.bf16.gmra.mrb[0].mxu0 %v1218
        %v1269 = vpop.f32.mrb[0].mxu0
        %v1270 = vadd.f32 0.0, %v1269
        %v1271 = vpop.f32.mrb[0].mxu0
        %v1272 = vpop.f32.mrb[0].mxu0
        %v1273 = vadd.f32 0.0, %v1272
        %v1274 = vpop.f32.mrb[0].mxu0
        %1275 = vmatprep.mubr.bf16.mxu0 0
        %1276 = vmatmul.mubr.bf16.gmra.mrb[0].mxu0 %v1221
        %v1277 = vpop.f32.mrb[0].mxu0
        %v1278 = vadd.f32 0.0, %v1277
        %v1279 = vpop.f32.mrb[0].mxu0
        %v1280 = vpop.f32.mrb[0].mxu0
        %v1281 = vadd.f32 0.0, %v1280
        %v1282 = vpop.f32.mrb[0].mxu0
        %1283 = vdwg.mxu0
        %v1285 = vsel %vm1145, %v1179, 0
        %v1288 = vsel %vm1145, %v1180, 0
        %v1291 = vsel %vm1145, %v1189, 0
        %v1294 = vsel %vm1145, %v1190, 0
        %v1297 = vsel %vm1145, %v1191, 0
        %v1300 = vsel %vm1145, %v1192, 0
        %1302 = vmatprep.subr.bf16.mxu0 0
        %1303 = vmatpush1.bf16.xpose.msra.mxu0 %v1291
        %1304 = vmatprep.subr.bf16.mxu0 0
        %1305 = vmatpush1.bf16.xpose.msra.mxu0 %v1294
        %1306 = vmatprep.subr.bf16.mxu0 0
        %1307 = vmatpush1.bf16.xpose.msra.mxu0 %v1297
        %1308 = vmatprep.subr.bf16.mxu0 0
        %1309 = vmatpush1.bf16.xpose.msra.mxu0 %v1300
        %1310 = vmatprep.subr.bf16.mxu0 0
        %1311 = vmatpush1.bf16.xpose.msra.mxu0 0
        %1312 = vmatprep.subr.bf16.mxu0 0
        %1313 = vmatpush1.bf16.xpose.msra.mxu0 0
        %1314 = vmatprep.subr.bf16.mxu0 0
        %1315 = vmatpush1.bf16.xpose.msra.mxu0 0
        %1316 = vmatprep.subr.bf16.mxu0 0
        %1317 = vmatpush1.bf16.xpose.msra.mxu0 0
        %1318 = vmatprep.subr.bf16.mxu0 0
        %1319 = vmatpush1.bf16.xpose.msra.mxu0 0
        %1320 = vmatprep.subr.bf16.mxu0 0
        %1321 = vmatpush1.bf16.xpose.msra.mxu0 0
        %1322 = vmatprep.subr.bf16.mxu0 0
        %1323 = vmatpush1.bf16.xpose.msra.mxu0 0
        %1324 = vmatprep.subr.bf16.mxu0 0
        %1325 = vmatpush1.bf16.xpose.msra.mxu0 0
        %1326 = vmatprep.subr.bf16.mxu0 0
        %1327 = vmatpush1.bf16.xpose.msra.mxu0 0
        %1328 = vmatprep.subr.bf16.mxu0 0
        %1329 = vmatpush1.bf16.xpose.msra.mxu0 0
        %1330 = vmatprep.subr.bf16.mxu0 0
        %1331 = vmatpush1.bf16.xpose.msra.mxu0 0
        %1332 = vmatprep.subr.bf16.mxu0 0
        %1333 = vmatpush1.bf16.xpose.msra.mxu0 0
        %1334 = vmatprep.mubr.bf16.mxu0 0
        %1335 = vmatmul.mubr.bf16.gmra.mrb[0].mxu0 %v1285
        %v1336 = vpop.f32.mrb[0].mxu0
        %v1337 = vadd.f32 0.0, %v1336
        %v1338 = vpop.f32.mrb[0].mxu0
        %v1339 = vpop.f32.mrb[0].mxu0
        %v1340 = vadd.f32 0.0, %v1339
        %v1341 = vpop.f32.mrb[0].mxu0
        %1342 = vmatprep.mubr.bf16.mxu0 0
        %1343 = vmatmul.mubr.bf16.gmra.mrb[0].mxu0 %v1288
        %v1344 = vpop.f32.mrb[0].mxu0
        %v1345 = vadd.f32 0.0, %v1344
        %v1346 = vpop.f32.mrb[0].mxu0
        %v1347 = vpop.f32.mrb[0].mxu0
        %v1348 = vadd.f32 0.0, %v1347
        %v1349 = vpop.f32.mrb[0].mxu0
        %1350 = vdwg.mxu0
        %v1352 = vsel %vm1145, %v1181, 0
        %v1355 = vsel %vm1145, %v1182, 0
        %v1358 = vsel %vm1145, %v1193, 0
        %v1361 = vsel %vm1145, %v1194, 0
        %v1364 = vsel %vm1145, %v1195, 0
        %v1367 = vsel %vm1145, %v1196, 0
        %1369 = vmatprep.subr.bf16.mxu0 0
        %1370 = vmatpush1.bf16.xpose.msra.mxu0 %v1358
        %1371 = vmatprep.subr.bf16.mxu0 0
        %1372 = vmatpush1.bf16.xpose.msra.mxu0 %v1361
        %1373 = vmatprep.subr.bf16.mxu0 0
        %1374 = vmatpush1.bf16.xpose.msra.mxu0 %v1364
        %1375 = vmatprep.subr.bf16.mxu0 0
        %1376 = vmatpush1.bf16.xpose.msra.mxu0 %v1367
        %1377 = vmatprep.subr.bf16.mxu0 0
        %1378 = vmatpush1.bf16.xpose.msra.mxu0 0
        %1379 = vmatprep.subr.bf16.mxu0 0
        %1380 = vmatpush1.bf16.xpose.msra.mxu0 0
        %1381 = vmatprep.subr.bf16.mxu0 0
        %1382 = vmatpush1.bf16.xpose.msra.mxu0 0
        %1383 = vmatprep.subr.bf16.mxu0 0
        %1384 = vmatpush1.bf16.xpose.msra.mxu0 0
        %1385 = vmatprep.subr.bf16.mxu0 0
        %1386 = vmatpush1.bf16.xpose.msra.mxu0 0
        %1387 = vmatprep.subr.bf16.mxu0 0
        %1388 = vmatpush1.bf16.xpose.msra.mxu0 0
        %1389 = vmatprep.subr.bf16.mxu0 0
        %1390 = vmatpush1.bf16.xpose.msra.mxu0 0
        %1391 = vmatprep.subr.bf16.mxu0 0
        %1392 = vmatpush1.bf16.xpose.msra.mxu0 0
        %1393 = vmatprep.subr.bf16.mxu0 0
        %1394 = vmatpush1.bf16.xpose.msra.mxu0 0
        %1395 = vmatprep.subr.bf16.mxu0 0
        %1396 = vmatpush1.bf16.xpose.msra.mxu0 0
        %1397 = vmatprep.subr.bf16.mxu0 0
        %1398 = vmatpush1.bf16.xpose.msra.mxu0 0
        %1399 = vmatprep.subr.bf16.mxu0 0
        %1400 = vmatpush1.bf16.xpose.msra.mxu0 0
        %1401 = vmatprep.mubr.bf16.mxu0 0
        %1402 = vmatmul.mubr.bf16.gmra.mrb[0].mxu0 %v1352
        %v1403 = vpop.f32.mrb[0].mxu0
        %v1404 = vadd.f32 0.0, %v1403
        %v1405 = vpop.f32.mrb[0].mxu0
        %v1406 = vpop.f32.mrb[0].mxu0
        %v1407 = vadd.f32 0.0, %v1406
        %v1408 = vpop.f32.mrb[0].mxu0
        %1409 = vmatprep.mubr.bf16.mxu0 0
        %1410 = vmatmul.mubr.bf16.gmra.mrb[0].mxu0 %v1355
        %v1411 = vpop.f32.mrb[0].mxu0
        %v1412 = vadd.f32 0.0, %v1411
        %v1413 = vpop.f32.mrb[0].mxu0
        %v1414 = vpop.f32.mrb[0].mxu0
        %v1415 = vadd.f32 0.0, %v1414
        %v1416 = vpop.f32.mrb[0].mxu0
        %1417 = vdwg.mxu0
        %v1419 = vsel %vm1145, %v1183, 0
        %v1422 = vsel %vm1145, %v1184, 0
        %v1425 = vsel %vm1145, %v1197, 0
        %v1428 = vsel %vm1145, %v1198, 0
        %v1431 = vsel %vm1145, %v1199, 0
        %v1434 = vsel %vm1145, %v1200, 0
        %1436 = vmatprep.subr.bf16.mxu0 0
        %1437 = vmatpush1.bf16.xpose.msra.mxu0 %v1425
        %1438 = vmatprep.subr.bf16.mxu0 0
        %1439 = vmatpush1.bf16.xpose.msra.mxu0 %v1428
        %1440 = vmatprep.subr.bf16.mxu0 0
        %1441 = vmatpush1.bf16.xpose.msra.mxu0 %v1431
        %1442 = vmatprep.subr.bf16.mxu0 0
        %1443 = vmatpush1.bf16.xpose.msra.mxu0 %v1434
        %1444 = vmatprep.subr.bf16.mxu0 0
        %1445 = vmatpush1.bf16.xpose.msra.mxu0 0
        %1446 = vmatprep.subr.bf16.mxu0 0
        %1447 = vmatpush1.bf16.xpose.msra.mxu0 0
        %1448 = vmatprep.subr.bf16.mxu0 0
        %1449 = vmatpush1.bf16.xpose.msra.mxu0 0
        %1450 = vmatprep.subr.bf16.mxu0 0
        %1451 = vmatpush1.bf16.xpose.msra.mxu0 0
        %1452 = vmatprep.subr.bf16.mxu0 0
        %1453 = vmatpush1.bf16.xpose.msra.mxu0 0
        %1454 = vmatprep.subr.bf16.mxu0 0
        %1455 = vmatpush1.bf16.xpose.msra.mxu0 0
        %1456 = vmatprep.subr.bf16.mxu0 0
        %1457 = vmatpush1.bf16.xpose.msra.mxu0 0
        %1458 = vmatprep.subr.bf16.mxu0 0
        %1459 = vmatpush1.bf16.xpose.msra.mxu0 0
        %1460 = vmatprep.subr.bf16.mxu0 0
        %1461 = vmatpush1.bf16.xpose.msra.mxu0 0
        %1462 = vmatprep.subr.bf16.mxu0 0
        %1463 = vmatpush1.bf16.xpose.msra.mxu0 0
        %1464 = vmatprep.subr.bf16.mxu0 0
        %1465 = vmatpush1.bf16.xpose.msra.mxu0 0
        %1466 = vmatprep.subr.bf16.mxu0 0
        %1467 = vmatpush1.bf16.xpose.msra.mxu0 0
        %1468 = vmatprep.mubr.bf16.mxu0 0
        %1469 = vmatmul.mubr.bf16.gmra.mrb[0].mxu0 %v1419
        %v1470 = vpop.f32.mrb[0].mxu0
        %v1471 = vadd.f32 0.0, %v1470
        %v1472 = vpop.f32.mrb[0].mxu0
        %v1473 = vpop.f32.mrb[0].mxu0
        %v1474 = vadd.f32 0.0, %v1473
        %v1475 = vpop.f32.mrb[0].mxu0
        %1476 = vmatprep.mubr.bf16.mxu0 0
        %1477 = vmatmul.mubr.bf16.gmra.mrb[0].mxu0 %v1422
        %v1478 = vpop.f32.mrb[0].mxu0
        %v1479 = vadd.f32 0.0, %v1478
        %v1480 = vpop.f32.mrb[0].mxu0
        %v1481 = vpop.f32.mrb[0].mxu0
        %v1482 = vadd.f32 0.0, %v1481
        %v1483 = vpop.f32.mrb[0].mxu0
        %1484 = vdwg.mxu0
        %vm1485 = vcmask 523264
        %v1486 = vsel %vm1485, %v1270, -inf
        %1487 = vmax.xlane.f32.xlu0 %v1486
        %v1488 = vpop.xlane.xlu0 %1487
        %v1489 = vsel %vm1485, %v1273, -inf
        %1490 = vmax.xlane.f32.xlu0 %v1489
        %v1491 = vpop.xlane.xlu0 %1490
        %v1492 = vsel %vm1485, %v1278, -inf
        %1493 = vmax.xlane.f32.xlu0 %v1492
        %v1494 = vpop.xlane.xlu0 %1493
        %v1495 = vsel %vm1485, %v1281, -inf
        %1496 = vmax.xlane.f32.xlu0 %v1495
        %v1497 = vpop.xlane.xlu0 %1496
        %v1498 = vsel %vm1485, %v1337, -inf
        %1499 = vmax.xlane.f32.xlu0 %v1498
        %v1500 = vpop.xlane.xlu0 %1499
        %v1501 = vsel %vm1485, %v1340, -inf
        %1502 = vmax.xlane.f32.xlu0 %v1501
        %v1503 = vpop.xlane.xlu0 %1502
        %v1504 = vsel %vm1485, %v1345, -inf
        %1505 = vmax.xlane.f32.xlu0 %v1504
        %v1506 = vpop.xlane.xlu0 %1505
        %v1507 = vsel %vm1485, %v1348, -inf
        %1508 = vmax.xlane.f32.xlu0 %v1507
        %v1509 = vpop.xlane.xlu0 %1508
        %v1510 = vsel %vm1485, %v1404, -inf
        %1511 = vmax.xlane.f32.xlu0 %v1510
        %v1512 = vpop.xlane.xlu0 %1511
        %v1513 = vsel %vm1485, %v1407, -inf
        %1514 = vmax.xlane.f32.xlu0 %v1513
        %v1515 = vpop.xlane.xlu0 %1514
        %v1516 = vsel %vm1485, %v1412, -inf
        %1517 = vmax.xlane.f32.xlu0 %v1516
        %v1518 = vpop.xlane.xlu0 %1517
        %v1519 = vsel %vm1485, %v1415, -inf
        %1520 = vmax.xlane.f32.xlu0 %v1519
        %v1521 = vpop.xlane.xlu0 %1520
        %v1522 = vsel %vm1485, %v1471, -inf
        %1523 = vmax.xlane.f32.xlu0 %v1522
        %v1524 = vpop.xlane.xlu0 %1523
        %v1525 = vsel %vm1485, %v1474, -inf
        %1526 = vmax.xlane.f32.xlu0 %v1525
        %v1527 = vpop.xlane.xlu0 %1526
        %v1528 = vsel %vm1485, %v1479, -inf
        %1529 = vmax.xlane.f32.xlu0 %v1528
        %v1530 = vpop.xlane.xlu0 %1529
        %v1531 = vsel %vm1485, %v1482, -inf
        %1532 = vmax.xlane.f32.xlu0 %v1531
        %v1533 = vpop.xlane.xlu0 %1532
        %v1534 = vsub.f32 -inf, %v1488
        %v1535 = vsub.f32 -inf, %v1491
        %v1536 = vsub.f32 -inf, %v1494
        %v1537 = vsub.f32 -inf, %v1497
        %v1538 = vsub.f32 -inf, %v1500
        %v1539 = vsub.f32 -inf, %v1503
        %v1540 = vsub.f32 -inf, %v1506
        %v1541 = vsub.f32 -inf, %v1509
        %v1542 = vsub.f32 -inf, %v1512
        %v1543 = vsub.f32 -inf, %v1515
        %v1544 = vsub.f32 -inf, %v1518
        %v1545 = vsub.f32 -inf, %v1521
        %v1546 = vsub.f32 -inf, %v1524
        %v1547 = vsub.f32 -inf, %v1527
        %v1548 = vsub.f32 -inf, %v1530
        %v1549 = vsub.f32 -inf, %v1533
        %v1550 = vmul.f32 %v1534, 1.442695
        %v1551 = vpow.pop %v1550
        %v1552 = vmul.f32 %v1535, 1.442695
        %v1553 = vpow.pop %v1552
        %v1554 = vmul.f32 %v1536, 1.442695
        %v1555 = vpow.pop %v1554
        %v1556 = vmul.f32 %v1537, 1.442695
        %v1557 = vpow.pop %v1556
        %v1558 = vmul.f32 %v1538, 1.442695
        %v1559 = vpow.pop %v1558
        %v1560 = vmul.f32 %v1539, 1.442695
        %v1561 = vpow.pop %v1560
        %v1562 = vmul.f32 %v1540, 1.442695
        %v1563 = vpow.pop %v1562
        %v1564 = vmul.f32 %v1541, 1.442695
        %v1565 = vpow.pop %v1564
        %v1566 = vmul.f32 %v1542, 1.442695
        %v1567 = vpow.pop %v1566
        %v1568 = vmul.f32 %v1543, 1.442695
        %v1569 = vpow.pop %v1568
        %v1570 = vmul.f32 %v1544, 1.442695
        %v1571 = vpow.pop %v1570
        %v1572 = vmul.f32 %v1545, 1.442695
        %v1573 = vpow.pop %v1572
        %v1574 = vmul.f32 %v1546, 1.442695
        %v1575 = vpow.pop %v1574
        %v1576 = vmul.f32 %v1547, 1.442695
        %v1577 = vpow.pop %v1576
        %v1578 = vmul.f32 %v1548, 1.442695
        %v1579 = vpow.pop %v1578
        %v1580 = vmul.f32 %v1549, 1.442695
        %v1581 = vpow.pop %v1580
        %v1582 = vsub.f32 %v1270, %v1488
        %v1583 = vsub.f32 %v1273, %v1491
        %v1584 = vsub.f32 %v1278, %v1494
        %v1585 = vsub.f32 %v1281, %v1497
        %v1586 = vsub.f32 %v1337, %v1500
        %v1587 = vsub.f32 %v1340, %v1503
        %v1588 = vsub.f32 %v1345, %v1506
        %v1589 = vsub.f32 %v1348, %v1509
        %v1590 = vsub.f32 %v1404, %v1512
        %v1591 = vsub.f32 %v1407, %v1515
        %v1592 = vsub.f32 %v1412, %v1518
        %v1593 = vsub.f32 %v1415, %v1521
        %v1594 = vsub.f32 %v1471, %v1524
        %v1595 = vsub.f32 %v1474, %v1527
        %v1596 = vsub.f32 %v1479, %v1530
        %v1597 = vsub.f32 %v1482, %v1533
        %v1598 = vmul.f32 %v1582, 1.442695
        %v1599 = vpow.pop %v1598
        %v1600 = vmul.f32 %v1583, 1.442695
        %v1601 = vpow.pop %v1600
        %v1602 = vmul.f32 %v1584, 1.442695
        %v1603 = vpow.pop %v1602
        %v1604 = vmul.f32 %v1585, 1.442695
        %v1605 = vpow.pop %v1604
        %v1606 = vmul.f32 %v1586, 1.442695
        %v1607 = vpow.pop %v1606
        %v1608 = vmul.f32 %v1587, 1.442695
        %v1609 = vpow.pop %v1608
        %v1610 = vmul.f32 %v1588, 1.442695
        %v1611 = vpow.pop %v1610
        %v1612 = vmul.f32 %v1589, 1.442695
        %v1613 = vpow.pop %v1612
        %v1614 = vmul.f32 %v1590, 1.442695
        %v1615 = vpow.pop %v1614
        %v1616 = vmul.f32 %v1591, 1.442695
        %v1617 = vpow.pop %v1616
        %v1618 = vmul.f32 %v1592, 1.442695
        %v1619 = vpow.pop %v1618
        %v1620 = vmul.f32 %v1593, 1.442695
        %v1621 = vpow.pop %v1620
        %v1622 = vmul.f32 %v1594, 1.442695
        %v1623 = vpow.pop %v1622
        %v1624 = vmul.f32 %v1595, 1.442695
        %v1625 = vpow.pop %v1624
        %v1626 = vmul.f32 %v1596, 1.442695
        %v1627 = vpow.pop %v1626
        %v1628 = vmul.f32 %v1597, 1.442695
        %v1629 = vpow.pop %v1628
        %v1630 = vmul.f32 %v1551, 0.0
        %v1631 = vmul.f32 %v1553, 0.0
        %v1632 = vmul.f32 %v1555, 0.0
        %v1633 = vmul.f32 %v1557, 0.0
        %v1634 = vmul.f32 %v1559, 0.0
        %v1635 = vmul.f32 %v1561, 0.0
        %v1636 = vmul.f32 %v1563, 0.0
        %v1637 = vmul.f32 %v1565, 0.0
        %v1638 = vmul.f32 %v1567, 0.0
        %v1639 = vmul.f32 %v1569, 0.0
        %v1640 = vmul.f32 %v1571, 0.0
        %v1641 = vmul.f32 %v1573, 0.0
        %v1642 = vmul.f32 %v1575, 0.0
        %v1643 = vmul.f32 %v1577, 0.0
        %v1644 = vmul.f32 %v1579, 0.0
        %v1645 = vmul.f32 %v1581, 0.0
        %v1646 = vsel %vm1485, %v1599, 0.0
        %1647 = vadd.xlane.f32.xlu0 %v1646
        %v1648 = vpop.xlane.xlu0 %1647
        %v1649 = vsel %vm1485, %v1601, 0.0
        %1650 = vadd.xlane.f32.xlu0 %v1649
        %v1651 = vpop.xlane.xlu0 %1650
        %v1652 = vsel %vm1485, %v1603, 0.0
        %1653 = vadd.xlane.f32.xlu0 %v1652
        %v1654 = vpop.xlane.xlu0 %1653
        %v1655 = vsel %vm1485, %v1605, 0.0
        %1656 = vadd.xlane.f32.xlu0 %v1655
        %v1657 = vpop.xlane.xlu0 %1656
        %v1658 = vsel %vm1485, %v1607, 0.0
        %1659 = vadd.xlane.f32.xlu0 %v1658
        %v1660 = vpop.xlane.xlu0 %1659
        %v1661 = vsel %vm1485, %v1609, 0.0
        %1662 = vadd.xlane.f32.xlu0 %v1661
        %v1663 = vpop.xlane.xlu0 %1662
        %v1664 = vsel %vm1485, %v1611, 0.0
        %1665 = vadd.xlane.f32.xlu0 %v1664
        %v1666 = vpop.xlane.xlu0 %1665
        %v1667 = vsel %vm1485, %v1613, 0.0
        %1668 = vadd.xlane.f32.xlu0 %v1667
        %v1669 = vpop.xlane.xlu0 %1668
        %v1670 = vsel %vm1485, %v1615, 0.0
        %1671 = vadd.xlane.f32.xlu0 %v1670
        %v1672 = vpop.xlane.xlu0 %1671
        %v1673 = vsel %vm1485, %v1617, 0.0
        %1674 = vadd.xlane.f32.xlu0 %v1673
        %v1675 = vpop.xlane.xlu0 %1674
        %v1676 = vsel %vm1485, %v1619, 0.0
        %1677 = vadd.xlane.f32.xlu0 %v1676
        %v1678 = vpop.xlane.xlu0 %1677
        %v1679 = vsel %vm1485, %v1621, 0.0
        %1680 = vadd.xlane.f32.xlu0 %v1679
        %v1681 = vpop.xlane.xlu0 %1680
        %v1682 = vsel %vm1485, %v1623, 0.0
        %1683 = vadd.xlane.f32.xlu0 %v1682
        %v1684 = vpop.xlane.xlu0 %1683
        %v1685 = vsel %vm1485, %v1625, 0.0
        %1686 = vadd.xlane.f32.xlu0 %v1685
        %v1687 = vpop.xlane.xlu0 %1686
        %v1688 = vsel %vm1485, %v1627, 0.0
        %1689 = vadd.xlane.f32.xlu0 %v1688
        %v1690 = vpop.xlane.xlu0 %1689
        %v1691 = vsel %vm1485, %v1629, 0.0
        %1692 = vadd.xlane.f32.xlu0 %v1691
        %v1693 = vpop.xlane.xlu0 %1692
        %v1694 = vadd.f32 %v1630, %v1648
        %v1695 = vadd.f32 %v1631, %v1651
        %v1696 = vadd.f32 %v1632, %v1654
        %v1697 = vadd.f32 %v1633, %v1657
        %v1698 = vadd.f32 %v1634, %v1660
        %v1699 = vadd.f32 %v1635, %v1663
        %v1700 = vadd.f32 %v1636, %v1666
        %v1701 = vadd.f32 %v1637, %v1669
        %v1702 = vadd.f32 %v1638, %v1672
        %v1703 = vadd.f32 %v1639, %v1675
        %v1704 = vadd.f32 %v1640, %v1678
        %v1705 = vadd.f32 %v1641, %v1681
        %v1706 = vadd.f32 %v1642, %v1684
        %v1707 = vadd.f32 %v1643, %v1687
        %v1708 = vadd.f32 %v1644, %v1690
        %v1709 = vadd.f32 %v1645, %v1693
        %v1710 = vpack.c.bf16 %v1601, %v1599
        %v1711 = vpack.c.bf16 %v1605, %v1603
        %v1712 = vpack.c.bf16 %v1609, %v1607
        %v1713 = vpack.c.bf16 %v1613, %v1611
        %v1714 = vpack.c.bf16 %v1617, %v1615
        %v1715 = vpack.c.bf16 %v1621, %v1619
        %v1716 = vpack.c.bf16 %v1625, %v1623
        %v1717 = vpack.c.bf16 %v1629, %v1627
        %v1719 = vsel %vm1485, %v1710, 0
        %v1722 = vsel %vm1485, %v1711, 0
        %1724 = vmatprep.subr.bf16.mxu0 0
        %1725 = vmatpush1.bf16.msra.mxu0 %v1201
        %1726 = vmatprep.subr.bf16.mxu0 0
        %1727 = vmatpush1.bf16.msra.mxu0 %v1202
        %1728 = vmatprep.subr.bf16.mxu0 0
        %1729 = vmatpush1.bf16.msra.mxu0 %v1203
        %1730 = vmatprep.subr.bf16.mxu0 0
        %1731 = vmatpush1.bf16.msra.mxu0 %v1204
        %1732 = vmatprep.subr.bf16.mxu0 0
        %1733 = vmatpush1.bf16.msra.mxu0 0
        %1734 = vmatprep.subr.bf16.mxu0 0
        %1735 = vmatpush1.bf16.msra.mxu0 0
        %1736 = vmatprep.subr.bf16.mxu0 0
        %1737 = vmatpush1.bf16.msra.mxu0 0
        %1738 = vmatprep.subr.bf16.mxu0 0
        %1739 = vmatpush1.bf16.msra.mxu0 0
        %1740 = vmatprep.subr.bf16.mxu0 0
        %1741 = vmatpush1.bf16.msra.mxu0 0
        %1742 = vmatprep.subr.bf16.mxu0 0
        %1743 = vmatpush1.bf16.msra.mxu0 0
        %1744 = vmatprep.subr.bf16.mxu0 0
        %1745 = vmatpush1.bf16.msra.mxu0 0
        %1746 = vmatprep.subr.bf16.mxu0 0
        %1747 = vmatpush1.bf16.msra.mxu0 0
        %1748 = vmatprep.subr.bf16.mxu0 0
        %1749 = vmatpush1.bf16.msra.mxu0 0
        %1750 = vmatprep.subr.bf16.mxu0 0
        %1751 = vmatpush1.bf16.msra.mxu0 0
        %1752 = vmatprep.subr.bf16.mxu0 0
        %1753 = vmatpush1.bf16.msra.mxu0 0
        %1754 = vmatprep.subr.bf16.mxu0 0
        %1755 = vmatpush1.bf16.msra.mxu0 0
        %1756 = vmatprep.mubr.bf16.mxu0 0
        %1757 = vmatmul.mubr.bf16.gmra.mrb[0].mxu0 %v1719
        %v1758 = vpop.f32.mrb[0].mxu0
        %v1759 = vadd.f32 0.0, %v1758
        %v1760 = vpop.f32.mrb[0].mxu0
        %v1761 = vpop.f32.mrb[0].mxu0
        %v1762 = vadd.f32 0.0, %v1761
        %v1763 = vpop.f32.mrb[0].mxu0
        %1764 = vmatprep.mubr.bf16.mxu0 0
        %1765 = vmatmul.mubr.bf16.gmra.mrb[0].mxu0 %v1722
        %v1766 = vpop.f32.mrb[0].mxu0
        %v1767 = vadd.f32 0.0, %v1766
        %v1768 = vpop.f32.mrb[0].mxu0
        %v1769 = vpop.f32.mrb[0].mxu0
        %v1770 = vadd.f32 0.0, %v1769
        %v1771 = vpop.f32.mrb[0].mxu0
        %1772 = vdwg.mxu0
        %v1774 = vsel %vm1485, %v1712, 0
        %v1777 = vsel %vm1485, %v1713, 0
        %1779 = vmatprep.subr.bf16.mxu0 0
        %1780 = vmatpush1.bf16.msra.mxu0 %v1205
        %1781 = vmatprep.subr.bf16.mxu0 0
        %1782 = vmatpush1.bf16.msra.mxu0 %v1206
        %1783 = vmatprep.subr.bf16.mxu0 0
        %1784 = vmatpush1.bf16.msra.mxu0 %v1207
        %1785 = vmatprep.subr.bf16.mxu0 0
        %1786 = vmatpush1.bf16.msra.mxu0 %v1208
        %1787 = vmatprep.subr.bf16.mxu0 0
        %1788 = vmatpush1.bf16.msra.mxu0 0
        %1789 = vmatprep.subr.bf16.mxu0 0
        %1790 = vmatpush1.bf16.msra.mxu0 0
        %1791 = vmatprep.subr.bf16.mxu0 0
        %1792 = vmatpush1.bf16.msra.mxu0 0
        %1793 = vmatprep.subr.bf16.mxu0 0
        %1794 = vmatpush1.bf16.msra.mxu0 0
        %1795 = vmatprep.subr.bf16.mxu0 0
        %1796 = vmatpush1.bf16.msra.mxu0 0
        %1797 = vmatprep.subr.bf16.mxu0 0
        %1798 = vmatpush1.bf16.msra.mxu0 0
        %1799 = vmatprep.subr.bf16.mxu0 0
        %1800 = vmatpush1.bf16.msra.mxu0 0
        %1801 = vmatprep.subr.bf16.mxu0 0
        %1802 = vmatpush1.bf16.msra.mxu0 0
        %1803 = vmatprep.subr.bf16.mxu0 0
        %1804 = vmatpush1.bf16.msra.mxu0 0
        %1805 = vmatprep.subr.bf16.mxu0 0
        %1806 = vmatpush1.bf16.msra.mxu0 0
        %1807 = vmatprep.subr.bf16.mxu0 0
        %1808 = vmatpush1.bf16.msra.mxu0 0
        %1809 = vmatprep.subr.bf16.mxu0 0
        %1810 = vmatpush1.bf16.msra.mxu0 0
        %1811 = vmatprep.mubr.bf16.mxu0 0
        %1812 = vmatmul.mubr.bf16.gmra.mrb[0].mxu0 %v1774
        %v1813 = vpop.f32.mrb[0].mxu0
        %v1814 = vadd.f32 0.0, %v1813
        %v1815 = vpop.f32.mrb[0].mxu0
        %v1816 = vpop.f32.mrb[0].mxu0
        %v1817 = vadd.f32 0.0, %v1816
        %v1818 = vpop.f32.mrb[0].mxu0
        %1819 = vmatprep.mubr.bf16.mxu0 0
        %1820 = vmatmul.mubr.bf16.gmra.mrb[0].mxu0 %v1777
        %v1821 = vpop.f32.mrb[0].mxu0
        %v1822 = vadd.f32 0.0, %v1821
        %v1823 = vpop.f32.mrb[0].mxu0
        %v1824 = vpop.f32.mrb[0].mxu0
        %v1825 = vadd.f32 0.0, %v1824
        %v1826 = vpop.f32.mrb[0].mxu0
        %1827 = vdwg.mxu0
        %v1829 = vsel %vm1485, %v1714, 0
        %v1832 = vsel %vm1485, %v1715, 0
        %1834 = vmatprep.subr.bf16.mxu0 0
        %1835 = vmatpush1.bf16.msra.mxu0 %v1209
        %1836 = vmatprep.subr.bf16.mxu0 0
        %1837 = vmatpush1.bf16.msra.mxu0 %v1210
        %1838 = vmatprep.subr.bf16.mxu0 0
        %1839 = vmatpush1.bf16.msra.mxu0 %v1211
        %1840 = vmatprep.subr.bf16.mxu0 0
        %1841 = vmatpush1.bf16.msra.mxu0 %v1212
        %1842 = vmatprep.subr.bf16.mxu0 0
        %1843 = vmatpush1.bf16.msra.mxu0 0
        %1844 = vmatprep.subr.bf16.mxu0 0
        %1845 = vmatpush1.bf16.msra.mxu0 0
        %1846 = vmatprep.subr.bf16.mxu0 0
        %1847 = vmatpush1.bf16.msra.mxu0 0
        %1848 = vmatprep.subr.bf16.mxu0 0
        %1849 = vmatpush1.bf16.msra.mxu0 0
        %1850 = vmatprep.subr.bf16.mxu0 0
        %1851 = vmatpush1.bf16.msra.mxu0 0
        %1852 = vmatprep.subr.bf16.mxu0 0
        %1853 = vmatpush1.bf16.msra.mxu0 0
        %1854 = vmatprep.subr.bf16.mxu0 0
        %1855 = vmatpush1.bf16.msra.mxu0 0
        %1856 = vmatprep.subr.bf16.mxu0 0
        %1857 = vmatpush1.bf16.msra.mxu0 0
        %1858 = vmatprep.subr.bf16.mxu0 0
        %1859 = vmatpush1.bf16.msra.mxu0 0
        %1860 = vmatprep.subr.bf16.mxu0 0
        %1861 = vmatpush1.bf16.msra.mxu0 0
        %1862 = vmatprep.subr.bf16.mxu0 0
        %1863 = vmatpush1.bf16.msra.mxu0 0
        %1864 = vmatprep.subr.bf16.mxu0 0
        %1865 = vmatpush1.bf16.msra.mxu0 0
        %1866 = vmatprep.mubr.bf16.mxu0 0
        %1867 = vmatmul.mubr.bf16.gmra.mrb[0].mxu0 %v1829
        %v1868 = vpop.f32.mrb[0].mxu0
        %v1869 = vadd.f32 0.0, %v1868
        %v1870 = vpop.f32.mrb[0].mxu0
        %v1871 = vpop.f32.mrb[0].mxu0
        %v1872 = vadd.f32 0.0, %v1871
        %v1873 = vpop.f32.mrb[0].mxu0
        %1874 = vmatprep.mubr.bf16.mxu0 0
        %1875 = vmatmul.mubr.bf16.gmra.mrb[0].mxu0 %v1832
        %v1876 = vpop.f32.mrb[0].mxu0
        %v1877 = vadd.f32 0.0, %v1876
        %v1878 = vpop.f32.mrb[0].mxu0
        %v1879 = vpop.f32.mrb[0].mxu0
        %v1880 = vadd.f32 0.0, %v1879
        %v1881 = vpop.f32.mrb[0].mxu0
        %1882 = vdwg.mxu0
        %v1884 = vsel %vm1485, %v1716, 0
        %v1887 = vsel %vm1485, %v1717, 0
        %1889 = vmatprep.subr.bf16.mxu0 0
        %1890 = vmatpush1.bf16.msra.mxu0 %v1213
        %1891 = vmatprep.subr.bf16.mxu0 0
        %1892 = vmatpush1.bf16.msra.mxu0 %v1214
        %1893 = vmatprep.subr.bf16.mxu0 0
        %1894 = vmatpush1.bf16.msra.mxu0 %v1215
        %1895 = vmatprep.subr.bf16.mxu0 0
        %1896 = vmatpush1.bf16.msra.mxu0 %v1216
        %1897 = vmatprep.subr.bf16.mxu0 0
        %1898 = vmatpush1.bf16.msra.mxu0 0
        %1899 = vmatprep.subr.bf16.mxu0 0
        %1900 = vmatpush1.bf16.msra.mxu0 0
        %1901 = vmatprep.subr.bf16.mxu0 0
        %1902 = vmatpush1.bf16.msra.mxu0 0
        %1903 = vmatprep.subr.bf16.mxu0 0
        %1904 = vmatpush1.bf16.msra.mxu0 0
        %1905 = vmatprep.subr.bf16.mxu0 0
        %1906 = vmatpush1.bf16.msra.mxu0 0
        %1907 = vmatprep.subr.bf16.mxu0 0
        %1908 = vmatpush1.bf16.msra.mxu0 0
        %1909 = vmatprep.subr.bf16.mxu0 0
        %1910 = vmatpush1.bf16.msra.mxu0 0
        %1911 = vmatprep.subr.bf16.mxu0 0
        %1912 = vmatpush1.bf16.msra.mxu0 0
        %1913 = vmatprep.subr.bf16.mxu0 0
        %1914 = vmatpush1.bf16.msra.mxu0 0
        %1915 = vmatprep.subr.bf16.mxu0 0
        %1916 = vmatpush1.bf16.msra.mxu0 0
        %1917 = vmatprep.subr.bf16.mxu0 0
        %1918 = vmatpush1.bf16.msra.mxu0 0
        %1919 = vmatprep.subr.bf16.mxu0 0
        %1920 = vmatpush1.bf16.msra.mxu0 0
        %1921 = vmatprep.mubr.bf16.mxu0 0
        %1922 = vmatmul.mubr.bf16.gmra.mrb[0].mxu0 %v1884
        %v1923 = vpop.f32.mrb[0].mxu0
        %v1924 = vadd.f32 0.0, %v1923
        %v1925 = vpop.f32.mrb[0].mxu0
        %v1926 = vpop.f32.mrb[0].mxu0
        %v1927 = vadd.f32 0.0, %v1926
        %v1928 = vpop.f32.mrb[0].mxu0
        %1929 = vmatprep.mubr.bf16.mxu0 0
        %1930 = vmatmul.mubr.bf16.gmra.mrb[0].mxu0 %v1887
        %v1931 = vpop.f32.mrb[0].mxu0
        %v1932 = vadd.f32 0.0, %v1931
        %v1933 = vpop.f32.mrb[0].mxu0
        %v1934 = vpop.f32.mrb[0].mxu0
        %v1935 = vadd.f32 0.0, %v1934
        %v1936 = vpop.f32.mrb[0].mxu0
        %1937 = vdwg.mxu0
        %v1938 = vadd.f32 %v1630, %v1759
        %v1939 = vadd.f32 %v1631, %v1762
        %v1940 = vadd.f32 %v1632, %v1767
        %v1941 = vadd.f32 %v1633, %v1770
        %v1942 = vadd.f32 %v1634, %v1814
        %v1943 = vadd.f32 %v1635, %v1817
        %v1944 = vadd.f32 %v1636, %v1822
        %v1945 = vadd.f32 %v1637, %v1825
        %v1946 = vadd.f32 %v1638, %v1869
        %v1947 = vadd.f32 %v1639, %v1872
        %v1948 = vadd.f32 %v1640, %v1877
        %v1949 = vadd.f32 %v1641, %v1880
        %v1950 = vadd.f32 %v1642, %v1924
        %v1951 = vadd.f32 %v1643, %v1927
        %v1952 = vadd.f32 %v1644, %v1932
        %v1953 = vadd.f32 %v1645, %v1935
        %v1954 = vrcp.pop %v1694
        %v1955 = vrcp.pop %v1695
        %v1956 = vrcp.pop %v1696
        %v1957 = vrcp.pop %v1697
        %v1958 = vrcp.pop %v1698
        %v1959 = vrcp.pop %v1699
        %v1960 = vrcp.pop %v1700
        %v1961 = vrcp.pop %v1701
        %v1962 = vrcp.pop %v1702
        %v1963 = vrcp.pop %v1703
        %v1964 = vrcp.pop %v1704
        %v1965 = vrcp.pop %v1705
        %v1966 = vrcp.pop %v1706
        %v1967 = vrcp.pop %v1707
        %v1968 = vrcp.pop %v1708
        %v1969 = vrcp.pop %v1709
        %v1970 = vmul.f32 %v1938, %v1954
        %v1971 = vmul.f32 %v1939, %v1955
        %v1972 = vmul.f32 %v1940, %v1956
        %v1973 = vmul.f32 %v1941, %v1957
        %v1974 = vmul.f32 %v1942, %v1958
        %v1975 = vmul.f32 %v1943, %v1959
        %v1976 = vmul.f32 %v1944, %v1960
        %v1977 = vmul.f32 %v1945, %v1961
        %v1978 = vmul.f32 %v1946, %v1962
        %v1979 = vmul.f32 %v1947, %v1963
        %v1980 = vmul.f32 %v1948, %v1964
        %v1981 = vmul.f32 %v1949, %v1965
        %v1982 = vmul.f32 %v1950, %v1966
        %v1983 = vmul.f32 %v1951, %v1967
        %v1984 = vmul.f32 %v1952, %v1968
        %v1985 = vmul.f32 %v1953, %v1969
        %v1986 = vpack.c.bf16 %v1971, %v1970
        %v1987 = vpack.c.bf16 %v1973, %v1972
        %v1988 = vpack.c.bf16 %v1975, %v1974
        %v1989 = vpack.c.bf16 %v1977, %v1976
        %v1990 = vpack.c.bf16 %v1979, %v1978
        %v1991 = vpack.c.bf16 %v1981, %v1980
        %v1992 = vpack.c.bf16 %v1983, %v1982
        %v1993 = vpack.c.bf16 %v1985, %v1984
        %1994 = vst.msk [vmem:[#allocation5] sm:$0xff] %vm1145, %v1986
        %1995 = vst.msk [vmem:[#allocation5 + $0x8] sm:$0xff] %vm1145, %v1987
        %1998 = vrot.lane.b32.xlu0 %v1988, 32
        %v1999 = vpop.permute.xlu0 %1998
        %2000 = vrot.lane.b32.xlu0 %v1989, 32
        %v2001 = vpop.permute.xlu0 %2000
        %vm2004 = vcmask 523520
        %2005 = vst.msk [vmem:[#allocation5] sm:$0xff] %vm2004, %v1999
        %2006 = vst.msk [vmem:[#allocation5 + $0x8] sm:$0xff] %vm2004, %v2001
        %2009 = vrot.lane.b32.xlu0 %v1990, 64
        %v2010 = vpop.permute.xlu0 %2009
        %2011 = vrot.lane.b32.xlu0 %v1991, 64
        %v2012 = vpop.permute.xlu0 %2011
        %vm2015 = vcmask 785920
        %2016 = vst.msk [vmem:[#allocation5] sm:$0xff] %vm2015, %v2010
        %2017 = vst.msk [vmem:[#allocation5 + $0x8] sm:$0xff] %vm2015, %v2012
        %2020 = vrot.lane.b32.xlu0 %v1992, 96
        %v2021 = vpop.permute.xlu0 %2020
        %2022 = vrot.lane.b32.xlu0 %v1993, 96
        %v2023 = vpop.permute.xlu0 %2022
        %vm2026 = vcmask 1048320
        %2027 = vst.msk [vmem:[#allocation5] sm:$0xff] %vm2026, %v2021
        %2028 = vst.msk [vmem:[#allocation5 + $0x8] sm:$0xff] %vm2026, %v2023
        %v2029 = vld [vmem:[#allocation5] sm:$0xff]
        %v2030 = vld [vmem:[#allocation5 + $0x8] sm:$0xff]
        %v2031 = vld [vmem:[#allocation14] sm:$0xf]
        %v2032 = vld [vmem:[#allocation14 + $0x4] sm:$0xf]
        %v2033 = vld [vmem:[#allocation14 + $0x8] sm:$0xf]
        %v2034 = vld [vmem:[#allocation14 + $0xc] sm:$0xf]
        %v2035 = vld [vmem:[#allocation14 + $0x10] sm:$0xf]
        %v2036 = vld [vmem:[#allocation14 + $0x14] sm:$0xf]
        %v2037 = vld [vmem:[#allocation14 + $0x18] sm:$0xf]
        %v2038 = vld [vmem:[#allocation14 + $0x1c] sm:$0xf]
        %v2039 = vld [vmem:[#allocation14 + $0x20] sm:$0xf]
        %v2040 = vld [vmem:[#allocation14 + $0x24] sm:$0xf]
        %v2041 = vld [vmem:[#allocation14 + $0x28] sm:$0xf]
        %v2042 = vld [vmem:[#allocation14 + $0x2c] sm:$0xf]
        %v2043 = vld [vmem:[#allocation14 + $0x30] sm:$0xf]
        %v2044 = vld [vmem:[#allocation14 + $0x34] sm:$0xf]
        %v2045 = vld [vmem:[#allocation14 + $0x38] sm:$0xf]
        %v2046 = vld [vmem:[#allocation14 + $0x3c] sm:$0xf]
        %v2047 = vld [vmem:[%s7] sm:$0x1]
        %v2049 = vlaneseq
        %v2050 = vshrl.u32 %v2049, 7
        %v2051 = vsub.s32 0, %v2050
        %v2052 = vrot.slane %v2047, %v2051
        %v2070 = vunpack.c.l.b16 %v2031
        %v2071 = vunpack.c.l.b16 %v2032
        %v2072 = vunpack.c.l.b16 %v2033
        %v2073 = vunpack.c.l.b16 %v2034
        %v2074 = vunpack.c.l.b16 %v2035
        %v2075 = vunpack.c.l.b16 %v2036
        %v2076 = vunpack.c.l.b16 %v2037
        %v2077 = vunpack.c.l.b16 %v2038
        %v2078 = vunpack.c.l.b16 %v2039
        %v2079 = vunpack.c.l.b16 %v2040
        %v2080 = vunpack.c.l.b16 %v2041
        %v2081 = vunpack.c.l.b16 %v2042
        %v2082 = vunpack.c.l.b16 %v2043
        %v2083 = vunpack.c.l.b16 %v2044
        %v2084 = vunpack.c.l.b16 %v2045
        %v2085 = vunpack.c.l.b16 %v2046
        %v2086 = vpack.c.b16 %v2071, %v2070
        %v2087 = vpack.c.b16 %v2073, %v2072
        %v2088 = vpack.c.b16 %v2075, %v2074
        %v2089 = vpack.c.b16 %v2077, %v2076
        %v2090 = vpack.c.b16 %v2079, %v2078
        %v2091 = vpack.c.b16 %v2081, %v2080
        %v2092 = vpack.c.b16 %v2083, %v2082
        %v2093 = vpack.c.b16 %v2085, %v2084
        %2102 = vmatprep.subr.bf16.mxu0 0
        %2103 = vmatpush1.bf16.msra.mxu0 %v2086
        %2104 = vmatprep.subr.bf16.mxu0 0
        %2105 = vmatpush1.bf16.msra.mxu0 %v2087
        %2106 = vmatprep.subr.bf16.mxu0 0
        %2107 = vmatpush1.bf16.msra.mxu0 %v2088
        %2108 = vmatprep.subr.bf16.mxu0 0
        %2109 = vmatpush1.bf16.msra.mxu0 %v2089
        %2110 = vmatprep.subr.bf16.mxu0 0
        %2111 = vmatpush1.bf16.msra.mxu0 %v2090
        %2112 = vmatprep.subr.bf16.mxu0 0
        %2113 = vmatpush1.bf16.msra.mxu0 %v2091
        %2114 = vmatprep.subr.bf16.mxu0 0
        %2115 = vmatpush1.bf16.msra.mxu0 %v2092
        %2116 = vmatprep.subr.bf16.mxu0 0
        %2117 = vmatpush1.bf16.msra.mxu0 %v2093
        %2118 = vmatprep.subr.bf16.mxu0 0
        %2119 = vmatpush1.bf16.msra.mxu0 0
        %2120 = vmatprep.subr.bf16.mxu0 0
        %2121 = vmatpush1.bf16.msra.mxu0 0
        %2122 = vmatprep.subr.bf16.mxu0 0
        %2123 = vmatpush1.bf16.msra.mxu0 0
        %2124 = vmatprep.subr.bf16.mxu0 0
        %2125 = vmatpush1.bf16.msra.mxu0 0
        %2126 = vmatprep.subr.bf16.mxu0 0
        %2127 = vmatpush1.bf16.msra.mxu0 0
        %2128 = vmatprep.subr.bf16.mxu0 0
        %2129 = vmatpush1.bf16.msra.mxu0 0
        %2130 = vmatprep.subr.bf16.mxu0 0
        %2131 = vmatpush1.bf16.msra.mxu0 0
        %2132 = vmatprep.subr.bf16.mxu0 0
        %2133 = vmatpush1.bf16.msra.mxu0 0
        %2134 = vmatprep.mubr.bf16.mxu0 0
        %2135 = vmatmul.mubr.bf16.gmra.mrb[0].mxu0 %v2029
        %v2136 = vpop.f32.mrb[0].mxu0
        %v2137 = vadd.f32 %v2052, %v2136
        %v2138 = vpop.f32.mrb[0].mxu0
        %v2139 = vpop.f32.mrb[0].mxu0
        %v2140 = vadd.f32 %v2052, %v2139
        %v2141 = vpop.f32.mrb[0].mxu0
        %2142 = vmatprep.mubr.bf16.mxu0 0
        %2143 = vmatmul.mubr.bf16.gmra.mrb[0].mxu0 %v2030
        %v2144 = vpop.f32.mrb[0].mxu0
        %v2145 = vadd.f32 %v2052, %v2144
        %v2146 = vpop.f32.mrb[0].mxu0
        %v2147 = vpop.f32.mrb[0].mxu0
        %v2148 = vadd.f32 %v2052, %v2147
        %v2149 = vpop.f32.mrb[0].mxu0
        %2150 = vdwg.mxu0
        %v2151 = vadd.f32 %v2137, %v1017
        %v2152 = vadd.f32 %v2140, %v1018
        %v2153 = vadd.f32 %v2145, %v1019
        %v2154 = vadd.f32 %v2148, %v1020
        %2155 = vadd.xlane.f32.xlu0 %v2151
        %v2156 = vpop.xlane.xlu0 %2155
        %2157 = vadd.xlane.f32.xlu0 %v2152
        %v2158 = vpop.xlane.xlu0 %2157
        %2159 = vadd.xlane.f32.xlu0 %v2153
        %v2160 = vpop.xlane.xlu0 %2159
        %2161 = vadd.xlane.f32.xlu0 %v2154
        %v2162 = vpop.xlane.xlu0 %2161
        %v2163 = vrcp.pop 128.0
        %v2164 = vmul.f32 %v2156, %v2163
        %v2165 = vmul.f32 %v2158, %v2163
        %v2166 = vmul.f32 %v2160, %v2163
        %v2167 = vmul.f32 %v2162, %v2163
        %v2168 = vsub.f32 %v2151, %v2164
        %v2169 = vsub.f32 %v2152, %v2165
        %v2170 = vsub.f32 %v2153, %v2166
        %v2171 = vsub.f32 %v2154, %v2167
        %v2172 = vmul.f32 %v2168, %v2168
        %v2173 = vmul.f32 %v2169, %v2169
        %v2174 = vmul.f32 %v2170, %v2170
        %v2175 = vmul.f32 %v2171, %v2171
        %2176 = vadd.xlane.f32.xlu0 %v2172
        %v2177 = vpop.xlane.xlu0 %2176
        %2178 = vadd.xlane.f32.xlu0 %v2173
        %v2179 = vpop.xlane.xlu0 %2178
        %2180 = vadd.xlane.f32.xlu0 %v2174
        %v2181 = vpop.xlane.xlu0 %2180
        %2182 = vadd.xlane.f32.xlu0 %v2175
        %v2183 = vpop.xlane.xlu0 %2182
        %v2184 = vmul.f32 %v2177, %v2163
        %v2185 = vmul.f32 %v2179, %v2163
        %v2186 = vmul.f32 %v2181, %v2163
        %v2187 = vmul.f32 %v2183, %v2163
        %v2188 = vadd.f32 %v2184, 1e-05
        %v2189 = vadd.f32 %v2185, 1e-05
        %v2190 = vadd.f32 %v2186, 1e-05
        %v2191 = vadd.f32 %v2187, 1e-05
        %v2192 = vrsqrt.pop %v2188
        %v2193 = vrsqrt.pop %v2189
        %v2194 = vrsqrt.pop %v2190
        %v2195 = vrsqrt.pop %v2191
        %v2196 = vmul.f32 %v2168, %v2192
        %v2197 = vmul.f32 %v2169, %v2193
        %v2198 = vmul.f32 %v2170, %v2194
        %v2199 = vmul.f32 %v2171, %v2195
        %v2200 = vld [vmem:[%s8] sm:$0x1]
        %v2202 = vlaneseq
        %v2203 = vshrl.u32 %v2202, 7
        %v2204 = vsub.s32 0, %v2203
        %v2205 = vrot.slane %v2200, %v2204
        %v2207 = vmul.f32 %v2205, %v2196
        %v2208 = vmul.f32 %v2205, %v2197
        %v2209 = vmul.f32 %v2205, %v2198
        %v2210 = vmul.f32 %v2205, %v2199
        %v2211 = vld [vmem:[%s9] sm:$0x1]
        %v2213 = vlaneseq
        %v2214 = vshrl.u32 %v2213, 7
        %v2215 = vsub.s32 0, %v2214
        %v2216 = vrot.slane %v2211, %v2215
        %v2218 = vadd.f32 %v2207, %v2216
        %v2219 = vadd.f32 %v2208, %v2216
        %v2220 = vadd.f32 %v2209, %v2216
        %v2221 = vadd.f32 %v2210, %v2216
        %v2222 = vpack.c.bf16 %v2219, %v2218
        %v2223 = vpack.c.bf16 %v2221, %v2220
        %v2224 = vld [vmem:[#allocation15] sm:$0xff]
        %v2225 = vld [vmem:[#allocation15 + $0x8] sm:$0xff]
        %v2226 = vld [vmem:[#allocation15 + $0x10] sm:$0xff]
        %v2227 = vld [vmem:[#allocation15 + $0x18] sm:$0xff]
        %v2228 = vld [vmem:[#allocation15 + $0x20] sm:$0xff]
        %v2229 = vld [vmem:[#allocation15 + $0x28] sm:$0xff]
        %v2230 = vld [vmem:[#allocation15 + $0x30] sm:$0xff]
        %v2231 = vld [vmem:[#allocation15 + $0x38] sm:$0xff]
        %v2232 = vld [vmem:[#allocation15 + $0x40] sm:$0xff]
        %v2233 = vld [vmem:[#allocation15 + $0x48] sm:$0xff]
        %v2234 = vld [vmem:[#allocation15 + $0x50] sm:$0xff]
        %v2235 = vld [vmem:[#allocation15 + $0x58] sm:$0xff]
        %v2236 = vld [vmem:[#allocation15 + $0x60] sm:$0xff]
        %v2237 = vld [vmem:[#allocation15 + $0x68] sm:$0xff]
        %v2238 = vld [vmem:[#allocation15 + $0x70] sm:$0xff]
        %v2239 = vld [vmem:[#allocation15 + $0x78] sm:$0xff]
        %v2240 = vld [vmem:[%s11] sm:$0x3]
        %v2242 = vlaneseq
        %v2243 = vshrl.u32 %v2242, 7
        %v2244 = vsub.s32 0, %v2243
        %v2245 = vrot.slane %v2240, %v2244
        %v2246 = vlaneseq
        %v2247 = vshrl.u32 %v2246, 7
        %v2248 = vsub.s32 1, %v2247
        %v2249 = vrot.slane %v2240, %v2248
        %v2268 = vunpack.c.l.b16 %v2224
        %v2269 = vunpack.c.h.b16 %v2224
        %v2270 = vunpack.c.l.b16 %v2225
        %v2271 = vunpack.c.h.b16 %v2225
        %v2272 = vunpack.c.l.b16 %v2226
        %v2273 = vunpack.c.h.b16 %v2226
        %v2274 = vunpack.c.l.b16 %v2227
        %v2275 = vunpack.c.h.b16 %v2227
        %v2276 = vunpack.c.l.b16 %v2228
        %v2277 = vunpack.c.h.b16 %v2228
        %v2278 = vunpack.c.l.b16 %v2229
        %v2279 = vunpack.c.h.b16 %v2229
        %v2280 = vunpack.c.l.b16 %v2230
        %v2281 = vunpack.c.h.b16 %v2230
        %v2282 = vunpack.c.l.b16 %v2231
        %v2283 = vunpack.c.h.b16 %v2231
        %v2284 = vunpack.c.l.b16 %v2232
        %v2285 = vunpack.c.h.b16 %v2232
        %v2286 = vunpack.c.l.b16 %v2233
        %v2287 = vunpack.c.h.b16 %v2233
        %v2288 = vunpack.c.l.b16 %v2234
        %v2289 = vunpack.c.h.b16 %v2234
        %v2290 = vunpack.c.l.b16 %v2235
        %v2291 = vunpack.c.h.b16 %v2235
        %v2292 = vunpack.c.l.b16 %v2236
        %v2293 = vunpack.c.h.b16 %v2236
        %v2294 = vunpack.c.l.b16 %v2237
        %v2295 = vunpack.c.h.b16 %v2237
        %v2296 = vunpack.c.l.b16 %v2238
        %v2297 = vunpack.c.h.b16 %v2238
        %v2298 = vunpack.c.l.b16 %v2239
        %v2299 = vunpack.c.h.b16 %v2239
        %v2300 = vpack.c.b16 %v2270, %v2268
        %v2301 = vpack.c.b16 %v2271, %v2269
        %v2302 = vpack.c.b16 %v2274, %v2272
        %v2303 = vpack.c.b16 %v2275, %v2273
        %v2304 = vpack.c.b16 %v2278, %v2276
        %v2305 = vpack.c.b16 %v2279, %v2277
        %v2306 = vpack.c.b16 %v2282, %v2280
        %v2307 = vpack.c.b16 %v2283, %v2281
        %v2308 = vpack.c.b16 %v2286, %v2284
        %v2309 = vpack.c.b16 %v2287, %v2285
        %v2310 = vpack.c.b16 %v2290, %v2288
        %v2311 = vpack.c.b16 %v2291, %v2289
        %v2312 = vpack.c.b16 %v2294, %v2292
        %v2313 = vpack.c.b16 %v2295, %v2293
        %v2314 = vpack.c.b16 %v2298, %v2296
        %v2315 = vpack.c.b16 %v2299, %v2297
        %2332 = vmatprep.subr.bf16.mxu0 %v2301
        %2333 = vmatpush1.bf16.msra.mxu0 %v2300
        %2334 = vmatprep.subr.bf16.mxu0 %v2303
        %2335 = vmatpush1.bf16.msra.mxu0 %v2302
        %2336 = vmatprep.subr.bf16.mxu0 %v2305
        %2337 = vmatpush1.bf16.msra.mxu0 %v2304
        %2338 = vmatprep.subr.bf16.mxu0 %v2307
        %2339 = vmatpush1.bf16.msra.mxu0 %v2306
        %2340 = vmatprep.subr.bf16.mxu0 %v2309
        %2341 = vmatpush1.bf16.msra.mxu0 %v2308
        %2342 = vmatprep.subr.bf16.mxu0 %v2311
        %2343 = vmatpush1.bf16.msra.mxu0 %v2310
        %2344 = vmatprep.subr.bf16.mxu0 %v2313
        %2345 = vmatpush1.bf16.msra.mxu0 %v2312
        %2346 = vmatprep.subr.bf16.mxu0 %v2315
        %2347 = vmatpush1.bf16.msra.mxu0 %v2314
        %2348 = vmatprep.subr.bf16.mxu0 0
        %2349 = vmatpush1.bf16.msra.mxu0 0
        %2350 = vmatprep.subr.bf16.mxu0 0
        %2351 = vmatpush1.bf16.msra.mxu0 0
        %2352 = vmatprep.subr.bf16.mxu0 0
        %2353 = vmatpush1.bf16.msra.mxu0 0
        %2354 = vmatprep.subr.bf16.mxu0 0
        %2355 = vmatpush1.bf16.msra.mxu0 0
        %2356 = vmatprep.subr.bf16.mxu0 0
        %2357 = vmatpush1.bf16.msra.mxu0 0
        %2358 = vmatprep.subr.bf16.mxu0 0
        %2359 = vmatpush1.bf16.msra.mxu0 0
        %2360 = vmatprep.subr.bf16.mxu0 0
        %2361 = vmatpush1.bf16.msra.mxu0 0
        %2362 = vmatprep.subr.bf16.mxu0 0
        %2363 = vmatpush1.bf16.msra.mxu0 0
        %2364 = vmatprep.mubr.bf16.mxu0 0
        %2365 = vmatmul.mubr.bf16.gmra.mrb[0].mxu0 %v2222
        %v2366 = vpop.f32.mrb[0].mxu0
        %v2367 = vadd.f32 %v2245, %v2366
        %v2368 = vpop.f32.mrb[0].mxu0
        %v2369 = vadd.f32 %v2249, %v2368
        %v2370 = vpop.f32.mrb[0].mxu0
        %v2371 = vadd.f32 %v2245, %v2370
        %v2372 = vpop.f32.mrb[0].mxu0
        %v2373 = vadd.f32 %v2249, %v2372
        %2374 = vmatprep.mubr.bf16.mxu0 0
        %2375 = vmatmul.mubr.bf16.gmra.mrb[0].mxu0 %v2223
        %v2376 = vpop.f32.mrb[0].mxu0
        %v2377 = vadd.f32 %v2245, %v2376
        %v2378 = vpop.f32.mrb[0].mxu0
        %v2379 = vadd.f32 %v2249, %v2378
        %v2380 = vpop.f32.mrb[0].mxu0
        %v2381 = vadd.f32 %v2245, %v2380
        %v2382 = vpop.f32.mrb[0].mxu0
        %v2383 = vadd.f32 %v2249, %v2382
        %2384 = vdwg.mxu0
        %v2385 = vmax.f32 %v2367, 0.0
        %v2386 = vmax.f32 %v2369, 0.0
        %v2387 = vmax.f32 %v2371, 0.0
        %v2388 = vmax.f32 %v2373, 0.0
        %v2389 = vmax.f32 %v2377, 0.0
        %v2390 = vmax.f32 %v2379, 0.0
        %v2391 = vmax.f32 %v2381, 0.0
        %v2392 = vmax.f32 %v2383, 0.0
        %v2393 = vpack.c.bf16 %v2387, %v2385
        %v2394 = vpack.c.bf16 %v2388, %v2386
        %v2395 = vpack.c.bf16 %v2391, %v2389
        %v2396 = vpack.c.bf16 %v2392, %v2390
        %v2397 = vld [vmem:[#allocation17] sm:$0xf]
        %v2398 = vld [vmem:[#allocation17 + $0x4] sm:$0xf]
        %v2399 = vld [vmem:[#allocation17 + $0x8] sm:$0xf]
        %v2400 = vld [vmem:[#allocation17 + $0xc] sm:$0xf]
        %v2401 = vld [vmem:[#allocation17 + $0x10] sm:$0xf]
        %v2402 = vld [vmem:[#allocation17 + $0x14] sm:$0xf]
        %v2403 = vld [vmem:[#allocation17 + $0x18] sm:$0xf]
        %v2404 = vld [vmem:[#allocation17 + $0x1c] sm:$0xf]
        %v2405 = vld [vmem:[#allocation17 + $0x20] sm:$0xf]
        %v2406 = vld [vmem:[#allocation17 + $0x24] sm:$0xf]
        %v2407 = vld [vmem:[#allocation17 + $0x28] sm:$0xf]
        %v2408 = vld [vmem:[#allocation17 + $0x2c] sm:$0xf]
        %v2409 = vld [vmem:[#allocation17 + $0x30] sm:$0xf]
        %v2410 = vld [vmem:[#allocation17 + $0x34] sm:$0xf]
        %v2411 = vld [vmem:[#allocation17 + $0x38] sm:$0xf]
        %v2412 = vld [vmem:[#allocation17 + $0x3c] sm:$0xf]
        %v2413 = vld [vmem:[#allocation17 + $0x40] sm:$0xf]
        %v2414 = vld [vmem:[#allocation17 + $0x44] sm:$0xf]
        %v2415 = vld [vmem:[#allocation17 + $0x48] sm:$0xf]
        %v2416 = vld [vmem:[#allocation17 + $0x4c] sm:$0xf]
        %v2417 = vld [vmem:[#allocation17 + $0x50] sm:$0xf]
        %v2418 = vld [vmem:[#allocation17 + $0x54] sm:$0xf]
        %v2419 = vld [vmem:[#allocation17 + $0x58] sm:$0xf]
        %v2420 = vld [vmem:[#allocation17 + $0x5c] sm:$0xf]
        %v2421 = vld [vmem:[#allocation17 + $0x60] sm:$0xf]
        %v2422 = vld [vmem:[#allocation17 + $0x64] sm:$0xf]
        %v2423 = vld [vmem:[#allocation17 + $0x68] sm:$0xf]
        %v2424 = vld [vmem:[#allocation17 + $0x6c] sm:$0xf]
        %v2425 = vld [vmem:[#allocation17 + $0x70] sm:$0xf]
        %v2426 = vld [vmem:[#allocation17 + $0x74] sm:$0xf]
        %v2427 = vld [vmem:[#allocation17 + $0x78] sm:$0xf]
        %v2428 = vld [vmem:[#allocation17 + $0x7c] sm:$0xf]
        %v2429 = vld [vmem:[%s13] sm:$0x1]
        %v2431 = vlaneseq
        %v2432 = vshrl.u32 %v2431, 7
        %v2433 = vsub.s32 0, %v2432
        %v2434 = vrot.slane %v2429, %v2433
        %v2468 = vunpack.c.l.b16 %v2397
        %v2469 = vunpack.c.l.b16 %v2398
        %v2470 = vunpack.c.l.b16 %v2399
        %v2471 = vunpack.c.l.b16 %v2400
        %v2472 = vunpack.c.l.b16 %v2401
        %v2473 = vunpack.c.l.b16 %v2402
        %v2474 = vunpack.c.l.b16 %v2403
        %v2475 = vunpack.c.l.b16 %v2404
        %v2476 = vunpack.c.l.b16 %v2405
        %v2477 = vunpack.c.l.b16 %v2406
        %v2478 = vunpack.c.l.b16 %v2407
        %v2479 = vunpack.c.l.b16 %v2408
        %v2480 = vunpack.c.l.b16 %v2409
        %v2481 = vunpack.c.l.b16 %v2410
        %v2482 = vunpack.c.l.b16 %v2411
        %v2483 = vunpack.c.l.b16 %v2412
        %v2484 = vunpack.c.l.b16 %v2413
        %v2485 = vunpack.c.l.b16 %v2414
        %v2486 = vunpack.c.l.b16 %v2415
        %v2487 = vunpack.c.l.b16 %v2416
        %v2488 = vunpack.c.l.b16 %v2417
        %v2489 = vunpack.c.l.b16 %v2418
        %v2490 = vunpack.c.l.b16 %v2419
        %v2491 = vunpack.c.l.b16 %v2420
        %v2492 = vunpack.c.l.b16 %v2421
        %v2493 = vunpack.c.l.b16 %v2422
        %v2494 = vunpack.c.l.b16 %v2423
        %v2495 = vunpack.c.l.b16 %v2424
        %v2496 = vunpack.c.l.b16 %v2425
        %v2497 = vunpack.c.l.b16 %v2426
        %v2498 = vunpack.c.l.b16 %v2427
        %v2499 = vunpack.c.l.b16 %v2428
        %v2500 = vpack.c.b16 %v2469, %v2468
        %v2501 = vpack.c.b16 %v2471, %v2470
        %v2502 = vpack.c.b16 %v2473, %v2472
        %v2503 = vpack.c.b16 %v2475, %v2474
        %v2504 = vpack.c.b16 %v2477, %v2476
        %v2505 = vpack.c.b16 %v2479, %v2478
        %v2506 = vpack.c.b16 %v2481, %v2480
        %v2507 = vpack.c.b16 %v2483, %v2482
        %v2508 = vpack.c.b16 %v2485, %v2484
        %v2509 = vpack.c.b16 %v2487, %v2486
        %v2510 = vpack.c.b16 %v2489, %v2488
        %v2511 = vpack.c.b16 %v2491, %v2490
        %v2512 = vpack.c.b16 %v2493, %v2492
        %v2513 = vpack.c.b16 %v2495, %v2494
        %v2514 = vpack.c.b16 %v2497, %v2496
        %v2515 = vpack.c.b16 %v2499, %v2498
        %2532 = vmatprep.subr.bf16.mxu0 0
        %2533 = vmatpush1.bf16.msra.mxu0 %v2500
        %2534 = vmatprep.subr.bf16.mxu0 0
        %2535 = vmatpush1.bf16.msra.mxu0 %v2501
        %2536 = vmatprep.subr.bf16.mxu0 0
        %2537 = vmatpush1.bf16.msra.mxu0 %v2502
        %2538 = vmatprep.subr.bf16.mxu0 0
        %2539 = vmatpush1.bf16.msra.mxu0 %v2503
        %2540 = vmatprep.subr.bf16.mxu0 0
        %2541 = vmatpush1.bf16.msra.mxu0 %v2504
        %2542 = vmatprep.subr.bf16.mxu0 0
        %2543 = vmatpush1.bf16.msra.mxu0 %v2505
        %2544 = vmatprep.subr.bf16.mxu0 0
        %2545 = vmatpush1.bf16.msra.mxu0 %v2506
        %2546 = vmatprep.subr.bf16.mxu0 0
        %2547 = vmatpush1.bf16.msra.mxu0 %v2507
        %2548 = vmatprep.subr.bf16.mxu0 0
        %2549 = vmatpush1.bf16.msra.mxu0 %v2508
        %2550 = vmatprep.subr.bf16.mxu0 0
        %2551 = vmatpush1.bf16.msra.mxu0 %v2509
        %2552 = vmatprep.subr.bf16.mxu0 0
        %2553 = vmatpush1.bf16.msra.mxu0 %v2510
        %2554 = vmatprep.subr.bf16.mxu0 0
        %2555 = vmatpush1.bf16.msra.mxu0 %v2511
        %2556 = vmatprep.subr.bf16.mxu0 0
        %2557 = vmatpush1.bf16.msra.mxu0 %v2512
        %2558 = vmatprep.subr.bf16.mxu0 0
        %2559 = vmatpush1.bf16.msra.mxu0 %v2513
        %2560 = vmatprep.subr.bf16.mxu0 0
        %2561 = vmatpush1.bf16.msra.mxu0 %v2514
        %2562 = vmatprep.subr.bf16.mxu0 0
        %2563 = vmatpush1.bf16.msra.mxu0 %v2515
        %2564 = vmatprep.mubr.bf16.mxu0 %v2394
        %2565 = vmatmul.mubr.bf16.gmra.mrb[0].mxu0 %v2393
        %v2566 = vpop.f32.mrb[0].mxu0
        %v2567 = vadd.f32 %v2434, %v2566
        %v2568 = vpop.f32.mrb[0].mxu0
        %v2569 = vpop.f32.mrb[0].mxu0
        %v2570 = vadd.f32 %v2434, %v2569
        %v2571 = vpop.f32.mrb[0].mxu0
        %2572 = vmatprep.mubr.bf16.mxu0 %v2396
        %2573 = vmatmul.mubr.bf16.gmra.mrb[0].mxu0 %v2395
        %v2574 = vpop.f32.mrb[0].mxu0
        %v2575 = vadd.f32 %v2434, %v2574
        %v2576 = vpop.f32.mrb[0].mxu0
        %v2577 = vpop.f32.mrb[0].mxu0
        %v2578 = vadd.f32 %v2434, %v2577
        %v2579 = vpop.f32.mrb[0].mxu0
        %2580 = vdwg.mxu0
        %v2581 = vadd.f32 %v2567, %v2218
        %v2582 = vadd.f32 %v2570, %v2219
        %v2583 = vadd.f32 %v2575, %v2220
        %v2584 = vadd.f32 %v2578, %v2221
        %2585 = vadd.xlane.f32.xlu0 %v2581
        %v2586 = vpop.xlane.xlu0 %2585
        %2587 = vadd.xlane.f32.xlu0 %v2582
        %v2588 = vpop.xlane.xlu0 %2587
        %2589 = vadd.xlane.f32.xlu0 %v2583
        %v2590 = vpop.xlane.xlu0 %2589
        %2591 = vadd.xlane.f32.xlu0 %v2584
        %v2592 = vpop.xlane.xlu0 %2591
        %v2593 = vmul.f32 %v2586, %v2163
        %v2594 = vmul.f32 %v2588, %v2163
        %v2595 = vmul.f32 %v2590, %v2163
        %v2596 = vmul.f32 %v2592, %v2163
        %v2597 = vsub.f32 %v2581, %v2593
        %v2598 = vsub.f32 %v2582, %v2594
        %v2599 = vsub.f32 %v2583, %v2595
        %v2600 = vsub.f32 %v2584, %v2596
        %v2601 = vmul.f32 %v2597, %v2597
        %v2602 = vmul.f32 %v2598, %v2598
        %v2603 = vmul.f32 %v2599, %v2599
        %v2604 = vmul.f32 %v2600, %v2600
        %2605 = vadd.xlane.f32.xlu0 %v2601
        %v2606 = vpop.xlane.xlu0 %2605
        %2607 = vadd.xlane.f32.xlu0 %v2602
        %v2608 = vpop.xlane.xlu0 %2607
        %2609 = vadd.xlane.f32.xlu0 %v2603
        %v2610 = vpop.xlane.xlu0 %2609
        %2611 = vadd.xlane.f32.xlu0 %v2604
        %v2612 = vpop.xlane.xlu0 %2611
        %v2613 = vmul.f32 %v2606, %v2163
        %v2614 = vmul.f32 %v2608, %v2163
        %v2615 = vmul.f32 %v2610, %v2163
        %v2616 = vmul.f32 %v2612, %v2163
        %v2617 = vadd.f32 %v2613, 1e-05
        %v2618 = vadd.f32 %v2614, 1e-05
        %v2619 = vadd.f32 %v2615, 1e-05
        %v2620 = vadd.f32 %v2616, 1e-05
        %v2621 = vrsqrt.pop %v2617
        %v2622 = vrsqrt.pop %v2618
        %v2623 = vrsqrt.pop %v2619
        %v2624 = vrsqrt.pop %v2620
        %v2625 = vmul.f32 %v2597, %v2621
        %v2626 = vmul.f32 %v2598, %v2622
        %v2627 = vmul.f32 %v2599, %v2623
        %v2628 = vmul.f32 %v2600, %v2624
        %v2629 = vld [vmem:[%s14] sm:$0x1]
        %v2631 = vlaneseq
        %v2632 = vshrl.u32 %v2631, 7
        %v2633 = vsub.s32 0, %v2632
        %v2634 = vrot.slane %v2629, %v2633
        %v2636 = vmul.f32 %v2634, %v2625
        %v2637 = vmul.f32 %v2634, %v2626
        %v2638 = vmul.f32 %v2634, %v2627
        %v2639 = vmul.f32 %v2634, %v2628
        %v2640 = vld [vmem:[%s15] sm:$0x1]
        %v2642 = vlaneseq
        %v2643 = vshrl.u32 %v2642, 7
        %v2644 = vsub.s32 0, %v2643
        %v2645 = vrot.slane %v2640, %v2644
        %v2647 = vadd.f32 %v2636, %v2645
        %v2648 = vadd.f32 %v2637, %v2645
        %v2649 = vadd.f32 %v2638, %v2645
        %v2650 = vadd.f32 %v2639, %v2645
        %2651 = vst [vmem:[%s669] sm:$0xff] %v2647
        %2652 = vst [vmem:[%s669 + $0x8] sm:$0xff] %v2648
        %2653 = vst [vmem:[%s669 + $0x10] sm:$0xff] %v2649
        %2654 = vst [vmem:[%s669 + $0x18] sm:$0xff] %v2650
        %s2655 = sand.u32 %s408, 1
        %s2656 = scalar_lea.sflag [#allocation8], %s2655
        %s2657 = sand.u32 %s408, 1
        %s2658 = smul.addr %s2657, 32
        %s2659 = scalar_lea.vmem [#allocation18], %s2658
        // Predicated region
        $region117: #{tpu_custom_call.1} parent=83 // pred_check
          %p2660 = pneg %p418
        $region118: #{tpu_custom_call.1} parent=83 // pred_check_branch
          %2662 = sbr.rel (%p2660) target = $region120
        $region119: #{tpu_custom_call.1} parent=83 // pred_region
          %s2663 = smul.u32 4, %s43
          %s2665 = ssub.s32 512, 512
          %2666 = vsyncadd %s2656, %s2665
          %s2667 = smul.addr %s42, 8
          %s2668 = sadd.s32 %s2663, %s2667
          %s2669 = smul.addr %s2668, 128
          %s2670 = scalar_lea.hbm %s16, %s2669
          %s2671 = sshll.u32 %s2659, 4
          %s2672 = int_to_ptr.vmem [resolvable:$true] %s2671
          %2677 = dma.vmem_to_hbm [thread:$0]  %s2672, 512, %s2670, %s2656, 128, 128, 8
        $region120: #{tpu_custom_call.1} parent=83 // pred_fallthru
          _
      $region84: #{tpu_custom_call.1} parent=5 // pred_fallthru
        _
      %p2678 = scmp.le.s32.totalorder 2, %s33
      // Predicated region
      $region121: #{tpu_custom_call.1} parent=5 // pred_check
        %p2679 = pneg %p2678
      $region122: #{tpu_custom_call.1} parent=5 // pred_check_branch
        %2681 = sbr.rel (%p2679) target = $region124
      $region123: #{tpu_custom_call.1} parent=5 // pred_region
        %s2682 = ssub.s32 %s33, 2
        // Predicated region
        $region125: #{tpu_custom_call.1} parent=123 // pred_check
          %p2683 = pneg %p424
        $region126: #{tpu_custom_call.1} parent=123 // pred_check_branch
          %2685 = sbr.rel (%p2683) target = $region128
        $region127: #{tpu_custom_call.1} parent=123 // pred_region
          %s2686 = sand.u32 %s409, 1
          %s2687 = scalar_lea.sflag [#allocation8], %s2686
          %s2688 = sand.u32 %s409, 1
          %s2689 = smul.addr %s2688, 32
          %s2690 = scalar_lea.vmem [#allocation18], %s2689
          %2691 = dma.done %s2687, 512
        $region128: #{tpu_custom_call.1} parent=123 // pred_fallthru
          _
      $region124: #{tpu_custom_call.1} parent=5 // pred_fallthru
        _
    $region6: #{tpu_custom_call.1} parent=1 // loop_footer
      %s37 = sadd.s32 1, %s33
    $region7: #{tpu_custom_call.1} parent=1 // loop_footer_branch
      %32 = sbr.rel target = $region3
    $region8: #{tpu_custom_call.1} parent=1 // loop_exit
      _
    %2692 = vsyncpa [#allocation7], 1
    %s2693 = scalar_lea.sflag [#allocation7], 1
    %2694 = vsyncpa %s2693, 1
    %2695 = vsyncpa [#allocation10], 1
    %s2696 = scalar_lea.sflag [#allocation10], 1
    %2697 = vsyncpa %s2696, 1
    %2698 = vsyncpa [#allocation13], 1
    %2699 = vsyncpa [#allocation16], 1
    %2700 = vsyncpa [#allocation8], 1
    %s2701 = scalar_lea.sflag [#allocation8], 1
    %2702 = vsyncpa %s2701, 1

// kernel: tpu_custom_call.1
$region0: #{tpu_custom_call.1}
  #allocation0 [shape = 'u32[]', space=smem, size = 0x4, offset = 0x4, fixed_abs, tag = 'smem constant byte address 0x4 - core index']
  #allocation1 [shape = 'u32[144,128]{1,0:T(1,128)}', space=vmem, size = 0x12000, scoped, tag = 'internal scratch']
  #allocation2 [shape = 'bf16[4,64,32]{2,1,0:T(16,128)(2,1)}', space=vmem, size = 0x10000, scoped, tag = 'scratch operand']
  #allocation3 [shape = 'bf16[4,64,32]{2,1,0:T(16,128)(2,1)}', space=vmem, size = 0x10000, scoped, tag = 'scratch operand']
  #allocation4 [shape = 'bf16[4,32,32]{2,1,0:T(16,128)(2,1)}', space=vmem, size = 0x8000, scoped, tag = 'scratch operand']
  #allocation5 [shape = 'bf16[32,128]{1,0:T(16,128)(2,1)}', space=vmem, size = 0x2000, scoped, tag = 'scratch operand']
  %s0 = inlined_call_operand.hbm [shape: f32[2,64,128], index: 0, kind: input, shape index: {}]
  %s1 = inlined_call_operand.hbm [shape: bf16[2,64,128], index: 1, kind: input, shape index: {}]
  %s2 = inlined_call_operand.hbm [shape: bf16[128,128], index: 2, kind: input, shape index: {}]
  %s3 = inlined_call_operand.vmem [shape: f32[1,128], index: 3, kind: input, shape index: {}]
  %s4 = inlined_call_operand.hbm [shape: bf16[128,256], index: 4, kind: input, shape index: {}]
  %s5 = inlined_call_operand.vmem [shape: f32[1,256], index: 5, kind: input, shape index: {}]
  %s6 = inlined_call_operand.hbm [shape: bf16[128,128], index: 6, kind: input, shape index: {}]
  %s7 = inlined_call_operand.vmem [shape: f32[1,128], index: 7, kind: input, shape index: {}]
  %s8 = inlined_call_operand.vmem [shape: f32[1,128], index: 8, kind: input, shape index: {}]
  %s9 = inlined_call_operand.vmem [shape: f32[1,128], index: 9, kind: input, shape index: {}]
  %s10 = inlined_call_operand.hbm [shape: bf16[128,256], index: 10, kind: input, shape index: {}]
  %s11 = inlined_call_operand.vmem [shape: f32[1,256], index: 11, kind: input, shape index: {}]
  %s12 = inlined_call_operand.hbm [shape: bf16[256,128], index: 12, kind: input, shape index: {}]
  %s13 = inlined_call_operand.vmem [shape: f32[1,128], index: 13, kind: input, shape index: {}]
  %s14 = inlined_call_operand.vmem [shape: f32[1,128], index: 14, kind: input, shape index: {}]
  %s15 = inlined_call_operand.vmem [shape: f32[1,128], index: 15, kind: input, shape index: {}]
  %s16 = inlined_call_operand.hbm [shape: f32[2,64,128], index: 16, kind: output, shape index: {}]
  %s17 = sld [smem:[#allocation0]]
  $region129: #{tpu_custom_call.1} parent=0
    _
  %s19 = ssub.s32 1, %s17
  %s20 = scalar_select 0, %s19, %s17
  $region1: #{tpu_custom_call.1} parent=0
    #allocation6 [shape = 'u8[32768]{0}', space=vmem, size = 0x8000, scoped, tag = 'input window, operand 0']
    #allocation7 [shape = 's32[2]{0}', space=sflag, size = 0x8, scoped, tag = 'scoped memory for tpu_custom_call.1']
    #allocation8 [shape = 's32[2]{0}', space=sflag, size = 0x8, scoped, tag = 'scoped memory for tpu_custom_call.1']
    #allocation9 [shape = 'u8[32768]{0}', space=vmem, size = 0x8000, scoped, tag = 'input window, operand 1']
    #allocation10 [shape = 's32[2]{0}', space=sflag, size = 0x8, scoped, tag = 'scoped memory for tpu_custom_call.1']
    #allocation11 [shape = 'u8[32768]{0}', space=vmem, size = 0x8000, scoped, tag = 'input window, operand 2, single buffered']
    #allocation12 [shape = 'u8[65536]{0}', space=vmem, size = 0x10000, scoped, tag = 'input window, operand 4, single buffered']
    #allocation13 [shape = 's32[1]{0}', space=sflag, size = 0x4, scoped, tag = 'scoped memory for tpu_custom_call.1']
    #allocation14 [shape = 'u8[32768]{0}', space=vmem, size = 0x8000, scoped, tag = 'input window, operand 6, single buffered']
    #allocation15 [shape = 'u8[65536]{0}', space=vmem, size = 0x10000, scoped, tag = 'input window, operand 10, single buffered']
    #allocation16 [shape = 's32[1]{0}', space=sflag, size = 0x4, scoped, tag = 'scoped memory for tpu_custom_call.1']
    #allocation17 [shape = 'u8[65536]{0}', space=vmem, size = 0x10000, scoped, tag = 'input window, operand 12, single buffered']
    #allocation18 [shape = 'u8[32768]{0}', space=vmem, size = 0x8000, scoped, tag = 'output window, operand 0']
    %21 = vsyncpa [#allocation7], 0
    %s22 = scalar_lea.sflag [#allocation7], 1
    %23 = vsyncpa %s22, 0
    %24 = vsyncpa [#allocation10], 0
    %s25 = scalar_lea.sflag [#allocation10], 1
    %26 = vsyncpa %s25, 0
    %27 = vsyncpa [#allocation13], 0
    %28 = vsyncpa [#allocation16], 0
    %29 = vsyncpa [#allocation8], 0
    %s30 = scalar_lea.sflag [#allocation8], 1
    %31 = vsyncpa %s30, 0
    loop: start=0, step=1, limit=6
    $region2: #{tpu_custom_call.1} parent=1 // loop_pre_header
      _
    $region3: #{tpu_custom_call.1} parent=1 // loop_header
      %s33 = sphi 0, %s37
      %p34 = scmp.ge.s32.totalorder %s33, 6
      %s40 = sphi 0, %s52
      %s41 = sphi 0, %s48
      %s42 = sphi 0, %s40
      %s43 = sphi 0, %s41
      %s44 = sphi 0, %s42
      %s45 = sphi 0, %s43
      %s57 = sphi 0, %s59
      %s60 = sphi 0, %s57
      %s61 = sphi 0, %s60
      %s77 = sphi 0, %s61
      %s83 = sphi 0, %s85
      %s86 = sphi 0, %s83
      %s87 = sphi 0, %s86
      %s103 = sphi 0, %s87
      %s107 = sphi 0, %s107
      %s109 = sphi 0, %s107
      %s110 = sphi 0, %s109
      %s124 = sphi 0, %s110
      %s128 = sphi 0, %s128
      %s130 = sphi 0, %s128
      %s131 = sphi 0, %s130
      %s145 = sphi 0, %s131
      %s149 = sphi 0, %s149
      %s151 = sphi 0, %s149
      %s152 = sphi 0, %s151
      %s166 = sphi 0, %s152
      %s170 = sphi 0, %s170
      %s172 = sphi 0, %s170
      %s173 = sphi 0, %s172
      %s187 = sphi 0, %s173
      %s191 = sphi 0, %s191
      %s193 = sphi 0, %s191
      %s194 = sphi 0, %s193
      %s208 = sphi 0, %s194
      %s212 = sphi 0, %s212
      %s214 = sphi 0, %s212
      %s215 = sphi 0, %s214
      %s229 = sphi 0, %s215
      %s233 = sphi 0, %s233
      %s235 = sphi 0, %s233
      %s236 = sphi 0, %s235
      %s250 = sphi 0, %s236
      %s254 = sphi 0, %s254
      %s256 = sphi 0, %s254
      %s257 = sphi 0, %s256
      %s271 = sphi 0, %s257
      %s275 = sphi 0, %s275
      %s277 = sphi 0, %s275
      %s278 = sphi 0, %s277
      %s292 = sphi 0, %s278
      %s296 = sphi 0, %s296
      %s298 = sphi 0, %s296
      %s299 = sphi 0, %s298
      %s313 = sphi 0, %s299
      %s317 = sphi 0, %s317
      %s319 = sphi 0, %s317
      %s320 = sphi 0, %s319
      %s334 = sphi 0, %s320
      %s338 = sphi 0, %s338
      %s340 = sphi 0, %s338
      %s341 = sphi 0, %s340
      %s355 = sphi 0, %s341
      %s359 = sphi 0, %s359
      %s361 = sphi 0, %s359
      %s362 = sphi 0, %s361
      %s376 = sphi 0, %s362
      %s380 = sphi 0, %s380
      %s382 = sphi 0, %s380
      %s383 = sphi 0, %s382
      %s397 = sphi 0, %s383
      %s405 = sphi 0, %s407
      %s408 = sphi 0, %s405
      %s409 = sphi 0, %s408
      %s425 = sphi 0, %s409
    $region4: #{tpu_custom_call.1} parent=1 // loop_header_branch
      %36 = sbr.rel (%p34) target = $region8
    $region5: #{tpu_custom_call.1} parent=1 // loop_body
      %s38 = ssub.s32 %s33, 1
      %s39 = ssub.s32 %s33, 2
      %s46 = sadd.s32 1, %s41
      %p47 = scmp.ge.s32.totalorder %s46, 2
      %s48 = scalar_select %p47, 0, %s46
      %s49 = sadd.s32 1, %s40
      %s50 = scalar_select %p47, %s49, %s40
      %p51 = scmp.ge.s32.totalorder %s50, 2
      %s52 = scalar_select %p51, 0, %s50
      %s53 = ssub.s32 %s40, %s52
      %s54 = ssub.s32 %s41, %s48
      %s55 = sor.u32 %s53, %s54
      %p56 = scmp.eq.s32.totalorder %s55, 0
      %s58 = sadd.s32 %s57, 1
      %s59 = scalar_select %p56, %s57, %s58
      %p62 = pneg %p56
      %p63 = scmp.eq.s32.totalorder %s33, 3
      %p64 = por %p62, %p63
      %p65 = scmp.ne.s32.totalorder %s57, %s60
      %p66 = scmp.eq.s32.totalorder %s33, 0
      %p67 = por %p65, %p66
      %p68 = scmp.ne.s32.totalorder %s57, %s60
      %p69 = scmp.eq.s32.totalorder %s38, 3
      %p70 = por %p68, %p69
      %p71 = scmp.ne.s32.totalorder %s60, %s61
      %p72 = scmp.eq.s32.totalorder %s38, 0
      %p73 = por %p71, %p72
      %p74 = scmp.ne.s32.totalorder %s60, %s61
      %p75 = scmp.eq.s32.totalorder %s39, 3
      %p76 = por %p74, %p75
      %p78 = scmp.ne.s32.totalorder %s61, %s77
      %p79 = scmp.eq.s32.totalorder %s39, 0
      %p80 = por %p78, %p79
      %s81 = ssub.s32 %s40, %s52
      %p82 = scmp.eq.s32.totalorder %s81, 0
      %s84 = sadd.s32 %s83, 1
      %s85 = scalar_select %p82, %s83, %s84
      %p88 = pneg %p82
      %p89 = scmp.eq.s32.totalorder %s33, 3
      %p90 = por %p88, %p89
      %p91 = scmp.ne.s32.totalorder %s83, %s86
      %p92 = scmp.eq.s32.totalorder %s33, 0
      %p93 = por %p91, %p92
      %p94 = scmp.ne.s32.totalorder %s83, %s86
      %p95 = scmp.eq.s32.totalorder %s38, 3
      %p96 = por %p94, %p95
      %p97 = scmp.ne.s32.totalorder %s86, %s87
      %p98 = scmp.eq.s32.totalorder %s38, 0
      %p99 = por %p97, %p98
      %p100 = scmp.ne.s32.totalorder %s86, %s87
      %p101 = scmp.eq.s32.totalorder %s39, 3
      %p102 = por %p100, %p101
      %p104 = scmp.ne.s32.totalorder %s87, %s103
      %p105 = scmp.eq.s32.totalorder %s39, 0
      %p106 = por %p104, %p105
      %s108 = sadd.s32 %s107, 1
      %p111 = scmp.eq.s32.totalorder %s33, 3
      %p112 = scmp.ne.s32.totalorder %s107, %s109
      %p113 = scmp.eq.s32.totalorder %s33, 0
      %p114 = por %p112, %p113
      %p115 = scmp.ne.s32.totalorder %s107, %s109
      %p116 = scmp.eq.s32.totalorder %s38, 3
      %p117 = por %p115, %p116
      %p118 = scmp.ne.s32.totalorder %s109, %s110
      %p119 = scmp.eq.s32.totalorder %s38, 0
      %p120 = por %p118, %p119
      %p121 = scmp.ne.s32.totalorder %s109, %s110
      %p122 = scmp.eq.s32.totalorder %s39, 3
      %p123 = por %p121, %p122
      %p125 = scmp.ne.s32.totalorder %s110, %s124
      %p126 = scmp.eq.s32.totalorder %s39, 0
      %p127 = por %p125, %p126
      %s129 = sadd.s32 %s128, 1
      %p132 = scmp.eq.s32.totalorder %s33, 3
      %p133 = scmp.ne.s32.totalorder %s128, %s130
      %p134 = scmp.eq.s32.totalorder %s33, 0
      %p135 = por %p133, %p134
      %p136 = scmp.ne.s32.totalorder %s128, %s130
      %p137 = scmp.eq.s32.totalorder %s38, 3
      %p138 = por %p136, %p137
      %p139 = scmp.ne.s32.totalorder %s130, %s131
      %p140 = scmp.eq.s32.totalorder %s38, 0
      %p141 = por %p139, %p140
      %p142 = scmp.ne.s32.totalorder %s130, %s131
      %p143 = scmp.eq.s32.totalorder %s39, 3
      %p144 = por %p142, %p143
      %p146 = scmp.ne.s32.totalorder %s131, %s145
      %p147 = scmp.eq.s32.totalorder %s39, 0
      %p148 = por %p146, %p147
      %s150 = sadd.s32 %s149, 1
      %p153 = scmp.eq.s32.totalorder %s33, 3
      %p154 = scmp.ne.s32.totalorder %s149, %s151
      %p155 = scmp.eq.s32.totalorder %s33, 0
      %p156 = por %p154, %p155
      %p157 = scmp.ne.s32.totalorder %s149, %s151
      %p158 = scmp.eq.s32.totalorder %s38, 3
      %p159 = por %p157, %p158
      %p160 = scmp.ne.s32.totalorder %s151, %s152
      %p161 = scmp.eq.s32.totalorder %s38, 0
      %p162 = por %p160, %p161
      %p163 = scmp.ne.s32.totalorder %s151, %s152
      %p164 = scmp.eq.s32.totalorder %s39, 3
      %p165 = por %p163, %p164
      %p167 = scmp.ne.s32.totalorder %s152, %s166
      %p168 = scmp.eq.s32.totalorder %s39, 0
      %p169 = por %p167, %p168
      %s171 = sadd.s32 %s170, 1
      %p174 = scmp.eq.s32.totalorder %s33, 3
      %p175 = scmp.ne.s32.totalorder %s170, %s172
      %p176 = scmp.eq.s32.totalorder %s33, 0
      %p177 = por %p175, %p176
      %p178 = scmp.ne.s32.totalorder %s170, %s172
      %p179 = scmp.eq.s32.totalorder %s38, 3
      %p180 = por %p178, %p179
      %p181 = scmp.ne.s32.totalorder %s172, %s173
      %p182 = scmp.eq.s32.totalorder %s38, 0
      %p183 = por %p181, %p182
      %p184 = scmp.ne.s32.totalorder %s172, %s173
      %p185 = scmp.eq.s32.totalorder %s39, 3
      %p186 = por %p184, %p185
      %p188 = scmp.ne.s32.totalorder %s173, %s187
      %p189 = scmp.eq.s32.totalorder %s39, 0
      %p190 = por %p188, %p189
      %s192 = sadd.s32 %s191, 1
      %p195 = scmp.eq.s32.totalorder %s33, 3
      %p196 = scmp.ne.s32.totalorder %s191, %s193
      %p197 = scmp.eq.s32.totalorder %s33, 0
      %p198 = por %p196, %p197
      %p199 = scmp.ne.s32.totalorder %s191, %s193
      %p200 = scmp.eq.s32.totalorder %s38, 3
      %p201 = por %p199, %p200
      %p202 = scmp.ne.s32.totalorder %s193, %s194
      %p203 = scmp.eq.s32.totalorder %s38, 0
      %p204 = por %p202, %p203
      %p205 = scmp.ne.s32.totalorder %s193, %s194
      %p206 = scmp.eq.s32.totalorder %s39, 3
      %p207 = por %p205, %p206
      %p209 = scmp.ne.s32.totalorder %s194, %s208
      %p210 = scmp.eq.s32.totalorder %s39, 0
      %p211 = por %p209, %p210
      %s213 = sadd.s32 %s212, 1
      %p216 = scmp.eq.s32.totalorder %s33, 3
      %p217 = scmp.ne.s32.totalorder %s212, %s214
      %p218 = scmp.eq.s32.totalorder %s33, 0
      %p219 = por %p217, %p218
      %p220 = scmp.ne.s32.totalorder %s212, %s214
      %p221 = scmp.eq.s32.totalorder %s38, 3
      %p222 = por %p220, %p221
      %p223 = scmp.ne.s32.totalorder %s214, %s215
      %p224 = scmp.eq.s32.totalorder %s38, 0
      %p225 = por %p223, %p224
      %p226 = scmp.ne.s32.totalorder %s214, %s215
      %p227 = scmp.eq.s32.totalorder %s39, 3
      %p228 = por %p226, %p227
      %p230 = scmp.ne.s32.totalorder %s215, %s229
      %p231 = scmp.eq.s32.totalorder %s39, 0
      %p232 = por %p230, %p231
      %s234 = sadd.s32 %s233, 1
      %p237 = scmp.eq.s32.totalorder %s33, 3
      %p238 = scmp.ne.s32.totalorder %s233, %s235
      %p239 = scmp.eq.s32.totalorder %s33, 0
      %p240 = por %p238, %p239
      %p241 = scmp.ne.s32.totalorder %s233, %s235
      %p242 = scmp.eq.s32.totalorder %s38, 3
      %p243 = por %p241, %p242
      %p244 = scmp.ne.s32.totalorder %s235, %s236
      %p245 = scmp.eq.s32.totalorder %s38, 0
      %p246 = por %p244, %p245
      %p247 = scmp.ne.s32.totalorder %s235, %s236
      %p248 = scmp.eq.s32.totalorder %s39, 3
      %p249 = por %p247, %p248
      %p251 = scmp.ne.s32.totalorder %s236, %s250
      %p252 = scmp.eq.s32.totalorder %s39, 0
      %p253 = por %p251, %p252
      %s255 = sadd.s32 %s254, 1
      %p258 = scmp.eq.s32.totalorder %s33, 3
      %p259 = scmp.ne.s32.totalorder %s254, %s256
      %p260 = scmp.eq.s32.totalorder %s33, 0
      %p261 = por %p259, %p260
      %p262 = scmp.ne.s32.totalorder %s254, %s256
      %p263 = scmp.eq.s32.totalorder %s38, 3
      %p264 = por %p262, %p263
      %p265 = scmp.ne.s32.totalorder %s256, %s257
      %p266 = scmp.eq.s32.totalorder %s38, 0
      %p267 = por %p265, %p266
      %p268 = scmp.ne.s32.totalorder %s256, %s257
      %p269 = scmp.eq.s32.totalorder %s39, 3
      %p270 = por %p268, %p269
      %p272 = scmp.ne.s32.totalorder %s257, %s271
      %p273 = scmp.eq.s32.totalorder %s39, 0
      %p274 = por %p272, %p273
      %s276 = sadd.s32 %s275, 1
      %p279 = scmp.eq.s32.totalorder %s33, 3
      %p280 = scmp.ne.s32.totalorder %s275, %s277
      %p281 = scmp.eq.s32.totalorder %s33, 0
      %p282 = por %p280, %p281
      %p283 = scmp.ne.s32.totalorder %s275, %s277
      %p284 = scmp.eq.s32.totalorder %s38, 3
      %p285 = por %p283, %p284
      %p286 = scmp.ne.s32.totalorder %s277, %s278
      %p287 = scmp.eq.s32.totalorder %s38, 0
      %p288 = por %p286, %p287
      %p289 = scmp.ne.s32.totalorder %s277, %s278
      %p290 = scmp.eq.s32.totalorder %s39, 3
      %p291 = por %p289, %p290
      %p293 = scmp.ne.s32.totalorder %s278, %s292
      %p294 = scmp.eq.s32.totalorder %s39, 0
      %p295 = por %p293, %p294
      %s297 = sadd.s32 %s296, 1
      %p300 = scmp.eq.s32.totalorder %s33, 3
      %p301 = scmp.ne.s32.totalorder %s296, %s298
      %p302 = scmp.eq.s32.totalorder %s33, 0
      %p303 = por %p301, %p302
      %p304 = scmp.ne.s32.totalorder %s296, %s298
      %p305 = scmp.eq.s32.totalorder %s38, 3
      %p306 = por %p304, %p305
      %p307 = scmp.ne.s32.totalorder %s298, %s299
      %p308 = scmp.eq.s32.totalorder %s38, 0
      %p309 = por %p307, %p308
      %p310 = scmp.ne.s32.totalorder %s298, %s299
      %p311 = scmp.eq.s32.totalorder %s39, 3
      %p312 = por %p310, %p311
      %p314 = scmp.ne.s32.totalorder %s299, %s313
      %p315 = scmp.eq.s32.totalorder %s39, 0
      %p316 = por %p314, %p315
      %s318 = sadd.s32 %s317, 1
      %p321 = scmp.eq.s32.totalorder %s33, 3
      %p322 = scmp.ne.s32.totalorder %s317, %s319
      %p323 = scmp.eq.s32.totalorder %s33, 0
      %p324 = por %p322, %p323
      %p325 = scmp.ne.s32.totalorder %s317, %s319
      %p326 = scmp.eq.s32.totalorder %s38, 3
      %p327 = por %p325, %p326
      %p328 = scmp.ne.s32.totalorder %s319, %s320
      %p329 = scmp.eq.s32.totalorder %s38, 0
      %p330 = por %p328, %p329
      %p331 = scmp.ne.s32.totalorder %s319, %s320
      %p332 = scmp.eq.s32.totalorder %s39, 3
      %p333 = por %p331, %p332
      %p335 = scmp.ne.s32.totalorder %s320, %s334
      %p336 = scmp.eq.s32.totalorder %s39, 0
      %p337 = por %p335, %p336
      %s339 = sadd.s32 %s338, 1
      %p342 = scmp.eq.s32.totalorder %s33, 3
      %p343 = scmp.ne.s32.totalorder %s338, %s340
      %p344 = scmp.eq.s32.totalorder %s33, 0
      %p345 = por %p343, %p344
      %p346 = scmp.ne.s32.totalorder %s338, %s340
      %p347 = scmp.eq.s32.totalorder %s38, 3
      %p348 = por %p346, %p347
      %p349 = scmp.ne.s32.totalorder %s340, %s341
      %p350 = scmp.eq.s32.totalorder %s38, 0
      %p351 = por %p349, %p350
      %p352 = scmp.ne.s32.totalorder %s340, %s341
      %p353 = scmp.eq.s32.totalorder %s39, 3
      %p354 = por %p352, %p353
      %p356 = scmp.ne.s32.totalorder %s341, %s355
      %p357 = scmp.eq.s32.totalorder %s39, 0
      %p358 = por %p356, %p357
      %s360 = sadd.s32 %s359, 1
      %p363 = scmp.eq.s32.totalorder %s33, 3
      %p364 = scmp.ne.s32.totalorder %s359, %s361
      %p365 = scmp.eq.s32.totalorder %s33, 0
      %p366 = por %p364, %p365
      %p367 = scmp.ne.s32.totalorder %s359, %s361
      %p368 = scmp.eq.s32.totalorder %s38, 3
      %p369 = por %p367, %p368
      %p370 = scmp.ne.s32.totalorder %s361, %s362
      %p371 = scmp.eq.s32.totalorder %s38, 0
      %p372 = por %p370, %p371
      %p373 = scmp.ne.s32.totalorder %s361, %s362
      %p374 = scmp.eq.s32.totalorder %s39, 3
      %p375 = por %p373, %p374
      %p377 = scmp.ne.s32.totalorder %s362, %s376
      %p378 = scmp.eq.s32.totalorder %s39, 0
      %p379 = por %p377, %p378
      %s381 = sadd.s32 %s380, 1
      %p384 = scmp.eq.s32.totalorder %s33, 3
      %p385 = scmp.ne.s32.totalorder %s380, %s382
      %p386 = scmp.eq.s32.totalorder %s33, 0
      %p387 = por %p385, %p386
      %p388 = scmp.ne.s32.totalorder %s380, %s382
      %p389 = scmp.eq.s32.totalorder %s38, 3
      %p390 = por %p388, %p389
      %p391 = scmp.ne.s32.totalorder %s382, %s383
      %p392 = scmp.eq.s32.totalorder %s38, 0
      %p393 = por %p391, %p392
      %p394 = scmp.ne.s32.totalorder %s382, %s383
      %p395 = scmp.eq.s32.totalorder %s39, 3
      %p396 = por %p394, %p395
      %p398 = scmp.ne.s32.totalorder %s383, %s397
      %p399 = scmp.eq.s32.totalorder %s39, 0
      %p400 = por %p398, %p399
      %s401 = ssub.s32 %s40, %s52
      %s402 = ssub.s32 %s41, %s48
      %s403 = sor.u32 %s401, %s402
      %p404 = scmp.eq.s32.totalorder %s403, 0
      %s406 = sadd.s32 %s405, 1
      %s407 = scalar_select %p404, %s405, %s406
      %p410 = pneg %p404
      %p411 = scmp.eq.s32.totalorder %s33, 3
      %p412 = por %p410, %p411
      %p413 = scmp.ne.s32.totalorder %s405, %s408
      %p414 = scmp.eq.s32.totalorder %s33, 0
      %p415 = por %p413, %p414
      %p416 = scmp.ne.s32.totalorder %s405, %s408
      %p417 = scmp.eq.s32.totalorder %s38, 3
      %p418 = por %p416, %p417
      %p419 = scmp.ne.s32.totalorder %s408, %s409
      %p420 = scmp.eq.s32.totalorder %s38, 0
      %p421 = por %p419, %p420
      %p422 = scmp.ne.s32.totalorder %s408, %s409
      %p423 = scmp.eq.s32.totalorder %s39, 3
      %p424 = por %p422, %p423
      %p426 = scmp.ne.s32.totalorder %s409, %s425
      %p427 = scmp.eq.s32.totalorder %s39, 0
      %p428 = por %p426, %p427
      %p429 = scmp.le.s32.totalorder 1, %s33
      %p430 = scmp.lt.s32.totalorder %s33, 5
      %p431 = pnand %p429, %p430
      %p432 = pneg %p431
      // Predicated region
      $region9: #{tpu_custom_call.1} parent=5 // pred_check
        _
      $region10: #{tpu_custom_call.1} parent=5 // pred_check_branch
        %434 = sbr.rel (%p431) target = $region12
      $region11: #{tpu_custom_call.1} parent=5 // pred_region
        %s435 = ssub.s32 %s33, 1
        // Predicated region
        $region13: #{tpu_custom_call.1} parent=11 // pred_check
          %p436 = pneg %p120
        $region14: #{tpu_custom_call.1} parent=11 // pred_check_branch
          %438 = sbr.rel (%p436) target = $region16
        $region15: #{tpu_custom_call.1} parent=11 // pred_region
          %s440 = ssub.s32 1024, 1024
          %441 = vsyncadd [#allocation10], %s440
          %s442 = sshll.u32 [#allocation11], 4
          %s443 = int_to_ptr.vmem [resolvable:$true] %s442
          %448 = dma.hbm_to_vmem [thread:$0]  %s2, 1024, %s443, [#allocation10], 64, 64, 4
        $region16: #{tpu_custom_call.1} parent=11 // pred_fallthru
          _
        // Predicated region
        $region17: #{tpu_custom_call.1} parent=11 // pred_check
          %p449 = pneg %p141
        $region18: #{tpu_custom_call.1} parent=11 // pred_check_branch
          %451 = sbr.rel (%p449) target = $region20
        $region19: #{tpu_custom_call.1} parent=11 // pred_region
          _
        $region20: #{tpu_custom_call.1} parent=11 // pred_fallthru
          _
        // Predicated region
        $region21: #{tpu_custom_call.1} parent=11 // pred_check
          %p452 = pneg %p162
        $region22: #{tpu_custom_call.1} parent=11 // pred_check_branch
          %454 = sbr.rel (%p452) target = $region24
        $region23: #{tpu_custom_call.1} parent=11 // pred_region
          %s456 = ssub.s32 2048, 2048
          %457 = vsyncadd [#allocation13], %s456
          %s458 = sshll.u32 [#allocation12], 4
          %s459 = int_to_ptr.vmem [resolvable:$true] %s458
          %464 = dma.hbm_to_vmem [thread:$0]  %s4, 2048, %s459, [#allocation13], 128, 128, 8
        $region24: #{tpu_custom_call.1} parent=11 // pred_fallthru
          _
        // Predicated region
        $region25: #{tpu_custom_call.1} parent=11 // pred_check
          %p465 = pneg %p183
        $region26: #{tpu_custom_call.1} parent=11 // pred_check_branch
          %467 = sbr.rel (%p465) target = $region28
        $region27: #{tpu_custom_call.1} parent=11 // pred_region
          _
        $region28: #{tpu_custom_call.1} parent=11 // pred_fallthru
          _
        // Predicated region
        $region29: #{tpu_custom_call.1} parent=11 // pred_check
          %p468 = pneg %p204
        $region30: #{tpu_custom_call.1} parent=11 // pred_check_branch
          %470 = sbr.rel (%p468) target = $region32
        $region31: #{tpu_custom_call.1} parent=11 // pred_region
          %s472 = ssub.s32 1024, 1024
          %473 = vsyncadd [#allocation13], %s472
          %s474 = sshll.u32 [#allocation14], 4
          %s475 = int_to_ptr.vmem [resolvable:$true] %s474
          %480 = dma.hbm_to_vmem [thread:$0]  %s6, 1024, %s475, [#allocation13], 64, 64, 4
        $region32: #{tpu_custom_call.1} parent=11 // pred_fallthru
          _
        // Predicated region
        $region33: #{tpu_custom_call.1} parent=11 // pred_check
          %p481 = pneg %p225
        $region34: #{tpu_custom_call.1} parent=11 // pred_check_branch
          %483 = sbr.rel (%p481) target = $region36
        $region35: #{tpu_custom_call.1} parent=11 // pred_region
          _
        $region36: #{tpu_custom_call.1} parent=11 // pred_fallthru
          _
        // Predicated region
        $region37: #{tpu_custom_call.1} parent=11 // pred_check
          %p484 = pneg %p246
        $region38: #{tpu_custom_call.1} parent=11 // pred_check_branch
          %486 = sbr.rel (%p484) target = $region40
        $region39: #{tpu_custom_call.1} parent=11 // pred_region
          _
        $region40: #{tpu_custom_call.1} parent=11 // pred_fallthru
          _
        // Predicated region
        $region41: #{tpu_custom_call.1} parent=11 // pred_check
          %p487 = pneg %p267
        $region42: #{tpu_custom_call.1} parent=11 // pred_check_branch
          %489 = sbr.rel (%p487) target = $region44
        $region43: #{tpu_custom_call.1} parent=11 // pred_region
          _
        $region44: #{tpu_custom_call.1} parent=11 // pred_fallthru
          _
        // Predicated region
        $region45: #{tpu_custom_call.1} parent=11 // pred_check
          %p490 = pneg %p288
        $region46: #{tpu_custom_call.1} parent=11 // pred_check_branch
          %492 = sbr.rel (%p490) target = $region48
        $region47: #{tpu_custom_call.1} parent=11 // pred_region
          %s494 = ssub.s32 2048, 2048
          %495 = vsyncadd [#allocation16], %s494
          %s496 = sshll.u32 [#allocation15], 4
          %s497 = int_to_ptr.vmem [resolvable:$true] %s496
          %502 = dma.hbm_to_vmem [thread:$0]  %s10, 2048, %s497, [#allocation16], 128, 128, 8
        $region48: #{tpu_custom_call.1} parent=11 // pred_fallthru
          _
        // Predicated region
        $region49: #{tpu_custom_call.1} parent=11 // pred_check
          %p503 = pneg %p309
        $region50: #{tpu_custom_call.1} parent=11 // pred_check_branch
          %505 = sbr.rel (%p503) target = $region52
        $region51: #{tpu_custom_call.1} parent=11 // pred_region
          _
        $region52: #{tpu_custom_call.1} parent=11 // pred_fallthru
          _
        // Predicated region
        $region53: #{tpu_custom_call.1} parent=11 // pred_check
          %p506 = pneg %p330
        $region54: #{tpu_custom_call.1} parent=11 // pred_check_branch
          %508 = sbr.rel (%p506) target = $region56
        $region55: #{tpu_custom_call.1} parent=11 // pred_region
          %s510 = ssub.s32 2048, 2048
          %511 = vsyncadd [#allocation16], %s510
          %s512 = sshll.u32 [#allocation17], 4
          %s513 = int_to_ptr.vmem [resolvable:$true] %s512
          %518 = dma.hbm_to_vmem [thread:$0]  %s12, 2048, %s513, [#allocation16], 64, 64, 4
        $region56: #{tpu_custom_call.1} parent=11 // pred_fallthru
          _
        // Predicated region
        $region57: #{tpu_custom_call.1} parent=11 // pred_check
          %p519 = pneg %p351
        $region58: #{tpu_custom_call.1} parent=11 // pred_check_branch
          %521 = sbr.rel (%p519) target = $region60
        $region59: #{tpu_custom_call.1} parent=11 // pred_region
          _
        $region60: #{tpu_custom_call.1} parent=11 // pred_fallthru
          _
        // Predicated region
        $region61: #{tpu_custom_call.1} parent=11 // pred_check
          %p522 = pneg %p372
        $region62: #{tpu_custom_call.1} parent=11 // pred_check_branch
          %524 = sbr.rel (%p522) target = $region64
        $region63: #{tpu_custom_call.1} parent=11 // pred_region
          _
        $region64: #{tpu_custom_call.1} parent=11 // pred_fallthru
          _
        // Predicated region
        $region65: #{tpu_custom_call.1} parent=11 // pred_check
          %p525 = pneg %p393
        $region66: #{tpu_custom_call.1} parent=11 // pred_check_branch
          %527 = sbr.rel (%p525) target = $region68
        $region67: #{tpu_custom_call.1} parent=11 // pred_region
          _
        $region68: #{tpu_custom_call.1} parent=11 // pred_fallthru
          _
      $region12: #{tpu_custom_call.1} parent=5 // pred_fallthru
        _
      %p528 = scmp.lt.s32.totalorder %s33, 4
      // Predicated region
      $region69: #{tpu_custom_call.1} parent=5 // pred_check
        %p529 = pneg %p528
      $region70: #{tpu_custom_call.1} parent=5 // pred_check_branch
        %531 = sbr.rel (%p529) target = $region72
      $region71: #{tpu_custom_call.1} parent=5 // pred_region
        // Predicated region
        $region73: #{tpu_custom_call.1} parent=71 // pred_check
          %p532 = pneg %p67
        $region74: #{tpu_custom_call.1} parent=71 // pred_check_branch
          %534 = sbr.rel (%p532) target = $region76
        $region75: #{tpu_custom_call.1} parent=71 // pred_region
          %s535 = sand.u32 %s57, 1
          %s536 = scalar_lea.sflag [#allocation7], %s535
          %s537 = sand.u32 %s57, 1
          %s538 = smul.addr %s537, 32
          %s539 = scalar_lea.vmem [#allocation6], %s538
          %s540 = smul.u32 4, %s41
          %s542 = ssub.s32 512, 512
          %543 = vsyncadd %s536, %s542
          %s544 = smul.addr %s40, 8
          %s545 = sadd.s32 %s540, %s544
          %s546 = smul.addr %s545, 128
          %s547 = scalar_lea.hbm %s0, %s546
          %s548 = sshll.u32 %s539, 4
          %s549 = int_to_ptr.vmem [resolvable:$true] %s548
          %554 = dma.hbm_to_vmem [thread:$0]  %s547, 512, %s549, %s536, 128, 128, 8
        $region76: #{tpu_custom_call.1} parent=71 // pred_fallthru
          _
        // Predicated region
        $region77: #{tpu_custom_call.1} parent=71 // pred_check
          %p555 = pneg %p93
        $region78: #{tpu_custom_call.1} parent=71 // pred_check_branch
          %557 = sbr.rel (%p555) target = $region80
        $region79: #{tpu_custom_call.1} parent=71 // pred_region
          %s558 = sand.u32 %s33, 1
          %s559 = scalar_lea.sflag [#allocation10], %s558
          %s560 = sand.u32 %s83, 1
          %s561 = smul.addr %s560, 32
          %s562 = scalar_lea.vmem [#allocation9], %s561
          %s564 = ssub.s32 512, 512
          %565 = vsyncadd %s559, %s564
          %s566 = smul.addr %s40, 8
          %s567 = smul.addr %s566, 64
          %s568 = scalar_lea.hbm %s1, %s567
          %s569 = sshll.u32 %s562, 4
          %s570 = int_to_ptr.vmem [resolvable:$true] %s569
          %575 = dma.hbm_to_vmem [thread:$0]  %s568, 512, %s570, %s559, 64, 64, 4
        $region80: #{tpu_custom_call.1} parent=71 // pred_fallthru
          _
      $region72: #{tpu_custom_call.1} parent=5 // pred_fallthru
        _
      %p576 = scmp.le.s32.totalorder 1, %s33
      %p577 = scmp.lt.s32.totalorder %s33, 5
      %p578 = pnand %p576, %p577
      %p579 = pneg %p578
      // Predicated region
      $region81: #{tpu_custom_call.1} parent=5 // pred_check
        _
      $region82: #{tpu_custom_call.1} parent=5 // pred_check_branch
        %581 = sbr.rel (%p578) target = $region84
      $region83: #{tpu_custom_call.1} parent=5 // pred_region
        %s582 = ssub.s32 %s33, 1
        %s583 = sand.u32 %s60, 1
        %s584 = scalar_lea.sflag [#allocation7], %s583
        %s585 = sand.u32 %s60, 1
        %s586 = smul.addr %s585, 32
        %s587 = scalar_lea.vmem [#allocation6], %s586
        // Predicated region
        $region85: #{tpu_custom_call.1} parent=83 // pred_check
          %p588 = pneg %p73
        $region86: #{tpu_custom_call.1} parent=83 // pred_check_branch
          %590 = sbr.rel (%p588) target = $region88
        $region87: #{tpu_custom_call.1} parent=83 // pred_region
          %591 = dma.done %s584, 512
        $region88: #{tpu_custom_call.1} parent=83 // pred_fallthru
          _
        %s592 = sand.u32 %s38, 1
        %s593 = scalar_lea.sflag [#allocation10], %s592
        %s594 = sand.u32 %s86, 1
        %s595 = smul.addr %s594, 32
        %s596 = scalar_lea.vmem [#allocation9], %s595
        // Predicated region
        $region89: #{tpu_custom_call.1} parent=83 // pred_check
          %p597 = pneg %p99
        $region90: #{tpu_custom_call.1} parent=83 // pred_check_branch
          %599 = sbr.rel (%p597) target = $region92
        $region91: #{tpu_custom_call.1} parent=83 // pred_region
          %600 = dma.done %s593, 512
        $region92: #{tpu_custom_call.1} parent=83 // pred_fallthru
          _
        // Predicated region
        $region93: #{tpu_custom_call.1} parent=83 // pred_check
          %p601 = pneg %p120
        $region94: #{tpu_custom_call.1} parent=83 // pred_check_branch
          %603 = sbr.rel (%p601) target = $region96
        $region95: #{tpu_custom_call.1} parent=83 // pred_region
          %604 = dma.done [#allocation10], 1024
        $region96: #{tpu_custom_call.1} parent=83 // pred_fallthru
          _
        // Predicated region
        $region97: #{tpu_custom_call.1} parent=83 // pred_check
          %p605 = pneg %p162
        $region98: #{tpu_custom_call.1} parent=83 // pred_check_branch
          %607 = sbr.rel (%p605) target = $region100
        $region99: #{tpu_custom_call.1} parent=83 // pred_region
          %608 = dma.done [#allocation13], 2048
        $region100: #{tpu_custom_call.1} parent=83 // pred_fallthru
          _
        // Predicated region
        $region101: #{tpu_custom_call.1} parent=83 // pred_check
          %p609 = pneg %p204
        $region102: #{tpu_custom_call.1} parent=83 // pred_check_branch
          %611 = sbr.rel (%p609) target = $region104
        $region103: #{tpu_custom_call.1} parent=83 // pred_region
          %612 = dma.done [#allocation13], 1024
        $region104: #{tpu_custom_call.1} parent=83 // pred_fallthru
          _
        // Predicated region
        $region105: #{tpu_custom_call.1} parent=83 // pred_check
          %p613 = pneg %p288
        $region106: #{tpu_custom_call.1} parent=83 // pred_check_branch
          %615 = sbr.rel (%p613) target = $region108
        $region107: #{tpu_custom_call.1} parent=83 // pred_region
          %616 = dma.done [#allocation16], 2048
        $region108: #{tpu_custom_call.1} parent=83 // pred_fallthru
          _
        // Predicated region
        $region109: #{tpu_custom_call.1} parent=83 // pred_check
          %p617 = pneg %p330
        $region110: #{tpu_custom_call.1} parent=83 // pred_check_branch
          %619 = sbr.rel (%p617) target = $region112
        $region111: #{tpu_custom_call.1} parent=83 // pred_region
          %620 = dma.done [#allocation16], 2048
        $region112: #{tpu_custom_call.1} parent=83 // pred_fallthru
          _
        %s621 = sand.u32 %s60, 1
        %s622 = scalar_lea.sflag [#allocation7], %s621
        %s623 = sand.u32 %s60, 1
        %s624 = smul.addr %s623, 32
        %s625 = scalar_lea.vmem [#allocation6], %s624
        %p626 = pneg %p73
        %p627 = pneg %p70
        %s628 = sand.u32 %s38, 1
        %s629 = scalar_lea.sflag [#allocation10], %s628
        %s630 = sand.u32 %s86, 1
        %s631 = smul.addr %s630, 32
        %s632 = scalar_lea.vmem [#allocation9], %s631
        %p633 = pneg %p99
        %p634 = pneg %p96
        %p635 = pneg %p120
        %p636 = pneg %p117
        %p637 = pneg %p141
        %p638 = pneg %p138
        %p639 = pneg %p162
        %p640 = pneg %p159
        %p641 = pneg %p183
        %p642 = pneg %p180
        %p643 = pneg %p204
        %p644 = pneg %p201
        %p645 = pneg %p225
        %p646 = pneg %p222
        %p647 = pneg %p246
        %p648 = pneg %p243
        %p649 = pneg %p267
        %p650 = pneg %p264
        %p651 = pneg %p288
        %p652 = pneg %p285
        %p653 = pneg %p309
        %p654 = pneg %p306
        %p655 = pneg %p330
        %p656 = pneg %p327
        %p657 = pneg %p351
        %p658 = pneg %p348
        %p659 = pneg %p372
        %p660 = pneg %p369
        %p661 = pneg %p393
        %p662 = pneg %p390
        %p663 = pneg %p421
        %p664 = pneg %p418
        %s665 = sand.u32 %s408, 1
        %s666 = scalar_lea.sflag [#allocation8], %s665
        %s667 = sand.u32 %s408, 1
        %s668 = smul.addr %s667, 32
        %s669 = scalar_lea.vmem [#allocation18], %s668
        %s670 = smul.u32 4, %s43
        %s671 = smul.u32 4, %s43
        %p673 = scmp.eq.s32.totalorder %s43, 0
        // Predicated region
        $region113: #{tpu_custom_call.1} parent=83 // pred_check
          %p674 = pneg %p673
        $region114: #{tpu_custom_call.1} parent=83 // pred_check_branch
          %676 = sbr.rel (%p674) target = $region116
        $region115: #{tpu_custom_call.1} parent=83 // pred_region
          %v677 = vld [vmem:[%s596] sm:$0xf]
          %v678 = vld [vmem:[%s596 + $0x4] sm:$0xf]
          %v679 = vld [vmem:[%s596 + $0x8] sm:$0xf]
          %v680 = vld [vmem:[%s596 + $0xc] sm:$0xf]
          %v681 = vld [vmem:[%s596 + $0x10] sm:$0xf]
          %v682 = vld [vmem:[%s596 + $0x14] sm:$0xf]
          %v683 = vld [vmem:[%s596 + $0x18] sm:$0xf]
          %v684 = vld [vmem:[%s596 + $0x1c] sm:$0xf]
          %v685 = vld [vmem:[#allocation12] sm:$0xff]
          %v686 = vld [vmem:[#allocation12 + $0x8] sm:$0xff]
          %v687 = vld [vmem:[#allocation12 + $0x10] sm:$0xff]
          %v688 = vld [vmem:[#allocation12 + $0x18] sm:$0xff]
          %v689 = vld [vmem:[#allocation12 + $0x20] sm:$0xff]
          %v690 = vld [vmem:[#allocation12 + $0x28] sm:$0xff]
          %v691 = vld [vmem:[#allocation12 + $0x30] sm:$0xff]
          %v692 = vld [vmem:[#allocation12 + $0x38] sm:$0xff]
          %v693 = vld [vmem:[#allocation12 + $0x40] sm:$0xff]
          %v694 = vld [vmem:[#allocation12 + $0x48] sm:$0xff]
          %v695 = vld [vmem:[#allocation12 + $0x50] sm:$0xff]
          %v696 = vld [vmem:[#allocation12 + $0x58] sm:$0xff]
          %v697 = vld [vmem:[#allocation12 + $0x60] sm:$0xff]
          %v698 = vld [vmem:[#allocation12 + $0x68] sm:$0xff]
          %v699 = vld [vmem:[#allocation12 + $0x70] sm:$0xff]
          %v700 = vld [vmem:[#allocation12 + $0x78] sm:$0xff]
          %v701 = vld [vmem:[%s5] sm:$0x3]
          %v703 = vlaneseq
          %v704 = vshrl.u32 %v703, 7
          %v705 = vsub.s32 0, %v704
          %v706 = vrot.slane %v701, %v705
          %v707 = vlaneseq
          %v708 = vshrl.u32 %v707, 7
          %v709 = vsub.s32 1, %v708
          %v710 = vrot.slane %v701, %v709
          %v721 = vunpack.c.l.b16 %v677
          %v722 = vunpack.c.l.b16 %v678
          %v723 = vunpack.c.l.b16 %v679
          %v724 = vunpack.c.l.b16 %v680
          %v725 = vunpack.c.l.b16 %v681
          %v726 = vunpack.c.l.b16 %v682
          %v727 = vunpack.c.l.b16 %v683
          %v728 = vunpack.c.l.b16 %v684
          %v729 = vpack.c.b16 %v722, %v721
          %v730 = vpack.c.b16 %v724, %v723
          %v731 = vpack.c.b16 %v726, %v725
          %v732 = vpack.c.b16 %v728, %v727
          %v753 = vunpack.c.l.b16 %v685
          %v754 = vunpack.c.h.b16 %v685
          %v755 = vunpack.c.l.b16 %v686
          %v756 = vunpack.c.h.b16 %v686
          %v757 = vunpack.c.l.b16 %v687
          %v758 = vunpack.c.h.b16 %v687
          %v759 = vunpack.c.l.b16 %v688
          %v760 = vunpack.c.h.b16 %v688
          %v761 = vunpack.c.l.b16 %v689
          %v762 = vunpack.c.h.b16 %v689
          %v763 = vunpack.c.l.b16 %v690
          %v764 = vunpack.c.h.b16 %v690
          %v765 = vunpack.c.l.b16 %v691
          %v766 = vunpack.c.h.b16 %v691
          %v767 = vunpack.c.l.b16 %v692
          %v768 = vunpack.c.h.b16 %v692
          %v769 = vunpack.c.l.b16 %v693
          %v770 = vunpack.c.h.b16 %v693
          %v771 = vunpack.c.l.b16 %v694
          %v772 = vunpack.c.h.b16 %v694
          %v773 = vunpack.c.l.b16 %v695
          %v774 = vunpack.c.h.b16 %v695
          %v775 = vunpack.c.l.b16 %v696
          %v776 = vunpack.c.h.b16 %v696
          %v777 = vunpack.c.l.b16 %v697
          %v778 = vunpack.c.h.b16 %v697
          %v779 = vunpack.c.l.b16 %v698
          %v780 = vunpack.c.h.b16 %v698
          %v781 = vunpack.c.l.b16 %v699
          %v782 = vunpack.c.h.b16 %v699
          %v783 = vunpack.c.l.b16 %v700
          %v784 = vunpack.c.h.b16 %v700
          %v785 = vpack.c.b16 %v755, %v753
          %v786 = vpack.c.b16 %v756, %v754
          %v787 = vpack.c.b16 %v759, %v757
          %v788 = vpack.c.b16 %v760, %v758
          %v789 = vpack.c.b16 %v763, %v761
          %v790 = vpack.c.b16 %v764, %v762
          %v791 = vpack.c.b16 %v767, %v765
          %v792 = vpack.c.b16 %v768, %v766
          %v793 = vpack.c.b16 %v771, %v769
          %v794 = vpack.c.b16 %v772, %v770
          %v795 = vpack.c.b16 %v775, %v773
          %v796 = vpack.c.b16 %v776, %v774
          %v797 = vpack.c.b16 %v779, %v777
          %v798 = vpack.c.b16 %v780, %v778
          %v799 = vpack.c.b16 %v783, %v781
          %v800 = vpack.c.b16 %v784, %v782
          %817 = vmatprep.subr.bf16.mxu0 %v786
          %818 = vmatpush1.bf16.msra.mxu0 %v785
          %819 = vmatprep.subr.bf16.mxu0 %v788
          %820 = vmatpush1.bf16.msra.mxu0 %v787
          %821 = vmatprep.subr.bf16.mxu0 %v790
          %822 = vmatpush1.bf16.msra.mxu0 %v789
          %823 = vmatprep.subr.bf16.mxu0 %v792
          %824 = vmatpush1.bf16.msra.mxu0 %v791
          %825 = vmatprep.subr.bf16.mxu0 %v794
          %826 = vmatpush1.bf16.msra.mxu0 %v793
          %827 = vmatprep.subr.bf16.mxu0 %v796
          %828 = vmatpush1.bf16.msra.mxu0 %v795
          %829 = vmatprep.subr.bf16.mxu0 %v798
          %830 = vmatpush1.bf16.msra.mxu0 %v797
          %831 = vmatprep.subr.bf16.mxu0 %v800
          %832 = vmatpush1.bf16.msra.mxu0 %v799
          %833 = vmatprep.subr.bf16.mxu0 0
          %834 = vmatpush1.bf16.msra.mxu0 0
          %835 = vmatprep.subr.bf16.mxu0 0
          %836 = vmatpush1.bf16.msra.mxu0 0
          %837 = vmatprep.subr.bf16.mxu0 0
          %838 = vmatpush1.bf16.msra.mxu0 0
          %839 = vmatprep.subr.bf16.mxu0 0
          %840 = vmatpush1.bf16.msra.mxu0 0
          %841 = vmatprep.subr.bf16.mxu0 0
          %842 = vmatpush1.bf16.msra.mxu0 0
          %843 = vmatprep.subr.bf16.mxu0 0
          %844 = vmatpush1.bf16.msra.mxu0 0
          %845 = vmatprep.subr.bf16.mxu0 0
          %846 = vmatpush1.bf16.msra.mxu0 0
          %847 = vmatprep.subr.bf16.mxu0 0
          %848 = vmatpush1.bf16.msra.mxu0 0
          %849 = vmatprep.mubr.bf16.mxu0 0
          %850 = vmatmul.mubr.bf16.gmra.mrb[0].mxu0 %v729
          %v851 = vpop.f32.mrb[0].mxu0
          %v852 = vadd.f32 %v706, %v851
          %v853 = vpop.f32.mrb[0].mxu0
          %v854 = vadd.f32 %v710, %v853
          %v855 = vpop.f32.mrb[0].mxu0
          %v856 = vadd.f32 %v706, %v855
          %v857 = vpop.f32.mrb[0].mxu0
          %v858 = vadd.f32 %v710, %v857
          %859 = vmatprep.mubr.bf16.mxu0 0
          %860 = vmatmul.mubr.bf16.gmra.mrb[0].mxu0 %v730
          %v861 = vpop.f32.mrb[0].mxu0
          %v862 = vadd.f32 %v706, %v861
          %v863 = vpop.f32.mrb[0].mxu0
          %v864 = vadd.f32 %v710, %v863
          %v865 = vpop.f32.mrb[0].mxu0
          %v866 = vadd.f32 %v706, %v865
          %v867 = vpop.f32.mrb[0].mxu0
          %v868 = vadd.f32 %v710, %v867
          %869 = vmatprep.mubr.bf16.mxu0 0
          %870 = vmatmul.mubr.bf16.gmra.mrb[0].mxu0 %v731
          %v871 = vpop.f32.mrb[0].mxu0
          %v872 = vadd.f32 %v706, %v871
          %v873 = vpop.f32.mrb[0].mxu0
          %v874 = vadd.f32 %v710, %v873
          %v875 = vpop.f32.mrb[0].mxu0
          %v876 = vadd.f32 %v706, %v875
          %v877 = vpop.f32.mrb[0].mxu0
          %v878 = vadd.f32 %v710, %v877
          %879 = vmatprep.mubr.bf16.mxu0 0
          %880 = vmatmul.mubr.bf16.gmra.mrb[0].mxu0 %v732
          %v881 = vpop.f32.mrb[0].mxu0
          %v882 = vadd.f32 %v706, %v881
          %v883 = vpop.f32.mrb[0].mxu0
          %v884 = vadd.f32 %v710, %v883
          %v885 = vpop.f32.mrb[0].mxu0
          %v886 = vadd.f32 %v706, %v885
          %v887 = vpop.f32.mrb[0].mxu0
          %v888 = vadd.f32 %v710, %v887
          %889 = vdwg.mxu0
          %v890 = vpack.c.bf16 %v856, %v852
          %v891 = vpack.c.bf16 %v858, %v854
          %v892 = vpack.c.bf16 %v866, %v862
          %v893 = vpack.c.bf16 %v868, %v864
          %v894 = vpack.c.bf16 %v876, %v872
          %v895 = vpack.c.bf16 %v878, %v874
          %v896 = vpack.c.bf16 %v886, %v882
          %v897 = vpack.c.bf16 %v888, %v884
          %vm898 = vcmask 261120
          %899 = vst.msk [vmem:[#allocation2] sm:$0xff] %vm898, %v890
          %900 = vst.msk [vmem:[#allocation2 + $0x8] sm:$0xff] %vm898, %v892
          %901 = vst.msk [vmem:[#allocation2 + $0x10] sm:$0xff] %vm898, %v894
          %902 = vst.msk [vmem:[#allocation2 + $0x18] sm:$0xff] %vm898, %v896
          %903 = vst.msk [vmem:[#allocation3] sm:$0xff] %vm898, %v891
          %904 = vst.msk [vmem:[#allocation3 + $0x8] sm:$0xff] %vm898, %v893
          %905 = vst.msk [vmem:[#allocation3 + $0x10] sm:$0xff] %vm898, %v895
          %906 = vst.msk [vmem:[#allocation3 + $0x18] sm:$0xff] %vm898, %v897
          %911 = vrot.lane.b32.xlu0 %v890, 96
          %v912 = vpop.permute.xlu0 %911
          %913 = vrot.lane.b32.xlu0 %v892, 96
          %v914 = vpop.permute.xlu0 %913
          %915 = vrot.lane.b32.xlu0 %v894, 96
          %v916 = vpop.permute.xlu0 %915
          %917 = vrot.lane.b32.xlu0 %v896, 96
          %v918 = vpop.permute.xlu0 %917
          %s923 = scalar_lea.vmem [#allocation2], 32
          %924 = vst.msk [vmem:[%s923] sm:$0xff] %vm898, %v912
          %925 = vst.msk [vmem:[%s923 + $0x8] sm:$0xff] %vm898, %v914
          %926 = vst.msk [vmem:[%s923 + $0x10] sm:$0xff] %vm898, %v916
          %927 = vst.msk [vmem:[%s923 + $0x18] sm:$0xff] %vm898, %v918
          %932 = vrot.lane.b32.xlu0 %v891, 96
          %v933 = vpop.permute.xlu0 %932
          %934 = vrot.lane.b32.xlu0 %v893, 96
          %v935 = vpop.permute.xlu0 %934
          %936 = vrot.lane.b32.xlu0 %v895, 96
          %v937 = vpop.permute.xlu0 %936
          %938 = vrot.lane.b32.xlu0 %v897, 96
          %v939 = vpop.permute.xlu0 %938
          %s944 = scalar_lea.vmem [#allocation3], 32
          %945 = vst.msk [vmem:[%s944] sm:$0xff] %vm898, %v933
          %946 = vst.msk [vmem:[%s944 + $0x8] sm:$0xff] %vm898, %v935
          %947 = vst.msk [vmem:[%s944 + $0x10] sm:$0xff] %vm898, %v937
          %948 = vst.msk [vmem:[%s944 + $0x18] sm:$0xff] %vm898, %v939
          %949 = vrot.lane.b32.xlu0 %v890, 64
          %v950 = vpop.permute.xlu0 %949
          %951 = vrot.lane.b32.xlu0 %v892, 64
          %v952 = vpop.permute.xlu0 %951
          %953 = vrot.lane.b32.xlu0 %v894, 64
          %v954 = vpop.permute.xlu0 %953
          %955 = vrot.lane.b32.xlu0 %v896, 64
          %v956 = vpop.permute.xlu0 %955
          %s961 = scalar_lea.vmem [#allocation2], 64
          %962 = vst.msk [vmem:[%s961] sm:$0xff] %vm898, %v950
          %963 = vst.msk [vmem:[%s961 + $0x8] sm:$0xff] %vm898, %v952
          %964 = vst.msk [vmem:[%s961 + $0x10] sm:$0xff] %vm898, %v954
          %965 = vst.msk [vmem:[%s961 + $0x18] sm:$0xff] %vm898, %v956
          %966 = vrot.lane.b32.xlu0 %v891, 64
          %v967 = vpop.permute.xlu0 %966
          %968 = vrot.lane.b32.xlu0 %v893, 64
          %v969 = vpop.permute.xlu0 %968
          %970 = vrot.lane.b32.xlu0 %v895, 64
          %v971 = vpop.permute.xlu0 %970
          %972 = vrot.lane.b32.xlu0 %v897, 64
          %v973 = vpop.permute.xlu0 %972
          %s978 = scalar_lea.vmem [#allocation3], 64
          %979 = vst.msk [vmem:[%s978] sm:$0xff] %vm898, %v967
          %980 = vst.msk [vmem:[%s978 + $0x8] sm:$0xff] %vm898, %v969
          %981 = vst.msk [vmem:[%s978 + $0x10] sm:$0xff] %vm898, %v971
          %982 = vst.msk [vmem:[%s978 + $0x18] sm:$0xff] %vm898, %v973
          %983 = vrot.lane.b32.xlu0 %v890, 32
          %v984 = vpop.permute.xlu0 %983
          %985 = vrot.lane.b32.xlu0 %v892, 32
          %v986 = vpop.permute.xlu0 %985
          %987 = vrot.lane.b32.xlu0 %v894, 32
          %v988 = vpop.permute.xlu0 %987
          %989 = vrot.lane.b32.xlu0 %v896, 32
          %v990 = vpop.permute.xlu0 %989
          %s995 = scalar_lea.vmem [#allocation2], 96
          %996 = vst.msk [vmem:[%s995] sm:$0xff] %vm898, %v984
          %997 = vst.msk [vmem:[%s995 + $0x8] sm:$0xff] %vm898, %v986
          %998 = vst.msk [vmem:[%s995 + $0x10] sm:$0xff] %vm898, %v988
          %999 = vst.msk [vmem:[%s995 + $0x18] sm:$0xff] %vm898, %v990
          %1000 = vrot.lane.b32.xlu0 %v891, 32
          %v1001 = vpop.permute.xlu0 %1000
          %1002 = vrot.lane.b32.xlu0 %v893, 32
          %v1003 = vpop.permute.xlu0 %1002
          %1004 = vrot.lane.b32.xlu0 %v895, 32
          %v1005 = vpop.permute.xlu0 %1004
          %1006 = vrot.lane.b32.xlu0 %v897, 32
          %v1007 = vpop.permute.xlu0 %1006
          %s1012 = scalar_lea.vmem [#allocation3], 96
          %1013 = vst.msk [vmem:[%s1012] sm:$0xff] %vm898, %v1001
          %1014 = vst.msk [vmem:[%s1012 + $0x8] sm:$0xff] %vm898, %v1003
          %1015 = vst.msk [vmem:[%s1012 + $0x10] sm:$0xff] %vm898, %v1005
          %1016 = vst.msk [vmem:[%s1012 + $0x18] sm:$0xff] %vm898, %v1007
        $region116: #{tpu_custom_call.1} parent=83 // pred_fallthru
          _
        %v1017 = vld [vmem:[%s587] sm:$0xff]
        %v1018 = vld [vmem:[%s587 + $0x8] sm:$0xff]
        %v1019 = vld [vmem:[%s587 + $0x10] sm:$0xff]
        %v1020 = vld [vmem:[%s587 + $0x18] sm:$0xff]
        %v1021 = vpack.c.bf16 %v1018, %v1017
        %v1022 = vpack.c.bf16 %v1020, %v1019
        %v1023 = vld [vmem:[#allocation11] sm:$0xf]
        %v1024 = vld [vmem:[#allocation11 + $0x4] sm:$0xf]
        %v1025 = vld [vmem:[#allocation11 + $0x8] sm:$0xf]
        %v1026 = vld [vmem:[#allocation11 + $0xc] sm:$0xf]
        %v1027 = vld [vmem:[#allocation11 + $0x10] sm:$0xf]
        %v1028 = vld [vmem:[#allocation11 + $0x14] sm:$0xf]
        %v1029 = vld [vmem:[#allocation11 + $0x18] sm:$0xf]
        %v1030 = vld [vmem:[#allocation11 + $0x1c] sm:$0xf]
        %v1031 = vld [vmem:[#allocation11 + $0x20] sm:$0xf]
        %v1032 = vld [vmem:[#allocation11 + $0x24] sm:$0xf]
        %v1033 = vld [vmem:[#allocation11 + $0x28] sm:$0xf]
        %v1034 = vld [vmem:[#allocation11 + $0x2c] sm:$0xf]
        %v1035 = vld [vmem:[#allocation11 + $0x30] sm:$0xf]
        %v1036 = vld [vmem:[#allocation11 + $0x34] sm:$0xf]
        %v1037 = vld [vmem:[#allocation11 + $0x38] sm:$0xf]
        %v1038 = vld [vmem:[#allocation11 + $0x3c] sm:$0xf]
        %v1039 = vld [vmem:[%s3] sm:$0x1]
        %v1041 = vlaneseq
        %v1042 = vshrl.u32 %v1041, 7
        %v1043 = vsub.s32 0, %v1042
        %v1044 = vrot.slane %v1039, %v1043
        %v1062 = vunpack.c.l.b16 %v1023
        %v1063 = vunpack.c.l.b16 %v1024
        %v1064 = vunpack.c.l.b16 %v1025
        %v1065 = vunpack.c.l.b16 %v1026
        %v1066 = vunpack.c.l.b16 %v1027
        %v1067 = vunpack.c.l.b16 %v1028
        %v1068 = vunpack.c.l.b16 %v1029
        %v1069 = vunpack.c.l.b16 %v1030
        %v1070 = vunpack.c.l.b16 %v1031
        %v1071 = vunpack.c.l.b16 %v1032
        %v1072 = vunpack.c.l.b16 %v1033
        %v1073 = vunpack.c.l.b16 %v1034
        %v1074 = vunpack.c.l.b16 %v1035
        %v1075 = vunpack.c.l.b16 %v1036
        %v1076 = vunpack.c.l.b16 %v1037
        %v1077 = vunpack.c.l.b16 %v1038
        %v1078 = vpack.c.b16 %v1063, %v1062
        %v1079 = vpack.c.b16 %v1065, %v1064
        %v1080 = vpack.c.b16 %v1067, %v1066
        %v1081 = vpack.c.b16 %v1069, %v1068
        %v1082 = vpack.c.b16 %v1071, %v1070
        %v1083 = vpack.c.b16 %v1073, %v1072
        %v1084 = vpack.c.b16 %v1075, %v1074
        %v1085 = vpack.c.b16 %v1077, %v1076
        %1094 = vmatprep.subr.bf16.mxu0 0
        %1095 = vmatpush1.bf16.msra.mxu0 %v1078
        %1096 = vmatprep.subr.bf16.mxu0 0
        %1097 = vmatpush1.bf16.msra.mxu0 %v1079
        %1098 = vmatprep.subr.bf16.mxu0 0
        %1099 = vmatpush1.bf16.msra.mxu0 %v1080
        %1100 = vmatprep.subr.bf16.mxu0 0
        %1101 = vmatpush1.bf16.msra.mxu0 %v1081
        %1102 = vmatprep.subr.bf16.mxu0 0
        %1103 = vmatpush1.bf16.msra.mxu0 %v1082
        %1104 = vmatprep.subr.bf16.mxu0 0
        %1105 = vmatpush1.bf16.msra.mxu0 %v1083
        %1106 = vmatprep.subr.bf16.mxu0 0
        %1107 = vmatpush1.bf16.msra.mxu0 %v1084
        %1108 = vmatprep.subr.bf16.mxu0 0
        %1109 = vmatpush1.bf16.msra.mxu0 %v1085
        %1110 = vmatprep.subr.bf16.mxu0 0
        %1111 = vmatpush1.bf16.msra.mxu0 0
        %1112 = vmatprep.subr.bf16.mxu0 0
        %1113 = vmatpush1.bf16.msra.mxu0 0
        %1114 = vmatprep.subr.bf16.mxu0 0
        %1115 = vmatpush1.bf16.msra.mxu0 0
        %1116 = vmatprep.subr.bf16.mxu0 0
        %1117 = vmatpush1.bf16.msra.mxu0 0
        %1118 = vmatprep.subr.bf16.mxu0 0
        %1119 = vmatpush1.bf16.msra.mxu0 0
        %1120 = vmatprep.subr.bf16.mxu0 0
        %1121 = vmatpush1.bf16.msra.mxu0 0
        %1122 = vmatprep.subr.bf16.mxu0 0
        %1123 = vmatpush1.bf16.msra.mxu0 0
        %1124 = vmatprep.subr.bf16.mxu0 0
        %1125 = vmatpush1.bf16.msra.mxu0 0
        %1126 = vmatprep.mubr.bf16.mxu0 0
        %1127 = vmatmul.mubr.bf16.gmra.mrb[0].mxu0 %v1021
        %v1128 = vpop.f32.mrb[0].mxu0
        %v1129 = vadd.f32 %v1044, %v1128
        %v1130 = vpop.f32.mrb[0].mxu0
        %v1131 = vpop.f32.mrb[0].mxu0
        %v1132 = vadd.f32 %v1044, %v1131
        %v1133 = vpop.f32.mrb[0].mxu0
        %1134 = vmatprep.mubr.bf16.mxu0 0
        %1135 = vmatmul.mubr.bf16.gmra.mrb[0].mxu0 %v1022
        %v1136 = vpop.f32.mrb[0].mxu0
        %v1137 = vadd.f32 %v1044, %v1136
        %v1138 = vpop.f32.mrb[0].mxu0
        %v1139 = vpop.f32.mrb[0].mxu0
        %v1140 = vadd.f32 %v1044, %v1139
        %v1141 = vpop.f32.mrb[0].mxu0
        %1142 = vdwg.mxu0
        %v1143 = vpack.c.bf16 %v1132, %v1129
        %v1144 = vpack.c.bf16 %v1140, %v1137
        %vm1145 = vcmask 261120
        %1146 = vst.msk [vmem:[#allocation4] sm:$0xff] %vm1145, %v1143
        %1147 = vst.msk [vmem:[#allocation4 + $0x8] sm:$0xff] %vm1145, %v1144
        %1150 = vrot.lane.b32.xlu0 %v1143, 96
        %v1151 = vpop.permute.xlu0 %1150
        %1152 = vrot.lane.b32.xlu0 %v1144, 96
        %v1153 = vpop.permute.xlu0 %1152
        %s1156 = scalar_lea.vmem [#allocation4], 16
        %1157 = vst.msk [vmem:[%s1156] sm:$0xff] %vm1145, %v1151
        %1158 = vst.msk [vmem:[%s1156 + $0x8] sm:$0xff] %vm1145, %v1153
        %1159 = vrot.lane.b32.xlu0 %v1143, 64
        %v1160 = vpop.permute.xlu0 %1159
        %1161 = vrot.lane.b32.xlu0 %v1144, 64
        %v1162 = vpop.permute.xlu0 %1161
        %s1165 = scalar_lea.vmem [#allocation4], 32
        %1166 = vst.msk [vmem:[%s1165] sm:$0xff] %vm1145, %v1160
        %1167 = vst.msk [vmem:[%s1165 + $0x8] sm:$0xff] %vm1145, %v1162
        %1168 = vrot.lane.b32.xlu0 %v1143, 32
        %v1169 = vpop.permute.xlu0 %1168
        %1170 = vrot.lane.b32.xlu0 %v1144, 32
        %v1171 = vpop.permute.xlu0 %1170
        %s1174 = scalar_lea.vmem [#allocation4], 48
        %1175 = vst.msk [vmem:[%s1174] sm:$0xff] %vm1145, %v1169
        %1176 = vst.msk [vmem:[%s1174 + $0x8] sm:$0xff] %vm1145, %v1171
        %v1177 = vld [vmem:[#allocation4] sm:$0xff]
        %v1178 = vld [vmem:[#allocation4 + $0x8] sm:$0xff]
        %v1179 = vld [vmem:[#allocation4 + $0x10] sm:$0xff]
        %v1180 = vld [vmem:[#allocation4 + $0x18] sm:$0xff]
        %v1181 = vld [vmem:[#allocation4 + $0x20] sm:$0xff]
        %v1182 = vld [vmem:[#allocation4 + $0x28] sm:$0xff]
        %v1183 = vld [vmem:[#allocation4 + $0x30] sm:$0xff]
        %v1184 = vld [vmem:[#allocation4 + $0x38] sm:$0xff]
        %v1185 = vld [vmem:[#allocation2] sm:$0xff]
        %v1186 = vld [vmem:[#allocation2 + $0x8] sm:$0xff]
        %v1187 = vld [vmem:[#allocation2 + $0x10] sm:$0xff]
        %v1188 = vld [vmem:[#allocation2 + $0x18] sm:$0xff]
        %v1189 = vld [vmem:[#allocation2 + $0x20] sm:$0xff]
        %v1190 = vld [vmem:[#allocation2 + $0x28] sm:$0xff]
        %v1191 = vld [vmem:[#allocation2 + $0x30] sm:$0xff]
        %v1192 = vld [vmem:[#allocation2 + $0x38] sm:$0xff]
        %v1193 = vld [vmem:[#allocation2 + $0x40] sm:$0xff]
        %v1194 = vld [vmem:[#allocation2 + $0x48] sm:$0xff]
        %v1195 = vld [vmem:[#allocation2 + $0x50] sm:$0xff]
        %v1196 = vld [vmem:[#allocation2 + $0x58] sm:$0xff]
        %v1197 = vld [vmem:[#allocation2 + $0x60] sm:$0xff]
        %v1198 = vld [vmem:[#allocation2 + $0x68] sm:$0xff]
        %v1199 = vld [vmem:[#allocation2 + $0x70] sm:$0xff]
        %v1200 = vld [vmem:[#allocation2 + $0x78] sm:$0xff]
        %v1201 = vld [vmem:[#allocation3] sm:$0xff]
        %v1202 = vld [vmem:[#allocation3 + $0x8] sm:$0xff]
        %v1203 = vld [vmem:[#allocation3 + $0x10] sm:$0xff]
        %v1204 = vld [vmem:[#allocation3 + $0x18] sm:$0xff]
        %v1205 = vld [vmem:[#allocation3 + $0x20] sm:$0xff]
        %v1206 = vld [vmem:[#allocation3 + $0x28] sm:$0xff]
        %v1207 = vld [vmem:[#allocation3 + $0x30] sm:$0xff]
        %v1208 = vld [vmem:[#allocation3 + $0x38] sm:$0xff]
        %v1209 = vld [vmem:[#allocation3 + $0x40] sm:$0xff]
        %v1210 = vld [vmem:[#allocation3 + $0x48] sm:$0xff]
        %v1211 = vld [vmem:[#allocation3 + $0x50] sm:$0xff]
        %v1212 = vld [vmem:[#allocation3 + $0x58] sm:$0xff]
        %v1213 = vld [vmem:[#allocation3 + $0x60] sm:$0xff]
        %v1214 = vld [vmem:[#allocation3 + $0x68] sm:$0xff]
        %v1215 = vld [vmem:[#allocation3 + $0x70] sm:$0xff]
        %v1216 = vld [vmem:[#allocation3 + $0x78] sm:$0xff]
        %v1218 = vsel %vm1145, %v1177, 0
        %v1221 = vsel %vm1145, %v1178, 0
        %v1224 = vsel %vm1145, %v1185, 0
        %v1227 = vsel %vm1145, %v1186, 0
        %v1230 = vsel %vm1145, %v1187, 0
        %v1233 = vsel %vm1145, %v1188, 0
        %1235 = vmatprep.subr.bf16.mxu0 0
        %1236 = vmatpush1.bf16.xpose.msra.mxu0 %v1224
        %1237 = vmatprep.subr.bf16.mxu0 0
        %1238 = vmatpush1.bf16.xpose.msra.mxu0 %v1227
        %1239 = vmatprep.subr.bf16.mxu0 0
        %1240 = vmatpush1.bf16.xpose.msra.mxu0 %v1230
        %1241 = vmatprep.subr.bf16.mxu0 0
        %1242 = vmatpush1.bf16.xpose.msra.mxu0 %v1233
        %1243 = vmatprep.subr.bf16.mxu0 0
        %1244 = vmatpush1.bf16.xpose.msra.mxu0 0
        %1245 = vmatprep.subr.bf16.mxu0 0
        %1246 = vmatpush1.bf16.xpose.msra.mxu0 0
        %1247 = vmatprep.subr.bf16.mxu0 0
        %1248 = vmatpush1.bf16.xpose.msra.mxu0 0
        %1249 = vmatprep.subr.bf16.mxu0 0
        %1250 = vmatpush1.bf16.xpose.msra.mxu0 0
        %1251 = vmatprep.subr.bf16.mxu0 0
        %1252 = vmatpush1.bf16.xpose.msra.mxu0 0
        %1253 = vmatprep.subr.bf16.mxu0 0
        %1254 = vmatpush1.bf16.xpose.msra.mxu0 0
        %1255 = vmatprep.subr.bf16.mxu0 0
        %1256 = vmatpush1.bf16.xpose.msra.mxu0 0
        %1257 = vmatprep.subr.bf16.mxu0 0
        %1258 = vmatpush1.bf16.xpose.msra.mxu0 0
        %1259 = vmatprep.subr.bf16.mxu0 0
        %1260 = vmatpush1.bf16.xpose.msra.mxu0 0
        %1261 = vmatprep.subr.bf16.mxu0 0
        %1262 = vmatpush1.bf16.xpose.msra.mxu0 0
        %1263 = vmatprep.subr.bf16.mxu0 0
        %1264 = vmatpush1.bf16.xpose.msra.mxu0 0
        %1265 = vmatprep.subr.bf16.mxu0 0
        %1266 = vmatpush1.bf16.xpose.msra.mxu0 0
        %1267 = vmatprep.mubr.bf16.mxu0 0
        %1268 = vmatmul.mubr.bf16.gmra.mrb[0].mxu0 %v1218
        %v1269 = vpop.f32.mrb[0].mxu0
        %v1270 = vadd.f32 0.0, %v1269
        %v1271 = vpop.f32.mrb[0].mxu0
        %v1272 = vpop.f32.mrb[0].mxu0
        %v1273 = vadd.f32 0.0, %v1272
        %v1274 = vpop.f32.mrb[0].mxu0
        %1275 = vmatprep.mubr.bf16.mxu0 0
        %1276 = vmatmul.mubr.bf16.gmra.mrb[0].mxu0 %v1221
        %v1277 = vpop.f32.mrb[0].mxu0
        %v1278 = vadd.f32 0.0, %v1277
        %v1279 = vpop.f32.mrb[0].mxu0
        %v1280 = vpop.f32.mrb[0].mxu0
        %v1281 = vadd.f32 0.0, %v1280
        %v1282 = vpop.f32.mrb[0].mxu0
        %1283 = vdwg.mxu0
        %v1285 = vsel %vm1145, %v1179, 0
        %v1288 = vsel %vm1145, %v1180, 0
        %v1291 = vsel %vm1145, %v1189, 0
        %v1294 = vsel %vm1145, %v1190, 0
        %v1297 = vsel %vm1145, %v1191, 0
        %v1300 = vsel %vm1145, %v1192, 0
        %1302 = vmatprep.subr.bf16.mxu0 0
        %1303 = vmatpush1.bf16.xpose.msra.mxu0 %v1291
        %1304 = vmatprep.subr.bf16.mxu0 0
        %1305 = vmatpush1.bf16.xpose.msra.mxu0 %v1294
        %1306 = vmatprep.subr.bf16.mxu0 0
        %1307 = vmatpush1.bf16.xpose.msra.mxu0 %v1297
        %1308 = vmatprep.subr.bf16.mxu0 0
        %1309 = vmatpush1.bf16.xpose.msra.mxu0 %v1300
        %1310 = vmatprep.subr.bf16.mxu0 0
        %1311 = vmatpush1.bf16.xpose.msra.mxu0 0
        %1312 = vmatprep.subr.bf16.mxu0 0
        %1313 = vmatpush1.bf16.xpose.msra.mxu0 0
        %1314 = vmatprep.subr.bf16.mxu0 0
        %1315 = vmatpush1.bf16.xpose.msra.mxu0 0
        %1316 = vmatprep.subr.bf16.mxu0 0
        %1317 = vmatpush1.bf16.xpose.msra.mxu0 0
        %1318 = vmatprep.subr.bf16.mxu0 0
        %1319 = vmatpush1.bf16.xpose.msra.mxu0 0
        %1320 = vmatprep.subr.bf16.mxu0 0
        %1321 = vmatpush1.bf16.xpose.msra.mxu0 0
        %1322 = vmatprep.subr.bf16.mxu0 0
        %1323 = vmatpush1.bf16.xpose.msra.mxu0 0
        %1324 = vmatprep.subr.bf16.mxu0 0
        %1325 = vmatpush1.bf16.xpose.msra.mxu0 0
        %1326 = vmatprep.subr.bf16.mxu0 0
        %1327 = vmatpush1.bf16.xpose.msra.mxu0 0
        %1328 = vmatprep.subr.bf16.mxu0 0
        %1329 = vmatpush1.bf16.xpose.msra.mxu0 0
        %1330 = vmatprep.subr.bf16.mxu0 0
        %1331 = vmatpush1.bf16.xpose.msra.mxu0 0
        %1332 = vmatprep.subr.bf16.mxu0 0
        %1333 = vmatpush1.bf16.xpose.msra.mxu0 0
        %1334 = vmatprep.mubr.bf16.mxu0 0
        %1335 = vmatmul.mubr.bf16.gmra.mrb[0].mxu0 %v1285
        %v1336 = vpop.f32.mrb[0].mxu0
        %v1337 = vadd.f32 0.0, %v1336
        %v1338 = vpop.f32.mrb[0].mxu0
        %v1339 = vpop.f32.mrb[0].mxu0
        %v1340 = vadd.f32 0.0, %v1339
        %v1341 = vpop.f32.mrb[0].mxu0
        %1342 = vmatprep.mubr.bf16.mxu0 0
        %1343 = vmatmul.mubr.bf16.gmra.mrb[0].mxu0 %v1288
        %v1344 = vpop.f32.mrb[0].mxu0
        %v1345 = vadd.f32 0.0, %v1344
        %v1346 = vpop.f32.mrb[0].mxu0
        %v1347 = vpop.f32.mrb[0].mxu0
        %v1348 = vadd.f32 0.0, %v1347
        %v1349 = vpop.f32.mrb[0].mxu0
        %1350 = vdwg.mxu0
        %v1352 = vsel %vm1145, %v1181, 0
        %v1355 = vsel %vm1145, %v1182, 0
        %v1358 = vsel %vm1145, %v1193, 0
        %v1361 = vsel %vm1145, %v1194, 0
        %v1364 = vsel %vm1145, %v1195, 0
        %v1367 = vsel %vm1145, %v1196, 0
        %1369 = vmatprep.subr.bf16.mxu0 0
        %1370 = vmatpush1.bf16.xpose.msra.mxu0 %v1358
        %1371 = vmatprep.subr.bf16.mxu0 0
        %1372 = vmatpush1.bf16.xpose.msra.mxu0 %v1361
        %1373 = vmatprep.subr.bf16.mxu0 0
        %1374 = vmatpush1.bf16.xpose.msra.mxu0 %v1364
        %1375 = vmatprep.subr.bf16.mxu0 0
        %1376 = vmatpush1.bf16.xpose.msra.mxu0 %v1367
        %1377 = vmatprep.subr.bf16.mxu0 0
        %1378 = vmatpush1.bf16.xpose.msra.mxu0 0
        %1379 = vmatprep.subr.bf16.mxu0 0
        %1380 = vmatpush1.bf16.xpose.msra.mxu0 0
        %1381 = vmatprep.subr.bf16.mxu0 0
        %1382 = vmatpush1.bf16.xpose.msra.mxu0 0
        %1383 = vmatprep.subr.bf16.mxu0 0
        %1384 = vmatpush1.bf16.xpose.msra.mxu0 0
        %1385 = vmatprep.subr.bf16.mxu0 0
        %1386 = vmatpush1.bf16.xpose.msra.mxu0 0
        %1387 = vmatprep.subr.bf16.mxu0 0
        %1388 = vmatpush1.bf16.xpose.msra.mxu0 0
        %1389 = vmatprep.subr.bf16.mxu0 0
        %1390 = vmatpush1.bf16.xpose.msra.mxu0 0
        %1391 = vmatprep.subr.bf16.mxu0 0
        %1392 = vmatpush1.bf16.xpose.msra.mxu0 0
        %1393 = vmatprep.subr.bf16.mxu0 0
        %1394 = vmatpush1.bf16.xpose.msra.mxu0 0
        %1395 = vmatprep.subr.bf16.mxu0 0
        %1396 = vmatpush1.bf16.xpose.msra.mxu0 0
        %1397 = vmatprep.subr.bf16.mxu0 0
        %1398 = vmatpush1.bf16.xpose.msra.mxu0 0
        %1399 = vmatprep.subr.bf16.mxu0 0
        %1400 = vmatpush1.bf16.xpose.msra.mxu0 0
        %1401 = vmatprep.mubr.bf16.mxu0 0
        %1402 = vmatmul.mubr.bf16.gmra.mrb[0].mxu0 %v1352
        %v1403 = vpop.f32.mrb[0].mxu0
        %v1404 = vadd.f32 0.0, %v1403
        %v1405 = vpop.f32.mrb[0].mxu0
        %v1406 = vpop.f32.mrb[0].mxu0
        %v1407 = vadd.f32 0.0, %v1406
        %v1408 = vpop.f32.mrb[0].mxu0
        %1409 = vmatprep.mubr.bf16.mxu0 0
        %1410 = vmatmul.mubr.bf16.gmra.mrb[0].mxu0 %v1355
        %v1411 = vpop.f32.mrb[0].mxu0
        %v1412 = vadd.f32 0.0, %v1411
        %v1413 = vpop.f32.mrb[0].mxu0
        %v1414 = vpop.f32.mrb[0].mxu0
        %v1415 = vadd.f32 0.0, %v1414
        %v1416 = vpop.f32.mrb[0].mxu0
        %1417 = vdwg.mxu0
        %v1419 = vsel %vm1145, %v1183, 0
        %v1422 = vsel %vm1145, %v1184, 0
        %v1425 = vsel %vm1145, %v1197, 0
        %v1428 = vsel %vm1145, %v1198, 0
        %v1431 = vsel %vm1145, %v1199, 0
        %v1434 = vsel %vm1145, %v1200, 0
        %1436 = vmatprep.subr.bf16.mxu0 0
        %1437 = vmatpush1.bf16.xpose.msra.mxu0 %v1425
        %1438 = vmatprep.subr.bf16.mxu0 0
        %1439 = vmatpush1.bf16.xpose.msra.mxu0 %v1428
        %1440 = vmatprep.subr.bf16.mxu0 0
        %1441 = vmatpush1.bf16.xpose.msra.mxu0 %v1431
        %1442 = vmatprep.subr.bf16.mxu0 0
        %1443 = vmatpush1.bf16.xpose.msra.mxu0 %v1434
        %1444 = vmatprep.subr.bf16.mxu0 0
        %1445 = vmatpush1.bf16.xpose.msra.mxu0 0
        %1446 = vmatprep.subr.bf16.mxu0 0
        %1447 = vmatpush1.bf16.xpose.msra.mxu0 0
        %1448 = vmatprep.subr.bf16.mxu0 0
        %1449 = vmatpush1.bf16.xpose.msra.mxu0 0
        %1450 = vmatprep.subr.bf16.mxu0 0
        %1451 = vmatpush1.bf16.xpose.msra.mxu0 0
        %1452 = vmatprep.subr.bf16.mxu0 0
        %1453 = vmatpush1.bf16.xpose.msra.mxu0 0
        %1454 = vmatprep.subr.bf16.mxu0 0
        %1455 = vmatpush1.bf16.xpose.msra.mxu0 0
        %1456 = vmatprep.subr.bf16.mxu0 0
        %1457 = vmatpush1.bf16.xpose.msra.mxu0 0
        %1458 = vmatprep.subr.bf16.mxu0 0
        %1459 = vmatpush1.bf16.xpose.msra.mxu0 0
        %1460 = vmatprep.subr.bf16.mxu0 0
        %1461 = vmatpush1.bf16.xpose.msra.mxu0 0
        %1462 = vmatprep.subr.bf16.mxu0 0
        %1463 = vmatpush1.bf16.xpose.msra.mxu0 0
        %1464 = vmatprep.subr.bf16.mxu0 0
        %1465 = vmatpush1.bf16.xpose.msra.mxu0 0
        %1466 = vmatprep.subr.bf16.mxu0 0
        %1467 = vmatpush1.bf16.xpose.msra.mxu0 0
        %1468 = vmatprep.mubr.bf16.mxu0 0
        %1469 = vmatmul.mubr.bf16.gmra.mrb[0].mxu0 %v1419
        %v1470 = vpop.f32.mrb[0].mxu0
        %v1471 = vadd.f32 0.0, %v1470
        %v1472 = vpop.f32.mrb[0].mxu0
        %v1473 = vpop.f32.mrb[0].mxu0
        %v1474 = vadd.f32 0.0, %v1473
        %v1475 = vpop.f32.mrb[0].mxu0
        %1476 = vmatprep.mubr.bf16.mxu0 0
        %1477 = vmatmul.mubr.bf16.gmra.mrb[0].mxu0 %v1422
        %v1478 = vpop.f32.mrb[0].mxu0
        %v1479 = vadd.f32 0.0, %v1478
        %v1480 = vpop.f32.mrb[0].mxu0
        %v1481 = vpop.f32.mrb[0].mxu0
        %v1482 = vadd.f32 0.0, %v1481
        %v1483 = vpop.f32.mrb[0].mxu0
        %1484 = vdwg.mxu0
        %vm1485 = vcmask 523264
        %v1486 = vsel %vm1485, %v1270, -inf
        %1487 = vmax.xlane.f32.xlu0 %v1486
        %v1488 = vpop.xlane.xlu0 %1487
        %v1489 = vsel %vm1485, %v1273, -inf
        %1490 = vmax.xlane.f32.xlu0 %v1489
        %v1491 = vpop.xlane.xlu0 %1490
        %v1492 = vsel %vm1485, %v1278, -inf
        %1493 = vmax.xlane.f32.xlu0 %v1492
        %v1494 = vpop.xlane.xlu0 %1493
        %v1495 = vsel %vm1485, %v1281, -inf
        %1496 = vmax.xlane.f32.xlu0 %v1495
        %v1497 = vpop.xlane.xlu0 %1496
        %v1498 = vsel %vm1485, %v1337, -inf
        %1499 = vmax.xlane.f32.xlu0 %v1498
        %v1500 = vpop.xlane.xlu0 %1499
        %v1501 = vsel %vm1485, %v1340, -inf
        %1502 = vmax.xlane.f32.xlu0 %v1501
        %v1503 = vpop.xlane.xlu0 %1502
        %v1504 = vsel %vm1485, %v1345, -inf
        %1505 = vmax.xlane.f32.xlu0 %v1504
        %v1506 = vpop.xlane.xlu0 %1505
        %v1507 = vsel %vm1485, %v1348, -inf
        %1508 = vmax.xlane.f32.xlu0 %v1507
        %v1509 = vpop.xlane.xlu0 %1508
        %v1510 = vsel %vm1485, %v1404, -inf
        %1511 = vmax.xlane.f32.xlu0 %v1510
        %v1512 = vpop.xlane.xlu0 %1511
        %v1513 = vsel %vm1485, %v1407, -inf
        %1514 = vmax.xlane.f32.xlu0 %v1513
        %v1515 = vpop.xlane.xlu0 %1514
        %v1516 = vsel %vm1485, %v1412, -inf
        %1517 = vmax.xlane.f32.xlu0 %v1516
        %v1518 = vpop.xlane.xlu0 %1517
        %v1519 = vsel %vm1485, %v1415, -inf
        %1520 = vmax.xlane.f32.xlu0 %v1519
        %v1521 = vpop.xlane.xlu0 %1520
        %v1522 = vsel %vm1485, %v1471, -inf
        %1523 = vmax.xlane.f32.xlu0 %v1522
        %v1524 = vpop.xlane.xlu0 %1523
        %v1525 = vsel %vm1485, %v1474, -inf
        %1526 = vmax.xlane.f32.xlu0 %v1525
        %v1527 = vpop.xlane.xlu0 %1526
        %v1528 = vsel %vm1485, %v1479, -inf
        %1529 = vmax.xlane.f32.xlu0 %v1528
        %v1530 = vpop.xlane.xlu0 %1529
        %v1531 = vsel %vm1485, %v1482, -inf
        %1532 = vmax.xlane.f32.xlu0 %v1531
        %v1533 = vpop.xlane.xlu0 %1532
        %v1534 = vsub.f32 -inf, %v1488
        %v1535 = vsub.f32 -inf, %v1491
        %v1536 = vsub.f32 -inf, %v1494
        %v1537 = vsub.f32 -inf, %v1497
        %v1538 = vsub.f32 -inf, %v1500
        %v1539 = vsub.f32 -inf, %v1503
        %v1540 = vsub.f32 -inf, %v1506
        %v1541 = vsub.f32 -inf, %v1509
        %v1542 = vsub.f32 -inf, %v1512
        %v1543 = vsub.f32 -inf, %v1515
        %v1544 = vsub.f32 -inf, %v1518
        %v1545 = vsub.f32 -inf, %v1521
        %v1546 = vsub.f32 -inf, %v1524
        %v1547 = vsub.f32 -inf, %v1527
        %v1548 = vsub.f32 -inf, %v1530
        %v1549 = vsub.f32 -inf, %v1533
        %v1550 = vmul.f32 %v1534, 1.442695
        %v1551 = vpow.pop %v1550
        %v1552 = vmul.f32 %v1535, 1.442695
        %v1553 = vpow.pop %v1552
        %v1554 = vmul.f32 %v1536, 1.442695
        %v1555 = vpow.pop %v1554
        %v1556 = vmul.f32 %v1537, 1.442695
        %v1557 = vpow.pop %v1556
        %v1558 = vmul.f32 %v1538, 1.442695
        %v1559 = vpow.pop %v1558
        %v1560 = vmul.f32 %v1539, 1.442695
        %v1561 = vpow.pop %v1560
        %v1562 = vmul.f32 %v1540, 1.442695
        %v1563 = vpow.pop %v1562
        %v1564 = vmul.f32 %v1541, 1.442695
        %v1565 = vpow.pop %v1564
        %v1566 = vmul.f32 %v1542, 1.442695
        %v1567 = vpow.pop %v1566
        %v1568 = vmul.f32 %v1543, 1.442695
        %v1569 = vpow.pop %v1568
        %v1570 = vmul.f32 %v1544, 1.442695
        %v1571 = vpow.pop %v1570
        %v1572 = vmul.f32 %v1545, 1.442695
        %v1573 = vpow.pop %v1572
        %v1574 = vmul.f32 %v1546, 1.442695
        %v1575 = vpow.pop %v1574
        %v1576 = vmul.f32 %v1547, 1.442695
        %v1577 = vpow.pop %v1576
        %v1578 = vmul.f32 %v1548, 1.442695
        %v1579 = vpow.pop %v1578
        %v1580 = vmul.f32 %v1549, 1.442695
        %v1581 = vpow.pop %v1580
        %v1582 = vsub.f32 %v1270, %v1488
        %v1583 = vsub.f32 %v1273, %v1491
        %v1584 = vsub.f32 %v1278, %v1494
        %v1585 = vsub.f32 %v1281, %v1497
        %v1586 = vsub.f32 %v1337, %v1500
        %v1587 = vsub.f32 %v1340, %v1503
        %v1588 = vsub.f32 %v1345, %v1506
        %v1589 = vsub.f32 %v1348, %v1509
        %v1590 = vsub.f32 %v1404, %v1512
        %v1591 = vsub.f32 %v1407, %v1515
        %v1592 = vsub.f32 %v1412, %v1518
        %v1593 = vsub.f32 %v1415, %v1521
        %v1594 = vsub.f32 %v1471, %v1524
        %v1595 = vsub.f32 %v1474, %v1527
        %v1596 = vsub.f32 %v1479, %v1530
        %v1597 = vsub.f32 %v1482, %v1533
        %v1598 = vmul.f32 %v1582, 1.442695
        %v1599 = vpow.pop %v1598
        %v1600 = vmul.f32 %v1583, 1.442695
        %v1601 = vpow.pop %v1600
        %v1602 = vmul.f32 %v1584, 1.442695
        %v1603 = vpow.pop %v1602
        %v1604 = vmul.f32 %v1585, 1.442695
        %v1605 = vpow.pop %v1604
        %v1606 = vmul.f32 %v1586, 1.442695
        %v1607 = vpow.pop %v1606
        %v1608 = vmul.f32 %v1587, 1.442695
        %v1609 = vpow.pop %v1608
        %v1610 = vmul.f32 %v1588, 1.442695
        %v1611 = vpow.pop %v1610
        %v1612 = vmul.f32 %v1589, 1.442695
        %v1613 = vpow.pop %v1612
        %v1614 = vmul.f32 %v1590, 1.442695
        %v1615 = vpow.pop %v1614
        %v1616 = vmul.f32 %v1591, 1.442695
        %v1617 = vpow.pop %v1616
        %v1618 = vmul.f32 %v1592, 1.442695
        %v1619 = vpow.pop %v1618
        %v1620 = vmul.f32 %v1593, 1.442695
        %v1621 = vpow.pop %v1620
        %v1622 = vmul.f32 %v1594, 1.442695
        %v1623 = vpow.pop %v1622
        %v1624 = vmul.f32 %v1595, 1.442695
        %v1625 = vpow.pop %v1624
        %v1626 = vmul.f32 %v1596, 1.442695
        %v1627 = vpow.pop %v1626
        %v1628 = vmul.f32 %v1597, 1.442695
        %v1629 = vpow.pop %v1628
        %v1630 = vmul.f32 %v1551, 0.0
        %v1631 = vmul.f32 %v1553, 0.0
        %v1632 = vmul.f32 %v1555, 0.0
        %v1633 = vmul.f32 %v1557, 0.0
        %v1634 = vmul.f32 %v1559, 0.0
        %v1635 = vmul.f32 %v1561, 0.0
        %v1636 = vmul.f32 %v1563, 0.0
        %v1637 = vmul.f32 %v1565, 0.0
        %v1638 = vmul.f32 %v1567, 0.0
        %v1639 = vmul.f32 %v1569, 0.0
        %v1640 = vmul.f32 %v1571, 0.0
        %v1641 = vmul.f32 %v1573, 0.0
        %v1642 = vmul.f32 %v1575, 0.0
        %v1643 = vmul.f32 %v1577, 0.0
        %v1644 = vmul.f32 %v1579, 0.0
        %v1645 = vmul.f32 %v1581, 0.0
        %v1646 = vsel %vm1485, %v1599, 0.0
        %1647 = vadd.xlane.f32.xlu0 %v1646
        %v1648 = vpop.xlane.xlu0 %1647
        %v1649 = vsel %vm1485, %v1601, 0.0
        %1650 = vadd.xlane.f32.xlu0 %v1649
        %v1651 = vpop.xlane.xlu0 %1650
        %v1652 = vsel %vm1485, %v1603, 0.0
        %1653 = vadd.xlane.f32.xlu0 %v1652
        %v1654 = vpop.xlane.xlu0 %1653
        %v1655 = vsel %vm1485, %v1605, 0.0
        %1656 = vadd.xlane.f32.xlu0 %v1655
        %v1657 = vpop.xlane.xlu0 %1656
        %v1658 = vsel %vm1485, %v1607, 0.0
        %1659 = vadd.xlane.f32.xlu0 %v1658
        %v1660 = vpop.xlane.xlu0 %1659
        %v1661 = vsel %vm1485, %v1609, 0.0
        %1662 = vadd.xlane.f32.xlu0 %v1661
        %v1663 = vpop.xlane.xlu0 %1662
        %v1664 = vsel %vm1485, %v1611, 0.0
        %1665 = vadd.xlane.f32.xlu0 %v1664
        %v1666 = vpop.xlane.xlu0 %1665
        %v1667 = vsel %vm1485, %v1613, 0.0
        %1668 = vadd.xlane.f32.xlu0 %v1667
        %v1669 = vpop.xlane.xlu0 %1668
        %v1670 = vsel %vm1485, %v1615, 0.0
        %1671 = vadd.xlane.f32.xlu0 %v1670
        %v1672 = vpop.xlane.xlu0 %1671
        %v1673 = vsel %vm1485, %v1617, 0.0
        %1674 = vadd.xlane.f32.xlu0 %v1673
        %v1675 = vpop.xlane.xlu0 %1674
        %v1676 = vsel %vm1485, %v1619, 0.0
        %1677 = vadd.xlane.f32.xlu0 %v1676
        %v1678 = vpop.xlane.xlu0 %1677
        %v1679 = vsel %vm1485, %v1621, 0.0
        %1680 = vadd.xlane.f32.xlu0 %v1679
        %v1681 = vpop.xlane.xlu0 %1680
        %v1682 = vsel %vm1485, %v1623, 0.0
        %1683 = vadd.xlane.f32.xlu0 %v1682
        %v1684 = vpop.xlane.xlu0 %1683
        %v1685 = vsel %vm1485, %v1625, 0.0
        %1686 = vadd.xlane.f32.xlu0 %v1685
        %v1687 = vpop.xlane.xlu0 %1686
        %v1688 = vsel %vm1485, %v1627, 0.0
        %1689 = vadd.xlane.f32.xlu0 %v1688
        %v1690 = vpop.xlane.xlu0 %1689
        %v1691 = vsel %vm1485, %v1629, 0.0
        %1692 = vadd.xlane.f32.xlu0 %v1691
        %v1693 = vpop.xlane.xlu0 %1692
        %v1694 = vadd.f32 %v1630, %v1648
        %v1695 = vadd.f32 %v1631, %v1651
        %v1696 = vadd.f32 %v1632, %v1654
        %v1697 = vadd.f32 %v1633, %v1657
        %v1698 = vadd.f32 %v1634, %v1660
        %v1699 = vadd.f32 %v1635, %v1663
        %v1700 = vadd.f32 %v1636, %v1666
        %v1701 = vadd.f32 %v1637, %v1669
        %v1702 = vadd.f32 %v1638, %v1672
        %v1703 = vadd.f32 %v1639, %v1675
        %v1704 = vadd.f32 %v1640, %v1678
        %v1705 = vadd.f32 %v1641, %v1681
        %v1706 = vadd.f32 %v1642, %v1684
        %v1707 = vadd.f32 %v1643, %v1687
        %v1708 = vadd.f32 %v1644, %v1690
        %v1709 = vadd.f32 %v1645, %v1693
        %v1710 = vpack.c.bf16 %v1601, %v1599
        %v1711 = vpack.c.bf16 %v1605, %v1603
        %v1712 = vpack.c.bf16 %v1609, %v1607
        %v1713 = vpack.c.bf16 %v1613, %v1611
        %v1714 = vpack.c.bf16 %v1617, %v1615
        %v1715 = vpack.c.bf16 %v1621, %v1619
        %v1716 = vpack.c.bf16 %v1625, %v1623
        %v1717 = vpack.c.bf16 %v1629, %v1627
        %v1719 = vsel %vm1485, %v1710, 0
        %v1722 = vsel %vm1485, %v1711, 0
        %1724 = vmatprep.subr.bf16.mxu0 0
        %1725 = vmatpush1.bf16.msra.mxu0 %v1201
        %1726 = vmatprep.subr.bf16.mxu0 0
        %1727 = vmatpush1.bf16.msra.mxu0 %v1202
        %1728 = vmatprep.subr.bf16.mxu0 0
        %1729 = vmatpush1.bf16.msra.mxu0 %v1203
        %1730 = vmatprep.subr.bf16.mxu0 0
        %1731 = vmatpush1.bf16.msra.mxu0 %v1204
        %1732 = vmatprep.subr.bf16.mxu0 0
        %1733 = vmatpush1.bf16.msra.mxu0 0
        %1734 = vmatprep.subr.bf16.mxu0 0
        %1735 = vmatpush1.bf16.msra.mxu0 0
        %1736 = vmatprep.subr.bf16.mxu0 0
        %1737 = vmatpush1.bf16.msra.mxu0 0
        %1738 = vmatprep.subr.bf16.mxu0 0
        %1739 = vmatpush1.bf16.msra.mxu0 0
        %1740 = vmatprep.subr.bf16.mxu0 0
        %1741 = vmatpush1.bf16.msra.mxu0 0
        %1742 = vmatprep.subr.bf16.mxu0 0
        %1743 = vmatpush1.bf16.msra.mxu0 0
        %1744 = vmatprep.subr.bf16.mxu0 0
        %1745 = vmatpush1.bf16.msra.mxu0 0
        %1746 = vmatprep.subr.bf16.mxu0 0
        %1747 = vmatpush1.bf16.msra.mxu0 0
        %1748 = vmatprep.subr.bf16.mxu0 0
        %1749 = vmatpush1.bf16.msra.mxu0 0
        %1750 = vmatprep.subr.bf16.mxu0 0
        %1751 = vmatpush1.bf16.msra.mxu0 0
        %1752 = vmatprep.subr.bf16.mxu0 0
        %1753 = vmatpush1.bf16.msra.mxu0 0
        %1754 = vmatprep.subr.bf16.mxu0 0
        %1755 = vmatpush1.bf16.msra.mxu0 0
        %1756 = vmatprep.mubr.bf16.mxu0 0
        %1757 = vmatmul.mubr.bf16.gmra.mrb[0].mxu0 %v1719
        %v1758 = vpop.f32.mrb[0].mxu0
        %v1759 = vadd.f32 0.0, %v1758
        %v1760 = vpop.f32.mrb[0].mxu0
        %v1761 = vpop.f32.mrb[0].mxu0
        %v1762 = vadd.f32 0.0, %v1761
        %v1763 = vpop.f32.mrb[0].mxu0
        %1764 = vmatprep.mubr.bf16.mxu0 0
        %1765 = vmatmul.mubr.bf16.gmra.mrb[0].mxu0 %v1722
        %v1766 = vpop.f32.mrb[0].mxu0
        %v1767 = vadd.f32 0.0, %v1766
        %v1768 = vpop.f32.mrb[0].mxu0
        %v1769 = vpop.f32.mrb[0].mxu0
        %v1770 = vadd.f32 0.0, %v1769
        %v1771 = vpop.f32.mrb[0].mxu0
        %1772 = vdwg.mxu0
        %v1774 = vsel %vm1485, %v1712, 0
        %v1777 = vsel %vm1485, %v1713, 0
        %1779 = vmatprep.subr.bf16.mxu0 0
        %1780 = vmatpush1.bf16.msra.mxu0 %v1205
        %1781 = vmatprep.subr.bf16.mxu0 0
        %1782 = vmatpush1.bf16.msra.mxu0 %v1206
        %1783 = vmatprep.subr.bf16.mxu0 0
        %1784 = vmatpush1.bf16.msra.mxu0 %v1207
        %1785 = vmatprep.subr.bf16.mxu0 0
        %1786 = vmatpush1.bf16.msra.mxu0 %v1208
        %1787 = vmatprep.subr.bf16.mxu0 0
        %1788 = vmatpush1.bf16.msra.mxu0 0
        %1789 = vmatprep.subr.bf16.mxu0 0
        %1790 = vmatpush1.bf16.msra.mxu0 0
        %1791 = vmatprep.subr.bf16.mxu0 0
        %1792 = vmatpush1.bf16.msra.mxu0 0
        %1793 = vmatprep.subr.bf16.mxu0 0
        %1794 = vmatpush1.bf16.msra.mxu0 0
        %1795 = vmatprep.subr.bf16.mxu0 0
        %1796 = vmatpush1.bf16.msra.mxu0 0
        %1797 = vmatprep.subr.bf16.mxu0 0
        %1798 = vmatpush1.bf16.msra.mxu0 0
        %1799 = vmatprep.subr.bf16.mxu0 0
        %1800 = vmatpush1.bf16.msra.mxu0 0
        %1801 = vmatprep.subr.bf16.mxu0 0
        %1802 = vmatpush1.bf16.msra.mxu0 0
        %1803 = vmatprep.subr.bf16.mxu0 0
        %1804 = vmatpush1.bf16.msra.mxu0 0
        %1805 = vmatprep.subr.bf16.mxu0 0
        %1806 = vmatpush1.bf16.msra.mxu0 0
        %1807 = vmatprep.subr.bf16.mxu0 0
        %1808 = vmatpush1.bf16.msra.mxu0 0
        %1809 = vmatprep.subr.bf16.mxu0 0
        %1810 = vmatpush1.bf16.msra.mxu0 0
        %1811 = vmatprep.mubr.bf16.mxu0 0
        %1812 = vmatmul.mubr.bf16.gmra.mrb[0].mxu0 %v1774
        %v1813 = vpop.f32.mrb[0].mxu0
        %v1814 = vadd.f32 0.0, %v1813
        %v1815 = vpop.f32.mrb[0].mxu0
        %v1816 = vpop.f32.mrb[0].mxu0
        %v1817 = vadd.f32 0.0, %v1816
        %v1818 = vpop.f32.mrb[0].mxu0
        %1819 = vmatprep.mubr.bf16.mxu0 0
        %1820 = vmatmul.mubr.bf16.gmra.mrb[0].mxu0 %v1777
        %v1821 = vpop.f32.mrb[0].mxu0
        %v1822 = vadd.f32 0.0, %v1821
        %v1823 = vpop.f32.mrb[0].mxu0
        %v1824 = vpop.f32.mrb[0].mxu0
        %v1825 = vadd.f32 0.0, %v1824
        %v1826 = vpop.f32.mrb[0].mxu0
        %1827 = vdwg.mxu0
        %v1829 = vsel %vm1485, %v1714, 0
        %v1832 = vsel %vm1485, %v1715, 0
        %1834 = vmatprep.subr.bf16.mxu0 0
        %1835 = vmatpush1.bf16.msra.mxu0 %v1209
        %1836 = vmatprep.subr.bf16.mxu0 0
        %1837 = vmatpush1.bf16.msra.mxu0 %v1210
        %1838 = vmatprep.subr.bf16.mxu0 0
        %1839 = vmatpush1.bf16.msra.mxu0 %v1211
        %1840 = vmatprep.subr.bf16.mxu0 0
        %1841 = vmatpush1.bf16.msra.mxu0 %v1212
        %1842 = vmatprep.subr.bf16.mxu0 0
        %1843 = vmatpush1.bf16.msra.mxu0 0
        %1844 = vmatprep.subr.bf16.mxu0 0
        %1845 = vmatpush1.bf16.msra.mxu0 0
        %1846 = vmatprep.subr.bf16.mxu0 0
        %1847 = vmatpush1.bf16.msra.mxu0 0
        %1848 = vmatprep.subr.bf16.mxu0 0
        %1849 = vmatpush1.bf16.msra.mxu0 0
        %1850 = vmatprep.subr.bf16.mxu0 0
        %1851 = vmatpush1.bf16.msra.mxu0 0
        %1852 = vmatprep.subr.bf16.mxu0 0
        %1853 = vmatpush1.bf16.msra.mxu0 0
        %1854 = vmatprep.subr.bf16.mxu0 0
        %1855 = vmatpush1.bf16.msra.mxu0 0
        %1856 = vmatprep.subr.bf16.mxu0 0
        %1857 = vmatpush1.bf16.msra.mxu0 0
        %1858 = vmatprep.subr.bf16.mxu0 0
        %1859 = vmatpush1.bf16.msra.mxu0 0
        %1860 = vmatprep.subr.bf16.mxu0 0
        %1861 = vmatpush1.bf16.msra.mxu0 0
        %1862 = vmatprep.subr.bf16.mxu0 0
        %1863 = vmatpush1.bf16.msra.mxu0 0
        %1864 = vmatprep.subr.bf16.mxu0 0
        %1865 = vmatpush1.bf16.msra.mxu0 0
        %1866 = vmatprep.mubr.bf16.mxu0 0
        %1867 = vmatmul.mubr.bf16.gmra.mrb[0].mxu0 %v1829
        %v1868 = vpop.f32.mrb[0].mxu0
        %v1869 = vadd.f32 0.0, %v1868
        %v1870 = vpop.f32.mrb[0].mxu0
        %v1871 = vpop.f32.mrb[0].mxu0
        %v1872 = vadd.f32 0.0, %v1871
        %v1873 = vpop.f32.mrb[0].mxu0
        %1874 = vmatprep.mubr.bf16.mxu0 0
        %1875 = vmatmul.mubr.bf16.gmra.mrb[0].mxu0 %v1832
        %v1876 = vpop.f32.mrb[0].mxu0
        %v1877 = vadd.f32 0.0, %v1876
        %v1878 = vpop.f32.mrb[0].mxu0
        %v1879 = vpop.f32.mrb[0].mxu0
        %v1880 = vadd.f32 0.0, %v1879
        %v1881 = vpop.f32.mrb[0].mxu0
        %1882 = vdwg.mxu0
        %v1884 = vsel %vm1485, %v1716, 0
        %v1887 = vsel %vm1485, %v1717, 0
        %1889 = vmatprep.subr.bf16.mxu0 0
        %1890 = vmatpush1.bf16.msra.mxu0 %v1213
        %1891 = vmatprep.subr.bf16.mxu0 0
        %1892 = vmatpush1.bf16.msra.mxu0 %v1214
        %1893 = vmatprep.subr.bf16.mxu0 0
        %1894 = vmatpush1.bf16.msra.mxu0 %v1215
        %1895 = vmatprep.subr.bf16.mxu0 0
        %1896 = vmatpush1.bf16.msra.mxu0 %v1216
        %1897 = vmatprep.subr.bf16.mxu0 0
        %1898 = vmatpush1.bf16.msra.mxu0 0
        %1899 = vmatprep.subr.bf16.mxu0 0
        %1900 = vmatpush1.bf16.msra.mxu0 0
        %1901 = vmatprep.subr.bf16.mxu0 0
        %1902 = vmatpush1.bf16.msra.mxu0 0
        %1903 = vmatprep.subr.bf16.mxu0 0
        %1904 = vmatpush1.bf16.msra.mxu0 0
        %1905 = vmatprep.subr.bf16.mxu0 0
        %1906 = vmatpush1.bf16.msra.mxu0 0
        %1907 = vmatprep.subr.bf16.mxu0 0
        %1908 = vmatpush1.bf16.msra.mxu0 0
        %1909 = vmatprep.subr.bf16.mxu0 0
        %1910 = vmatpush1.bf16.msra.mxu0 0
        %1911 = vmatprep.subr.bf16.mxu0 0
        %1912 = vmatpush1.bf16.msra.mxu0 0
        %1913 = vmatprep.subr.bf16.mxu0 0
        %1914 = vmatpush1.bf16.msra.mxu0 0
        %1915 = vmatprep.subr.bf16.mxu0 0
        %1916 = vmatpush1.bf16.msra.mxu0 0
        %1917 = vmatprep.subr.bf16.mxu0 0
        %1918 = vmatpush1.bf16.msra.mxu0 0
        %1919 = vmatprep.subr.bf16.mxu0 0
        %1920 = vmatpush1.bf16.msra.mxu0 0
        %1921 = vmatprep.mubr.bf16.mxu0 0
        %1922 = vmatmul.mubr.bf16.gmra.mrb[0].mxu0 %v1884
        %v1923 = vpop.f32.mrb[0].mxu0
        %v1924 = vadd.f32 0.0, %v1923
        %v1925 = vpop.f32.mrb[0].mxu0
        %v1926 = vpop.f32.mrb[0].mxu0
        %v1927 = vadd.f32 0.0, %v1926
        %v1928 = vpop.f32.mrb[0].mxu0
        %1929 = vmatprep.mubr.bf16.mxu0 0
        %1930 = vmatmul.mubr.bf16.gmra.mrb[0].mxu0 %v1887
        %v1931 = vpop.f32.mrb[0].mxu0
        %v1932 = vadd.f32 0.0, %v1931
        %v1933 = vpop.f32.mrb[0].mxu0
        %v1934 = vpop.f32.mrb[0].mxu0
        %v1935 = vadd.f32 0.0, %v1934
        %v1936 = vpop.f32.mrb[0].mxu0
        %1937 = vdwg.mxu0
        %v1938 = vadd.f32 %v1630, %v1759
        %v1939 = vadd.f32 %v1631, %v1762
        %v1940 = vadd.f32 %v1632, %v1767
        %v1941 = vadd.f32 %v1633, %v1770
        %v1942 = vadd.f32 %v1634, %v1814
        %v1943 = vadd.f32 %v1635, %v1817
        %v1944 = vadd.f32 %v1636, %v1822
        %v1945 = vadd.f32 %v1637, %v1825
        %v1946 = vadd.f32 %v1638, %v1869
        %v1947 = vadd.f32 %v1639, %v1872
        %v1948 = vadd.f32 %v1640, %v1877
        %v1949 = vadd.f32 %v1641, %v1880
        %v1950 = vadd.f32 %v1642, %v1924
        %v1951 = vadd.f32 %v1643, %v1927
        %v1952 = vadd.f32 %v1644, %v1932
        %v1953 = vadd.f32 %v1645, %v1935
        %v1954 = vrcp.pop %v1694
        %v1955 = vrcp.pop %v1695
        %v1956 = vrcp.pop %v1696
        %v1957 = vrcp.pop %v1697
        %v1958 = vrcp.pop %v1698
        %v1959 = vrcp.pop %v1699
        %v1960 = vrcp.pop %v1700
        %v1961 = vrcp.pop %v1701
        %v1962 = vrcp.pop %v1702
        %v1963 = vrcp.pop %v1703
        %v1964 = vrcp.pop %v1704
        %v1965 = vrcp.pop %v1705
        %v1966 = vrcp.pop %v1706
        %v1967 = vrcp.pop %v1707
        %v1968 = vrcp.pop %v1708
        %v1969 = vrcp.pop %v1709
        %v1970 = vmul.f32 %v1938, %v1954
        %v1971 = vmul.f32 %v1939, %v1955
        %v1972 = vmul.f32 %v1940, %v1956
        %v1973 = vmul.f32 %v1941, %v1957
        %v1974 = vmul.f32 %v1942, %v1958
        %v1975 = vmul.f32 %v1943, %v1959
        %v1976 = vmul.f32 %v1944, %v1960
        %v1977 = vmul.f32 %v1945, %v1961
        %v1978 = vmul.f32 %v1946, %v1962
        %v1979 = vmul.f32 %v1947, %v1963
        %v1980 = vmul.f32 %v1948, %v1964
        %v1981 = vmul.f32 %v1949, %v1965
        %v1982 = vmul.f32 %v1950, %v1966
        %v1983 = vmul.f32 %v1951, %v1967
        %v1984 = vmul.f32 %v1952, %v1968
        %v1985 = vmul.f32 %v1953, %v1969
        %v1986 = vpack.c.bf16 %v1971, %v1970
        %v1987 = vpack.c.bf16 %v1973, %v1972
        %v1988 = vpack.c.bf16 %v1975, %v1974
        %v1989 = vpack.c.bf16 %v1977, %v1976
        %v1990 = vpack.c.bf16 %v1979, %v1978
        %v1991 = vpack.c.bf16 %v1981, %v1980
        %v1992 = vpack.c.bf16 %v1983, %v1982
        %v1993 = vpack.c.bf16 %v1985, %v1984
        %1994 = vst.msk [vmem:[#allocation5] sm:$0xff] %vm1145, %v1986
        %1995 = vst.msk [vmem:[#allocation5 + $0x8] sm:$0xff] %vm1145, %v1987
        %1998 = vrot.lane.b32.xlu0 %v1988, 32
        %v1999 = vpop.permute.xlu0 %1998
        %2000 = vrot.lane.b32.xlu0 %v1989, 32
        %v2001 = vpop.permute.xlu0 %2000
        %vm2004 = vcmask 523520
        %2005 = vst.msk [vmem:[#allocation5] sm:$0xff] %vm2004, %v1999
        %2006 = vst.msk [vmem:[#allocation5 + $0x8] sm:$0xff] %vm2004, %v2001
        %2009 = vrot.lane.b32.xlu0 %v1990, 64
        %v2010 = vpop.permute.xlu0 %2009
        %2011 = vrot.lane.b32.xlu0 %v1991, 64
        %v2012 = vpop.permute.xlu0 %2011
        %vm2015 = vcmask 785920
        %2016 = vst.msk [vmem:[#allocation5] sm:$0xff] %vm2015, %v2010
        %2017 = vst.msk [vmem:[#allocation5 + $0x8] sm:$0xff] %vm2015, %v2012
        %2020 = vrot.lane.b32.xlu0 %v1992, 96
        %v2021 = vpop.permute.xlu0 %2020
        %2022 = vrot.lane.b32.xlu0 %v1993, 96
        %v2023 = vpop.permute.xlu0 %2022
        %vm2026 = vcmask 1048320
        %2027 = vst.msk [vmem:[#allocation5] sm:$0xff] %vm2026, %v2021
        %2028 = vst.msk [vmem:[#allocation5 + $0x8] sm:$0xff] %vm2026, %v2023
        %v2029 = vld [vmem:[#allocation5] sm:$0xff]
        %v2030 = vld [vmem:[#allocation5 + $0x8] sm:$0xff]
        %v2031 = vld [vmem:[#allocation14] sm:$0xf]
        %v2032 = vld [vmem:[#allocation14 + $0x4] sm:$0xf]
        %v2033 = vld [vmem:[#allocation14 + $0x8] sm:$0xf]
        %v2034 = vld [vmem:[#allocation14 + $0xc] sm:$0xf]
        %v2035 = vld [vmem:[#allocation14 + $0x10] sm:$0xf]
        %v2036 = vld [vmem:[#allocation14 + $0x14] sm:$0xf]
        %v2037 = vld [vmem:[#allocation14 + $0x18] sm:$0xf]
        %v2038 = vld [vmem:[#allocation14 + $0x1c] sm:$0xf]
        %v2039 = vld [vmem:[#allocation14 + $0x20] sm:$0xf]
        %v2040 = vld [vmem:[#allocation14 + $0x24] sm:$0xf]
        %v2041 = vld [vmem:[#allocation14 + $0x28] sm:$0xf]
        %v2042 = vld [vmem:[#allocation14 + $0x2c] sm:$0xf]
        %v2043 = vld [vmem:[#allocation14 + $0x30] sm:$0xf]
        %v2044 = vld [vmem:[#allocation14 + $0x34] sm:$0xf]
        %v2045 = vld [vmem:[#allocation14 + $0x38] sm:$0xf]
        %v2046 = vld [vmem:[#allocation14 + $0x3c] sm:$0xf]
        %v2047 = vld [vmem:[%s7] sm:$0x1]
        %v2049 = vlaneseq
        %v2050 = vshrl.u32 %v2049, 7
        %v2051 = vsub.s32 0, %v2050
        %v2052 = vrot.slane %v2047, %v2051
        %v2070 = vunpack.c.l.b16 %v2031
        %v2071 = vunpack.c.l.b16 %v2032
        %v2072 = vunpack.c.l.b16 %v2033
        %v2073 = vunpack.c.l.b16 %v2034
        %v2074 = vunpack.c.l.b16 %v2035
        %v2075 = vunpack.c.l.b16 %v2036
        %v2076 = vunpack.c.l.b16 %v2037
        %v2077 = vunpack.c.l.b16 %v2038
        %v2078 = vunpack.c.l.b16 %v2039
        %v2079 = vunpack.c.l.b16 %v2040
        %v2080 = vunpack.c.l.b16 %v2041
        %v2081 = vunpack.c.l.b16 %v2042
        %v2082 = vunpack.c.l.b16 %v2043
        %v2083 = vunpack.c.l.b16 %v2044
        %v2084 = vunpack.c.l.b16 %v2045
        %v2085 = vunpack.c.l.b16 %v2046
        %v2086 = vpack.c.b16 %v2071, %v2070
        %v2087 = vpack.c.b16 %v2073, %v2072
        %v2088 = vpack.c.b16 %v2075, %v2074
        %v2089 = vpack.c.b16 %v2077, %v2076
        %v2090 = vpack.c.b16 %v2079, %v2078
        %v2091 = vpack.c.b16 %v2081, %v2080
        %v2092 = vpack.c.b16 %v2083, %v2082
        %v2093 = vpack.c.b16 %v2085, %v2084
        %2102 = vmatprep.subr.bf16.mxu0 0
        %2103 = vmatpush1.bf16.msra.mxu0 %v2086
        %2104 = vmatprep.subr.bf16.mxu0 0
        %2105 = vmatpush1.bf16.msra.mxu0 %v2087
        %2106 = vmatprep.subr.bf16.mxu0 0
        %2107 = vmatpush1.bf16.msra.mxu0 %v2088
        %2108 = vmatprep.subr.bf16.mxu0 0
        %2109 = vmatpush1.bf16.msra.mxu0 %v2089
        %2110 = vmatprep.subr.bf16.mxu0 0
        %2111 = vmatpush1.bf16.msra.mxu0 %v2090
        %2112 = vmatprep.subr.bf16.mxu0 0
        %2113 = vmatpush1.bf16.msra.mxu0 %v2091
        %2114 = vmatprep.subr.bf16.mxu0 0
        %2115 = vmatpush1.bf16.msra.mxu0 %v2092
        %2116 = vmatprep.subr.bf16.mxu0 0
        %2117 = vmatpush1.bf16.msra.mxu0 %v2093
        %2118 = vmatprep.subr.bf16.mxu0 0
        %2119 = vmatpush1.bf16.msra.mxu0 0
        %2120 = vmatprep.subr.bf16.mxu0 0
        %2121 = vmatpush1.bf16.msra.mxu0 0
        %2122 = vmatprep.subr.bf16.mxu0 0
        %2123 = vmatpush1.bf16.msra.mxu0 0
        %2124 = vmatprep.subr.bf16.mxu0 0
        %2125 = vmatpush1.bf16.msra.mxu0 0
        %2126 = vmatprep.subr.bf16.mxu0 0
        %2127 = vmatpush1.bf16.msra.mxu0 0
        %2128 = vmatprep.subr.bf16.mxu0 0
        %2129 = vmatpush1.bf16.msra.mxu0 0
        %2130 = vmatprep.subr.bf16.mxu0 0
        %2131 = vmatpush1.bf16.msra.mxu0 0
        %2132 = vmatprep.subr.bf16.mxu0 0
        %2133 = vmatpush1.bf16.msra.mxu0 0
        %2134 = vmatprep.mubr.bf16.mxu0 0
        %2135 = vmatmul.mubr.bf16.gmra.mrb[0].mxu0 %v2029
        %v2136 = vpop.f32.mrb[0].mxu0
        %v2137 = vadd.f32 %v2052, %v2136
        %v2138 = vpop.f32.mrb[0].mxu0
        %v2139 = vpop.f32.mrb[0].mxu0
        %v2140 = vadd.f32 %v2052, %v2139
        %v2141 = vpop.f32.mrb[0].mxu0
        %2142 = vmatprep.mubr.bf16.mxu0 0
        %2143 = vmatmul.mubr.bf16.gmra.mrb[0].mxu0 %v2030
        %v2144 = vpop.f32.mrb[0].mxu0
        %v2145 = vadd.f32 %v2052, %v2144
        %v2146 = vpop.f32.mrb[0].mxu0
        %v2147 = vpop.f32.mrb[0].mxu0
        %v2148 = vadd.f32 %v2052, %v2147
        %v2149 = vpop.f32.mrb[0].mxu0
        %2150 = vdwg.mxu0
        %v2151 = vadd.f32 %v2137, %v1017
        %v2152 = vadd.f32 %v2140, %v1018
        %v2153 = vadd.f32 %v2145, %v1019
        %v2154 = vadd.f32 %v2148, %v1020
        %2155 = vadd.xlane.f32.xlu0 %v2151
        %v2156 = vpop.xlane.xlu0 %2155
        %2157 = vadd.xlane.f32.xlu0 %v2152
        %v2158 = vpop.xlane.xlu0 %2157
        %2159 = vadd.xlane.f32.xlu0 %v2153
        %v2160 = vpop.xlane.xlu0 %2159
        %2161 = vadd.xlane.f32.xlu0 %v2154
        %v2162 = vpop.xlane.xlu0 %2161
        %v2163 = vrcp.pop 128.0
        %v2164 = vmul.f32 %v2156, %v2163
        %v2165 = vmul.f32 %v2158, %v2163
        %v2166 = vmul.f32 %v2160, %v2163
        %v2167 = vmul.f32 %v2162, %v2163
        %v2168 = vsub.f32 %v2151, %v2164
        %v2169 = vsub.f32 %v2152, %v2165
        %v2170 = vsub.f32 %v2153, %v2166
        %v2171 = vsub.f32 %v2154, %v2167
        %v2172 = vmul.f32 %v2168, %v2168
        %v2173 = vmul.f32 %v2169, %v2169
        %v2174 = vmul.f32 %v2170, %v2170
        %v2175 = vmul.f32 %v2171, %v2171
        %2176 = vadd.xlane.f32.xlu0 %v2172
        %v2177 = vpop.xlane.xlu0 %2176
        %2178 = vadd.xlane.f32.xlu0 %v2173
        %v2179 = vpop.xlane.xlu0 %2178
        %2180 = vadd.xlane.f32.xlu0 %v2174
        %v2181 = vpop.xlane.xlu0 %2180
        %2182 = vadd.xlane.f32.xlu0 %v2175
        %v2183 = vpop.xlane.xlu0 %2182
        %v2184 = vmul.f32 %v2177, %v2163
        %v2185 = vmul.f32 %v2179, %v2163
        %v2186 = vmul.f32 %v2181, %v2163
        %v2187 = vmul.f32 %v2183, %v2163
        %v2188 = vadd.f32 %v2184, 1e-05
        %v2189 = vadd.f32 %v2185, 1e-05
        %v2190 = vadd.f32 %v2186, 1e-05
        %v2191 = vadd.f32 %v2187, 1e-05
        %v2192 = vrsqrt.pop %v2188
        %v2193 = vrsqrt.pop %v2189
        %v2194 = vrsqrt.pop %v2190
        %v2195 = vrsqrt.pop %v2191
        %v2196 = vmul.f32 %v2168, %v2192
        %v2197 = vmul.f32 %v2169, %v2193
        %v2198 = vmul.f32 %v2170, %v2194
        %v2199 = vmul.f32 %v2171, %v2195
        %v2200 = vld [vmem:[%s8] sm:$0x1]
        %v2202 = vlaneseq
        %v2203 = vshrl.u32 %v2202, 7
        %v2204 = vsub.s32 0, %v2203
        %v2205 = vrot.slane %v2200, %v2204
        %v2207 = vmul.f32 %v2205, %v2196
        %v2208 = vmul.f32 %v2205, %v2197
        %v2209 = vmul.f32 %v2205, %v2198
        %v2210 = vmul.f32 %v2205, %v2199
        %v2211 = vld [vmem:[%s9] sm:$0x1]
        %v2213 = vlaneseq
        %v2214 = vshrl.u32 %v2213, 7
        %v2215 = vsub.s32 0, %v2214
        %v2216 = vrot.slane %v2211, %v2215
        %v2218 = vadd.f32 %v2207, %v2216
        %v2219 = vadd.f32 %v2208, %v2216
        %v2220 = vadd.f32 %v2209, %v2216
        %v2221 = vadd.f32 %v2210, %v2216
        %v2222 = vpack.c.bf16 %v2219, %v2218
        %v2223 = vpack.c.bf16 %v2221, %v2220
        %v2224 = vld [vmem:[#allocation15] sm:$0xff]
        %v2225 = vld [vmem:[#allocation15 + $0x8] sm:$0xff]
        %v2226 = vld [vmem:[#allocation15 + $0x10] sm:$0xff]
        %v2227 = vld [vmem:[#allocation15 + $0x18] sm:$0xff]
        %v2228 = vld [vmem:[#allocation15 + $0x20] sm:$0xff]
        %v2229 = vld [vmem:[#allocation15 + $0x28] sm:$0xff]
        %v2230 = vld [vmem:[#allocation15 + $0x30] sm:$0xff]
        %v2231 = vld [vmem:[#allocation15 + $0x38] sm:$0xff]
        %v2232 = vld [vmem:[#allocation15 + $0x40] sm:$0xff]
        %v2233 = vld [vmem:[#allocation15 + $0x48] sm:$0xff]
        %v2234 = vld [vmem:[#allocation15 + $0x50] sm:$0xff]
        %v2235 = vld [vmem:[#allocation15 + $0x58] sm:$0xff]
        %v2236 = vld [vmem:[#allocation15 + $0x60] sm:$0xff]
        %v2237 = vld [vmem:[#allocation15 + $0x68] sm:$0xff]
        %v2238 = vld [vmem:[#allocation15 + $0x70] sm:$0xff]
        %v2239 = vld [vmem:[#allocation15 + $0x78] sm:$0xff]
        %v2240 = vld [vmem:[%s11] sm:$0x3]
        %v2242 = vlaneseq
        %v2243 = vshrl.u32 %v2242, 7
        %v2244 = vsub.s32 0, %v2243
        %v2245 = vrot.slane %v2240, %v2244
        %v2246 = vlaneseq
        %v2247 = vshrl.u32 %v2246, 7
        %v2248 = vsub.s32 1, %v2247
        %v2249 = vrot.slane %v2240, %v2248
        %v2268 = vunpack.c.l.b16 %v2224
        %v2269 = vunpack.c.h.b16 %v2224
        %v2270 = vunpack.c.l.b16 %v2225
        %v2271 = vunpack.c.h.b16 %v2225
        %v2272 = vunpack.c.l.b16 %v2226
        %v2273 = vunpack.c.h.b16 %v2226
        %v2274 = vunpack.c.l.b16 %v2227
        %v2275 = vunpack.c.h.b16 %v2227
        %v2276 = vunpack.c.l.b16 %v2228
        %v2277 = vunpack.c.h.b16 %v2228
        %v2278 = vunpack.c.l.b16 %v2229
        %v2279 = vunpack.c.h.b16 %v2229
        %v2280 = vunpack.c.l.b16 %v2230
        %v2281 = vunpack.c.h.b16 %v2230
        %v2282 = vunpack.c.l.b16 %v2231
        %v2283 = vunpack.c.h.b16 %v2231
        %v2284 = vunpack.c.l.b16 %v2232
        %v2285 = vunpack.c.h.b16 %v2232
        %v2286 = vunpack.c.l.b16 %v2233
        %v2287 = vunpack.c.h.b16 %v2233
        %v2288 = vunpack.c.l.b16 %v2234
        %v2289 = vunpack.c.h.b16 %v2234
        %v2290 = vunpack.c.l.b16 %v2235
        %v2291 = vunpack.c.h.b16 %v2235
        %v2292 = vunpack.c.l.b16 %v2236
        %v2293 = vunpack.c.h.b16 %v2236
        %v2294 = vunpack.c.l.b16 %v2237
        %v2295 = vunpack.c.h.b16 %v2237
        %v2296 = vunpack.c.l.b16 %v2238
        %v2297 = vunpack.c.h.b16 %v2238
        %v2298 = vunpack.c.l.b16 %v2239
        %v2299 = vunpack.c.h.b16 %v2239
        %v2300 = vpack.c.b16 %v2270, %v2268
        %v2301 = vpack.c.b16 %v2271, %v2269
        %v2302 = vpack.c.b16 %v2274, %v2272
        %v2303 = vpack.c.b16 %v2275, %v2273
        %v2304 = vpack.c.b16 %v2278, %v2276
        %v2305 = vpack.c.b16 %v2279, %v2277
        %v2306 = vpack.c.b16 %v2282, %v2280
        %v2307 = vpack.c.b16 %v2283, %v2281
        %v2308 = vpack.c.b16 %v2286, %v2284
        %v2309 = vpack.c.b16 %v2287, %v2285
        %v2310 = vpack.c.b16 %v2290, %v2288
        %v2311 = vpack.c.b16 %v2291, %v2289
        %v2312 = vpack.c.b16 %v2294, %v2292
        %v2313 = vpack.c.b16 %v2295, %v2293
        %v2314 = vpack.c.b16 %v2298, %v2296
        %v2315 = vpack.c.b16 %v2299, %v2297
        %2332 = vmatprep.subr.bf16.mxu0 %v2301
        %2333 = vmatpush1.bf16.msra.mxu0 %v2300
        %2334 = vmatprep.subr.bf16.mxu0 %v2303
        %2335 = vmatpush1.bf16.msra.mxu0 %v2302
        %2336 = vmatprep.subr.bf16.mxu0 %v2305
        %2337 = vmatpush1.bf16.msra.mxu0 %v2304
        %2338 = vmatprep.subr.bf16.mxu0 %v2307
        %2339 = vmatpush1.bf16.msra.mxu0 %v2306
        %2340 = vmatprep.subr.bf16.mxu0 %v2309
        %2341 = vmatpush1.bf16.msra.mxu0 %v2308
        %2342 = vmatprep.subr.bf16.mxu0 %v2311
        %2343 = vmatpush1.bf16.msra.mxu0 %v2310
        %2344 = vmatprep.subr.bf16.mxu0 %v2313
        %2345 = vmatpush1.bf16.msra.mxu0 %v2312
        %2346 = vmatprep.subr.bf16.mxu0 %v2315
        %2347 = vmatpush1.bf16.msra.mxu0 %v2314
        %2348 = vmatprep.subr.bf16.mxu0 0
        %2349 = vmatpush1.bf16.msra.mxu0 0
        %2350 = vmatprep.subr.bf16.mxu0 0
        %2351 = vmatpush1.bf16.msra.mxu0 0
        %2352 = vmatprep.subr.bf16.mxu0 0
        %2353 = vmatpush1.bf16.msra.mxu0 0
        %2354 = vmatprep.subr.bf16.mxu0 0
        %2355 = vmatpush1.bf16.msra.mxu0 0
        %2356 = vmatprep.subr.bf16.mxu0 0
        %2357 = vmatpush1.bf16.msra.mxu0 0
        %2358 = vmatprep.subr.bf16.mxu0 0
        %2359 = vmatpush1.bf16.msra.mxu0 0
        %2360 = vmatprep.subr.bf16.mxu0 0
        %2361 = vmatpush1.bf16.msra.mxu0 0
        %2362 = vmatprep.subr.bf16.mxu0 0
        %2363 = vmatpush1.bf16.msra.mxu0 0
        %2364 = vmatprep.mubr.bf16.mxu0 0
        %2365 = vmatmul.mubr.bf16.gmra.mrb[0].mxu0 %v2222
        %v2366 = vpop.f32.mrb[0].mxu0
        %v2367 = vadd.f32 %v2245, %v2366
        %v2368 = vpop.f32.mrb[0].mxu0
        %v2369 = vadd.f32 %v2249, %v2368
        %v2370 = vpop.f32.mrb[0].mxu0
        %v2371 = vadd.f32 %v2245, %v2370
        %v2372 = vpop.f32.mrb[0].mxu0
        %v2373 = vadd.f32 %v2249, %v2372
        %2374 = vmatprep.mubr.bf16.mxu0 0
        %2375 = vmatmul.mubr.bf16.gmra.mrb[0].mxu0 %v2223
        %v2376 = vpop.f32.mrb[0].mxu0
        %v2377 = vadd.f32 %v2245, %v2376
        %v2378 = vpop.f32.mrb[0].mxu0
        %v2379 = vadd.f32 %v2249, %v2378
        %v2380 = vpop.f32.mrb[0].mxu0
        %v2381 = vadd.f32 %v2245, %v2380
        %v2382 = vpop.f32.mrb[0].mxu0
        %v2383 = vadd.f32 %v2249, %v2382
        %2384 = vdwg.mxu0
        %v2385 = vmax.f32 %v2367, 0.0
        %v2386 = vmax.f32 %v2369, 0.0
        %v2387 = vmax.f32 %v2371, 0.0
        %v2388 = vmax.f32 %v2373, 0.0
        %v2389 = vmax.f32 %v2377, 0.0
        %v2390 = vmax.f32 %v2379, 0.0
        %v2391 = vmax.f32 %v2381, 0.0
        %v2392 = vmax.f32 %v2383, 0.0
        %v2393 = vpack.c.bf16 %v2387, %v2385
        %v2394 = vpack.c.bf16 %v2388, %v2386
        %v2395 = vpack.c.bf16 %v2391, %v2389
        %v2396 = vpack.c.bf16 %v2392, %v2390
        %v2397 = vld [vmem:[#allocation17] sm:$0xf]
        %v2398 = vld [vmem:[#allocation17 + $0x4] sm:$0xf]
        %v2399 = vld [vmem:[#allocation17 + $0x8] sm:$0xf]
        %v2400 = vld [vmem:[#allocation17 + $0xc] sm:$0xf]
        %v2401 = vld [vmem:[#allocation17 + $0x10] sm:$0xf]
        %v2402 = vld [vmem:[#allocation17 + $0x14] sm:$0xf]
        %v2403 = vld [vmem:[#allocation17 + $0x18] sm:$0xf]
        %v2404 = vld [vmem:[#allocation17 + $0x1c] sm:$0xf]
        %v2405 = vld [vmem:[#allocation17 + $0x20] sm:$0xf]
        %v2406 = vld [vmem:[#allocation17 + $0x24] sm:$0xf]
        %v2407 = vld [vmem:[#allocation17 + $0x28] sm:$0xf]
        %v2408 = vld [vmem:[#allocation17 + $0x2c] sm:$0xf]
        %v2409 = vld [vmem:[#allocation17 + $0x30] sm:$0xf]
        %v2410 = vld [vmem:[#allocation17 + $0x34] sm:$0xf]
        %v2411 = vld [vmem:[#allocation17 + $0x38] sm:$0xf]
        %v2412 = vld [vmem:[#allocation17 + $0x3c] sm:$0xf]
        %v2413 = vld [vmem:[#allocation17 + $0x40] sm:$0xf]
        %v2414 = vld [vmem:[#allocation17 + $0x44] sm:$0xf]
        %v2415 = vld [vmem:[#allocation17 + $0x48] sm:$0xf]
        %v2416 = vld [vmem:[#allocation17 + $0x4c] sm:$0xf]
        %v2417 = vld [vmem:[#allocation17 + $0x50] sm:$0xf]
        %v2418 = vld [vmem:[#allocation17 + $0x54] sm:$0xf]
        %v2419 = vld [vmem:[#allocation17 + $0x58] sm:$0xf]
        %v2420 = vld [vmem:[#allocation17 + $0x5c] sm:$0xf]
        %v2421 = vld [vmem:[#allocation17 + $0x60] sm:$0xf]
        %v2422 = vld [vmem:[#allocation17 + $0x64] sm:$0xf]
        %v2423 = vld [vmem:[#allocation17 + $0x68] sm:$0xf]
        %v2424 = vld [vmem:[#allocation17 + $0x6c] sm:$0xf]
        %v2425 = vld [vmem:[#allocation17 + $0x70] sm:$0xf]
        %v2426 = vld [vmem:[#allocation17 + $0x74] sm:$0xf]
        %v2427 = vld [vmem:[#allocation17 + $0x78] sm:$0xf]
        %v2428 = vld [vmem:[#allocation17 + $0x7c] sm:$0xf]
        %v2429 = vld [vmem:[%s13] sm:$0x1]
        %v2431 = vlaneseq
        %v2432 = vshrl.u32 %v2431, 7
        %v2433 = vsub.s32 0, %v2432
        %v2434 = vrot.slane %v2429, %v2433
        %v2468 = vunpack.c.l.b16 %v2397
        %v2469 = vunpack.c.l.b16 %v2398
        %v2470 = vunpack.c.l.b16 %v2399
        %v2471 = vunpack.c.l.b16 %v2400
        %v2472 = vunpack.c.l.b16 %v2401
        %v2473 = vunpack.c.l.b16 %v2402
        %v2474 = vunpack.c.l.b16 %v2403
        %v2475 = vunpack.c.l.b16 %v2404
        %v2476 = vunpack.c.l.b16 %v2405
        %v2477 = vunpack.c.l.b16 %v2406
        %v2478 = vunpack.c.l.b16 %v2407
        %v2479 = vunpack.c.l.b16 %v2408
        %v2480 = vunpack.c.l.b16 %v2409
        %v2481 = vunpack.c.l.b16 %v2410
        %v2482 = vunpack.c.l.b16 %v2411
        %v2483 = vunpack.c.l.b16 %v2412
        %v2484 = vunpack.c.l.b16 %v2413
        %v2485 = vunpack.c.l.b16 %v2414
        %v2486 = vunpack.c.l.b16 %v2415
        %v2487 = vunpack.c.l.b16 %v2416
        %v2488 = vunpack.c.l.b16 %v2417
        %v2489 = vunpack.c.l.b16 %v2418
        %v2490 = vunpack.c.l.b16 %v2419
        %v2491 = vunpack.c.l.b16 %v2420
        %v2492 = vunpack.c.l.b16 %v2421
        %v2493 = vunpack.c.l.b16 %v2422
        %v2494 = vunpack.c.l.b16 %v2423
        %v2495 = vunpack.c.l.b16 %v2424
        %v2496 = vunpack.c.l.b16 %v2425
        %v2497 = vunpack.c.l.b16 %v2426
        %v2498 = vunpack.c.l.b16 %v2427
        %v2499 = vunpack.c.l.b16 %v2428
        %v2500 = vpack.c.b16 %v2469, %v2468
        %v2501 = vpack.c.b16 %v2471, %v2470
        %v2502 = vpack.c.b16 %v2473, %v2472
        %v2503 = vpack.c.b16 %v2475, %v2474
        %v2504 = vpack.c.b16 %v2477, %v2476
        %v2505 = vpack.c.b16 %v2479, %v2478
        %v2506 = vpack.c.b16 %v2481, %v2480
        %v2507 = vpack.c.b16 %v2483, %v2482
        %v2508 = vpack.c.b16 %v2485, %v2484
        %v2509 = vpack.c.b16 %v2487, %v2486
        %v2510 = vpack.c.b16 %v2489, %v2488
        %v2511 = vpack.c.b16 %v2491, %v2490
        %v2512 = vpack.c.b16 %v2493, %v2492
        %v2513 = vpack.c.b16 %v2495, %v2494
        %v2514 = vpack.c.b16 %v2497, %v2496
        %v2515 = vpack.c.b16 %v2499, %v2498
        %2532 = vmatprep.subr.bf16.mxu0 0
        %2533 = vmatpush1.bf16.msra.mxu0 %v2500
        %2534 = vmatprep.subr.bf16.mxu0 0
        %2535 = vmatpush1.bf16.msra.mxu0 %v2501
        %2536 = vmatprep.subr.bf16.mxu0 0
        %2537 = vmatpush1.bf16.msra.mxu0 %v2502
        %2538 = vmatprep.subr.bf16.mxu0 0
        %2539 = vmatpush1.bf16.msra.mxu0 %v2503
        %2540 = vmatprep.subr.bf16.mxu0 0
        %2541 = vmatpush1.bf16.msra.mxu0 %v2504
        %2542 = vmatprep.subr.bf16.mxu0 0
        %2543 = vmatpush1.bf16.msra.mxu0 %v2505
        %2544 = vmatprep.subr.bf16.mxu0 0
        %2545 = vmatpush1.bf16.msra.mxu0 %v2506
        %2546 = vmatprep.subr.bf16.mxu0 0
        %2547 = vmatpush1.bf16.msra.mxu0 %v2507
        %2548 = vmatprep.subr.bf16.mxu0 0
        %2549 = vmatpush1.bf16.msra.mxu0 %v2508
        %2550 = vmatprep.subr.bf16.mxu0 0
        %2551 = vmatpush1.bf16.msra.mxu0 %v2509
        %2552 = vmatprep.subr.bf16.mxu0 0
        %2553 = vmatpush1.bf16.msra.mxu0 %v2510
        %2554 = vmatprep.subr.bf16.mxu0 0
        %2555 = vmatpush1.bf16.msra.mxu0 %v2511
        %2556 = vmatprep.subr.bf16.mxu0 0
        %2557 = vmatpush1.bf16.msra.mxu0 %v2512
        %2558 = vmatprep.subr.bf16.mxu0 0
        %2559 = vmatpush1.bf16.msra.mxu0 %v2513
        %2560 = vmatprep.subr.bf16.mxu0 0
        %2561 = vmatpush1.bf16.msra.mxu0 %v2514
        %2562 = vmatprep.subr.bf16.mxu0 0
        %2563 = vmatpush1.bf16.msra.mxu0 %v2515
        %2564 = vmatprep.mubr.bf16.mxu0 %v2394
        %2565 = vmatmul.mubr.bf16.gmra.mrb[0].mxu0 %v2393
        %v2566 = vpop.f32.mrb[0].mxu0
        %v2567 = vadd.f32 %v2434, %v2566
        %v2568 = vpop.f32.mrb[0].mxu0
        %v2569 = vpop.f32.mrb[0].mxu0
        %v2570 = vadd.f32 %v2434, %v2569
        %v2571 = vpop.f32.mrb[0].mxu0
        %2572 = vmatprep.mubr.bf16.mxu0 %v2396
        %2573 = vmatmul.mubr.bf16.gmra.mrb[0].mxu0 %v2395
        %v2574 = vpop.f32.mrb[0].mxu0
        %v2575 = vadd.f32 %v2434, %v2574
        %v2576 = vpop.f32.mrb[0].mxu0
        %v2577 = vpop.f32.mrb[0].mxu0
        %v2578 = vadd.f32 %v2434, %v2577
        %v2579 = vpop.f32.mrb[0].mxu0
        %2580 = vdwg.mxu0
        %v2581 = vadd.f32 %v2567, %v2218
        %v2582 = vadd.f32 %v2570, %v2219
        %v2583 = vadd.f32 %v2575, %v2220
        %v2584 = vadd.f32 %v2578, %v2221
        %2585 = vadd.xlane.f32.xlu0 %v2581
        %v2586 = vpop.xlane.xlu0 %2585
        %2587 = vadd.xlane.f32.xlu0 %v2582
        %v2588 = vpop.xlane.xlu0 %2587
        %2589 = vadd.xlane.f32.xlu0 %v2583
        %v2590 = vpop.xlane.xlu0 %2589
        %2591 = vadd.xlane.f32.xlu0 %v2584
        %v2592 = vpop.xlane.xlu0 %2591
        %v2593 = vmul.f32 %v2586, %v2163
        %v2594 = vmul.f32 %v2588, %v2163
        %v2595 = vmul.f32 %v2590, %v2163
        %v2596 = vmul.f32 %v2592, %v2163
        %v2597 = vsub.f32 %v2581, %v2593
        %v2598 = vsub.f32 %v2582, %v2594
        %v2599 = vsub.f32 %v2583, %v2595
        %v2600 = vsub.f32 %v2584, %v2596
        %v2601 = vmul.f32 %v2597, %v2597
        %v2602 = vmul.f32 %v2598, %v2598
        %v2603 = vmul.f32 %v2599, %v2599
        %v2604 = vmul.f32 %v2600, %v2600
        %2605 = vadd.xlane.f32.xlu0 %v2601
        %v2606 = vpop.xlane.xlu0 %2605
        %2607 = vadd.xlane.f32.xlu0 %v2602
        %v2608 = vpop.xlane.xlu0 %2607
        %2609 = vadd.xlane.f32.xlu0 %v2603
        %v2610 = vpop.xlane.xlu0 %2609
        %2611 = vadd.xlane.f32.xlu0 %v2604
        %v2612 = vpop.xlane.xlu0 %2611
        %v2613 = vmul.f32 %v2606, %v2163
        %v2614 = vmul.f32 %v2608, %v2163
        %v2615 = vmul.f32 %v2610, %v2163
        %v2616 = vmul.f32 %v2612, %v2163
        %v2617 = vadd.f32 %v2613, 1e-05
        %v2618 = vadd.f32 %v2614, 1e-05
        %v2619 = vadd.f32 %v2615, 1e-05
        %v2620 = vadd.f32 %v2616, 1e-05
        %v2621 = vrsqrt.pop %v2617
        %v2622 = vrsqrt.pop %v2618
        %v2623 = vrsqrt.pop %v2619
        %v2624 = vrsqrt.pop %v2620
        %v2625 = vmul.f32 %v2597, %v2621
        %v2626 = vmul.f32 %v2598, %v2622
        %v2627 = vmul.f32 %v2599, %v2623
        %v2628 = vmul.f32 %v2600, %v2624
        %v2629 = vld [vmem:[%s14] sm:$0x1]
        %v2631 = vlaneseq
        %v2632 = vshrl.u32 %v2631, 7
        %v2633 = vsub.s32 0, %v2632
        %v2634 = vrot.slane %v2629, %v2633
        %v2636 = vmul.f32 %v2634, %v2625
        %v2637 = vmul.f32 %v2634, %v2626
        %v2638 = vmul.f32 %v2634, %v2627
        %v2639 = vmul.f32 %v2634, %v2628
        %v2640 = vld [vmem:[%s15] sm:$0x1]
        %v2642 = vlaneseq
        %v2643 = vshrl.u32 %v2642, 7
        %v2644 = vsub.s32 0, %v2643
        %v2645 = vrot.slane %v2640, %v2644
        %v2647 = vadd.f32 %v2636, %v2645
        %v2648 = vadd.f32 %v2637, %v2645
        %v2649 = vadd.f32 %v2638, %v2645
        %v2650 = vadd.f32 %v2639, %v2645
        %2651 = vst [vmem:[%s669] sm:$0xff] %v2647
        %2652 = vst [vmem:[%s669 + $0x8] sm:$0xff] %v2648
        %2653 = vst [vmem:[%s669 + $0x10] sm:$0xff] %v2649
        %2654 = vst [vmem:[%s669 + $0x18] sm:$0xff] %v2650
        %s2655 = sand.u32 %s408, 1
        %s2656 = scalar_lea.sflag [#allocation8], %s2655
        %s2657 = sand.u32 %s408, 1
        %s2658 = smul.addr %s2657, 32
        %s2659 = scalar_lea.vmem [#allocation18], %s2658
        // Predicated region
        $region117: #{tpu_custom_call.1} parent=83 // pred_check
          %p2660 = pneg %p418
        $region118: #{tpu_custom_call.1} parent=83 // pred_check_branch
          %2662 = sbr.rel (%p2660) target = $region120
        $region119: #{tpu_custom_call.1} parent=83 // pred_region
          %s2663 = smul.u32 4, %s43
          %s2665 = ssub.s32 512, 512
          %2666 = vsyncadd %s2656, %s2665
          %s2667 = smul.addr %s42, 8
          %s2668 = sadd.s32 %s2663, %s2667
          %s2669 = smul.addr %s2668, 128
          %s2670 = scalar_lea.hbm %s16, %s2669
          %s2671 = sshll.u32 %s2659, 4
          %s2672 = int_to_ptr.vmem [resolvable:$true] %s2671
          %2677 = dma.vmem_to_hbm [thread:$0]  %s2672, 512, %s2670, %s2656, 128, 128, 8
        $region120: #{tpu_custom_call.1} parent=83 // pred_fallthru
          _
      $region84: #{tpu_custom_call.1} parent=5 // pred_fallthru
        _
      %p2678 = scmp.le.s32.totalorder 2, %s33
      // Predicated region
      $region121: #{tpu_custom_call.1} parent=5 // pred_check
        %p2679 = pneg %p2678
      $region122: #{tpu_custom_call.1} parent=5 // pred_check_branch
        %2681 = sbr.rel (%p2679) target = $region124
      $region123: #{tpu_custom_call.1} parent=5 // pred_region
        %s2682 = ssub.s32 %s33, 2
        // Predicated region
        $region125: #{tpu_custom_call.1} parent=123 // pred_check
          %p2683 = pneg %p424
        $region126: #{tpu_custom_call.1} parent=123 // pred_check_branch
          %2685 = sbr.rel (%p2683) target = $region128
        $region127: #{tpu_custom_call.1} parent=123 // pred_region
          %s2686 = sand.u32 %s409, 1
          %s2687 = scalar_lea.sflag [#allocation8], %s2686
          %s2688 = sand.u32 %s409, 1
          %s2689 = smul.addr %s2688, 32
          %s2690 = scalar_lea.vmem [#allocation18], %s2689
          %2691 = dma.done %s2687, 512
        $region128: #{tpu_custom_call.1} parent=123 // pred_fallthru
          _
      $region124: #{tpu_custom_call.1} parent=5 // pred_fallthru
        _
    $region6: #{tpu_custom_call.1} parent=1 // loop_footer
      %s37 = sadd.s32 1, %s33
    $region7: #{tpu_custom_call.1} parent=1 // loop_footer_branch
      %32 = sbr.rel target = $region3
    $region8: #{tpu_custom_call.1} parent=1 // loop_exit
      _
    %2692 = vsyncpa [#allocation7], 1
    %s2693 = scalar_lea.sflag [#allocation7], 1
    %2694 = vsyncpa %s2693, 1
    %2695 = vsyncpa [#allocation10], 1
    %s2696 = scalar_lea.sflag [#allocation10], 1
    %2697 = vsyncpa %s2696, 1
    %2698 = vsyncpa [#allocation13], 1
    %2699 = vsyncpa [#allocation16], 1
    %2700 = vsyncpa [#allocation8], 1
    %s2701 = scalar_lea.sflag [#allocation8], 1
    %2702 = vsyncpa %s2701, 1

</llo_original>
